<compile_context>
chip_gen: v5e
topology: v5e:2x2
jax: 0.10.0
libtpu: 0.0.40
codegen_flags: <defaults>
</compile_context>

<pallas_src>
import functools
import math

import jax
import jax.numpy as jnp
from jax.experimental import pallas as pl
from jax.experimental.pallas import tpu as pltpu

_BN_EPS = 1e-5
_LANE = 128
_VMEM_LIMIT = 48 * 1024 * 1024   # explicit scoped-VMEM budget (fits v7x 64 MiB)


# ---------------------------------------------------------------------------
# tiling helpers
# ---------------------------------------------------------------------------
def _round_up(x, m):
    return (x + m - 1) // m * m


def _m_tiling(M):
    """Pick a row tile that divides M (falls back to padded 128-tiles)."""
    for tm in (512, 256, 128, 64, 32, 16, 8):
        if M % tm == 0:
            return M, tm
    return _round_up(M, 128), 128


def _k_tiling(K):
    """Pad K to a sublane/tile multiple and pick the K tile."""
    Kp = _round_up(K, 8)
    if Kp <= 512:
        return Kp, Kp
    Kp = _round_up(K, 512)
    return Kp, 512


# ---------------------------------------------------------------------------
# Pallas kernels
# ---------------------------------------------------------------------------
def _gemm_affine_kernel(a_ref, b_ref, s_ref, t_ref, o_ref, acc_ref, *, relu):
    k = pl.program_id(2)

    @pl.when(k == 0)
    def _():
        acc_ref[...] = jnp.zeros_like(acc_ref)

    acc_ref[...] += jnp.dot(a_ref[...], b_ref[...],
                            preferred_element_type=jnp.float32)

    @pl.when(k == pl.num_programs(2) - 1)
    def _():
        y = acc_ref[...] * s_ref[...] + t_ref[...]
        if relu:
            y = jnp.maximum(y, 0.0)
        o_ref[...] = y.astype(o_ref.dtype)


def _gemm_affine_res_kernel(a_ref, b_ref, s_ref, t_ref, r_ref, o_ref, acc_ref,
                            *, relu):
    k = pl.program_id(2)

    @pl.when(k == 0)
    def _():
        acc_ref[...] = jnp.zeros_like(acc_ref)

    acc_ref[...] += jnp.dot(a_ref[...], b_ref[...],
                            preferred_element_type=jnp.float32)

    @pl.when(k == pl.num_programs(2) - 1)
    def _():
        y = (acc_ref[...] * s_ref[...] + t_ref[...]
             + r_ref[...].astype(jnp.float32))          # residual upcast in-kernel
        if relu:
            y = jnp.maximum(y, 0.0)
        o_ref[...] = y.astype(o_ref.dtype)


def _pool_linear_kernel(x_ref, w_ref, b_ref, o_ref):
    # fused global average pool + linear:  o = mean_s(x[n,s,:]) @ W + b
    pooled = jnp.mean(x_ref[...].astype(jnp.float32), axis=1)          # (N, Cp)
    acc = jnp.dot(pooled.astype(jnp.bfloat16), w_ref[...],
                  preferred_element_type=jnp.float32)
    o_ref[...] = acc + b_ref[...]


# ---------------------------------------------------------------------------
# GEMM wrapper: tiled, double-buffered, lane-dense output
# ---------------------------------------------------------------------------
def gemm_affine(a, b, scale, shift, residual=None, relu=True,
                out_dtype=jnp.bfloat16):
    """out = [relu]((a @ b) * scale + shift [+ residual])  — tiled Pallas GEMM.

    a: (M, Kp) bf16, b: (Kp, Np) bf16 with Np % 128 == 0,
    scale/shift: (1, Np) f32, residual: (M, Np) bf16 or None.
    """
    M, K = a.shape
    Kb, Np = b.shape
    assert K == Kb and Np % _LANE == 0
    Kp, tk = _k_tiling(K)
    assert Kp == K, "caller must pre-pad K to the tile multiple"
    Mp, tm = _m_tiling(M)
    tn = _LANE

    if Mp != M:                                          # rare fallback path
        a = jnp.pad(a, ((0, Mp - M), (0, 0)))
        if residual is not None:
            residual = jnp.pad(residual, ((0, Mp - M), (0, 0)))

    grid = (Mp // tm, Np // tn, Kp // tk)
    in_specs = [
        pl.BlockSpec((tm, tk), lambda i, j, k: (i, k)),
        pl.BlockSpec((tk, tn), lambda i, j, k: (k, j)),
        pl.BlockSpec((1, tn), lambda i, j, k: (0, j)),
        pl.BlockSpec((1, tn), lambda i, j, k: (0, j)),
    ]
    args = [a, b, scale, shift]
    if residual is None:
        kernel = functools.partial(_gemm_affine_kernel, relu=relu)
    else:
        kernel = functools.partial(_gemm_affine_res_kernel, relu=relu)
        in_specs.append(pl.BlockSpec((tm, tn), lambda i, j, k: (i, j)))
        args.append(residual)

    out = pl.pallas_call(
        kernel,
        out_shape=jax.ShapeDtypeStruct((Mp, Np), out_dtype),
        grid_spec=pltpu.PrefetchScalarGridSpec(
            num_scalar_prefetch=0,
            grid=grid,
            in_specs=in_specs,
            out_specs=pl.BlockSpec((tm, tn), lambda i, j, k: (i, j)),
            scratch_shapes=[pltpu.VMEM((tm, tn), jnp.float32)],
        ),
        compiler_params=pltpu.CompilerParams(
            dimension_semantics=("parallel", "parallel", "arbitrary"),
            vmem_limit_bytes=_VMEM_LIMIT,
        ),
    )(*args)
    if Mp != M:
        out = out[:M]
    return out


def pool_linear(x_nhwc, w, b):
    """Fused global average pool + final linear layer (one pallas_call)."""
    N, H, W, Cp = x_nhwc.shape
    x = x_nhwc.reshape(N, H * W, Cp)
    Np = w.shape[1]
    return pl.pallas_call(
        _pool_linear_kernel,
        out_shape=jax.ShapeDtypeStruct((N, Np), jnp.float32),
        grid=(1,),
        in_specs=[
            pl.BlockSpec((N, H * W, Cp), lambda i: (0, 0, 0)),
            pl.BlockSpec((Cp, Np), lambda i: (0, 0)),
            pl.BlockSpec((1, Np), lambda i: (0, 0)),
        ],
        out_specs=pl.BlockSpec((N, Np), lambda i: (0, 0)),
        compiler_params=pltpu.CompilerParams(
            dimension_semantics=("arbitrary",),
            vmem_limit_bytes=_VMEM_LIMIT,
        ),
    )(x, w, b)


# ---------------------------------------------------------------------------
# Glue: im2col patch extraction (plain JAX) + conv+BN wrapper
# ---------------------------------------------------------------------------
def _im2col(x, cin, kh, kw, stride, padding):
    N, H, W, _ = x.shape
    x = x[..., :cin]          # drop zero-padded channels before the kh*kw blow-up
    if padding:
        x = jnp.pad(x, ((0, 0), (padding, padding), (padding, padding), (0, 0)))
    Ho = (H + 2 * padding - kh) // stride + 1
    Wo = (W + 2 * padding - kw) // stride + 1
    cols = []
    for i in range(kh):
        for j in range(kw):
            cols.append(x[:, i:i + stride * Ho:stride,
                          j:j + stride * Wo:stride, :])
    patches = jnp.concatenate(cols, axis=-1)          # (N, Ho, Wo, kh*kw*cin)
    return patches.reshape(N * Ho * Wo, kh * kw * cin), N, Ho, Wo


def conv_bn(x, p, stride, relu, residual=None):
    a, N, Ho, Wo = _im2col(x, p['cin'], p['kh'], p['kw'], stride, p['pad'])
    K = a.shape[1]
    Kp, Np = p['w'].shape
    if Kp != K:
        a = jnp.pad(a, ((0, 0), (0, Kp - K)))           # zero-pad contraction dim
    res2d = None if residual is None else residual.reshape(N * Ho * Wo, Np)
    out = gemm_affine(a, p['w'], p['scale'], p['shift'],
                      residual=res2d, relu=relu)
    return out.reshape(N, Ho, Wo, Np)                   # channels stay 128-padded


# ---------------------------------------------------------------------------
# Parameter construction (deterministic kaiming-normal, BN defaults)
# ---------------------------------------------------------------------------
def make_conv_bn(key, cin, cout, k, pad):
    fan_in = cin * k * k
    std = math.sqrt(2.0 / fan_in)                       # kaiming_normal_, fan_in, relu
    w = jax.random.normal(key, (cout, cin, k, k), jnp.float32) * std   # torch layout
    w = jnp.transpose(w, (2, 3, 1, 0)).reshape(k * k * cin, cout)      # (K, Cout)
    gamma = jnp.ones((cout,), jnp.float32)              # BN defaults (weight=1, bias=0)
    beta = jnp.zeros((cout,), jnp.float32)
    rmean = jnp.zeros((cout,), jnp.float32)
    rvar = jnp.ones((cout,), jnp.float32)
    scale = gamma / jnp.sqrt(rvar + _BN_EPS)
    shift = beta - rmean * scale

    K = k * k * cin
    Kp, _ = _k_tiling(K)
    Np = _round_up(cout, _LANE)                         # lane-dense output width
    w = jnp.pad(w, ((0, Kp - K), (0, Np - cout))).astype(jnp.bfloat16)
    scale = jnp.pad(scale, (0, Np - cout)).reshape(1, Np).astype(jnp.float32)
    shift = jnp.pad(shift, (0, Np - cout)).reshape(1, Np).astype(jnp.float32)
    return dict(w=w, scale=scale, shift=shift, kh=k, kw=k, pad=pad,
                cin=cin, cout=cout)


def make_linear(key, cin, cout):
    kw_, kb = jax.random.split(key)
    std = math.sqrt(2.0 / cin)                          # kaiming_normal_ on (out, in)
    w = jax.random.normal(kw_, (cout, cin), jnp.float32) * std
    bound = 1.0 / math.sqrt(cin)
    b = jax.random.uniform(kb, (cout,), jnp.float32, -bound, bound)
    Cp = _round_up(cin, _LANE)
    Np = _round_up(cout, _LANE)
    w = jnp.pad(jnp.transpose(w), ((0, Cp - cin), (0, Np - cout)))      # (Cp, Np)
    b = jnp.pad(b, (0, Np - cout)).reshape(1, Np)
    return dict(w=w.astype(jnp.bfloat16), b=b.astype(jnp.float32), cout=cout)


def make_block(key, in_planes, planes, stride):
    k1, k2, k3 = jax.random.split(key, 3)
    p = dict(conv1=make_conv_bn(k1, in_planes, planes, 3, 1),
             conv2=make_conv_bn(k2, planes, planes, 3, 1),
             stride=stride)
    if stride != 1 or in_planes != planes:
        # projection shortcut: 1x1 conv (stride) + BN
        p['shortcut'] = make_conv_bn(k3, in_planes, planes, 1, 0)
    return p


def make_resnet_params(key, num_blocks, filter_sizes, num_classes=10):
    k_conv1, k_blocks, k_lin = jax.random.split(key, 3)
    params = dict(conv1=make_conv_bn(k_conv1, 3, filter_sizes[0], 3, 1))
    in_planes = filter_sizes[0]
    stages = []
    for li, (planes, nb, stride) in enumerate(
            zip(filter_sizes, num_blocks, (1, 2, 2))):
        blocks = []
        for bi in range(nb):
            s = stride if bi == 0 else 1
            bkey = jax.random.fold_in(k_blocks, li * 100 + bi)
            blocks.append(make_block(bkey, in_planes, planes, s))
            in_planes = planes                          # expansion = 1
        stages.append(blocks)
    params['stages'] = stages
    params['linear'] = make_linear(k_lin, filter_sizes[2], num_classes)
    return params


# ---------------------------------------------------------------------------
# Forward pass (mirrors ResNet.forward)
# ---------------------------------------------------------------------------
def block_forward(x, p):
    out = conv_bn(x, p['conv1'], p['stride'], relu=True)
    if 'shortcut' in p:
        sc = conv_bn(x, p['shortcut'], p['stride'], relu=False)
    else:
        sc = x
    # out = relu(bn2(conv2(out)) + shortcut(x)) — fused into one Pallas GEMM
    return conv_bn(out, p['conv2'], 1, relu=True, residual=sc)


def resnet_forward(x_nchw, params):
    x = jnp.transpose(x_nchw, (0, 2, 3, 1)).astype(jnp.bfloat16)  # NCHW -> NHWC bf16
    out = conv_bn(x, params['conv1'], stride=1, relu=True)        # relu(bn1(conv1(x)))
    for blocks in params['stages']:                               # layer1..layer3
        for bp in blocks:
            out = block_forward(out, bp)
    lin = params['linear']
    logits = pool_linear(out, lin['w'], lin['b'])                 # avg_pool + linear
    return logits[:, :lin['cout']]


if __name__ == "__main__":
    key = jax.random.PRNGKey(0)
    kx, kp = jax.random.split(key)
    # small, forward-consistent shapes: batch=2, RGB input 16x16
    x = jax.random.normal(kx, (2, 3, 16, 16), jnp.float32)   # NCHW like PyTorch
    params = make_resnet_params(kp, num_blocks=[1, 1, 1],
                                filter_sizes=[8, 16, 32], num_classes=10)
    logits = jax.jit(lambda inp: resnet_forward(inp, params))(x)
    jax.block_until_ready(logits)
    assert logits.shape == (2, 10) and logits.dtype == jnp.float32
    assert bool(jnp.all(jnp.isfinite(logits)))
    print("KERNEL_OK")
</pallas_src>

<mosaic_0001>
module attributes {stable_mosaic.version = 11 : i64} {
  func.func @_gemm_affine_kernel(%arg0: i32, %arg1: i32, %arg2: i32, %arg3: memref<512x32xbf16, #tpu.memory_space<vmem>>, %arg4: memref<32x128xbf16, #tpu.memory_space<vmem>>, %arg5: memref<1x128xf32, #tpu.memory_space<vmem>>, %arg6: memref<1x128xf32, #tpu.memory_space<vmem>>, %arg7: memref<512x128xbf16, #tpu.memory_space<vmem>>, %arg8: memref<512x128xf32, #tpu.memory_space<vmem>>) attributes {dimension_semantics = [#tpu.dimension_semantics<parallel>, #tpu.dimension_semantics<parallel>, #tpu.dimension_semantics<arbitrary>], iteration_bounds = array<i64: 1, 1, 1>, scalar_prefetch = 0 : i64, scratch_operands = 1 : i64, tpu.core_type = #tpu.core_type<tc>, window_params = [{transform_indices = @transform_0, window_bounds = array<i64: 512, 32>}, {transform_indices = @transform_1, window_bounds = array<i64: 32, 128>}, {transform_indices = @transform_2, window_bounds = array<i64: 1, 128>}, {transform_indices = @transform_3, window_bounds = array<i64: 1, 128>}, {transform_indices = @transform_4, window_bounds = array<i64: 512, 128>}]} {
    %c0_i32 = arith.constant 0 : i32
    %0 = arith.cmpi eq, %arg2, %c0_i32 : i32
    %1 = arith.extui %0 : i1 to i32
    %c0_i32_0 = arith.constant 0 : i32
    %2 = arith.cmpi ne, %1, %c0_i32_0 : i32
    scf.if %2 {
      %cst_10 = arith.constant 0.000000e+00 : f32
      %12 = vector.broadcast %cst_10 : f32 to vector<512x128xf32>
      %c0_11 = arith.constant 0 : index
      %c0_12 = arith.constant 0 : index
      %13 = vector.load %arg8[%c0_11, %c0_12] : memref<512x128xf32, #tpu.memory_space<vmem>>, vector<512x128xf32>
      tpu.vector_store %arg8[%c0_11, %c0_12], %12 {strides = array<i32>} : memref<512x128xf32, #tpu.memory_space<vmem>>, vector<512x128xf32>,
    } else {
    }
    %c0 = arith.constant 0 : index
    %c0_1 = arith.constant 0 : index
    %3 = vector.load %arg8[%c0, %c0_1] : memref<512x128xf32, #tpu.memory_space<vmem>>, vector<512x128xf32>
    %c0_2 = arith.constant 0 : index
    %c0_3 = arith.constant 0 : index
    %4 = vector.load %arg3[%c0_2, %c0_3] : memref<512x32xbf16, #tpu.memory_space<vmem>>, vector<512x32xbf16>
    %c0_4 = arith.constant 0 : index
    %c0_5 = arith.constant 0 : index
    %5 = vector.load %arg4[%c0_4, %c0_5] : memref<32x128xbf16, #tpu.memory_space<vmem>>, vector<32x128xbf16>
    %cst = arith.constant dense<0.000000e+00> : vector<512x128xf32>
    %6 = tpu.matmul %4, %5, %cst {dimension_numbers = #tpu.dot_dimension_numbers<[1], [0], [0], [1], [0, 0, 1, 1], [], []>} : vector<512x32xbf16>, vector<32x128xbf16>, vector<512x128xf32> -> vector<512x128xf32>
    %7 = arith.addf %3, %6 : vector<512x128xf32>
    %c0_6 = arith.constant 0 : index
    %c0_7 = arith.constant 0 : index
    %8 = vector.load %arg8[%c0_6, %c0_7] : memref<512x128xf32, #tpu.memory_space<vmem>>, vector<512x128xf32>
    tpu.vector_store %arg8[%c0_6, %c0_7], %7 {strides = array<i32>} : memref<512x128xf32, #tpu.memory_space<vmem>>, vector<512x128xf32>,
    %c0_i32_8 = arith.constant 0 : i32
    %9 = arith.cmpi eq, %arg2, %c0_i32_8 : i32
    %10 = arith.extui %9 : i1 to i32
    %c0_i32_9 = arith.constant 0 : i32
    %11 = arith.cmpi ne, %10, %c0_i32_9 : i32
    scf.if %11 {
      %c0_10 = arith.constant 0 : index
      %c0_11 = arith.constant 0 : index
      %12 = vector.load %arg8[%c0_10, %c0_11] : memref<512x128xf32, #tpu.memory_space<vmem>>, vector<512x128xf32>
      %c0_12 = arith.constant 0 : index
      %c0_13 = arith.constant 0 : index
      %13 = vector.load %arg5[%c0_12, %c0_13] : memref<1x128xf32, #tpu.memory_space<vmem>>, vector<1x128xf32>
      %14 = vector.broadcast %13 : vector<1x128xf32> to vector<512x128xf32>
      %15 = arith.mulf %12, %14 : vector<512x128xf32>
      %c0_14 = arith.constant 0 : index
      %c0_15 = arith.constant 0 : index
      %16 = vector.load %arg6[%c0_14, %c0_15] : memref<1x128xf32, #tpu.memory_space<vmem>>, vector<1x128xf32>
      %17 = vector.broadcast %16 : vector<1x128xf32> to vector<512x128xf32>
      %18 = arith.addf %15, %17 : vector<512x128xf32>
      %cst_16 = arith.constant 0.000000e+00 : f32
      %19 = vector.broadcast %cst_16 : f32 to vector<512x128xf32>
      %20 = arith.maximumf %18, %19 : vector<512x128xf32>
      %21 = arith.truncf %20 : vector<512x128xf32> to vector<512x128xbf16>
      %c0_17 = arith.constant 0 : index
      %c0_18 = arith.constant 0 : index
      %22 = vector.load %arg7[%c0_17, %c0_18] : memref<512x128xbf16, #tpu.memory_space<vmem>>, vector<512x128xbf16>
      tpu.vector_store %arg7[%c0_17, %c0_18], %21 {strides = array<i32>} : memref<512x128xbf16, #tpu.memory_space<vmem>>, vector<512x128xbf16>,
    } else {
    }
    return
  }
  func.func @transform_0(%arg0: i32, %arg1: i32, %arg2: i32) -> (i32, i32) {
    %c0_i32 = arith.constant 0 : i32
    return %arg0, %arg2 : i32, i32
  }
  func.func @transform_1(%arg0: i32, %arg1: i32, %arg2: i32) -> (i32, i32) {
    %c0_i32 = arith.constant 0 : i32
    return %arg2, %arg1 : i32, i32
  }
  func.func @transform_2(%arg0: i32, %arg1: i32, %arg2: i32) -> (i32, i32) {
    %c0_i32 = arith.constant 0 : i32
    %c0_i32_0 = arith.constant 0 : i32
    return %c0_i32, %arg1 : i32, i32
  }
  func.func @transform_3(%arg0: i32, %arg1: i32, %arg2: i32) -> (i32, i32) {
    %c0_i32 = arith.constant 0 : i32
    %c0_i32_0 = arith.constant 0 : i32
    return %c0_i32, %arg1 : i32, i32
  }
  func.func @transform_4(%arg0: i32, %arg1: i32, %arg2: i32) -> (i32, i32) {
    %c0_i32 = arith.constant 0 : i32
    return %arg0, %arg1 : i32, i32
  }
}

module attributes {stable_mosaic.version = 11 : i64} {
  func.func @_gemm_affine_kernel(%arg0: i32, %arg1: i32, %arg2: i32, %arg3: memref<512x72xbf16, #tpu.memory_space<vmem>>, %arg4: memref<72x128xbf16, #tpu.memory_space<vmem>>, %arg5: memref<1x128xf32, #tpu.memory_space<vmem>>, %arg6: memref<1x128xf32, #tpu.memory_space<vmem>>, %arg7: memref<512x128xbf16, #tpu.memory_space<vmem>>, %arg8: memref<512x128xf32, #tpu.memory_space<vmem>>) attributes {dimension_semantics = [#tpu.dimension_semantics<parallel>, #tpu.dimension_semantics<parallel>, #tpu.dimension_semantics<arbitrary>], iteration_bounds = array<i64: 1, 1, 1>, scalar_prefetch = 0 : i64, scratch_operands = 1 : i64, tpu.core_type = #tpu.core_type<tc>, window_params = [{transform_indices = @transform_0, window_bounds = array<i64: 512, 72>}, {transform_indices = @transform_1, window_bounds = array<i64: 72, 128>}, {transform_indices = @transform_2, window_bounds = array<i64: 1, 128>}, {transform_indices = @transform_3, window_bounds = array<i64: 1, 128>}, {transform_indices = @transform_4, window_bounds = array<i64: 512, 128>}]} {
    %c0_i32 = arith.constant 0 : i32
    %0 = arith.cmpi eq, %arg2, %c0_i32 : i32
    %1 = arith.extui %0 : i1 to i32
    %c0_i32_0 = arith.constant 0 : i32
    %2 = arith.cmpi ne, %1, %c0_i32_0 : i32
    scf.if %2 {
      %cst_10 = arith.constant 0.000000e+00 : f32
      %12 = vector.broadcast %cst_10 : f32 to vector<512x128xf32>
      %c0_11 = arith.constant 0 : index
      %c0_12 = arith.constant 0 : index
      %13 = vector.load %arg8[%c0_11, %c0_12] : memref<512x128xf32, #tpu.memory_space<vmem>>, vector<512x128xf32>
      tpu.vector_store %arg8[%c0_11, %c0_12], %12 {strides = array<i32>} : memref<512x128xf32, #tpu.memory_space<vmem>>, vector<512x128xf32>,
    } else {
    }
    %c0 = arith.constant 0 : index
    %c0_1 = arith.constant 0 : index
    %3 = vector.load %arg8[%c0, %c0_1] : memref<512x128xf32, #tpu.memory_space<vmem>>, vector<512x128xf32>
    %c0_2 = arith.constant 0 : index
    %c0_3 = arith.constant 0 : index
    %4 = vector.load %arg3[%c0_2, %c0_3] : memref<512x72xbf16, #tpu.memory_space<vmem>>, vector<512x72xbf16>
    %c0_4 = arith.constant 0 : index
    %c0_5 = arith.constant 0 : index
    %5 = vector.load %arg4[%c0_4, %c0_5] : memref<72x128xbf16, #tpu.memory_space<vmem>>, vector<72x128xbf16>
    %cst = arith.constant dense<0.000000e+00> : vector<512x128xf32>
    %6 = tpu.matmul %4, %5, %cst {dimension_numbers = #tpu.dot_dimension_numbers<[1], [0], [0], [1], [0, 0, 1, 1], [], []>} : vector<512x72xbf16>, vector<72x128xbf16>, vector<512x128xf32> -> vector<512x128xf32>
    %7 = arith.addf %3, %6 : vector<512x128xf32>
    %c0_6 = arith.constant 0 : index
    %c0_7 = arith.constant 0 : index
    %8 = vector.load %arg8[%c0_6, %c0_7] : memref<512x128xf32, #tpu.memory_space<vmem>>, vector<512x128xf32>
    tpu.vector_store %arg8[%c0_6, %c0_7], %7 {strides = array<i32>} : memref<512x128xf32, #tpu.memory_space<vmem>>, vector<512x128xf32>,
    %c0_i32_8 = arith.constant 0 : i32
    %9 = arith.cmpi eq, %arg2, %c0_i32_8 : i32
    %10 = arith.extui %9 : i1 to i32
    %c0_i32_9 = arith.constant 0 : i32
    %11 = arith.cmpi ne, %10, %c0_i32_9 : i32
    scf.if %11 {
      %c0_10 = arith.constant 0 : index
      %c0_11 = arith.constant 0 : index
      %12 = vector.load %arg8[%c0_10, %c0_11] : memref<512x128xf32, #tpu.memory_space<vmem>>, vector<512x128xf32>
      %c0_12 = arith.constant 0 : index
      %c0_13 = arith.constant 0 : index
      %13 = vector.load %arg5[%c0_12, %c0_13] : memref<1x128xf32, #tpu.memory_space<vmem>>, vector<1x128xf32>
      %14 = vector.broadcast %13 : vector<1x128xf32> to vector<512x128xf32>
      %15 = arith.mulf %12, %14 : vector<512x128xf32>
      %c0_14 = arith.constant 0 : index
      %c0_15 = arith.constant 0 : index
      %16 = vector.load %arg6[%c0_14, %c0_15] : memref<1x128xf32, #tpu.memory_space<vmem>>, vector<1x128xf32>
      %17 = vector.broadcast %16 : vector<1x128xf32> to vector<512x128xf32>
      %18 = arith.addf %15, %17 : vector<512x128xf32>
      %cst_16 = arith.constant 0.000000e+00 : f32
      %19 = vector.broadcast %cst_16 : f32 to vector<512x128xf32>
      %20 = arith.maximumf %18, %19 : vector<512x128xf32>
      %21 = arith.truncf %20 : vector<512x128xf32> to vector<512x128xbf16>
      %c0_17 = arith.constant 0 : index
      %c0_18 = arith.constant 0 : index
      %22 = vector.load %arg7[%c0_17, %c0_18] : memref<512x128xbf16, #tpu.memory_space<vmem>>, vector<512x128xbf16>
      tpu.vector_store %arg7[%c0_17, %c0_18], %21 {strides = array<i32>} : memref<512x128xbf16, #tpu.memory_space<vmem>>, vector<512x128xbf16>,
    } else {
    }
    return
  }
  func.func @transform_0(%arg0: i32, %arg1: i32, %arg2: i32) -> (i32, i32) {
    %c0_i32 = arith.constant 0 : i32
    return %arg0, %arg2 : i32, i32
  }
  func.func @transform_1(%arg0: i32, %arg1: i32, %arg2: i32) -> (i32, i32) {
    %c0_i32 = arith.constant 0 : i32
    return %arg2, %arg1 : i32, i32
  }
  func.func @transform_2(%arg0: i32, %arg1: i32, %arg2: i32) -> (i32, i32) {
    %c0_i32 = arith.constant 0 : i32
    %c0_i32_0 = arith.constant 0 : i32
    return %c0_i32, %arg1 : i32, i32
  }
  func.func @transform_3(%arg0: i32, %arg1: i32, %arg2: i32) -> (i32, i32) {
    %c0_i32 = arith.constant 0 : i32
    %c0_i32_0 = arith.constant 0 : i32
    return %c0_i32, %arg1 : i32, i32
  }
  func.func @transform_4(%arg0: i32, %arg1: i32, %arg2: i32) -> (i32, i32) {
    %c0_i32 = arith.constant 0 : i32
    return %arg0, %arg1 : i32, i32
  }
}

module attributes {stable_mosaic.version = 11 : i64} {
  func.func @_gemm_affine_res_kernel(%arg0: i32, %arg1: i32, %arg2: i32, %arg3: memref<512x72xbf16, #tpu.memory_space<vmem>>, %arg4: memref<72x128xbf16, #tpu.memory_space<vmem>>, %arg5: memref<1x128xf32, #tpu.memory_space<vmem>>, %arg6: memref<1x128xf32, #tpu.memory_space<vmem>>, %arg7: memref<512x128xbf16, #tpu.memory_space<vmem>>, %arg8: memref<512x128xbf16, #tpu.memory_space<vmem>>, %arg9: memref<512x128xf32, #tpu.memory_space<vmem>>) attributes {dimension_semantics = [#tpu.dimension_semantics<parallel>, #tpu.dimension_semantics<parallel>, #tpu.dimension_semantics<arbitrary>], iteration_bounds = array<i64: 1, 1, 1>, scalar_prefetch = 0 : i64, scratch_operands = 1 : i64, tpu.core_type = #tpu.core_type<tc>, window_params = [{transform_indices = @transform_0, window_bounds = array<i64: 512, 72>}, {transform_indices = @transform_1, window_bounds = array<i64: 72, 128>}, {transform_indices = @transform_2, window_bounds = array<i64: 1, 128>}, {transform_indices = @transform_3, window_bounds = array<i64: 1, 128>}, {transform_indices = @transform_4, window_bounds = array<i64: 512, 128>}, {transform_indices = @transform_5, window_bounds = array<i64: 512, 128>}]} {
    %c0_i32 = arith.constant 0 : i32
    %0 = arith.cmpi eq, %arg2, %c0_i32 : i32
    %1 = arith.extui %0 : i1 to i32
    %c0_i32_0 = arith.constant 0 : i32
    %2 = arith.cmpi ne, %1, %c0_i32_0 : i32
    scf.if %2 {
      %cst_10 = arith.constant 0.000000e+00 : f32
      %12 = vector.broadcast %cst_10 : f32 to vector<512x128xf32>
      %c0_11 = arith.constant 0 : index
      %c0_12 = arith.constant 0 : index
      %13 = vector.load %arg9[%c0_11, %c0_12] : memref<512x128xf32, #tpu.memory_space<vmem>>, vector<512x128xf32>
      tpu.vector_store %arg9[%c0_11, %c0_12], %12 {strides = array<i32>} : memref<512x128xf32, #tpu.memory_space<vmem>>, vector<512x128xf32>,
    } else {
    }
    %c0 = arith.constant 0 : index
    %c0_1 = arith.constant 0 : index
    %3 = vector.load %arg9[%c0, %c0_1] : memref<512x128xf32, #tpu.memory_space<vmem>>, vector<512x128xf32>
    %c0_2 = arith.constant 0 : index
    %c0_3 = arith.constant 0 : index
    %4 = vector.load %arg3[%c0_2, %c0_3] : memref<512x72xbf16, #tpu.memory_space<vmem>>, vector<512x72xbf16>
    %c0_4 = arith.constant 0 : index
    %c0_5 = arith.constant 0 : index
    %5 = vector.load %arg4[%c0_4, %c0_5] : memref<72x128xbf16, #tpu.memory_space<vmem>>, vector<72x128xbf16>
    %cst = arith.constant dense<0.000000e+00> : vector<512x128xf32>
    %6 = tpu.matmul %4, %5, %cst {dimension_numbers = #tpu.dot_dimension_numbers<[1], [0], [0], [1], [0, 0, 1, 1], [], []>} : vector<512x72xbf16>, vector<72x128xbf16>, vector<512x128xf32> -> vector<512x128xf32>
    %7 = arith.addf %3, %6 : vector<512x128xf32>
    %c0_6 = arith.constant 0 : index
    %c0_7 = arith.constant 0 : index
    %8 = vector.load %arg9[%c0_6, %c0_7] : memref<512x128xf32, #tpu.memory_space<vmem>>, vector<512x128xf32>
    tpu.vector_store %arg9[%c0_6, %c0_7], %7 {strides = array<i32>} : memref<512x128xf32, #tpu.memory_space<vmem>>, vector<512x128xf32>,
    %c0_i32_8 = arith.constant 0 : i32
    %9 = arith.cmpi eq, %arg2, %c0_i32_8 : i32
    %10 = arith.extui %9 : i1 to i32
    %c0_i32_9 = arith.constant 0 : i32
    %11 = arith.cmpi ne, %10, %c0_i32_9 : i32
    scf.if %11 {
      %c0_10 = arith.constant 0 : index
      %c0_11 = arith.constant 0 : index
      %12 = vector.load %arg9[%c0_10, %c0_11] : memref<512x128xf32, #tpu.memory_space<vmem>>, vector<512x128xf32>
      %c0_12 = arith.constant 0 : index
      %c0_13 = arith.constant 0 : index
      %13 = vector.load %arg5[%c0_12, %c0_13] : memref<1x128xf32, #tpu.memory_space<vmem>>, vector<1x128xf32>
      %14 = vector.broadcast %13 : vector<1x128xf32> to vector<512x128xf32>
      %15 = arith.mulf %12, %14 : vector<512x128xf32>
      %c0_14 = arith.constant 0 : index
      %c0_15 = arith.constant 0 : index
      %16 = vector.load %arg6[%c0_14, %c0_15] : memref<1x128xf32, #tpu.memory_space<vmem>>, vector<1x128xf32>
      %17 = vector.broadcast %16 : vector<1x128xf32> to vector<512x128xf32>
      %18 = arith.addf %15, %17 : vector<512x128xf32>
      %c0_16 = arith.constant 0 : index
      %c0_17 = arith.constant 0 : index
      %19 = vector.load %arg7[%c0_16, %c0_17] : memref<512x128xbf16, #tpu.memory_space<vmem>>, vector<512x128xbf16>
      %20 = arith.extf %19 : vector<512x128xbf16> to vector<512x128xf32>
      %21 = arith.addf %18, %20 : vector<512x128xf32>
      %cst_18 = arith.constant 0.000000e+00 : f32
      %22 = vector.broadcast %cst_18 : f32 to vector<512x128xf32>
      %23 = arith.maximumf %21, %22 : vector<512x128xf32>
      %24 = arith.truncf %23 : vector<512x128xf32> to vector<512x128xbf16>
      %c0_19 = arith.constant 0 : index
      %c0_20 = arith.constant 0 : index
      %25 = vector.load %arg8[%c0_19, %c0_20] : memref<512x128xbf16, #tpu.memory_space<vmem>>, vector<512x128xbf16>
      tpu.vector_store %arg8[%c0_19, %c0_20], %24 {strides = array<i32>} : memref<512x128xbf16, #tpu.memory_space<vmem>>, vector<512x128xbf16>,
    } else {
    }
    return
  }
  func.func @transform_0(%arg0: i32, %arg1: i32, %arg2: i32) -> (i32, i32) {
    %c0_i32 = arith.constant 0 : i32
    return %arg0, %arg2 : i32, i32
  }
  func.func @transform_1(%arg0: i32, %arg1: i32, %arg2: i32) -> (i32, i32) {
    %c0_i32 = arith.constant 0 : i32
    return %arg2, %arg1 : i32, i32
  }
  func.func @transform_2(%arg0: i32, %arg1: i32, %arg2: i32) -> (i32, i32) {
    %c0_i32 = arith.constant 0 : i32
    %c0_i32_0 = arith.constant 0 : i32
    return %c0_i32, %arg1 : i32, i32
  }
  func.func @transform_3(%arg0: i32, %arg1: i32, %arg2: i32) -> (i32, i32) {
    %c0_i32 = arith.constant 0 : i32
    %c0_i32_0 = arith.constant 0 : i32
    return %c0_i32, %arg1 : i32, i32
  }
  func.func @transform_4(%arg0: i32, %arg1: i32, %arg2: i32) -> (i32, i32) {
    %c0_i32 = arith.constant 0 : i32
    return %arg0, %arg1 : i32, i32
  }
  func.func @transform_5(%arg0: i32, %arg1: i32, %arg2: i32) -> (i32, i32) {
    %c0_i32 = arith.constant 0 : i32
    return %arg0, %arg1 : i32, i32
  }
}

module attributes {stable_mosaic.version = 11 : i64} {
  func.func @_gemm_affine_kernel(%arg0: i32, %arg1: i32, %arg2: i32, %arg3: memref<128x8xbf16, #tpu.memory_space<vmem>>, %arg4: memref<8x128xbf16, #tpu.memory_space<vmem>>, %arg5: memref<1x128xf32, #tpu.memory_space<vmem>>, %arg6: memref<1x128xf32, #tpu.memory_space<vmem>>, %arg7: memref<128x128xbf16, #tpu.memory_space<vmem>>, %arg8: memref<128x128xf32, #tpu.memory_space<vmem>>) attributes {dimension_semantics = [#tpu.dimension_semantics<parallel>, #tpu.dimension_semantics<parallel>, #tpu.dimension_semantics<arbitrary>], iteration_bounds = array<i64: 1, 1, 1>, scalar_prefetch = 0 : i64, scratch_operands = 1 : i64, tpu.core_type = #tpu.core_type<tc>, window_params = [{transform_indices = @transform_0, window_bounds = array<i64: 128, 8>}, {transform_indices = @transform_1, window_bounds = array<i64: 8, 128>}, {transform_indices = @transform_2, window_bounds = array<i64: 1, 128>}, {transform_indices = @transform_3, window_bounds = array<i64: 1, 128>}, {transform_indices = @transform_4, window_bounds = array<i64: 128, 128>}]} {
    %c0_i32 = arith.constant 0 : i32
    %0 = arith.cmpi eq, %arg2, %c0_i32 : i32
    %1 = arith.extui %0 : i1 to i32
    %c0_i32_0 = arith.constant 0 : i32
    %2 = arith.cmpi ne, %1, %c0_i32_0 : i32
    scf.if %2 {
      %cst_10 = arith.constant 0.000000e+00 : f32
      %12 = vector.broadcast %cst_10 : f32 to vector<128x128xf32>
      %c0_11 = arith.constant 0 : index
      %c0_12 = arith.constant 0 : index
      %13 = vector.load %arg8[%c0_11, %c0_12] : memref<128x128xf32, #tpu.memory_space<vmem>>, vector<128x128xf32>
      tpu.vector_store %arg8[%c0_11, %c0_12], %12 {strides = array<i32>} : memref<128x128xf32, #tpu.memory_space<vmem>>, vector<128x128xf32>,
    } else {
    }
    %c0 = arith.constant 0 : index
    %c0_1 = arith.constant 0 : index
    %3 = vector.load %arg8[%c0, %c0_1] : memref<128x128xf32, #tpu.memory_space<vmem>>, vector<128x128xf32>
    %c0_2 = arith.constant 0 : index
    %c0_3 = arith.constant 0 : index
    %4 = vector.load %arg3[%c0_2, %c0_3] : memref<128x8xbf16, #tpu.memory_space<vmem>>, vector<128x8xbf16>
    %c0_4 = arith.constant 0 : index
    %c0_5 = arith.constant 0 : index
    %5 = vector.load %arg4[%c0_4, %c0_5] : memref<8x128xbf16, #tpu.memory_space<vmem>>, vector<8x128xbf16>
    %cst = arith.constant dense<0.000000e+00> : vector<128x128xf32>
    %6 = tpu.matmul %4, %5, %cst {dimension_numbers = #tpu.dot_dimension_numbers<[1], [0], [0], [1], [0, 0, 1, 1], [], []>} : vector<128x8xbf16>, vector<8x128xbf16>, vector<128x128xf32> -> vector<128x128xf32>
    %7 = arith.addf %3, %6 : vector<128x128xf32>
    %c0_6 = arith.constant 0 : index
    %c0_7 = arith.constant 0 : index
    %8 = vector.load %arg8[%c0_6, %c0_7] : memref<128x128xf32, #tpu.memory_space<vmem>>, vector<128x128xf32>
    tpu.vector_store %arg8[%c0_6, %c0_7], %7 {strides = array<i32>} : memref<128x128xf32, #tpu.memory_space<vmem>>, vector<128x128xf32>,
    %c0_i32_8 = arith.constant 0 : i32
    %9 = arith.cmpi eq, %arg2, %c0_i32_8 : i32
    %10 = arith.extui %9 : i1 to i32
    %c0_i32_9 = arith.constant 0 : i32
    %11 = arith.cmpi ne, %10, %c0_i32_9 : i32
    scf.if %11 {
      %c0_10 = arith.constant 0 : index
      %c0_11 = arith.constant 0 : index
      %12 = vector.load %arg8[%c0_10, %c0_11] : memref<128x128xf32, #tpu.memory_space<vmem>>, vector<128x128xf32>
      %c0_12 = arith.constant 0 : index
      %c0_13 = arith.constant 0 : index
      %13 = vector.load %arg5[%c0_12, %c0_13] : memref<1x128xf32, #tpu.memory_space<vmem>>, vector<1x128xf32>
      %14 = vector.broadcast %13 : vector<1x128xf32> to vector<128x128xf32>
      %15 = arith.mulf %12, %14 : vector<128x128xf32>
      %c0_14 = arith.constant 0 : index
      %c0_15 = arith.constant 0 : index
      %16 = vector.load %arg6[%c0_14, %c0_15] : memref<1x128xf32, #tpu.memory_space<vmem>>, vector<1x128xf32>
      %17 = vector.broadcast %16 : vector<1x128xf32> to vector<128x128xf32>
      %18 = arith.addf %15, %17 : vector<128x128xf32>
      %19 = arith.truncf %18 : vector<128x128xf32> to vector<128x128xbf16>
      %c0_16 = arith.constant 0 : index
      %c0_17 = arith.constant 0 : index
      %20 = vector.load %arg7[%c0_16, %c0_17] : memref<128x128xbf16, #tpu.memory_space<vmem>>, vector<128x128xbf16>
      tpu.vector_store %arg7[%c0_16, %c0_17], %19 {strides = array<i32>} : memref<128x128xbf16, #tpu.memory_space<vmem>>, vector<128x128xbf16>,
    } else {
    }
    return
  }
  func.func @transform_0(%arg0: i32, %arg1: i32, %arg2: i32) -> (i32, i32) {
    %c0_i32 = arith.constant 0 : i32
    return %arg0, %arg2 : i32, i32
  }
  func.func @transform_1(%arg0: i32, %arg1: i32, %arg2: i32) -> (i32, i32) {
    %c0_i32 = arith.constant 0 : i32
    return %arg2, %arg1 : i32, i32
  }
  func.func @transform_2(%arg0: i32, %arg1: i32, %arg2: i32) -> (i32, i32) {
    %c0_i32 = arith.constant 0 : i32
    %c0_i32_0 = arith.constant 0 : i32
    return %c0_i32, %arg1 : i32, i32
  }
  func.func @transform_3(%arg0: i32, %arg1: i32, %arg2: i32) -> (i32, i32) {
    %c0_i32 = arith.constant 0 : i32
    %c0_i32_0 = arith.constant 0 : i32
    return %c0_i32, %arg1 : i32, i32
  }
  func.func @transform_4(%arg0: i32, %arg1: i32, %arg2: i32) -> (i32, i32) {
    %c0_i32 = arith.constant 0 : i32
    return %arg0, %arg1 : i32, i32
  }
}

module attributes {stable_mosaic.version = 11 : i64} {
  func.func @_gemm_affine_kernel(%arg0: i32, %arg1: i32, %arg2: i32, %arg3: memref<128x72xbf16, #tpu.memory_space<vmem>>, %arg4: memref<72x128xbf16, #tpu.memory_space<vmem>>, %arg5: memref<1x128xf32, #tpu.memory_space<vmem>>, %arg6: memref<1x128xf32, #tpu.memory_space<vmem>>, %arg7: memref<128x128xbf16, #tpu.memory_space<vmem>>, %arg8: memref<128x128xf32, #tpu.memory_space<vmem>>) attributes {dimension_semantics = [#tpu.dimension_semantics<parallel>, #tpu.dimension_semantics<parallel>, #tpu.dimension_semantics<arbitrary>], iteration_bounds = array<i64: 1, 1, 1>, scalar_prefetch = 0 : i64, scratch_operands = 1 : i64, tpu.core_type = #tpu.core_type<tc>, window_params = [{transform_indices = @transform_0, window_bounds = array<i64: 128, 72>}, {transform_indices = @transform_1, window_bounds = array<i64: 72, 128>}, {transform_indices = @transform_2, window_bounds = array<i64: 1, 128>}, {transform_indices = @transform_3, window_bounds = array<i64: 1, 128>}, {transform_indices = @transform_4, window_bounds = array<i64: 128, 128>}]} {
    %c0_i32 = arith.constant 0 : i32
    %0 = arith.cmpi eq, %arg2, %c0_i32 : i32
    %1 = arith.extui %0 : i1 to i32
    %c0_i32_0 = arith.constant 0 : i32
    %2 = arith.cmpi ne, %1, %c0_i32_0 : i32
    scf.if %2 {
      %cst_10 = arith.constant 0.000000e+00 : f32
      %12 = vector.broadcast %cst_10 : f32 to vector<128x128xf32>
      %c0_11 = arith.constant 0 : index
      %c0_12 = arith.constant 0 : index
      %13 = vector.load %arg8[%c0_11, %c0_12] : memref<128x128xf32, #tpu.memory_space<vmem>>, vector<128x128xf32>
      tpu.vector_store %arg8[%c0_11, %c0_12], %12 {strides = array<i32>} : memref<128x128xf32, #tpu.memory_space<vmem>>, vector<128x128xf32>,
    } else {
    }
    %c0 = arith.constant 0 : index
    %c0_1 = arith.constant 0 : index
    %3 = vector.load %arg8[%c0, %c0_1] : memref<128x128xf32, #tpu.memory_space<vmem>>, vector<128x128xf32>
    %c0_2 = arith.constant 0 : index
    %c0_3 = arith.constant 0 : index
    %4 = vector.load %arg3[%c0_2, %c0_3] : memref<128x72xbf16, #tpu.memory_space<vmem>>, vector<128x72xbf16>
    %c0_4 = arith.constant 0 : index
    %c0_5 = arith.constant 0 : index
    %5 = vector.load %arg4[%c0_4, %c0_5] : memref<72x128xbf16, #tpu.memory_space<vmem>>, vector<72x128xbf16>
    %cst = arith.constant dense<0.000000e+00> : vector<128x128xf32>
    %6 = tpu.matmul %4, %5, %cst {dimension_numbers = #tpu.dot_dimension_numbers<[1], [0], [0], [1], [0, 0, 1, 1], [], []>} : vector<128x72xbf16>, vector<72x128xbf16>, vector<128x128xf32> -> vector<128x128xf32>
    %7 = arith.addf %3, %6 : vector<128x128xf32>
    %c0_6 = arith.constant 0 : index
    %c0_7 = arith.constant 0 : index
    %8 = vector.load %arg8[%c0_6, %c0_7] : memref<128x128xf32, #tpu.memory_space<vmem>>, vector<128x128xf32>
    tpu.vector_store %arg8[%c0_6, %c0_7], %7 {strides = array<i32>} : memref<128x128xf32, #tpu.memory_space<vmem>>, vector<128x128xf32>,
    %c0_i32_8 = arith.constant 0 : i32
    %9 = arith.cmpi eq, %arg2, %c0_i32_8 : i32
    %10 = arith.extui %9 : i1 to i32
    %c0_i32_9 = arith.constant 0 : i32
    %11 = arith.cmpi ne, %10, %c0_i32_9 : i32
    scf.if %11 {
      %c0_10 = arith.constant 0 : index
      %c0_11 = arith.constant 0 : index
      %12 = vector.load %arg8[%c0_10, %c0_11] : memref<128x128xf32, #tpu.memory_space<vmem>>, vector<128x128xf32>
      %c0_12 = arith.constant 0 : index
      %c0_13 = arith.constant 0 : index
      %13 = vector.load %arg5[%c0_12, %c0_13] : memref<1x128xf32, #tpu.memory_space<vmem>>, vector<1x128xf32>
      %14 = vector.broadcast %13 : vector<1x128xf32> to vector<128x128xf32>
      %15 = arith.mulf %12, %14 : vector<128x128xf32>
      %c0_14 = arith.constant 0 : index
      %c0_15 = arith.constant 0 : index
      %16 = vector.load %arg6[%c0_14, %c0_15] : memref<1x128xf32, #tpu.memory_space<vmem>>, vector<1x128xf32>
      %17 = vector.broadcast %16 : vector<1x128xf32> to vector<128x128xf32>
      %18 = arith.addf %15, %17 : vector<128x128xf32>
      %cst_16 = arith.constant 0.000000e+00 : f32
      %19 = vector.broadcast %cst_16 : f32 to vector<128x128xf32>
      %20 = arith.maximumf %18, %19 : vector<128x128xf32>
      %21 = arith.truncf %20 : vector<128x128xf32> to vector<128x128xbf16>
      %c0_17 = arith.constant 0 : index
      %c0_18 = arith.constant 0 : index
      %22 = vector.load %arg7[%c0_17, %c0_18] : memref<128x128xbf16, #tpu.memory_space<vmem>>, vector<128x128xbf16>
      tpu.vector_store %arg7[%c0_17, %c0_18], %21 {strides = array<i32>} : memref<128x128xbf16, #tpu.memory_space<vmem>>, vector<128x128xbf16>,
    } else {
    }
    return
  }
  func.func @transform_0(%arg0: i32, %arg1: i32, %arg2: i32) -> (i32, i32) {
    %c0_i32 = arith.constant 0 : i32
    return %arg0, %arg2 : i32, i32
  }
  func.func @transform_1(%arg0: i32, %arg1: i32, %arg2: i32) -> (i32, i32) {
    %c0_i32 = arith.constant 0 : i32
    return %arg2, %arg1 : i32, i32
  }
  func.func @transform_2(%arg0: i32, %arg1: i32, %arg2: i32) -> (i32, i32) {
    %c0_i32 = arith.constant 0 : i32
    %c0_i32_0 = arith.constant 0 : i32
    return %c0_i32, %arg1 : i32, i32
  }
  func.func @transform_3(%arg0: i32, %arg1: i32, %arg2: i32) -> (i32, i32) {
    %c0_i32 = arith.constant 0 : i32
    %c0_i32_0 = arith.constant 0 : i32
    return %c0_i32, %arg1 : i32, i32
  }
  func.func @transform_4(%arg0: i32, %arg1: i32, %arg2: i32) -> (i32, i32) {
    %c0_i32 = arith.constant 0 : i32
    return %arg0, %arg1 : i32, i32
  }
}

module attributes {stable_mosaic.version = 11 : i64} {
  func.func @_gemm_affine_res_kernel(%arg0: i32, %arg1: i32, %arg2: i32, %arg3: memref<128x144xbf16, #tpu.memory_space<vmem>>, %arg4: memref<144x128xbf16, #tpu.memory_space<vmem>>, %arg5: memref<1x128xf32, #tpu.memory_space<vmem>>, %arg6: memref<1x128xf32, #tpu.memory_space<vmem>>, %arg7: memref<128x128xbf16, #tpu.memory_space<vmem>>, %arg8: memref<128x128xbf16, #tpu.memory_space<vmem>>, %arg9: memref<128x128xf32, #tpu.memory_space<vmem>>) attributes {dimension_semantics = [#tpu.dimension_semantics<parallel>, #tpu.dimension_semantics<parallel>, #tpu.dimension_semantics<arbitrary>], iteration_bounds = array<i64: 1, 1, 1>, scalar_prefetch = 0 : i64, scratch_operands = 1 : i64, tpu.core_type = #tpu.core_type<tc>, window_params = [{transform_indices = @transform_0, window_bounds = array<i64: 128, 144>}, {transform_indices = @transform_1, window_bounds = array<i64: 144, 128>}, {transform_indices = @transform_2, window_bounds = array<i64: 1, 128>}, {transform_indices = @transform_3, window_bounds = array<i64: 1, 128>}, {transform_indices = @transform_4, window_bounds = array<i64: 128, 128>}, {transform_indices = @transform_5, window_bounds = array<i64: 128, 128>}]} {
    %c0_i32 = arith.constant 0 : i32
    %0 = arith.cmpi eq, %arg2, %c0_i32 : i32
    %1 = arith.extui %0 : i1 to i32
    %c0_i32_0 = arith.constant 0 : i32
    %2 = arith.cmpi ne, %1, %c0_i32_0 : i32
    scf.if %2 {
      %cst_10 = arith.constant 0.000000e+00 : f32
      %12 = vector.broadcast %cst_10 : f32 to vector<128x128xf32>
      %c0_11 = arith.constant 0 : index
      %c0_12 = arith.constant 0 : index
      %13 = vector.load %arg9[%c0_11, %c0_12] : memref<128x128xf32, #tpu.memory_space<vmem>>, vector<128x128xf32>
      tpu.vector_store %arg9[%c0_11, %c0_12], %12 {strides = array<i32>} : memref<128x128xf32, #tpu.memory_space<vmem>>, vector<128x128xf32>,
    } else {
    }
    %c0 = arith.constant 0 : index
    %c0_1 = arith.constant 0 : index
    %3 = vector.load %arg9[%c0, %c0_1] : memref<128x128xf32, #tpu.memory_space<vmem>>, vector<128x128xf32>
    %c0_2 = arith.constant 0 : index
    %c0_3 = arith.constant 0 : index
    %4 = vector.load %arg3[%c0_2, %c0_3] : memref<128x144xbf16, #tpu.memory_space<vmem>>, vector<128x144xbf16>
    %c0_4 = arith.constant 0 : index
    %c0_5 = arith.constant 0 : index
    %5 = vector.load %arg4[%c0_4, %c0_5] : memref<144x128xbf16, #tpu.memory_space<vmem>>, vector<144x128xbf16>
    %cst = arith.constant dense<0.000000e+00> : vector<128x128xf32>
    %6 = tpu.matmul %4, %5, %cst {dimension_numbers = #tpu.dot_dimension_numbers<[1], [0], [0], [1], [0, 0, 1, 1], [], []>} : vector<128x144xbf16>, vector<144x128xbf16>, vector<128x128xf32> -> vector<128x128xf32>
    %7 = arith.addf %3, %6 : vector<128x128xf32>
    %c0_6 = arith.constant 0 : index
    %c0_7 = arith.constant 0 : index
    %8 = vector.load %arg9[%c0_6, %c0_7] : memref<128x128xf32, #tpu.memory_space<vmem>>, vector<128x128xf32>
    tpu.vector_store %arg9[%c0_6, %c0_7], %7 {strides = array<i32>} : memref<128x128xf32, #tpu.memory_space<vmem>>, vector<128x128xf32>,
    %c0_i32_8 = arith.constant 0 : i32
    %9 = arith.cmpi eq, %arg2, %c0_i32_8 : i32
    %10 = arith.extui %9 : i1 to i32
    %c0_i32_9 = arith.constant 0 : i32
    %11 = arith.cmpi ne, %10, %c0_i32_9 : i32
    scf.if %11 {
      %c0_10 = arith.constant 0 : index
      %c0_11 = arith.constant 0 : index
      %12 = vector.load %arg9[%c0_10, %c0_11] : memref<128x128xf32, #tpu.memory_space<vmem>>, vector<128x128xf32>
      %c0_12 = arith.constant 0 : index
      %c0_13 = arith.constant 0 : index
      %13 = vector.load %arg5[%c0_12, %c0_13] : memref<1x128xf32, #tpu.memory_space<vmem>>, vector<1x128xf32>
      %14 = vector.broadcast %13 : vector<1x128xf32> to vector<128x128xf32>
      %15 = arith.mulf %12, %14 : vector<128x128xf32>
      %c0_14 = arith.constant 0 : index
      %c0_15 = arith.constant 0 : index
      %16 = vector.load %arg6[%c0_14, %c0_15] : memref<1x128xf32, #tpu.memory_space<vmem>>, vector<1x128xf32>
      %17 = vector.broadcast %16 : vector<1x128xf32> to vector<128x128xf32>
      %18 = arith.addf %15, %17 : vector<128x128xf32>
      %c0_16 = arith.constant 0 : index
      %c0_17 = arith.constant 0 : index
      %19 = vector.load %arg7[%c0_16, %c0_17] : memref<128x128xbf16, #tpu.memory_space<vmem>>, vector<128x128xbf16>
      %20 = arith.extf %19 : vector<128x128xbf16> to vector<128x128xf32>
      %21 = arith.addf %18, %20 : vector<128x128xf32>
      %cst_18 = arith.constant 0.000000e+00 : f32
      %22 = vector.broadcast %cst_18 : f32 to vector<128x128xf32>
      %23 = arith.maximumf %21, %22 : vector<128x128xf32>
      %24 = arith.truncf %23 : vector<128x128xf32> to vector<128x128xbf16>
      %c0_19 = arith.constant 0 : index
      %c0_20 = arith.constant 0 : index
      %25 = vector.load %arg8[%c0_19, %c0_20] : memref<128x128xbf16, #tpu.memory_space<vmem>>, vector<128x128xbf16>
      tpu.vector_store %arg8[%c0_19, %c0_20], %24 {strides = array<i32>} : memref<128x128xbf16, #tpu.memory_space<vmem>>, vector<128x128xbf16>,
    } else {
    }
    return
  }
  func.func @transform_0(%arg0: i32, %arg1: i32, %arg2: i32) -> (i32, i32) {
    %c0_i32 = arith.constant 0 : i32
    return %arg0, %arg2 : i32, i32
  }
  func.func @transform_1(%arg0: i32, %arg1: i32, %arg2: i32) -> (i32, i32) {
    %c0_i32 = arith.constant 0 : i32
    return %arg2, %arg1 : i32, i32
  }
  func.func @transform_2(%arg0: i32, %arg1: i32, %arg2: i32) -> (i32, i32) {
    %c0_i32 = arith.constant 0 : i32
    %c0_i32_0 = arith.constant 0 : i32
    return %c0_i32, %arg1 : i32, i32
  }
  func.func @transform_3(%arg0: i32, %arg1: i32, %arg2: i32) -> (i32, i32) {
    %c0_i32 = arith.constant 0 : i32
    %c0_i32_0 = arith.constant 0 : i32
    return %c0_i32, %arg1 : i32, i32
  }
  func.func @transform_4(%arg0: i32, %arg1: i32, %arg2: i32) -> (i32, i32) {
    %c0_i32 = arith.constant 0 : i32
    return %arg0, %arg1 : i32, i32
  }
  func.func @transform_5(%arg0: i32, %arg1: i32, %arg2: i32) -> (i32, i32) {
    %c0_i32 = arith.constant 0 : i32
    return %arg0, %arg1 : i32, i32
  }
}

module attributes {stable_mosaic.version = 11 : i64} {
  func.func @_gemm_affine_kernel(%arg0: i32, %arg1: i32, %arg2: i32, %arg3: memref<32x16xbf16, #tpu.memory_space<vmem>>, %arg4: memref<16x128xbf16, #tpu.memory_space<vmem>>, %arg5: memref<1x128xf32, #tpu.memory_space<vmem>>, %arg6: memref<1x128xf32, #tpu.memory_space<vmem>>, %arg7: memref<32x128xbf16, #tpu.memory_space<vmem>>, %arg8: memref<32x128xf32, #tpu.memory_space<vmem>>) attributes {dimension_semantics = [#tpu.dimension_semantics<parallel>, #tpu.dimension_semantics<parallel>, #tpu.dimension_semantics<arbitrary>], iteration_bounds = array<i64: 1, 1, 1>, scalar_prefetch = 0 : i64, scratch_operands = 1 : i64, tpu.core_type = #tpu.core_type<tc>, window_params = [{transform_indices = @transform_0, window_bounds = array<i64: 32, 16>}, {transform_indices = @transform_1, window_bounds = array<i64: 16, 128>}, {transform_indices = @transform_2, window_bounds = array<i64: 1, 128>}, {transform_indices = @transform_3, window_bounds = array<i64: 1, 128>}, {transform_indices = @transform_4, window_bounds = array<i64: 32, 128>}]} {
    %c0_i32 = arith.constant 0 : i32
    %0 = arith.cmpi eq, %arg2, %c0_i32 : i32
    %1 = arith.extui %0 : i1 to i32
    %c0_i32_0 = arith.constant 0 : i32
    %2 = arith.cmpi ne, %1, %c0_i32_0 : i32
    scf.if %2 {
      %cst_10 = arith.constant 0.000000e+00 : f32
      %12 = vector.broadcast %cst_10 : f32 to vector<32x128xf32>
      %c0_11 = arith.constant 0 : index
      %c0_12 = arith.constant 0 : index
      %13 = vector.load %arg8[%c0_11, %c0_12] : memref<32x128xf32, #tpu.memory_space<vmem>>, vector<32x128xf32>
      tpu.vector_store %arg8[%c0_11, %c0_12], %12 {strides = array<i32>} : memref<32x128xf32, #tpu.memory_space<vmem>>, vector<32x128xf32>,
    } else {
    }
    %c0 = arith.constant 0 : index
    %c0_1 = arith.constant 0 : index
    %3 = vector.load %arg8[%c0, %c0_1] : memref<32x128xf32, #tpu.memory_space<vmem>>, vector<32x128xf32>
    %c0_2 = arith.constant 0 : index
    %c0_3 = arith.constant 0 : index
    %4 = vector.load %arg3[%c0_2, %c0_3] : memref<32x16xbf16, #tpu.memory_space<vmem>>, vector<32x16xbf16>
    %c0_4 = arith.constant 0 : index
    %c0_5 = arith.constant 0 : index
    %5 = vector.load %arg4[%c0_4, %c0_5] : memref<16x128xbf16, #tpu.memory_space<vmem>>, vector<16x128xbf16>
    %cst = arith.constant dense<0.000000e+00> : vector<32x128xf32>
    %6 = tpu.matmul %4, %5, %cst {dimension_numbers = #tpu.dot_dimension_numbers<[1], [0], [0], [1], [0, 0, 1, 1], [], []>} : vector<32x16xbf16>, vector<16x128xbf16>, vector<32x128xf32> -> vector<32x128xf32>
    %7 = arith.addf %3, %6 : vector<32x128xf32>
    %c0_6 = arith.constant 0 : index
    %c0_7 = arith.constant 0 : index
    %8 = vector.load %arg8[%c0_6, %c0_7] : memref<32x128xf32, #tpu.memory_space<vmem>>, vector<32x128xf32>
    tpu.vector_store %arg8[%c0_6, %c0_7], %7 {strides = array<i32>} : memref<32x128xf32, #tpu.memory_space<vmem>>, vector<32x128xf32>,
    %c0_i32_8 = arith.constant 0 : i32
    %9 = arith.cmpi eq, %arg2, %c0_i32_8 : i32
    %10 = arith.extui %9 : i1 to i32
    %c0_i32_9 = arith.constant 0 : i32
    %11 = arith.cmpi ne, %10, %c0_i32_9 : i32
    scf.if %11 {
      %c0_10 = arith.constant 0 : index
      %c0_11 = arith.constant 0 : index
      %12 = vector.load %arg8[%c0_10, %c0_11] : memref<32x128xf32, #tpu.memory_space<vmem>>, vector<32x128xf32>
      %c0_12 = arith.constant 0 : index
      %c0_13 = arith.constant 0 : index
      %13 = vector.load %arg5[%c0_12, %c0_13] : memref<1x128xf32, #tpu.memory_space<vmem>>, vector<1x128xf32>
      %14 = vector.broadcast %13 : vector<1x128xf32> to vector<32x128xf32>
      %15 = arith.mulf %12, %14 : vector<32x128xf32>
      %c0_14 = arith.constant 0 : index
      %c0_15 = arith.constant 0 : index
      %16 = vector.load %arg6[%c0_14, %c0_15] : memref<1x128xf32, #tpu.memory_space<vmem>>, vector<1x128xf32>
      %17 = vector.broadcast %16 : vector<1x128xf32> to vector<32x128xf32>
      %18 = arith.addf %15, %17 : vector<32x128xf32>
      %19 = arith.truncf %18 : vector<32x128xf32> to vector<32x128xbf16>
      %c0_16 = arith.constant 0 : index
      %c0_17 = arith.constant 0 : index
      %20 = vector.load %arg7[%c0_16, %c0_17] : memref<32x128xbf16, #tpu.memory_space<vmem>>, vector<32x128xbf16>
      tpu.vector_store %arg7[%c0_16, %c0_17], %19 {strides = array<i32>} : memref<32x128xbf16, #tpu.memory_space<vmem>>, vector<32x128xbf16>,
    } else {
    }
    return
  }
  func.func @transform_0(%arg0: i32, %arg1: i32, %arg2: i32) -> (i32, i32) {
    %c0_i32 = arith.constant 0 : i32
    return %arg0, %arg2 : i32, i32
  }
  func.func @transform_1(%arg0: i32, %arg1: i32, %arg2: i32) -> (i32, i32) {
    %c0_i32 = arith.constant 0 : i32
    return %arg2, %arg1 : i32, i32
  }
  func.func @transform_2(%arg0: i32, %arg1: i32, %arg2: i32) -> (i32, i32) {
    %c0_i32 = arith.constant 0 : i32
    %c0_i32_0 = arith.constant 0 : i32
    return %c0_i32, %arg1 : i32, i32
  }
  func.func @transform_3(%arg0: i32, %arg1: i32, %arg2: i32) -> (i32, i32) {
    %c0_i32 = arith.constant 0 : i32
    %c0_i32_0 = arith.constant 0 : i32
    return %c0_i32, %arg1 : i32, i32
  }
  func.func @transform_4(%arg0: i32, %arg1: i32, %arg2: i32) -> (i32, i32) {
    %c0_i32 = arith.constant 0 : i32
    return %arg0, %arg1 : i32, i32
  }
}

module attributes {stable_mosaic.version = 11 : i64} {
  func.func @_gemm_affine_kernel(%arg0: i32, %arg1: i32, %arg2: i32, %arg3: memref<32x144xbf16, #tpu.memory_space<vmem>>, %arg4: memref<144x128xbf16, #tpu.memory_space<vmem>>, %arg5: memref<1x128xf32, #tpu.memory_space<vmem>>, %arg6: memref<1x128xf32, #tpu.memory_space<vmem>>, %arg7: memref<32x128xbf16, #tpu.memory_space<vmem>>, %arg8: memref<32x128xf32, #tpu.memory_space<vmem>>) attributes {dimension_semantics = [#tpu.dimension_semantics<parallel>, #tpu.dimension_semantics<parallel>, #tpu.dimension_semantics<arbitrary>], iteration_bounds = array<i64: 1, 1, 1>, scalar_prefetch = 0 : i64, scratch_operands = 1 : i64, tpu.core_type = #tpu.core_type<tc>, window_params = [{transform_indices = @transform_0, window_bounds = array<i64: 32, 144>}, {transform_indices = @transform_1, window_bounds = array<i64: 144, 128>}, {transform_indices = @transform_2, window_bounds = array<i64: 1, 128>}, {transform_indices = @transform_3, window_bounds = array<i64: 1, 128>}, {transform_indices = @transform_4, window_bounds = array<i64: 32, 128>}]} {
    %c0_i32 = arith.constant 0 : i32
    %0 = arith.cmpi eq, %arg2, %c0_i32 : i32
    %1 = arith.extui %0 : i1 to i32
    %c0_i32_0 = arith.constant 0 : i32
    %2 = arith.cmpi ne, %1, %c0_i32_0 : i32
    scf.if %2 {
      %cst_10 = arith.constant 0.000000e+00 : f32
      %12 = vector.broadcast %cst_10 : f32 to vector<32x128xf32>
      %c0_11 = arith.constant 0 : index
      %c0_12 = arith.constant 0 : index
      %13 = vector.load %arg8[%c0_11, %c0_12] : memref<32x128xf32, #tpu.memory_space<vmem>>, vector<32x128xf32>
      tpu.vector_store %arg8[%c0_11, %c0_12], %12 {strides = array<i32>} : memref<32x128xf32, #tpu.memory_space<vmem>>, vector<32x128xf32>,
    } else {
    }
    %c0 = arith.constant 0 : index
    %c0_1 = arith.constant 0 : index
    %3 = vector.load %arg8[%c0, %c0_1] : memref<32x128xf32, #tpu.memory_space<vmem>>, vector<32x128xf32>
    %c0_2 = arith.constant 0 : index
    %c0_3 = arith.constant 0 : index
    %4 = vector.load %arg3[%c0_2, %c0_3] : memref<32x144xbf16, #tpu.memory_space<vmem>>, vector<32x144xbf16>
    %c0_4 = arith.constant 0 : index
    %c0_5 = arith.constant 0 : index
    %5 = vector.load %arg4[%c0_4, %c0_5] : memref<144x128xbf16, #tpu.memory_space<vmem>>, vector<144x128xbf16>
    %cst = arith.constant dense<0.000000e+00> : vector<32x128xf32>
    %6 = tpu.matmul %4, %5, %cst {dimension_numbers = #tpu.dot_dimension_numbers<[1], [0], [0], [1], [0, 0, 1, 1], [], []>} : vector<32x144xbf16>, vector<144x128xbf16>, vector<32x128xf32> -> vector<32x128xf32>
    %7 = arith.addf %3, %6 : vector<32x128xf32>
    %c0_6 = arith.constant 0 : index
    %c0_7 = arith.constant 0 : index
    %8 = vector.load %arg8[%c0_6, %c0_7] : memref<32x128xf32, #tpu.memory_space<vmem>>, vector<32x128xf32>
    tpu.vector_store %arg8[%c0_6, %c0_7], %7 {strides = array<i32>} : memref<32x128xf32, #tpu.memory_space<vmem>>, vector<32x128xf32>,
    %c0_i32_8 = arith.constant 0 : i32
    %9 = arith.cmpi eq, %arg2, %c0_i32_8 : i32
    %10 = arith.extui %9 : i1 to i32
    %c0_i32_9 = arith.constant 0 : i32
    %11 = arith.cmpi ne, %10, %c0_i32_9 : i32
    scf.if %11 {
      %c0_10 = arith.constant 0 : index
      %c0_11 = arith.constant 0 : index
      %12 = vector.load %arg8[%c0_10, %c0_11] : memref<32x128xf32, #tpu.memory_space<vmem>>, vector<32x128xf32>
      %c0_12 = arith.constant 0 : index
      %c0_13 = arith.constant 0 : index
      %13 = vector.load %arg5[%c0_12, %c0_13] : memref<1x128xf32, #tpu.memory_space<vmem>>, vector<1x128xf32>
      %14 = vector.broadcast %13 : vector<1x128xf32> to vector<32x128xf32>
      %15 = arith.mulf %12, %14 : vector<32x128xf32>
      %c0_14 = arith.constant 0 : index
      %c0_15 = arith.constant 0 : index
      %16 = vector.load %arg6[%c0_14, %c0_15] : memref<1x128xf32, #tpu.memory_space<vmem>>, vector<1x128xf32>
      %17 = vector.broadcast %16 : vector<1x128xf32> to vector<32x128xf32>
      %18 = arith.addf %15, %17 : vector<32x128xf32>
      %cst_16 = arith.constant 0.000000e+00 : f32
      %19 = vector.broadcast %cst_16 : f32 to vector<32x128xf32>
      %20 = arith.maximumf %18, %19 : vector<32x128xf32>
      %21 = arith.truncf %20 : vector<32x128xf32> to vector<32x128xbf16>
      %c0_17 = arith.constant 0 : index
      %c0_18 = arith.constant 0 : index
      %22 = vector.load %arg7[%c0_17, %c0_18] : memref<32x128xbf16, #tpu.memory_space<vmem>>, vector<32x128xbf16>
      tpu.vector_store %arg7[%c0_17, %c0_18], %21 {strides = array<i32>} : memref<32x128xbf16, #tpu.memory_space<vmem>>, vector<32x128xbf16>,
    } else {
    }
    return
  }
  func.func @transform_0(%arg0: i32, %arg1: i32, %arg2: i32) -> (i32, i32) {
    %c0_i32 = arith.constant 0 : i32
    return %arg0, %arg2 : i32, i32
  }
  func.func @transform_1(%arg0: i32, %arg1: i32, %arg2: i32) -> (i32, i32) {
    %c0_i32 = arith.constant 0 : i32
    return %arg2, %arg1 : i32, i32
  }
  func.func @transform_2(%arg0: i32, %arg1: i32, %arg2: i32) -> (i32, i32) {
    %c0_i32 = arith.constant 0 : i32
    %c0_i32_0 = arith.constant 0 : i32
    return %c0_i32, %arg1 : i32, i32
  }
  func.func @transform_3(%arg0: i32, %arg1: i32, %arg2: i32) -> (i32, i32) {
    %c0_i32 = arith.constant 0 : i32
    %c0_i32_0 = arith.constant 0 : i32
    return %c0_i32, %arg1 : i32, i32
  }
  func.func @transform_4(%arg0: i32, %arg1: i32, %arg2: i32) -> (i32, i32) {
    %c0_i32 = arith.constant 0 : i32
    return %arg0, %arg1 : i32, i32
  }
}

module attributes {stable_mosaic.version = 11 : i64} {
  func.func @_gemm_affine_res_kernel(%arg0: i32, %arg1: i32, %arg2: i32, %arg3: memref<32x288xbf16, #tpu.memory_space<vmem>>, %arg4: memref<288x128xbf16, #tpu.memory_space<vmem>>, %arg5: memref<1x128xf32, #tpu.memory_space<vmem>>, %arg6: memref<1x128xf32, #tpu.memory_space<vmem>>, %arg7: memref<32x128xbf16, #tpu.memory_space<vmem>>, %arg8: memref<32x128xbf16, #tpu.memory_space<vmem>>, %arg9: memref<32x128xf32, #tpu.memory_space<vmem>>) attributes {dimension_semantics = [#tpu.dimension_semantics<parallel>, #tpu.dimension_semantics<parallel>, #tpu.dimension_semantics<arbitrary>], iteration_bounds = array<i64: 1, 1, 1>, scalar_prefetch = 0 : i64, scratch_operands = 1 : i64, tpu.core_type = #tpu.core_type<tc>, window_params = [{transform_indices = @transform_0, window_bounds = array<i64: 32, 288>}, {transform_indices = @transform_1, window_bounds = array<i64: 288, 128>}, {transform_indices = @transform_2, window_bounds = array<i64: 1, 128>}, {transform_indices = @transform_3, window_bounds = array<i64: 1, 128>}, {transform_indices = @transform_4, window_bounds = array<i64: 32, 128>}, {transform_indices = @transform_5, window_bounds = array<i64: 32, 128>}]} {
    %c0_i32 = arith.constant 0 : i32
    %0 = arith.cmpi eq, %arg2, %c0_i32 : i32
    %1 = arith.extui %0 : i1 to i32
    %c0_i32_0 = arith.constant 0 : i32
    %2 = arith.cmpi ne, %1, %c0_i32_0 : i32
    scf.if %2 {
      %cst_10 = arith.constant 0.000000e+00 : f32
      %12 = vector.broadcast %cst_10 : f32 to vector<32x128xf32>
      %c0_11 = arith.constant 0 : index
      %c0_12 = arith.constant 0 : index
      %13 = vector.load %arg9[%c0_11, %c0_12] : memref<32x128xf32, #tpu.memory_space<vmem>>, vector<32x128xf32>
      tpu.vector_store %arg9[%c0_11, %c0_12], %12 {strides = array<i32>} : memref<32x128xf32, #tpu.memory_space<vmem>>, vector<32x128xf32>,
    } else {
    }
    %c0 = arith.constant 0 : index
    %c0_1 = arith.constant 0 : index
    %3 = vector.load %arg9[%c0, %c0_1] : memref<32x128xf32, #tpu.memory_space<vmem>>, vector<32x128xf32>
    %c0_2 = arith.constant 0 : index
    %c0_3 = arith.constant 0 : index
    %4 = vector.load %arg3[%c0_2, %c0_3] : memref<32x288xbf16, #tpu.memory_space<vmem>>, vector<32x288xbf16>
    %c0_4 = arith.constant 0 : index
    %c0_5 = arith.constant 0 : index
    %5 = vector.load %arg4[%c0_4, %c0_5] : memref<288x128xbf16, #tpu.memory_space<vmem>>, vector<288x128xbf16>
    %cst = arith.constant dense<0.000000e+00> : vector<32x128xf32>
    %6 = tpu.matmul %4, %5, %cst {dimension_numbers = #tpu.dot_dimension_numbers<[1], [0], [0], [1], [0, 0, 1, 1], [], []>} : vector<32x288xbf16>, vector<288x128xbf16>, vector<32x128xf32> -> vector<32x128xf32>
    %7 = arith.addf %3, %6 : vector<32x128xf32>
    %c0_6 = arith.constant 0 : index
    %c0_7 = arith.constant 0 : index
    %8 = vector.load %arg9[%c0_6, %c0_7] : memref<32x128xf32, #tpu.memory_space<vmem>>, vector<32x128xf32>
    tpu.vector_store %arg9[%c0_6, %c0_7], %7 {strides = array<i32>} : memref<32x128xf32, #tpu.memory_space<vmem>>, vector<32x128xf32>,
    %c0_i32_8 = arith.constant 0 : i32
    %9 = arith.cmpi eq, %arg2, %c0_i32_8 : i32
    %10 = arith.extui %9 : i1 to i32
    %c0_i32_9 = arith.constant 0 : i32
    %11 = arith.cmpi ne, %10, %c0_i32_9 : i32
    scf.if %11 {
      %c0_10 = arith.constant 0 : index
      %c0_11 = arith.constant 0 : index
      %12 = vector.load %arg9[%c0_10, %c0_11] : memref<32x128xf32, #tpu.memory_space<vmem>>, vector<32x128xf32>
      %c0_12 = arith.constant 0 : index
      %c0_13 = arith.constant 0 : index
      %13 = vector.load %arg5[%c0_12, %c0_13] : memref<1x128xf32, #tpu.memory_space<vmem>>, vector<1x128xf32>
      %14 = vector.broadcast %13 : vector<1x128xf32> to vector<32x128xf32>
      %15 = arith.mulf %12, %14 : vector<32x128xf32>
      %c0_14 = arith.constant 0 : index
      %c0_15 = arith.constant 0 : index
      %16 = vector.load %arg6[%c0_14, %c0_15] : memref<1x128xf32, #tpu.memory_space<vmem>>, vector<1x128xf32>
      %17 = vector.broadcast %16 : vector<1x128xf32> to vector<32x128xf32>
      %18 = arith.addf %15, %17 : vector<32x128xf32>
      %c0_16 = arith.constant 0 : index
      %c0_17 = arith.constant 0 : index
      %19 = vector.load %arg7[%c0_16, %c0_17] : memref<32x128xbf16, #tpu.memory_space<vmem>>, vector<32x128xbf16>
      %20 = arith.extf %19 : vector<32x128xbf16> to vector<32x128xf32>
      %21 = arith.addf %18, %20 : vector<32x128xf32>
      %cst_18 = arith.constant 0.000000e+00 : f32
      %22 = vector.broadcast %cst_18 : f32 to vector<32x128xf32>
      %23 = arith.maximumf %21, %22 : vector<32x128xf32>
      %24 = arith.truncf %23 : vector<32x128xf32> to vector<32x128xbf16>
      %c0_19 = arith.constant 0 : index
      %c0_20 = arith.constant 0 : index
      %25 = vector.load %arg8[%c0_19, %c0_20] : memref<32x128xbf16, #tpu.memory_space<vmem>>, vector<32x128xbf16>
      tpu.vector_store %arg8[%c0_19, %c0_20], %24 {strides = array<i32>} : memref<32x128xbf16, #tpu.memory_space<vmem>>, vector<32x128xbf16>,
    } else {
    }
    return
  }
  func.func @transform_0(%arg0: i32, %arg1: i32, %arg2: i32) -> (i32, i32) {
    %c0_i32 = arith.constant 0 : i32
    return %arg0, %arg2 : i32, i32
  }
  func.func @transform_1(%arg0: i32, %arg1: i32, %arg2: i32) -> (i32, i32) {
    %c0_i32 = arith.constant 0 : i32
    return %arg2, %arg1 : i32, i32
  }
  func.func @transform_2(%arg0: i32, %arg1: i32, %arg2: i32) -> (i32, i32) {
    %c0_i32 = arith.constant 0 : i32
    %c0_i32_0 = arith.constant 0 : i32
    return %c0_i32, %arg1 : i32, i32
  }
  func.func @transform_3(%arg0: i32, %arg1: i32, %arg2: i32) -> (i32, i32) {
    %c0_i32 = arith.constant 0 : i32
    %c0_i32_0 = arith.constant 0 : i32
    return %c0_i32, %arg1 : i32, i32
  }
  func.func @transform_4(%arg0: i32, %arg1: i32, %arg2: i32) -> (i32, i32) {
    %c0_i32 = arith.constant 0 : i32
    return %arg0, %arg1 : i32, i32
  }
  func.func @transform_5(%arg0: i32, %arg1: i32, %arg2: i32) -> (i32, i32) {
    %c0_i32 = arith.constant 0 : i32
    return %arg0, %arg1 : i32, i32
  }
}

module attributes {stable_mosaic.version = 11 : i64} {
  func.func @_pool_linear_kernel(%arg0: i32, %arg1: memref<2x16x128xbf16, #tpu.memory_space<vmem>>, %arg2: memref<128x128xbf16, #tpu.memory_space<vmem>>, %arg3: memref<1x128xf32, #tpu.memory_space<vmem>>, %arg4: memref<2x128xf32, #tpu.memory_space<vmem>>) attributes {dimension_semantics = [#tpu.dimension_semantics<arbitrary>], iteration_bounds = array<i64: 1>, scalar_prefetch = 0 : i64, scratch_operands = 0 : i64, tpu.core_type = #tpu.core_type<tc>, window_params = [{pipeline_mode = #tpu.pipeline_mode<synchronous>, transform_indices = @transform_0, window_bounds = array<i64: 2, 16, 128>}, {pipeline_mode = #tpu.pipeline_mode<synchronous>, transform_indices = @transform_1, window_bounds = array<i64: 128, 128>}, {pipeline_mode = #tpu.pipeline_mode<synchronous>, transform_indices = @transform_2, window_bounds = array<i64: 1, 128>}, {pipeline_mode = #tpu.pipeline_mode<synchronous>, transform_indices = @transform_3, window_bounds = array<i64: 2, 128>}]} {
    %c0 = arith.constant 0 : index
    %c0_0 = arith.constant 0 : index
    %c0_1 = arith.constant 0 : index
    %0 = vector.load %arg1[%c0, %c0_0, %c0_1] : memref<2x16x128xbf16, #tpu.memory_space<vmem>>, vector<2x16x128xbf16>
    %1 = arith.extf %0 : vector<2x16x128xbf16> to vector<2x16x128xf32>
    %cst = arith.constant dense<0.000000e+00> : vector<2x128xf32>
    %2 = vector.multi_reduction <add>, %1, %cst [1] : vector<2x16x128xf32> to vector<2x128xf32>
    %cst_2 = arith.constant 1.600000e+01 : f32
    %3 = vector.broadcast %cst_2 : f32 to vector<2x128xf32>
    %4 = arith.divf %2, %3 : vector<2x128xf32>
    %5 = arith.truncf %4 : vector<2x128xf32> to vector<2x128xbf16>
    %c0_3 = arith.constant 0 : index
    %c0_4 = arith.constant 0 : index
    %6 = vector.load %arg2[%c0_3, %c0_4] : memref<128x128xbf16, #tpu.memory_space<vmem>>, vector<128x128xbf16>
    %cst_5 = arith.constant dense<0.000000e+00> : vector<2x128xf32>
    %7 = tpu.matmul %5, %6, %cst_5 {dimension_numbers = #tpu.dot_dimension_numbers<[1], [0], [0], [1], [0, 0, 1, 1], [], []>} : vector<2x128xbf16>, vector<128x128xbf16>, vector<2x128xf32> -> vector<2x128xf32>
    %c0_6 = arith.constant 0 : index
    %c0_7 = arith.constant 0 : index
    %8 = vector.load %arg3[%c0_6, %c0_7] : memref<1x128xf32, #tpu.memory_space<vmem>>, vector<1x128xf32>
    %9 = vector.broadcast %8 : vector<1x128xf32> to vector<2x128xf32>
    %10 = arith.addf %7, %9 : vector<2x128xf32>
    %c0_8 = arith.constant 0 : index
    %c0_9 = arith.constant 0 : index
    %11 = vector.load %arg4[%c0_8, %c0_9] : memref<2x128xf32, #tpu.memory_space<vmem>>, vector<2x128xf32>
    tpu.vector_store %arg4[%c0_8, %c0_9], %10 {strides = array<i32>} : memref<2x128xf32, #tpu.memory_space<vmem>>, vector<2x128xf32>,
    return
  }
  func.func @transform_0(%arg0: i32) -> (i32, i32, i32) {
    %c0_i32 = arith.constant 0 : i32
    %c0_i32_0 = arith.constant 0 : i32
    %c0_i32_1 = arith.constant 0 : i32
    %c0_i32_2 = arith.constant 0 : i32
    return %c0_i32, %c0_i32_0, %c0_i32_1 : i32, i32, i32
  }
  func.func @transform_1(%arg0: i32) -> (i32, i32) {
    %c0_i32 = arith.constant 0 : i32
    %c0_i32_0 = arith.constant 0 : i32
    %c0_i32_1 = arith.constant 0 : i32
    return %c0_i32, %c0_i32_0 : i32, i32
  }
  func.func @transform_2(%arg0: i32) -> (i32, i32) {
    %c0_i32 = arith.constant 0 : i32
    %c0_i32_0 = arith.constant 0 : i32
    %c0_i32_1 = arith.constant 0 : i32
    return %c0_i32, %c0_i32_0 : i32, i32
  }
  func.func @transform_3(%arg0: i32) -> (i32, i32) {
    %c0_i32 = arith.constant 0 : i32
    %c0_i32_0 = arith.constant 0 : i32
    %c0_i32_1 = arith.constant 0 : i32
    return %c0_i32, %c0_i32_0 : i32, i32
  }
}

</mosaic_0001>

<llo_original>
// kernel: _lambda_.10
$region0: #{_lambda_.10}
  #allocation0 [shape = 'u32[]', space=smem, size = 0x4, offset = 0x4, fixed_abs, tag = 'smem constant byte address 0x4 - core index']
  #allocation1 [shape = 'u32[72,128]{1,0:T(1,128)}', space=vmem, size = 0x9000, scoped, tag = 'internal scratch']
  #allocation2 [shape = 'f32[512,128]{1,0:T(8,128)}', space=vmem, size = 0x40000, scoped, tag = 'scratch operand']
  %s0 = inlined_call_operand.vmem [shape: bf16[512,32], index: 0, kind: input, shape index: {}]
  %s1 = inlined_call_operand.vmem [shape: bf16[32,128], index: 1, kind: input, shape index: {}]
  %s2 = inlined_call_operand.vmem [shape: f32[1,128], index: 2, kind: input, shape index: {}]
  %s3 = inlined_call_operand.vmem [shape: f32[1,128], index: 3, kind: input, shape index: {}]
  %s4 = inlined_call_operand.vmem [shape: bf16[512,128], index: 4, kind: output, shape index: {}]
  %s5 = sld [smem:[#allocation0]]
  $region34: #{_lambda_.10} parent=0
    _
  %s7 = ssub.s32 1, %s5
  %s8 = scalar_select 0, %s7, %s5
  // Predicated region
  $region2: #{_lambda_.10} parent=0 // pred_check
    _
  $region3: #{_lambda_.10} parent=0 // pred_check_branch
    %10 = sbr.rel (0) target = $region5
  $region4: #{_lambda_.10} parent=0 // pred_region
    _
  $region5: #{_lambda_.10} parent=0 // pred_fallthru
    _
  // Predicated region
  $region6: #{_lambda_.10} parent=0 // pred_check
    _
  $region7: #{_lambda_.10} parent=0 // pred_check_branch
    %12 = sbr.rel (0) target = $region9
  $region8: #{_lambda_.10} parent=0 // pred_region
    _
  $region9: #{_lambda_.10} parent=0 // pred_fallthru
    _
  // Predicated region
  $region10: #{_lambda_.10} parent=0 // pred_check
    _
  $region11: #{_lambda_.10} parent=0 // pred_check_branch
    %14 = sbr.rel (0) target = $region13
  $region12: #{_lambda_.10} parent=0 // pred_region
    _
  $region13: #{_lambda_.10} parent=0 // pred_fallthru
    _
  // Predicated region
  $region14: #{_lambda_.10} parent=0 // pred_check
    _
  $region15: #{_lambda_.10} parent=0 // pred_check_branch
    %16 = sbr.rel (0) target = $region17
  $region16: #{_lambda_.10} parent=0 // pred_region
    _
  $region17: #{_lambda_.10} parent=0 // pred_fallthru
    _
  %p18 = scmp.eq.s32.totalorder 0, 0
  // Predicated region
  $region18: #{_lambda_.10} parent=0 // pred_check
    %p19 = pneg %p18
  $region19: #{_lambda_.10} parent=0 // pred_check_branch
    %21 = sbr.rel (%p19) target = $region21
  $region20: #{_lambda_.10} parent=0 // pred_region
    %22 = vst [vmem:[#allocation2] sm:$0xff] 0.0
    %23 = vst [vmem:[#allocation2 + $0x8] sm:$0xff] 0.0
    %24 = vst [vmem:[#allocation2 + $0x10] sm:$0xff] 0.0
    %25 = vst [vmem:[#allocation2 + $0x18] sm:$0xff] 0.0
    %26 = vst [vmem:[#allocation2 + $0x20] sm:$0xff] 0.0
    %27 = vst [vmem:[#allocation2 + $0x28] sm:$0xff] 0.0
    %28 = vst [vmem:[#allocation2 + $0x30] sm:$0xff] 0.0
    %29 = vst [vmem:[#allocation2 + $0x38] sm:$0xff] 0.0
    %30 = vst [vmem:[#allocation2 + $0x40] sm:$0xff] 0.0
    %31 = vst [vmem:[#allocation2 + $0x48] sm:$0xff] 0.0
    %32 = vst [vmem:[#allocation2 + $0x50] sm:$0xff] 0.0
    %33 = vst [vmem:[#allocation2 + $0x58] sm:$0xff] 0.0
    %34 = vst [vmem:[#allocation2 + $0x60] sm:$0xff] 0.0
    %35 = vst [vmem:[#allocation2 + $0x68] sm:$0xff] 0.0
    %36 = vst [vmem:[#allocation2 + $0x70] sm:$0xff] 0.0
    %37 = vst [vmem:[#allocation2 + $0x78] sm:$0xff] 0.0
    %38 = vst [vmem:[#allocation2 + $0x80] sm:$0xff] 0.0
    %39 = vst [vmem:[#allocation2 + $0x88] sm:$0xff] 0.0
    %40 = vst [vmem:[#allocation2 + $0x90] sm:$0xff] 0.0
    %41 = vst [vmem:[#allocation2 + $0x98] sm:$0xff] 0.0
    %42 = vst [vmem:[#allocation2 + $0xa0] sm:$0xff] 0.0
    %43 = vst [vmem:[#allocation2 + $0xa8] sm:$0xff] 0.0
    %44 = vst [vmem:[#allocation2 + $0xb0] sm:$0xff] 0.0
    %45 = vst [vmem:[#allocation2 + $0xb8] sm:$0xff] 0.0
    %46 = vst [vmem:[#allocation2 + $0xc0] sm:$0xff] 0.0
    %47 = vst [vmem:[#allocation2 + $0xc8] sm:$0xff] 0.0
    %48 = vst [vmem:[#allocation2 + $0xd0] sm:$0xff] 0.0
    %49 = vst [vmem:[#allocation2 + $0xd8] sm:$0xff] 0.0
    %50 = vst [vmem:[#allocation2 + $0xe0] sm:$0xff] 0.0
    %51 = vst [vmem:[#allocation2 + $0xe8] sm:$0xff] 0.0
    %52 = vst [vmem:[#allocation2 + $0xf0] sm:$0xff] 0.0
    %53 = vst [vmem:[#allocation2 + $0xf8] sm:$0xff] 0.0
    %54 = vst [vmem:[#allocation2 + $0x100] sm:$0xff] 0.0
    %55 = vst [vmem:[#allocation2 + $0x108] sm:$0xff] 0.0
    %56 = vst [vmem:[#allocation2 + $0x110] sm:$0xff] 0.0
    %57 = vst [vmem:[#allocation2 + $0x118] sm:$0xff] 0.0
    %58 = vst [vmem:[#allocation2 + $0x120] sm:$0xff] 0.0
    %59 = vst [vmem:[#allocation2 + $0x128] sm:$0xff] 0.0
    %60 = vst [vmem:[#allocation2 + $0x130] sm:$0xff] 0.0
    %61 = vst [vmem:[#allocation2 + $0x138] sm:$0xff] 0.0
    %62 = vst [vmem:[#allocation2 + $0x140] sm:$0xff] 0.0
    %63 = vst [vmem:[#allocation2 + $0x148] sm:$0xff] 0.0
    %64 = vst [vmem:[#allocation2 + $0x150] sm:$0xff] 0.0
    %65 = vst [vmem:[#allocation2 + $0x158] sm:$0xff] 0.0
    %66 = vst [vmem:[#allocation2 + $0x160] sm:$0xff] 0.0
    %67 = vst [vmem:[#allocation2 + $0x168] sm:$0xff] 0.0
    %68 = vst [vmem:[#allocation2 + $0x170] sm:$0xff] 0.0
    %69 = vst [vmem:[#allocation2 + $0x178] sm:$0xff] 0.0
    %70 = vst [vmem:[#allocation2 + $0x180] sm:$0xff] 0.0
    %71 = vst [vmem:[#allocation2 + $0x188] sm:$0xff] 0.0
    %72 = vst [vmem:[#allocation2 + $0x190] sm:$0xff] 0.0
    %73 = vst [vmem:[#allocation2 + $0x198] sm:$0xff] 0.0
    %74 = vst [vmem:[#allocation2 + $0x1a0] sm:$0xff] 0.0
    %75 = vst [vmem:[#allocation2 + $0x1a8] sm:$0xff] 0.0
    %76 = vst [vmem:[#allocation2 + $0x1b0] sm:$0xff] 0.0
    %77 = vst [vmem:[#allocation2 + $0x1b8] sm:$0xff] 0.0
    %78 = vst [vmem:[#allocation2 + $0x1c0] sm:$0xff] 0.0
    %79 = vst [vmem:[#allocation2 + $0x1c8] sm:$0xff] 0.0
    %80 = vst [vmem:[#allocation2 + $0x1d0] sm:$0xff] 0.0
    %81 = vst [vmem:[#allocation2 + $0x1d8] sm:$0xff] 0.0
    %82 = vst [vmem:[#allocation2 + $0x1e0] sm:$0xff] 0.0
    %83 = vst [vmem:[#allocation2 + $0x1e8] sm:$0xff] 0.0
    %84 = vst [vmem:[#allocation2 + $0x1f0] sm:$0xff] 0.0
    %85 = vst [vmem:[#allocation2 + $0x1f8] sm:$0xff] 0.0
  $region21: #{_lambda_.10} parent=0 // pred_fallthru
    _
  %v86 = vld [vmem:[#allocation2] sm:$0xff]
  %v87 = vld [vmem:[#allocation2 + $0x8] sm:$0xff]
  %v88 = vld [vmem:[#allocation2 + $0x10] sm:$0xff]
  %v89 = vld [vmem:[#allocation2 + $0x18] sm:$0xff]
  %v90 = vld [vmem:[#allocation2 + $0x20] sm:$0xff]
  %v91 = vld [vmem:[#allocation2 + $0x28] sm:$0xff]
  %v92 = vld [vmem:[#allocation2 + $0x30] sm:$0xff]
  %v93 = vld [vmem:[#allocation2 + $0x38] sm:$0xff]
  %v94 = vld [vmem:[#allocation2 + $0x40] sm:$0xff]
  %v95 = vld [vmem:[#allocation2 + $0x48] sm:$0xff]
  %v96 = vld [vmem:[#allocation2 + $0x50] sm:$0xff]
  %v97 = vld [vmem:[#allocation2 + $0x58] sm:$0xff]
  %v98 = vld [vmem:[#allocation2 + $0x60] sm:$0xff]
  %v99 = vld [vmem:[#allocation2 + $0x68] sm:$0xff]
  %v100 = vld [vmem:[#allocation2 + $0x70] sm:$0xff]
  %v101 = vld [vmem:[#allocation2 + $0x78] sm:$0xff]
  %v102 = vld [vmem:[#allocation2 + $0x80] sm:$0xff]
  %v103 = vld [vmem:[#allocation2 + $0x88] sm:$0xff]
  %v104 = vld [vmem:[#allocation2 + $0x90] sm:$0xff]
  %v105 = vld [vmem:[#allocation2 + $0x98] sm:$0xff]
  %v106 = vld [vmem:[#allocation2 + $0xa0] sm:$0xff]
  %v107 = vld [vmem:[#allocation2 + $0xa8] sm:$0xff]
  %v108 = vld [vmem:[#allocation2 + $0xb0] sm:$0xff]
  %v109 = vld [vmem:[#allocation2 + $0xb8] sm:$0xff]
  %v110 = vld [vmem:[#allocation2 + $0xc0] sm:$0xff]
  %v111 = vld [vmem:[#allocation2 + $0xc8] sm:$0xff]
  %v112 = vld [vmem:[#allocation2 + $0xd0] sm:$0xff]
  %v113 = vld [vmem:[#allocation2 + $0xd8] sm:$0xff]
  %v114 = vld [vmem:[#allocation2 + $0xe0] sm:$0xff]
  %v115 = vld [vmem:[#allocation2 + $0xe8] sm:$0xff]
  %v116 = vld [vmem:[#allocation2 + $0xf0] sm:$0xff]
  %v117 = vld [vmem:[#allocation2 + $0xf8] sm:$0xff]
  %v118 = vld [vmem:[#allocation2 + $0x100] sm:$0xff]
  %v119 = vld [vmem:[#allocation2 + $0x108] sm:$0xff]
  %v120 = vld [vmem:[#allocation2 + $0x110] sm:$0xff]
  %v121 = vld [vmem:[#allocation2 + $0x118] sm:$0xff]
  %v122 = vld [vmem:[#allocation2 + $0x120] sm:$0xff]
  %v123 = vld [vmem:[#allocation2 + $0x128] sm:$0xff]
  %v124 = vld [vmem:[#allocation2 + $0x130] sm:$0xff]
  %v125 = vld [vmem:[#allocation2 + $0x138] sm:$0xff]
  %v126 = vld [vmem:[#allocation2 + $0x140] sm:$0xff]
  %v127 = vld [vmem:[#allocation2 + $0x148] sm:$0xff]
  %v128 = vld [vmem:[#allocation2 + $0x150] sm:$0xff]
  %v129 = vld [vmem:[#allocation2 + $0x158] sm:$0xff]
  %v130 = vld [vmem:[#allocation2 + $0x160] sm:$0xff]
  %v131 = vld [vmem:[#allocation2 + $0x168] sm:$0xff]
  %v132 = vld [vmem:[#allocation2 + $0x170] sm:$0xff]
  %v133 = vld [vmem:[#allocation2 + $0x178] sm:$0xff]
  %v134 = vld [vmem:[#allocation2 + $0x180] sm:$0xff]
  %v135 = vld [vmem:[#allocation2 + $0x188] sm:$0xff]
  %v136 = vld [vmem:[#allocation2 + $0x190] sm:$0xff]
  %v137 = vld [vmem:[#allocation2 + $0x198] sm:$0xff]
  %v138 = vld [vmem:[#allocation2 + $0x1a0] sm:$0xff]
  %v139 = vld [vmem:[#allocation2 + $0x1a8] sm:$0xff]
  %v140 = vld [vmem:[#allocation2 + $0x1b0] sm:$0xff]
  %v141 = vld [vmem:[#allocation2 + $0x1b8] sm:$0xff]
  %v142 = vld [vmem:[#allocation2 + $0x1c0] sm:$0xff]
  %v143 = vld [vmem:[#allocation2 + $0x1c8] sm:$0xff]
  %v144 = vld [vmem:[#allocation2 + $0x1d0] sm:$0xff]
  %v145 = vld [vmem:[#allocation2 + $0x1d8] sm:$0xff]
  %v146 = vld [vmem:[#allocation2 + $0x1e0] sm:$0xff]
  %v147 = vld [vmem:[#allocation2 + $0x1e8] sm:$0xff]
  %v148 = vld [vmem:[#allocation2 + $0x1f0] sm:$0xff]
  %v149 = vld [vmem:[#allocation2 + $0x1f8] sm:$0xff]
  %v150 = vld [vmem:[%s0] sm:$0xf]
  %v151 = vld [vmem:[%s0 + $0x4] sm:$0xf]
  %v152 = vld [vmem:[%s0 + $0x8] sm:$0xf]
  %v153 = vld [vmem:[%s0 + $0xc] sm:$0xf]
  %v154 = vld [vmem:[%s0 + $0x10] sm:$0xf]
  %v155 = vld [vmem:[%s0 + $0x14] sm:$0xf]
  %v156 = vld [vmem:[%s0 + $0x18] sm:$0xf]
  %v157 = vld [vmem:[%s0 + $0x1c] sm:$0xf]
  %v158 = vld [vmem:[%s0 + $0x20] sm:$0xf]
  %v159 = vld [vmem:[%s0 + $0x24] sm:$0xf]
  %v160 = vld [vmem:[%s0 + $0x28] sm:$0xf]
  %v161 = vld [vmem:[%s0 + $0x2c] sm:$0xf]
  %v162 = vld [vmem:[%s0 + $0x30] sm:$0xf]
  %v163 = vld [vmem:[%s0 + $0x34] sm:$0xf]
  %v164 = vld [vmem:[%s0 + $0x38] sm:$0xf]
  %v165 = vld [vmem:[%s0 + $0x3c] sm:$0xf]
  %v166 = vld [vmem:[%s0 + $0x40] sm:$0xf]
  %v167 = vld [vmem:[%s0 + $0x44] sm:$0xf]
  %v168 = vld [vmem:[%s0 + $0x48] sm:$0xf]
  %v169 = vld [vmem:[%s0 + $0x4c] sm:$0xf]
  %v170 = vld [vmem:[%s0 + $0x50] sm:$0xf]
  %v171 = vld [vmem:[%s0 + $0x54] sm:$0xf]
  %v172 = vld [vmem:[%s0 + $0x58] sm:$0xf]
  %v173 = vld [vmem:[%s0 + $0x5c] sm:$0xf]
  %v174 = vld [vmem:[%s0 + $0x60] sm:$0xf]
  %v175 = vld [vmem:[%s0 + $0x64] sm:$0xf]
  %v176 = vld [vmem:[%s0 + $0x68] sm:$0xf]
  %v177 = vld [vmem:[%s0 + $0x6c] sm:$0xf]
  %v178 = vld [vmem:[%s0 + $0x70] sm:$0xf]
  %v179 = vld [vmem:[%s0 + $0x74] sm:$0xf]
  %v180 = vld [vmem:[%s0 + $0x78] sm:$0xf]
  %v181 = vld [vmem:[%s0 + $0x7c] sm:$0xf]
  %v182 = vld [vmem:[%s0 + $0x80] sm:$0xf]
  %v183 = vld [vmem:[%s0 + $0x84] sm:$0xf]
  %v184 = vld [vmem:[%s0 + $0x88] sm:$0xf]
  %v185 = vld [vmem:[%s0 + $0x8c] sm:$0xf]
  %v186 = vld [vmem:[%s0 + $0x90] sm:$0xf]
  %v187 = vld [vmem:[%s0 + $0x94] sm:$0xf]
  %v188 = vld [vmem:[%s0 + $0x98] sm:$0xf]
  %v189 = vld [vmem:[%s0 + $0x9c] sm:$0xf]
  %v190 = vld [vmem:[%s0 + $0xa0] sm:$0xf]
  %v191 = vld [vmem:[%s0 + $0xa4] sm:$0xf]
  %v192 = vld [vmem:[%s0 + $0xa8] sm:$0xf]
  %v193 = vld [vmem:[%s0 + $0xac] sm:$0xf]
  %v194 = vld [vmem:[%s0 + $0xb0] sm:$0xf]
  %v195 = vld [vmem:[%s0 + $0xb4] sm:$0xf]
  %v196 = vld [vmem:[%s0 + $0xb8] sm:$0xf]
  %v197 = vld [vmem:[%s0 + $0xbc] sm:$0xf]
  %v198 = vld [vmem:[%s0 + $0xc0] sm:$0xf]
  %v199 = vld [vmem:[%s0 + $0xc4] sm:$0xf]
  %v200 = vld [vmem:[%s0 + $0xc8] sm:$0xf]
  %v201 = vld [vmem:[%s0 + $0xcc] sm:$0xf]
  %v202 = vld [vmem:[%s0 + $0xd0] sm:$0xf]
  %v203 = vld [vmem:[%s0 + $0xd4] sm:$0xf]
  %v204 = vld [vmem:[%s0 + $0xd8] sm:$0xf]
  %v205 = vld [vmem:[%s0 + $0xdc] sm:$0xf]
  %v206 = vld [vmem:[%s0 + $0xe0] sm:$0xf]
  %v207 = vld [vmem:[%s0 + $0xe4] sm:$0xf]
  %v208 = vld [vmem:[%s0 + $0xe8] sm:$0xf]
  %v209 = vld [vmem:[%s0 + $0xec] sm:$0xf]
  %v210 = vld [vmem:[%s0 + $0xf0] sm:$0xf]
  %v211 = vld [vmem:[%s0 + $0xf4] sm:$0xf]
  %v212 = vld [vmem:[%s0 + $0xf8] sm:$0xf]
  %v213 = vld [vmem:[%s0 + $0xfc] sm:$0xf]
  %v214 = vld [vmem:[%s1] sm:$0xf]
  %v215 = vld [vmem:[%s1 + $0x4] sm:$0xf]
  %v216 = vld [vmem:[%s1 + $0x8] sm:$0xf]
  %v217 = vld [vmem:[%s1 + $0xc] sm:$0xf]
  %v282 = vunpack.c.l.b16 %v150
  %v283 = vunpack.c.l.b16 %v151
  %v284 = vunpack.c.l.b16 %v152
  %v285 = vunpack.c.l.b16 %v153
  %v286 = vunpack.c.l.b16 %v154
  %v287 = vunpack.c.l.b16 %v155
  %v288 = vunpack.c.l.b16 %v156
  %v289 = vunpack.c.l.b16 %v157
  %v290 = vunpack.c.l.b16 %v158
  %v291 = vunpack.c.l.b16 %v159
  %v292 = vunpack.c.l.b16 %v160
  %v293 = vunpack.c.l.b16 %v161
  %v294 = vunpack.c.l.b16 %v162
  %v295 = vunpack.c.l.b16 %v163
  %v296 = vunpack.c.l.b16 %v164
  %v297 = vunpack.c.l.b16 %v165
  %v298 = vunpack.c.l.b16 %v166
  %v299 = vunpack.c.l.b16 %v167
  %v300 = vunpack.c.l.b16 %v168
  %v301 = vunpack.c.l.b16 %v169
  %v302 = vunpack.c.l.b16 %v170
  %v303 = vunpack.c.l.b16 %v171
  %v304 = vunpack.c.l.b16 %v172
  %v305 = vunpack.c.l.b16 %v173
  %v306 = vunpack.c.l.b16 %v174
  %v307 = vunpack.c.l.b16 %v175
  %v308 = vunpack.c.l.b16 %v176
  %v309 = vunpack.c.l.b16 %v177
  %v310 = vunpack.c.l.b16 %v178
  %v311 = vunpack.c.l.b16 %v179
  %v312 = vunpack.c.l.b16 %v180
  %v313 = vunpack.c.l.b16 %v181
  %v314 = vunpack.c.l.b16 %v182
  %v315 = vunpack.c.l.b16 %v183
  %v316 = vunpack.c.l.b16 %v184
  %v317 = vunpack.c.l.b16 %v185
  %v318 = vunpack.c.l.b16 %v186
  %v319 = vunpack.c.l.b16 %v187
  %v320 = vunpack.c.l.b16 %v188
  %v321 = vunpack.c.l.b16 %v189
  %v322 = vunpack.c.l.b16 %v190
  %v323 = vunpack.c.l.b16 %v191
  %v324 = vunpack.c.l.b16 %v192
  %v325 = vunpack.c.l.b16 %v193
  %v326 = vunpack.c.l.b16 %v194
  %v327 = vunpack.c.l.b16 %v195
  %v328 = vunpack.c.l.b16 %v196
  %v329 = vunpack.c.l.b16 %v197
  %v330 = vunpack.c.l.b16 %v198
  %v331 = vunpack.c.l.b16 %v199
  %v332 = vunpack.c.l.b16 %v200
  %v333 = vunpack.c.l.b16 %v201
  %v334 = vunpack.c.l.b16 %v202
  %v335 = vunpack.c.l.b16 %v203
  %v336 = vunpack.c.l.b16 %v204
  %v337 = vunpack.c.l.b16 %v205
  %v338 = vunpack.c.l.b16 %v206
  %v339 = vunpack.c.l.b16 %v207
  %v340 = vunpack.c.l.b16 %v208
  %v341 = vunpack.c.l.b16 %v209
  %v342 = vunpack.c.l.b16 %v210
  %v343 = vunpack.c.l.b16 %v211
  %v344 = vunpack.c.l.b16 %v212
  %v345 = vunpack.c.l.b16 %v213
  %v346 = vpack.c.b16 %v283, %v282
  %v347 = vpack.c.b16 %v285, %v284
  %v348 = vpack.c.b16 %v287, %v286
  %v349 = vpack.c.b16 %v289, %v288
  %v350 = vpack.c.b16 %v291, %v290
  %v351 = vpack.c.b16 %v293, %v292
  %v352 = vpack.c.b16 %v295, %v294
  %v353 = vpack.c.b16 %v297, %v296
  %v354 = vpack.c.b16 %v299, %v298
  %v355 = vpack.c.b16 %v301, %v300
  %v356 = vpack.c.b16 %v303, %v302
  %v357 = vpack.c.b16 %v305, %v304
  %v358 = vpack.c.b16 %v307, %v306
  %v359 = vpack.c.b16 %v309, %v308
  %v360 = vpack.c.b16 %v311, %v310
  %v361 = vpack.c.b16 %v313, %v312
  %v362 = vpack.c.b16 %v315, %v314
  %v363 = vpack.c.b16 %v317, %v316
  %v364 = vpack.c.b16 %v319, %v318
  %v365 = vpack.c.b16 %v321, %v320
  %v366 = vpack.c.b16 %v323, %v322
  %v367 = vpack.c.b16 %v325, %v324
  %v368 = vpack.c.b16 %v327, %v326
  %v369 = vpack.c.b16 %v329, %v328
  %v370 = vpack.c.b16 %v331, %v330
  %v371 = vpack.c.b16 %v333, %v332
  %v372 = vpack.c.b16 %v335, %v334
  %v373 = vpack.c.b16 %v337, %v336
  %v374 = vpack.c.b16 %v339, %v338
  %v375 = vpack.c.b16 %v341, %v340
  %v376 = vpack.c.b16 %v343, %v342
  %v377 = vpack.c.b16 %v345, %v344
  %v382 = vunpack.c.l.b16 %v214
  %v383 = vunpack.c.l.b16 %v215
  %v384 = vunpack.c.l.b16 %v216
  %v385 = vunpack.c.l.b16 %v217
  %v386 = vpack.c.b16 %v383, %v382
  %v387 = vpack.c.b16 %v385, %v384
  %vm390 = vcmask 261120
  %v392 = vsel %vm390, %v346, 0
  %v395 = vsel %vm390, %v347, 0
  %v398 = vsel %vm390, %v348, 0
  %v401 = vsel %vm390, %v349, 0
  %v404 = vsel %vm390, %v350, 0
  %v407 = vsel %vm390, %v351, 0
  %v410 = vsel %vm390, %v352, 0
  %v413 = vsel %vm390, %v353, 0
  %v416 = vsel %vm390, %v354, 0
  %v419 = vsel %vm390, %v355, 0
  %v422 = vsel %vm390, %v356, 0
  %v425 = vsel %vm390, %v357, 0
  %v428 = vsel %vm390, %v358, 0
  %v431 = vsel %vm390, %v359, 0
  %v434 = vsel %vm390, %v360, 0
  %v437 = vsel %vm390, %v361, 0
  %v440 = vsel %vm390, %v362, 0
  %v443 = vsel %vm390, %v363, 0
  %v446 = vsel %vm390, %v364, 0
  %v449 = vsel %vm390, %v365, 0
  %v452 = vsel %vm390, %v366, 0
  %v455 = vsel %vm390, %v367, 0
  %v458 = vsel %vm390, %v368, 0
  %v461 = vsel %vm390, %v369, 0
  %v464 = vsel %vm390, %v370, 0
  %v467 = vsel %vm390, %v371, 0
  %v470 = vsel %vm390, %v372, 0
  %v473 = vsel %vm390, %v373, 0
  %v476 = vsel %vm390, %v374, 0
  %v479 = vsel %vm390, %v375, 0
  %v482 = vsel %vm390, %v376, 0
  %v485 = vsel %vm390, %v377, 0
  %487 = vmatpush.bf16.msra.mxu0 0
  %488 = vmatpush.bf16.msra.mxu0 0
  %489 = vmatpush.bf16.msra.mxu0 0
  %490 = vmatpush.bf16.msra.mxu0 0
  %491 = vmatpush.bf16.msra.mxu0 0
  %492 = vmatpush.bf16.msra.mxu0 0
  %493 = vmatpush.bf16.msra.mxu0 %v387
  %494 = vmatpush.bf16.msra.mxu0 %v386
  %495 = vmatmul.bf16.gmra.mxu0 %v392
  %v496 = vpop.f32.mrf.mxu0
  %v497 = vadd.f32 0.0, %v496
  %v498 = vpop.f32.mrf.mxu0
  %v499 = vadd.f32 0.0, %v498
  %500 = vmatmul.bf16.gmra.mxu0 %v395
  %v501 = vpop.f32.mrf.mxu0
  %v502 = vadd.f32 0.0, %v501
  %v503 = vpop.f32.mrf.mxu0
  %v504 = vadd.f32 0.0, %v503
  %505 = vmatmul.bf16.gmra.mxu0 %v398
  %v506 = vpop.f32.mrf.mxu0
  %v507 = vadd.f32 0.0, %v506
  %v508 = vpop.f32.mrf.mxu0
  %v509 = vadd.f32 0.0, %v508
  %510 = vmatmul.bf16.gmra.mxu0 %v401
  %v511 = vpop.f32.mrf.mxu0
  %v512 = vadd.f32 0.0, %v511
  %v513 = vpop.f32.mrf.mxu0
  %v514 = vadd.f32 0.0, %v513
  %515 = vmatmul.bf16.gmra.mxu0 %v404
  %v516 = vpop.f32.mrf.mxu0
  %v517 = vadd.f32 0.0, %v516
  %v518 = vpop.f32.mrf.mxu0
  %v519 = vadd.f32 0.0, %v518
  %520 = vmatmul.bf16.gmra.mxu0 %v407
  %v521 = vpop.f32.mrf.mxu0
  %v522 = vadd.f32 0.0, %v521
  %v523 = vpop.f32.mrf.mxu0
  %v524 = vadd.f32 0.0, %v523
  %525 = vmatmul.bf16.gmra.mxu0 %v410
  %v526 = vpop.f32.mrf.mxu0
  %v527 = vadd.f32 0.0, %v526
  %v528 = vpop.f32.mrf.mxu0
  %v529 = vadd.f32 0.0, %v528
  %530 = vmatmul.bf16.gmra.mxu0 %v413
  %v531 = vpop.f32.mrf.mxu0
  %v532 = vadd.f32 0.0, %v531
  %v533 = vpop.f32.mrf.mxu0
  %v534 = vadd.f32 0.0, %v533
  %535 = vmatmul.bf16.gmra.mxu0 %v416
  %v536 = vpop.f32.mrf.mxu0
  %v537 = vadd.f32 0.0, %v536
  %v538 = vpop.f32.mrf.mxu0
  %v539 = vadd.f32 0.0, %v538
  %540 = vmatmul.bf16.gmra.mxu0 %v419
  %v541 = vpop.f32.mrf.mxu0
  %v542 = vadd.f32 0.0, %v541
  %v543 = vpop.f32.mrf.mxu0
  %v544 = vadd.f32 0.0, %v543
  %545 = vmatmul.bf16.gmra.mxu0 %v422
  %v546 = vpop.f32.mrf.mxu0
  %v547 = vadd.f32 0.0, %v546
  %v548 = vpop.f32.mrf.mxu0
  %v549 = vadd.f32 0.0, %v548
  %550 = vmatmul.bf16.gmra.mxu0 %v425
  %v551 = vpop.f32.mrf.mxu0
  %v552 = vadd.f32 0.0, %v551
  %v553 = vpop.f32.mrf.mxu0
  %v554 = vadd.f32 0.0, %v553
  %555 = vmatmul.bf16.gmra.mxu0 %v428
  %v556 = vpop.f32.mrf.mxu0
  %v557 = vadd.f32 0.0, %v556
  %v558 = vpop.f32.mrf.mxu0
  %v559 = vadd.f32 0.0, %v558
  %560 = vmatmul.bf16.gmra.mxu0 %v431
  %v561 = vpop.f32.mrf.mxu0
  %v562 = vadd.f32 0.0, %v561
  %v563 = vpop.f32.mrf.mxu0
  %v564 = vadd.f32 0.0, %v563
  %565 = vmatmul.bf16.gmra.mxu0 %v434
  %v566 = vpop.f32.mrf.mxu0
  %v567 = vadd.f32 0.0, %v566
  %v568 = vpop.f32.mrf.mxu0
  %v569 = vadd.f32 0.0, %v568
  %570 = vmatmul.bf16.gmra.mxu0 %v437
  %v571 = vpop.f32.mrf.mxu0
  %v572 = vadd.f32 0.0, %v571
  %v573 = vpop.f32.mrf.mxu0
  %v574 = vadd.f32 0.0, %v573
  %575 = vmatmul.bf16.gmra.mxu0 %v440
  %v576 = vpop.f32.mrf.mxu0
  %v577 = vadd.f32 0.0, %v576
  %v578 = vpop.f32.mrf.mxu0
  %v579 = vadd.f32 0.0, %v578
  %580 = vmatmul.bf16.gmra.mxu0 %v443
  %v581 = vpop.f32.mrf.mxu0
  %v582 = vadd.f32 0.0, %v581
  %v583 = vpop.f32.mrf.mxu0
  %v584 = vadd.f32 0.0, %v583
  %585 = vmatmul.bf16.gmra.mxu0 %v446
  %v586 = vpop.f32.mrf.mxu0
  %v587 = vadd.f32 0.0, %v586
  %v588 = vpop.f32.mrf.mxu0
  %v589 = vadd.f32 0.0, %v588
  %590 = vmatmul.bf16.gmra.mxu0 %v449
  %v591 = vpop.f32.mrf.mxu0
  %v592 = vadd.f32 0.0, %v591
  %v593 = vpop.f32.mrf.mxu0
  %v594 = vadd.f32 0.0, %v593
  %595 = vmatmul.bf16.gmra.mxu0 %v452
  %v596 = vpop.f32.mrf.mxu0
  %v597 = vadd.f32 0.0, %v596
  %v598 = vpop.f32.mrf.mxu0
  %v599 = vadd.f32 0.0, %v598
  %600 = vmatmul.bf16.gmra.mxu0 %v455
  %v601 = vpop.f32.mrf.mxu0
  %v602 = vadd.f32 0.0, %v601
  %v603 = vpop.f32.mrf.mxu0
  %v604 = vadd.f32 0.0, %v603
  %605 = vmatmul.bf16.gmra.mxu0 %v458
  %v606 = vpop.f32.mrf.mxu0
  %v607 = vadd.f32 0.0, %v606
  %v608 = vpop.f32.mrf.mxu0
  %v609 = vadd.f32 0.0, %v608
  %610 = vmatmul.bf16.gmra.mxu0 %v461
  %v611 = vpop.f32.mrf.mxu0
  %v612 = vadd.f32 0.0, %v611
  %v613 = vpop.f32.mrf.mxu0
  %v614 = vadd.f32 0.0, %v613
  %615 = vmatmul.bf16.gmra.mxu0 %v464
  %v616 = vpop.f32.mrf.mxu0
  %v617 = vadd.f32 0.0, %v616
  %v618 = vpop.f32.mrf.mxu0
  %v619 = vadd.f32 0.0, %v618
  %620 = vmatmul.bf16.gmra.mxu0 %v467
  %v621 = vpop.f32.mrf.mxu0
  %v622 = vadd.f32 0.0, %v621
  %v623 = vpop.f32.mrf.mxu0
  %v624 = vadd.f32 0.0, %v623
  %625 = vmatmul.bf16.gmra.mxu0 %v470
  %v626 = vpop.f32.mrf.mxu0
  %v627 = vadd.f32 0.0, %v626
  %v628 = vpop.f32.mrf.mxu0
  %v629 = vadd.f32 0.0, %v628
  %630 = vmatmul.bf16.gmra.mxu0 %v473
  %v631 = vpop.f32.mrf.mxu0
  %v632 = vadd.f32 0.0, %v631
  %v633 = vpop.f32.mrf.mxu0
  %v634 = vadd.f32 0.0, %v633
  %635 = vmatmul.bf16.gmra.mxu0 %v476
  %v636 = vpop.f32.mrf.mxu0
  %v637 = vadd.f32 0.0, %v636
  %v638 = vpop.f32.mrf.mxu0
  %v639 = vadd.f32 0.0, %v638
  %640 = vmatmul.bf16.gmra.mxu0 %v479
  %v641 = vpop.f32.mrf.mxu0
  %v642 = vadd.f32 0.0, %v641
  %v643 = vpop.f32.mrf.mxu0
  %v644 = vadd.f32 0.0, %v643
  %645 = vmatmul.bf16.gmra.mxu0 %v482
  %v646 = vpop.f32.mrf.mxu0
  %v647 = vadd.f32 0.0, %v646
  %v648 = vpop.f32.mrf.mxu0
  %v649 = vadd.f32 0.0, %v648
  %650 = vmatmul.bf16.gmra.mxu0 %v485
  %v651 = vpop.f32.mrf.mxu0
  %v652 = vadd.f32 0.0, %v651
  %v653 = vpop.f32.mrf.mxu0
  %v654 = vadd.f32 0.0, %v653
  %655 = vdwg.mxu0
  %v656 = vadd.f32 %v86, %v497
  %v657 = vadd.f32 %v87, %v499
  %v658 = vadd.f32 %v88, %v502
  %v659 = vadd.f32 %v89, %v504
  %v660 = vadd.f32 %v90, %v507
  %v661 = vadd.f32 %v91, %v509
  %v662 = vadd.f32 %v92, %v512
  %v663 = vadd.f32 %v93, %v514
  %v664 = vadd.f32 %v94, %v517
  %v665 = vadd.f32 %v95, %v519
  %v666 = vadd.f32 %v96, %v522
  %v667 = vadd.f32 %v97, %v524
  %v668 = vadd.f32 %v98, %v527
  %v669 = vadd.f32 %v99, %v529
  %v670 = vadd.f32 %v100, %v532
  %v671 = vadd.f32 %v101, %v534
  %v672 = vadd.f32 %v102, %v537
  %v673 = vadd.f32 %v103, %v539
  %v674 = vadd.f32 %v104, %v542
  %v675 = vadd.f32 %v105, %v544
  %v676 = vadd.f32 %v106, %v547
  %v677 = vadd.f32 %v107, %v549
  %v678 = vadd.f32 %v108, %v552
  %v679 = vadd.f32 %v109, %v554
  %v680 = vadd.f32 %v110, %v557
  %v681 = vadd.f32 %v111, %v559
  %v682 = vadd.f32 %v112, %v562
  %v683 = vadd.f32 %v113, %v564
  %v684 = vadd.f32 %v114, %v567
  %v685 = vadd.f32 %v115, %v569
  %v686 = vadd.f32 %v116, %v572
  %v687 = vadd.f32 %v117, %v574
  %v688 = vadd.f32 %v118, %v577
  %v689 = vadd.f32 %v119, %v579
  %v690 = vadd.f32 %v120, %v582
  %v691 = vadd.f32 %v121, %v584
  %v692 = vadd.f32 %v122, %v587
  %v693 = vadd.f32 %v123, %v589
  %v694 = vadd.f32 %v124, %v592
  %v695 = vadd.f32 %v125, %v594
  %v696 = vadd.f32 %v126, %v597
  %v697 = vadd.f32 %v127, %v599
  %v698 = vadd.f32 %v128, %v602
  %v699 = vadd.f32 %v129, %v604
  %v700 = vadd.f32 %v130, %v607
  %v701 = vadd.f32 %v131, %v609
  %v702 = vadd.f32 %v132, %v612
  %v703 = vadd.f32 %v133, %v614
  %v704 = vadd.f32 %v134, %v617
  %v705 = vadd.f32 %v135, %v619
  %v706 = vadd.f32 %v136, %v622
  %v707 = vadd.f32 %v137, %v624
  %v708 = vadd.f32 %v138, %v627
  %v709 = vadd.f32 %v139, %v629
  %v710 = vadd.f32 %v140, %v632
  %v711 = vadd.f32 %v141, %v634
  %v712 = vadd.f32 %v142, %v637
  %v713 = vadd.f32 %v143, %v639
  %v714 = vadd.f32 %v144, %v642
  %v715 = vadd.f32 %v145, %v644
  %v716 = vadd.f32 %v146, %v647
  %v717 = vadd.f32 %v147, %v649
  %v718 = vadd.f32 %v148, %v652
  %v719 = vadd.f32 %v149, %v654
  %720 = vst [vmem:[#allocation2] sm:$0xff] %v656
  %721 = vst [vmem:[#allocation2 + $0x8] sm:$0xff] %v657
  %722 = vst [vmem:[#allocation2 + $0x10] sm:$0xff] %v658
  %723 = vst [vmem:[#allocation2 + $0x18] sm:$0xff] %v659
  %724 = vst [vmem:[#allocation2 + $0x20] sm:$0xff] %v660
  %725 = vst [vmem:[#allocation2 + $0x28] sm:$0xff] %v661
  %726 = vst [vmem:[#allocation2 + $0x30] sm:$0xff] %v662
  %727 = vst [vmem:[#allocation2 + $0x38] sm:$0xff] %v663
  %728 = vst [vmem:[#allocation2 + $0x40] sm:$0xff] %v664
  %729 = vst [vmem:[#allocation2 + $0x48] sm:$0xff] %v665
  %730 = vst [vmem:[#allocation2 + $0x50] sm:$0xff] %v666
  %731 = vst [vmem:[#allocation2 + $0x58] sm:$0xff] %v667
  %732 = vst [vmem:[#allocation2 + $0x60] sm:$0xff] %v668
  %733 = vst [vmem:[#allocation2 + $0x68] sm:$0xff] %v669
  %734 = vst [vmem:[#allocation2 + $0x70] sm:$0xff] %v670
  %735 = vst [vmem:[#allocation2 + $0x78] sm:$0xff] %v671
  %736 = vst [vmem:[#allocation2 + $0x80] sm:$0xff] %v672
  %737 = vst [vmem:[#allocation2 + $0x88] sm:$0xff] %v673
  %738 = vst [vmem:[#allocation2 + $0x90] sm:$0xff] %v674
  %739 = vst [vmem:[#allocation2 + $0x98] sm:$0xff] %v675
  %740 = vst [vmem:[#allocation2 + $0xa0] sm:$0xff] %v676
  %741 = vst [vmem:[#allocation2 + $0xa8] sm:$0xff] %v677
  %742 = vst [vmem:[#allocation2 + $0xb0] sm:$0xff] %v678
  %743 = vst [vmem:[#allocation2 + $0xb8] sm:$0xff] %v679
  %744 = vst [vmem:[#allocation2 + $0xc0] sm:$0xff] %v680
  %745 = vst [vmem:[#allocation2 + $0xc8] sm:$0xff] %v681
  %746 = vst [vmem:[#allocation2 + $0xd0] sm:$0xff] %v682
  %747 = vst [vmem:[#allocation2 + $0xd8] sm:$0xff] %v683
  %748 = vst [vmem:[#allocation2 + $0xe0] sm:$0xff] %v684
  %749 = vst [vmem:[#allocation2 + $0xe8] sm:$0xff] %v685
  %750 = vst [vmem:[#allocation2 + $0xf0] sm:$0xff] %v686
  %751 = vst [vmem:[#allocation2 + $0xf8] sm:$0xff] %v687
  %752 = vst [vmem:[#allocation2 + $0x100] sm:$0xff] %v688
  %753 = vst [vmem:[#allocation2 + $0x108] sm:$0xff] %v689
  %754 = vst [vmem:[#allocation2 + $0x110] sm:$0xff] %v690
  %755 = vst [vmem:[#allocation2 + $0x118] sm:$0xff] %v691
  %756 = vst [vmem:[#allocation2 + $0x120] sm:$0xff] %v692
  %757 = vst [vmem:[#allocation2 + $0x128] sm:$0xff] %v693
  %758 = vst [vmem:[#allocation2 + $0x130] sm:$0xff] %v694
  %759 = vst [vmem:[#allocation2 + $0x138] sm:$0xff] %v695
  %760 = vst [vmem:[#allocation2 + $0x140] sm:$0xff] %v696
  %761 = vst [vmem:[#allocation2 + $0x148] sm:$0xff] %v697
  %762 = vst [vmem:[#allocation2 + $0x150] sm:$0xff] %v698
  %763 = vst [vmem:[#allocation2 + $0x158] sm:$0xff] %v699
  %764 = vst [vmem:[#allocation2 + $0x160] sm:$0xff] %v700
  %765 = vst [vmem:[#allocation2 + $0x168] sm:$0xff] %v701
  %766 = vst [vmem:[#allocation2 + $0x170] sm:$0xff] %v702
  %767 = vst [vmem:[#allocation2 + $0x178] sm:$0xff] %v703
  %768 = vst [vmem:[#allocation2 + $0x180] sm:$0xff] %v704
  %769 = vst [vmem:[#allocation2 + $0x188] sm:$0xff] %v705
  %770 = vst [vmem:[#allocation2 + $0x190] sm:$0xff] %v706
  %771 = vst [vmem:[#allocation2 + $0x198] sm:$0xff] %v707
  %772 = vst [vmem:[#allocation2 + $0x1a0] sm:$0xff] %v708
  %773 = vst [vmem:[#allocation2 + $0x1a8] sm:$0xff] %v709
  %774 = vst [vmem:[#allocation2 + $0x1b0] sm:$0xff] %v710
  %775 = vst [vmem:[#allocation2 + $0x1b8] sm:$0xff] %v711
  %776 = vst [vmem:[#allocation2 + $0x1c0] sm:$0xff] %v712
  %777 = vst [vmem:[#allocation2 + $0x1c8] sm:$0xff] %v713
  %778 = vst [vmem:[#allocation2 + $0x1d0] sm:$0xff] %v714
  %779 = vst [vmem:[#allocation2 + $0x1d8] sm:$0xff] %v715
  %780 = vst [vmem:[#allocation2 + $0x1e0] sm:$0xff] %v716
  %781 = vst [vmem:[#allocation2 + $0x1e8] sm:$0xff] %v717
  %782 = vst [vmem:[#allocation2 + $0x1f0] sm:$0xff] %v718
  %783 = vst [vmem:[#allocation2 + $0x1f8] sm:$0xff] %v719
  // Predicated region
  $region22: #{_lambda_.10} parent=0 // pred_check
    %p784 = pneg %p18
  $region23: #{_lambda_.10} parent=0 // pred_check_branch
    %786 = sbr.rel (%p784) target = $region25
  $region24: #{_lambda_.10} parent=0 // pred_region
    %v787 = vld [vmem:[#allocation2] sm:$0xff]
    %v788 = vld [vmem:[#allocation2 + $0x8] sm:$0xff]
    %v789 = vld [vmem:[#allocation2 + $0x10] sm:$0xff]
    %v790 = vld [vmem:[#allocation2 + $0x18] sm:$0xff]
    %v791 = vld [vmem:[#allocation2 + $0x20] sm:$0xff]
    %v792 = vld [vmem:[#allocation2 + $0x28] sm:$0xff]
    %v793 = vld [vmem:[#allocation2 + $0x30] sm:$0xff]
    %v794 = vld [vmem:[#allocation2 + $0x38] sm:$0xff]
    %v795 = vld [vmem:[#allocation2 + $0x40] sm:$0xff]
    %v796 = vld [vmem:[#allocation2 + $0x48] sm:$0xff]
    %v797 = vld [vmem:[#allocation2 + $0x50] sm:$0xff]
    %v798 = vld [vmem:[#allocation2 + $0x58] sm:$0xff]
    %v799 = vld [vmem:[#allocation2 + $0x60] sm:$0xff]
    %v800 = vld [vmem:[#allocation2 + $0x68] sm:$0xff]
    %v801 = vld [vmem:[#allocation2 + $0x70] sm:$0xff]
    %v802 = vld [vmem:[#allocation2 + $0x78] sm:$0xff]
    %v803 = vld [vmem:[#allocation2 + $0x80] sm:$0xff]
    %v804 = vld [vmem:[#allocation2 + $0x88] sm:$0xff]
    %v805 = vld [vmem:[#allocation2 + $0x90] sm:$0xff]
    %v806 = vld [vmem:[#allocation2 + $0x98] sm:$0xff]
    %v807 = vld [vmem:[#allocation2 + $0xa0] sm:$0xff]
    %v808 = vld [vmem:[#allocation2 + $0xa8] sm:$0xff]
    %v809 = vld [vmem:[#allocation2 + $0xb0] sm:$0xff]
    %v810 = vld [vmem:[#allocation2 + $0xb8] sm:$0xff]
    %v811 = vld [vmem:[#allocation2 + $0xc0] sm:$0xff]
    %v812 = vld [vmem:[#allocation2 + $0xc8] sm:$0xff]
    %v813 = vld [vmem:[#allocation2 + $0xd0] sm:$0xff]
    %v814 = vld [vmem:[#allocation2 + $0xd8] sm:$0xff]
    %v815 = vld [vmem:[#allocation2 + $0xe0] sm:$0xff]
    %v816 = vld [vmem:[#allocation2 + $0xe8] sm:$0xff]
    %v817 = vld [vmem:[#allocation2 + $0xf0] sm:$0xff]
    %v818 = vld [vmem:[#allocation2 + $0xf8] sm:$0xff]
    %v819 = vld [vmem:[#allocation2 + $0x100] sm:$0xff]
    %v820 = vld [vmem:[#allocation2 + $0x108] sm:$0xff]
    %v821 = vld [vmem:[#allocation2 + $0x110] sm:$0xff]
    %v822 = vld [vmem:[#allocation2 + $0x118] sm:$0xff]
    %v823 = vld [vmem:[#allocation2 + $0x120] sm:$0xff]
    %v824 = vld [vmem:[#allocation2 + $0x128] sm:$0xff]
    %v825 = vld [vmem:[#allocation2 + $0x130] sm:$0xff]
    %v826 = vld [vmem:[#allocation2 + $0x138] sm:$0xff]
    %v827 = vld [vmem:[#allocation2 + $0x140] sm:$0xff]
    %v828 = vld [vmem:[#allocation2 + $0x148] sm:$0xff]
    %v829 = vld [vmem:[#allocation2 + $0x150] sm:$0xff]
    %v830 = vld [vmem:[#allocation2 + $0x158] sm:$0xff]
    %v831 = vld [vmem:[#allocation2 + $0x160] sm:$0xff]
    %v832 = vld [vmem:[#allocation2 + $0x168] sm:$0xff]
    %v833 = vld [vmem:[#allocation2 + $0x170] sm:$0xff]
    %v834 = vld [vmem:[#allocation2 + $0x178] sm:$0xff]
    %v835 = vld [vmem:[#allocation2 + $0x180] sm:$0xff]
    %v836 = vld [vmem:[#allocation2 + $0x188] sm:$0xff]
    %v837 = vld [vmem:[#allocation2 + $0x190] sm:$0xff]
    %v838 = vld [vmem:[#allocation2 + $0x198] sm:$0xff]
    %v839 = vld [vmem:[#allocation2 + $0x1a0] sm:$0xff]
    %v840 = vld [vmem:[#allocation2 + $0x1a8] sm:$0xff]
    %v841 = vld [vmem:[#allocation2 + $0x1b0] sm:$0xff]
    %v842 = vld [vmem:[#allocation2 + $0x1b8] sm:$0xff]
    %v843 = vld [vmem:[#allocation2 + $0x1c0] sm:$0xff]
    %v844 = vld [vmem:[#allocation2 + $0x1c8] sm:$0xff]
    %v845 = vld [vmem:[#allocation2 + $0x1d0] sm:$0xff]
    %v846 = vld [vmem:[#allocation2 + $0x1d8] sm:$0xff]
    %v847 = vld [vmem:[#allocation2 + $0x1e0] sm:$0xff]
    %v848 = vld [vmem:[#allocation2 + $0x1e8] sm:$0xff]
    %v849 = vld [vmem:[#allocation2 + $0x1f0] sm:$0xff]
    %v850 = vld [vmem:[#allocation2 + $0x1f8] sm:$0xff]
    %v851 = vld [vmem:[%s2] sm:$0x1]
    %v853 = vperm.slane %v851, 0
    %v855 = vmul.f32 %v787, %v853
    %v856 = vmul.f32 %v788, %v853
    %v857 = vmul.f32 %v789, %v853
    %v858 = vmul.f32 %v790, %v853
    %v859 = vmul.f32 %v791, %v853
    %v860 = vmul.f32 %v792, %v853
    %v861 = vmul.f32 %v793, %v853
    %v862 = vmul.f32 %v794, %v853
    %v863 = vmul.f32 %v795, %v853
    %v864 = vmul.f32 %v796, %v853
    %v865 = vmul.f32 %v797, %v853
    %v866 = vmul.f32 %v798, %v853
    %v867 = vmul.f32 %v799, %v853
    %v868 = vmul.f32 %v800, %v853
    %v869 = vmul.f32 %v801, %v853
    %v870 = vmul.f32 %v802, %v853
    %v871 = vmul.f32 %v803, %v853
    %v872 = vmul.f32 %v804, %v853
    %v873 = vmul.f32 %v805, %v853
    %v874 = vmul.f32 %v806, %v853
    %v875 = vmul.f32 %v807, %v853
    %v876 = vmul.f32 %v808, %v853
    %v877 = vmul.f32 %v809, %v853
    %v878 = vmul.f32 %v810, %v853
    %v879 = vmul.f32 %v811, %v853
    %v880 = vmul.f32 %v812, %v853
    %v881 = vmul.f32 %v813, %v853
    %v882 = vmul.f32 %v814, %v853
    %v883 = vmul.f32 %v815, %v853
    %v884 = vmul.f32 %v816, %v853
    %v885 = vmul.f32 %v817, %v853
    %v886 = vmul.f32 %v818, %v853
    %v887 = vmul.f32 %v819, %v853
    %v888 = vmul.f32 %v820, %v853
    %v889 = vmul.f32 %v821, %v853
    %v890 = vmul.f32 %v822, %v853
    %v891 = vmul.f32 %v823, %v853
    %v892 = vmul.f32 %v824, %v853
    %v893 = vmul.f32 %v825, %v853
    %v894 = vmul.f32 %v826, %v853
    %v895 = vmul.f32 %v827, %v853
    %v896 = vmul.f32 %v828, %v853
    %v897 = vmul.f32 %v829, %v853
    %v898 = vmul.f32 %v830, %v853
    %v899 = vmul.f32 %v831, %v853
    %v900 = vmul.f32 %v832, %v853
    %v901 = vmul.f32 %v833, %v853
    %v902 = vmul.f32 %v834, %v853
    %v903 = vmul.f32 %v835, %v853
    %v904 = vmul.f32 %v836, %v853
    %v905 = vmul.f32 %v837, %v853
    %v906 = vmul.f32 %v838, %v853
    %v907 = vmul.f32 %v839, %v853
    %v908 = vmul.f32 %v840, %v853
    %v909 = vmul.f32 %v841, %v853
    %v910 = vmul.f32 %v842, %v853
    %v911 = vmul.f32 %v843, %v853
    %v912 = vmul.f32 %v844, %v853
    %v913 = vmul.f32 %v845, %v853
    %v914 = vmul.f32 %v846, %v853
    %v915 = vmul.f32 %v847, %v853
    %v916 = vmul.f32 %v848, %v853
    %v917 = vmul.f32 %v849, %v853
    %v918 = vmul.f32 %v850, %v853
    %v919 = vld [vmem:[%s3] sm:$0x1]
    %v921 = vperm.slane %v919, 0
    %v923 = vadd.f32 %v855, %v921
    %v924 = vadd.f32 %v856, %v921
    %v925 = vadd.f32 %v857, %v921
    %v926 = vadd.f32 %v858, %v921
    %v927 = vadd.f32 %v859, %v921
    %v928 = vadd.f32 %v860, %v921
    %v929 = vadd.f32 %v861, %v921
    %v930 = vadd.f32 %v862, %v921
    %v931 = vadd.f32 %v863, %v921
    %v932 = vadd.f32 %v864, %v921
    %v933 = vadd.f32 %v865, %v921
    %v934 = vadd.f32 %v866, %v921
    %v935 = vadd.f32 %v867, %v921
    %v936 = vadd.f32 %v868, %v921
    %v937 = vadd.f32 %v869, %v921
    %v938 = vadd.f32 %v870, %v921
    %v939 = vadd.f32 %v871, %v921
    %v940 = vadd.f32 %v872, %v921
    %v941 = vadd.f32 %v873, %v921
    %v942 = vadd.f32 %v874, %v921
    %v943 = vadd.f32 %v875, %v921
    %v944 = vadd.f32 %v876, %v921
    %v945 = vadd.f32 %v877, %v921
    %v946 = vadd.f32 %v878, %v921
    %v947 = vadd.f32 %v879, %v921
    %v948 = vadd.f32 %v880, %v921
    %v949 = vadd.f32 %v881, %v921
    %v950 = vadd.f32 %v882, %v921
    %v951 = vadd.f32 %v883, %v921
    %v952 = vadd.f32 %v884, %v921
    %v953 = vadd.f32 %v885, %v921
    %v954 = vadd.f32 %v886, %v921
    %v955 = vadd.f32 %v887, %v921
    %v956 = vadd.f32 %v888, %v921
    %v957 = vadd.f32 %v889, %v921
    %v958 = vadd.f32 %v890, %v921
    %v959 = vadd.f32 %v891, %v921
    %v960 = vadd.f32 %v892, %v921
    %v961 = vadd.f32 %v893, %v921
    %v962 = vadd.f32 %v894, %v921
    %v963 = vadd.f32 %v895, %v921
    %v964 = vadd.f32 %v896, %v921
    %v965 = vadd.f32 %v897, %v921
    %v966 = vadd.f32 %v898, %v921
    %v967 = vadd.f32 %v899, %v921
    %v968 = vadd.f32 %v900, %v921
    %v969 = vadd.f32 %v901, %v921
    %v970 = vadd.f32 %v902, %v921
    %v971 = vadd.f32 %v903, %v921
    %v972 = vadd.f32 %v904, %v921
    %v973 = vadd.f32 %v905, %v921
    %v974 = vadd.f32 %v906, %v921
    %v975 = vadd.f32 %v907, %v921
    %v976 = vadd.f32 %v908, %v921
    %v977 = vadd.f32 %v909, %v921
    %v978 = vadd.f32 %v910, %v921
    %v979 = vadd.f32 %v911, %v921
    %v980 = vadd.f32 %v912, %v921
    %v981 = vadd.f32 %v913, %v921
    %v982 = vadd.f32 %v914, %v921
    %v983 = vadd.f32 %v915, %v921
    %v984 = vadd.f32 %v916, %v921
    %v985 = vadd.f32 %v917, %v921
    %v986 = vadd.f32 %v918, %v921
    %v987 = vmax.f32 %v923, 0.0
    %v988 = vmax.f32 %v924, 0.0
    %v989 = vmax.f32 %v925, 0.0
    %v990 = vmax.f32 %v926, 0.0
    %v991 = vmax.f32 %v927, 0.0
    %v992 = vmax.f32 %v928, 0.0
    %v993 = vmax.f32 %v929, 0.0
    %v994 = vmax.f32 %v930, 0.0
    %v995 = vmax.f32 %v931, 0.0
    %v996 = vmax.f32 %v932, 0.0
    %v997 = vmax.f32 %v933, 0.0
    %v998 = vmax.f32 %v934, 0.0
    %v999 = vmax.f32 %v935, 0.0
    %v1000 = vmax.f32 %v936, 0.0
    %v1001 = vmax.f32 %v937, 0.0
    %v1002 = vmax.f32 %v938, 0.0
    %v1003 = vmax.f32 %v939, 0.0
    %v1004 = vmax.f32 %v940, 0.0
    %v1005 = vmax.f32 %v941, 0.0
    %v1006 = vmax.f32 %v942, 0.0
    %v1007 = vmax.f32 %v943, 0.0
    %v1008 = vmax.f32 %v944, 0.0
    %v1009 = vmax.f32 %v945, 0.0
    %v1010 = vmax.f32 %v946, 0.0
    %v1011 = vmax.f32 %v947, 0.0
    %v1012 = vmax.f32 %v948, 0.0
    %v1013 = vmax.f32 %v949, 0.0
    %v1014 = vmax.f32 %v950, 0.0
    %v1015 = vmax.f32 %v951, 0.0
    %v1016 = vmax.f32 %v952, 0.0
    %v1017 = vmax.f32 %v953, 0.0
    %v1018 = vmax.f32 %v954, 0.0
    %v1019 = vmax.f32 %v955, 0.0
    %v1020 = vmax.f32 %v956, 0.0
    %v1021 = vmax.f32 %v957, 0.0
    %v1022 = vmax.f32 %v958, 0.0
    %v1023 = vmax.f32 %v959, 0.0
    %v1024 = vmax.f32 %v960, 0.0
    %v1025 = vmax.f32 %v961, 0.0
    %v1026 = vmax.f32 %v962, 0.0
    %v1027 = vmax.f32 %v963, 0.0
    %v1028 = vmax.f32 %v964, 0.0
    %v1029 = vmax.f32 %v965, 0.0
    %v1030 = vmax.f32 %v966, 0.0
    %v1031 = vmax.f32 %v967, 0.0
    %v1032 = vmax.f32 %v968, 0.0
    %v1033 = vmax.f32 %v969, 0.0
    %v1034 = vmax.f32 %v970, 0.0
    %v1035 = vmax.f32 %v971, 0.0
    %v1036 = vmax.f32 %v972, 0.0
    %v1037 = vmax.f32 %v973, 0.0
    %v1038 = vmax.f32 %v974, 0.0
    %v1039 = vmax.f32 %v975, 0.0
    %v1040 = vmax.f32 %v976, 0.0
    %v1041 = vmax.f32 %v977, 0.0
    %v1042 = vmax.f32 %v978, 0.0
    %v1043 = vmax.f32 %v979, 0.0
    %v1044 = vmax.f32 %v980, 0.0
    %v1045 = vmax.f32 %v981, 0.0
    %v1046 = vmax.f32 %v982, 0.0
    %v1047 = vmax.f32 %v983, 0.0
    %v1048 = vmax.f32 %v984, 0.0
    %v1049 = vmax.f32 %v985, 0.0
    %v1050 = vmax.f32 %v986, 0.0
    %v1051 = vpack.c.bf16 %v987, %v987
    %v1052 = vpack.c.bf16 %v988, %v988
    %v1053 = vpack.c.bf16 %v989, %v989
    %v1054 = vpack.c.bf16 %v990, %v990
    %v1055 = vpack.c.bf16 %v991, %v991
    %v1056 = vpack.c.bf16 %v992, %v992
    %v1057 = vpack.c.bf16 %v993, %v993
    %v1058 = vpack.c.bf16 %v994, %v994
    %v1059 = vpack.c.bf16 %v995, %v995
    %v1060 = vpack.c.bf16 %v996, %v996
    %v1061 = vpack.c.bf16 %v997, %v997
    %v1062 = vpack.c.bf16 %v998, %v998
    %v1063 = vpack.c.bf16 %v999, %v999
    %v1064 = vpack.c.bf16 %v1000, %v1000
    %v1065 = vpack.c.bf16 %v1001, %v1001
    %v1066 = vpack.c.bf16 %v1002, %v1002
    %v1067 = vpack.c.bf16 %v1003, %v1003
    %v1068 = vpack.c.bf16 %v1004, %v1004
    %v1069 = vpack.c.bf16 %v1005, %v1005
    %v1070 = vpack.c.bf16 %v1006, %v1006
    %v1071 = vpack.c.bf16 %v1007, %v1007
    %v1072 = vpack.c.bf16 %v1008, %v1008
    %v1073 = vpack.c.bf16 %v1009, %v1009
    %v1074 = vpack.c.bf16 %v1010, %v1010
    %v1075 = vpack.c.bf16 %v1011, %v1011
    %v1076 = vpack.c.bf16 %v1012, %v1012
    %v1077 = vpack.c.bf16 %v1013, %v1013
    %v1078 = vpack.c.bf16 %v1014, %v1014
    %v1079 = vpack.c.bf16 %v1015, %v1015
    %v1080 = vpack.c.bf16 %v1016, %v1016
    %v1081 = vpack.c.bf16 %v1017, %v1017
    %v1082 = vpack.c.bf16 %v1018, %v1018
    %v1083 = vpack.c.bf16 %v1019, %v1019
    %v1084 = vpack.c.bf16 %v1020, %v1020
    %v1085 = vpack.c.bf16 %v1021, %v1021
    %v1086 = vpack.c.bf16 %v1022, %v1022
    %v1087 = vpack.c.bf16 %v1023, %v1023
    %v1088 = vpack.c.bf16 %v1024, %v1024
    %v1089 = vpack.c.bf16 %v1025, %v1025
    %v1090 = vpack.c.bf16 %v1026, %v1026
    %v1091 = vpack.c.bf16 %v1027, %v1027
    %v1092 = vpack.c.bf16 %v1028, %v1028
    %v1093 = vpack.c.bf16 %v1029, %v1029
    %v1094 = vpack.c.bf16 %v1030, %v1030
    %v1095 = vpack.c.bf16 %v1031, %v1031
    %v1096 = vpack.c.bf16 %v1032, %v1032
    %v1097 = vpack.c.bf16 %v1033, %v1033
    %v1098 = vpack.c.bf16 %v1034, %v1034
    %v1099 = vpack.c.bf16 %v1035, %v1035
    %v1100 = vpack.c.bf16 %v1036, %v1036
    %v1101 = vpack.c.bf16 %v1037, %v1037
    %v1102 = vpack.c.bf16 %v1038, %v1038
    %v1103 = vpack.c.bf16 %v1039, %v1039
    %v1104 = vpack.c.bf16 %v1040, %v1040
    %v1105 = vpack.c.bf16 %v1041, %v1041
    %v1106 = vpack.c.bf16 %v1042, %v1042
    %v1107 = vpack.c.bf16 %v1043, %v1043
    %v1108 = vpack.c.bf16 %v1044, %v1044
    %v1109 = vpack.c.bf16 %v1045, %v1045
    %v1110 = vpack.c.bf16 %v1046, %v1046
    %v1111 = vpack.c.bf16 %v1047, %v1047
    %v1112 = vpack.c.bf16 %v1048, %v1048
    %v1113 = vpack.c.bf16 %v1049, %v1049
    %v1114 = vpack.c.bf16 %v1050, %v1050
    %1115 = vst [vmem:[%s4] sm:$0xf] %v1051
    %1116 = vst [vmem:[%s4 + $0x4] sm:$0xf] %v1052
    %1117 = vst [vmem:[%s4 + $0x8] sm:$0xf] %v1053
    %1118 = vst [vmem:[%s4 + $0xc] sm:$0xf] %v1054
    %1119 = vst [vmem:[%s4 + $0x10] sm:$0xf] %v1055
    %1120 = vst [vmem:[%s4 + $0x14] sm:$0xf] %v1056
    %1121 = vst [vmem:[%s4 + $0x18] sm:$0xf] %v1057
    %1122 = vst [vmem:[%s4 + $0x1c] sm:$0xf] %v1058
    %1123 = vst [vmem:[%s4 + $0x20] sm:$0xf] %v1059
    %1124 = vst [vmem:[%s4 + $0x24] sm:$0xf] %v1060
    %1125 = vst [vmem:[%s4 + $0x28] sm:$0xf] %v1061
    %1126 = vst [vmem:[%s4 + $0x2c] sm:$0xf] %v1062
    %1127 = vst [vmem:[%s4 + $0x30] sm:$0xf] %v1063
    %1128 = vst [vmem:[%s4 + $0x34] sm:$0xf] %v1064
    %1129 = vst [vmem:[%s4 + $0x38] sm:$0xf] %v1065
    %1130 = vst [vmem:[%s4 + $0x3c] sm:$0xf] %v1066
    %1131 = vst [vmem:[%s4 + $0x40] sm:$0xf] %v1067
    %1132 = vst [vmem:[%s4 + $0x44] sm:$0xf] %v1068
    %1133 = vst [vmem:[%s4 + $0x48] sm:$0xf] %v1069
    %1134 = vst [vmem:[%s4 + $0x4c] sm:$0xf] %v1070
    %1135 = vst [vmem:[%s4 + $0x50] sm:$0xf] %v1071
    %1136 = vst [vmem:[%s4 + $0x54] sm:$0xf] %v1072
    %1137 = vst [vmem:[%s4 + $0x58] sm:$0xf] %v1073
    %1138 = vst [vmem:[%s4 + $0x5c] sm:$0xf] %v1074
    %1139 = vst [vmem:[%s4 + $0x60] sm:$0xf] %v1075
    %1140 = vst [vmem:[%s4 + $0x64] sm:$0xf] %v1076
    %1141 = vst [vmem:[%s4 + $0x68] sm:$0xf] %v1077
    %1142 = vst [vmem:[%s4 + $0x6c] sm:$0xf] %v1078
    %1143 = vst [vmem:[%s4 + $0x70] sm:$0xf] %v1079
    %1144 = vst [vmem:[%s4 + $0x74] sm:$0xf] %v1080
    %1145 = vst [vmem:[%s4 + $0x78] sm:$0xf] %v1081
    %1146 = vst [vmem:[%s4 + $0x7c] sm:$0xf] %v1082
    %1147 = vst [vmem:[%s4 + $0x80] sm:$0xf] %v1083
    %1148 = vst [vmem:[%s4 + $0x84] sm:$0xf] %v1084
    %1149 = vst [vmem:[%s4 + $0x88] sm:$0xf] %v1085
    %1150 = vst [vmem:[%s4 + $0x8c] sm:$0xf] %v1086
    %1151 = vst [vmem:[%s4 + $0x90] sm:$0xf] %v1087
    %1152 = vst [vmem:[%s4 + $0x94] sm:$0xf] %v1088
    %1153 = vst [vmem:[%s4 + $0x98] sm:$0xf] %v1089
    %1154 = vst [vmem:[%s4 + $0x9c] sm:$0xf] %v1090
    %1155 = vst [vmem:[%s4 + $0xa0] sm:$0xf] %v1091
    %1156 = vst [vmem:[%s4 + $0xa4] sm:$0xf] %v1092
    %1157 = vst [vmem:[%s4 + $0xa8] sm:$0xf] %v1093
    %1158 = vst [vmem:[%s4 + $0xac] sm:$0xf] %v1094
    %1159 = vst [vmem:[%s4 + $0xb0] sm:$0xf] %v1095
    %1160 = vst [vmem:[%s4 + $0xb4] sm:$0xf] %v1096
    %1161 = vst [vmem:[%s4 + $0xb8] sm:$0xf] %v1097
    %1162 = vst [vmem:[%s4 + $0xbc] sm:$0xf] %v1098
    %1163 = vst [vmem:[%s4 + $0xc0] sm:$0xf] %v1099
    %1164 = vst [vmem:[%s4 + $0xc4] sm:$0xf] %v1100
    %1165 = vst [vmem:[%s4 + $0xc8] sm:$0xf] %v1101
    %1166 = vst [vmem:[%s4 + $0xcc] sm:$0xf] %v1102
    %1167 = vst [vmem:[%s4 + $0xd0] sm:$0xf] %v1103
    %1168 = vst [vmem:[%s4 + $0xd4] sm:$0xf] %v1104
    %1169 = vst [vmem:[%s4 + $0xd8] sm:$0xf] %v1105
    %1170 = vst [vmem:[%s4 + $0xdc] sm:$0xf] %v1106
    %1171 = vst [vmem:[%s4 + $0xe0] sm:$0xf] %v1107
    %1172 = vst [vmem:[%s4 + $0xe4] sm:$0xf] %v1108
    %1173 = vst [vmem:[%s4 + $0xe8] sm:$0xf] %v1109
    %1174 = vst [vmem:[%s4 + $0xec] sm:$0xf] %v1110
    %1175 = vst [vmem:[%s4 + $0xf0] sm:$0xf] %v1111
    %1176 = vst [vmem:[%s4 + $0xf4] sm:$0xf] %v1112
    %1177 = vst [vmem:[%s4 + $0xf8] sm:$0xf] %v1113
    %1178 = vst [vmem:[%s4 + $0xfc] sm:$0xf] %v1114
  $region25: #{_lambda_.10} parent=0 // pred_fallthru
    _
  // Predicated region
  $region26: #{_lambda_.10} parent=0 // pred_check
    _
  $region27: #{_lambda_.10} parent=0 // pred_check_branch
    %1180 = sbr.rel (0) target = $region29
  $region28: #{_lambda_.10} parent=0 // pred_region
    _
  $region29: #{_lambda_.10} parent=0 // pred_fallthru
    _
  // Predicated region
  $region30: #{_lambda_.10} parent=0 // pred_check
    _
  $region31: #{_lambda_.10} parent=0 // pred_check_branch
    %1182 = sbr.rel (0) target = $region33
  $region32: #{_lambda_.10} parent=0 // pred_region
    _
  $region33: #{_lambda_.10} parent=0 // pred_fallthru
    _

// kernel: _lambda_.11
$region0: #{_lambda_.11}
  #allocation0 [shape = 'u32[]', space=smem, size = 0x4, offset = 0x4, fixed_abs, tag = 'smem constant byte address 0x4 - core index']
  #allocation1 [shape = 'u32[72,128]{1,0:T(1,128)}', space=vmem, size = 0x9000, scoped, tag = 'internal scratch']
  #allocation2 [shape = 'f32[512,128]{1,0:T(8,128)}', space=vmem, size = 0x40000, scoped, tag = 'scratch operand']
  %s0 = inlined_call_operand.vmem [shape: bf16[512,72], index: 0, kind: input, shape index: {}]
  %s1 = inlined_call_operand.vmem [shape: bf16[72,128], index: 1, kind: input, shape index: {}]
  %s2 = inlined_call_operand.vmem [shape: f32[1,128], index: 2, kind: input, shape index: {}]
  %s3 = inlined_call_operand.vmem [shape: f32[1,128], index: 3, kind: input, shape index: {}]
  %s4 = inlined_call_operand.vmem [shape: bf16[512,128], index: 4, kind: output, shape index: {}]
  %s5 = sld [smem:[#allocation0]]
  $region34: #{_lambda_.11} parent=0
    _
  %s7 = ssub.s32 1, %s5
  %s8 = scalar_select 0, %s7, %s5
  // Predicated region
  $region2: #{_lambda_.11} parent=0 // pred_check
    _
  $region3: #{_lambda_.11} parent=0 // pred_check_branch
    %10 = sbr.rel (0) target = $region5
  $region4: #{_lambda_.11} parent=0 // pred_region
    _
  $region5: #{_lambda_.11} parent=0 // pred_fallthru
    _
  // Predicated region
  $region6: #{_lambda_.11} parent=0 // pred_check
    _
  $region7: #{_lambda_.11} parent=0 // pred_check_branch
    %12 = sbr.rel (0) target = $region9
  $region8: #{_lambda_.11} parent=0 // pred_region
    _
  $region9: #{_lambda_.11} parent=0 // pred_fallthru
    _
  // Predicated region
  $region10: #{_lambda_.11} parent=0 // pred_check
    _
  $region11: #{_lambda_.11} parent=0 // pred_check_branch
    %14 = sbr.rel (0) target = $region13
  $region12: #{_lambda_.11} parent=0 // pred_region
    _
  $region13: #{_lambda_.11} parent=0 // pred_fallthru
    _
  // Predicated region
  $region14: #{_lambda_.11} parent=0 // pred_check
    _
  $region15: #{_lambda_.11} parent=0 // pred_check_branch
    %16 = sbr.rel (0) target = $region17
  $region16: #{_lambda_.11} parent=0 // pred_region
    _
  $region17: #{_lambda_.11} parent=0 // pred_fallthru
    _
  %p18 = scmp.eq.s32.totalorder 0, 0
  // Predicated region
  $region18: #{_lambda_.11} parent=0 // pred_check
    %p19 = pneg %p18
  $region19: #{_lambda_.11} parent=0 // pred_check_branch
    %21 = sbr.rel (%p19) target = $region21
  $region20: #{_lambda_.11} parent=0 // pred_region
    %22 = vst [vmem:[#allocation2] sm:$0xff] 0.0
    %23 = vst [vmem:[#allocation2 + $0x8] sm:$0xff] 0.0
    %24 = vst [vmem:[#allocation2 + $0x10] sm:$0xff] 0.0
    %25 = vst [vmem:[#allocation2 + $0x18] sm:$0xff] 0.0
    %26 = vst [vmem:[#allocation2 + $0x20] sm:$0xff] 0.0
    %27 = vst [vmem:[#allocation2 + $0x28] sm:$0xff] 0.0
    %28 = vst [vmem:[#allocation2 + $0x30] sm:$0xff] 0.0
    %29 = vst [vmem:[#allocation2 + $0x38] sm:$0xff] 0.0
    %30 = vst [vmem:[#allocation2 + $0x40] sm:$0xff] 0.0
    %31 = vst [vmem:[#allocation2 + $0x48] sm:$0xff] 0.0
    %32 = vst [vmem:[#allocation2 + $0x50] sm:$0xff] 0.0
    %33 = vst [vmem:[#allocation2 + $0x58] sm:$0xff] 0.0
    %34 = vst [vmem:[#allocation2 + $0x60] sm:$0xff] 0.0
    %35 = vst [vmem:[#allocation2 + $0x68] sm:$0xff] 0.0
    %36 = vst [vmem:[#allocation2 + $0x70] sm:$0xff] 0.0
    %37 = vst [vmem:[#allocation2 + $0x78] sm:$0xff] 0.0
    %38 = vst [vmem:[#allocation2 + $0x80] sm:$0xff] 0.0
    %39 = vst [vmem:[#allocation2 + $0x88] sm:$0xff] 0.0
    %40 = vst [vmem:[#allocation2 + $0x90] sm:$0xff] 0.0
    %41 = vst [vmem:[#allocation2 + $0x98] sm:$0xff] 0.0
    %42 = vst [vmem:[#allocation2 + $0xa0] sm:$0xff] 0.0
    %43 = vst [vmem:[#allocation2 + $0xa8] sm:$0xff] 0.0
    %44 = vst [vmem:[#allocation2 + $0xb0] sm:$0xff] 0.0
    %45 = vst [vmem:[#allocation2 + $0xb8] sm:$0xff] 0.0
    %46 = vst [vmem:[#allocation2 + $0xc0] sm:$0xff] 0.0
    %47 = vst [vmem:[#allocation2 + $0xc8] sm:$0xff] 0.0
    %48 = vst [vmem:[#allocation2 + $0xd0] sm:$0xff] 0.0
    %49 = vst [vmem:[#allocation2 + $0xd8] sm:$0xff] 0.0
    %50 = vst [vmem:[#allocation2 + $0xe0] sm:$0xff] 0.0
    %51 = vst [vmem:[#allocation2 + $0xe8] sm:$0xff] 0.0
    %52 = vst [vmem:[#allocation2 + $0xf0] sm:$0xff] 0.0
    %53 = vst [vmem:[#allocation2 + $0xf8] sm:$0xff] 0.0
    %54 = vst [vmem:[#allocation2 + $0x100] sm:$0xff] 0.0
    %55 = vst [vmem:[#allocation2 + $0x108] sm:$0xff] 0.0
    %56 = vst [vmem:[#allocation2 + $0x110] sm:$0xff] 0.0
    %57 = vst [vmem:[#allocation2 + $0x118] sm:$0xff] 0.0
    %58 = vst [vmem:[#allocation2 + $0x120] sm:$0xff] 0.0
    %59 = vst [vmem:[#allocation2 + $0x128] sm:$0xff] 0.0
    %60 = vst [vmem:[#allocation2 + $0x130] sm:$0xff] 0.0
    %61 = vst [vmem:[#allocation2 + $0x138] sm:$0xff] 0.0
    %62 = vst [vmem:[#allocation2 + $0x140] sm:$0xff] 0.0
    %63 = vst [vmem:[#allocation2 + $0x148] sm:$0xff] 0.0
    %64 = vst [vmem:[#allocation2 + $0x150] sm:$0xff] 0.0
    %65 = vst [vmem:[#allocation2 + $0x158] sm:$0xff] 0.0
    %66 = vst [vmem:[#allocation2 + $0x160] sm:$0xff] 0.0
    %67 = vst [vmem:[#allocation2 + $0x168] sm:$0xff] 0.0
    %68 = vst [vmem:[#allocation2 + $0x170] sm:$0xff] 0.0
    %69 = vst [vmem:[#allocation2 + $0x178] sm:$0xff] 0.0
    %70 = vst [vmem:[#allocation2 + $0x180] sm:$0xff] 0.0
    %71 = vst [vmem:[#allocation2 + $0x188] sm:$0xff] 0.0
    %72 = vst [vmem:[#allocation2 + $0x190] sm:$0xff] 0.0
    %73 = vst [vmem:[#allocation2 + $0x198] sm:$0xff] 0.0
    %74 = vst [vmem:[#allocation2 + $0x1a0] sm:$0xff] 0.0
    %75 = vst [vmem:[#allocation2 + $0x1a8] sm:$0xff] 0.0
    %76 = vst [vmem:[#allocation2 + $0x1b0] sm:$0xff] 0.0
    %77 = vst [vmem:[#allocation2 + $0x1b8] sm:$0xff] 0.0
    %78 = vst [vmem:[#allocation2 + $0x1c0] sm:$0xff] 0.0
    %79 = vst [vmem:[#allocation2 + $0x1c8] sm:$0xff] 0.0
    %80 = vst [vmem:[#allocation2 + $0x1d0] sm:$0xff] 0.0
    %81 = vst [vmem:[#allocation2 + $0x1d8] sm:$0xff] 0.0
    %82 = vst [vmem:[#allocation2 + $0x1e0] sm:$0xff] 0.0
    %83 = vst [vmem:[#allocation2 + $0x1e8] sm:$0xff] 0.0
    %84 = vst [vmem:[#allocation2 + $0x1f0] sm:$0xff] 0.0
    %85 = vst [vmem:[#allocation2 + $0x1f8] sm:$0xff] 0.0
  $region21: #{_lambda_.11} parent=0 // pred_fallthru
    _
  %v86 = vld [vmem:[#allocation2] sm:$0xff]
  %v87 = vld [vmem:[#allocation2 + $0x8] sm:$0xff]
  %v88 = vld [vmem:[#allocation2 + $0x10] sm:$0xff]
  %v89 = vld [vmem:[#allocation2 + $0x18] sm:$0xff]
  %v90 = vld [vmem:[#allocation2 + $0x20] sm:$0xff]
  %v91 = vld [vmem:[#allocation2 + $0x28] sm:$0xff]
  %v92 = vld [vmem:[#allocation2 + $0x30] sm:$0xff]
  %v93 = vld [vmem:[#allocation2 + $0x38] sm:$0xff]
  %v94 = vld [vmem:[#allocation2 + $0x40] sm:$0xff]
  %v95 = vld [vmem:[#allocation2 + $0x48] sm:$0xff]
  %v96 = vld [vmem:[#allocation2 + $0x50] sm:$0xff]
  %v97 = vld [vmem:[#allocation2 + $0x58] sm:$0xff]
  %v98 = vld [vmem:[#allocation2 + $0x60] sm:$0xff]
  %v99 = vld [vmem:[#allocation2 + $0x68] sm:$0xff]
  %v100 = vld [vmem:[#allocation2 + $0x70] sm:$0xff]
  %v101 = vld [vmem:[#allocation2 + $0x78] sm:$0xff]
  %v102 = vld [vmem:[#allocation2 + $0x80] sm:$0xff]
  %v103 = vld [vmem:[#allocation2 + $0x88] sm:$0xff]
  %v104 = vld [vmem:[#allocation2 + $0x90] sm:$0xff]
  %v105 = vld [vmem:[#allocation2 + $0x98] sm:$0xff]
  %v106 = vld [vmem:[#allocation2 + $0xa0] sm:$0xff]
  %v107 = vld [vmem:[#allocation2 + $0xa8] sm:$0xff]
  %v108 = vld [vmem:[#allocation2 + $0xb0] sm:$0xff]
  %v109 = vld [vmem:[#allocation2 + $0xb8] sm:$0xff]
  %v110 = vld [vmem:[#allocation2 + $0xc0] sm:$0xff]
  %v111 = vld [vmem:[#allocation2 + $0xc8] sm:$0xff]
  %v112 = vld [vmem:[#allocation2 + $0xd0] sm:$0xff]
  %v113 = vld [vmem:[#allocation2 + $0xd8] sm:$0xff]
  %v114 = vld [vmem:[#allocation2 + $0xe0] sm:$0xff]
  %v115 = vld [vmem:[#allocation2 + $0xe8] sm:$0xff]
  %v116 = vld [vmem:[#allocation2 + $0xf0] sm:$0xff]
  %v117 = vld [vmem:[#allocation2 + $0xf8] sm:$0xff]
  %v118 = vld [vmem:[#allocation2 + $0x100] sm:$0xff]
  %v119 = vld [vmem:[#allocation2 + $0x108] sm:$0xff]
  %v120 = vld [vmem:[#allocation2 + $0x110] sm:$0xff]
  %v121 = vld [vmem:[#allocation2 + $0x118] sm:$0xff]
  %v122 = vld [vmem:[#allocation2 + $0x120] sm:$0xff]
  %v123 = vld [vmem:[#allocation2 + $0x128] sm:$0xff]
  %v124 = vld [vmem:[#allocation2 + $0x130] sm:$0xff]
  %v125 = vld [vmem:[#allocation2 + $0x138] sm:$0xff]
  %v126 = vld [vmem:[#allocation2 + $0x140] sm:$0xff]
  %v127 = vld [vmem:[#allocation2 + $0x148] sm:$0xff]
  %v128 = vld [vmem:[#allocation2 + $0x150] sm:$0xff]
  %v129 = vld [vmem:[#allocation2 + $0x158] sm:$0xff]
  %v130 = vld [vmem:[#allocation2 + $0x160] sm:$0xff]
  %v131 = vld [vmem:[#allocation2 + $0x168] sm:$0xff]
  %v132 = vld [vmem:[#allocation2 + $0x170] sm:$0xff]
  %v133 = vld [vmem:[#allocation2 + $0x178] sm:$0xff]
  %v134 = vld [vmem:[#allocation2 + $0x180] sm:$0xff]
  %v135 = vld [vmem:[#allocation2 + $0x188] sm:$0xff]
  %v136 = vld [vmem:[#allocation2 + $0x190] sm:$0xff]
  %v137 = vld [vmem:[#allocation2 + $0x198] sm:$0xff]
  %v138 = vld [vmem:[#allocation2 + $0x1a0] sm:$0xff]
  %v139 = vld [vmem:[#allocation2 + $0x1a8] sm:$0xff]
  %v140 = vld [vmem:[#allocation2 + $0x1b0] sm:$0xff]
  %v141 = vld [vmem:[#allocation2 + $0x1b8] sm:$0xff]
  %v142 = vld [vmem:[#allocation2 + $0x1c0] sm:$0xff]
  %v143 = vld [vmem:[#allocation2 + $0x1c8] sm:$0xff]
  %v144 = vld [vmem:[#allocation2 + $0x1d0] sm:$0xff]
  %v145 = vld [vmem:[#allocation2 + $0x1d8] sm:$0xff]
  %v146 = vld [vmem:[#allocation2 + $0x1e0] sm:$0xff]
  %v147 = vld [vmem:[#allocation2 + $0x1e8] sm:$0xff]
  %v148 = vld [vmem:[#allocation2 + $0x1f0] sm:$0xff]
  %v149 = vld [vmem:[#allocation2 + $0x1f8] sm:$0xff]
  %v150 = vld [vmem:[%s0] sm:$0xf]
  %v151 = vld [vmem:[%s0 + $0x4] sm:$0xf]
  %v152 = vld [vmem:[%s0 + $0x8] sm:$0xf]
  %v153 = vld [vmem:[%s0 + $0xc] sm:$0xf]
  %v154 = vld [vmem:[%s0 + $0x10] sm:$0xf]
  %v155 = vld [vmem:[%s0 + $0x14] sm:$0xf]
  %v156 = vld [vmem:[%s0 + $0x18] sm:$0xf]
  %v157 = vld [vmem:[%s0 + $0x1c] sm:$0xf]
  %v158 = vld [vmem:[%s0 + $0x20] sm:$0xf]
  %v159 = vld [vmem:[%s0 + $0x24] sm:$0xf]
  %v160 = vld [vmem:[%s0 + $0x28] sm:$0xf]
  %v161 = vld [vmem:[%s0 + $0x2c] sm:$0xf]
  %v162 = vld [vmem:[%s0 + $0x30] sm:$0xf]
  %v163 = vld [vmem:[%s0 + $0x34] sm:$0xf]
  %v164 = vld [vmem:[%s0 + $0x38] sm:$0xf]
  %v165 = vld [vmem:[%s0 + $0x3c] sm:$0xf]
  %v166 = vld [vmem:[%s0 + $0x40] sm:$0xf]
  %v167 = vld [vmem:[%s0 + $0x44] sm:$0xf]
  %v168 = vld [vmem:[%s0 + $0x48] sm:$0xf]
  %v169 = vld [vmem:[%s0 + $0x4c] sm:$0xf]
  %v170 = vld [vmem:[%s0 + $0x50] sm:$0xf]
  %v171 = vld [vmem:[%s0 + $0x54] sm:$0xf]
  %v172 = vld [vmem:[%s0 + $0x58] sm:$0xf]
  %v173 = vld [vmem:[%s0 + $0x5c] sm:$0xf]
  %v174 = vld [vmem:[%s0 + $0x60] sm:$0xf]
  %v175 = vld [vmem:[%s0 + $0x64] sm:$0xf]
  %v176 = vld [vmem:[%s0 + $0x68] sm:$0xf]
  %v177 = vld [vmem:[%s0 + $0x6c] sm:$0xf]
  %v178 = vld [vmem:[%s0 + $0x70] sm:$0xf]
  %v179 = vld [vmem:[%s0 + $0x74] sm:$0xf]
  %v180 = vld [vmem:[%s0 + $0x78] sm:$0xf]
  %v181 = vld [vmem:[%s0 + $0x7c] sm:$0xf]
  %v182 = vld [vmem:[%s0 + $0x80] sm:$0xf]
  %v183 = vld [vmem:[%s0 + $0x84] sm:$0xf]
  %v184 = vld [vmem:[%s0 + $0x88] sm:$0xf]
  %v185 = vld [vmem:[%s0 + $0x8c] sm:$0xf]
  %v186 = vld [vmem:[%s0 + $0x90] sm:$0xf]
  %v187 = vld [vmem:[%s0 + $0x94] sm:$0xf]
  %v188 = vld [vmem:[%s0 + $0x98] sm:$0xf]
  %v189 = vld [vmem:[%s0 + $0x9c] sm:$0xf]
  %v190 = vld [vmem:[%s0 + $0xa0] sm:$0xf]
  %v191 = vld [vmem:[%s0 + $0xa4] sm:$0xf]
  %v192 = vld [vmem:[%s0 + $0xa8] sm:$0xf]
  %v193 = vld [vmem:[%s0 + $0xac] sm:$0xf]
  %v194 = vld [vmem:[%s0 + $0xb0] sm:$0xf]
  %v195 = vld [vmem:[%s0 + $0xb4] sm:$0xf]
  %v196 = vld [vmem:[%s0 + $0xb8] sm:$0xf]
  %v197 = vld [vmem:[%s0 + $0xbc] sm:$0xf]
  %v198 = vld [vmem:[%s0 + $0xc0] sm:$0xf]
  %v199 = vld [vmem:[%s0 + $0xc4] sm:$0xf]
  %v200 = vld [vmem:[%s0 + $0xc8] sm:$0xf]
  %v201 = vld [vmem:[%s0 + $0xcc] sm:$0xf]
  %v202 = vld [vmem:[%s0 + $0xd0] sm:$0xf]
  %v203 = vld [vmem:[%s0 + $0xd4] sm:$0xf]
  %v204 = vld [vmem:[%s0 + $0xd8] sm:$0xf]
  %v205 = vld [vmem:[%s0 + $0xdc] sm:$0xf]
  %v206 = vld [vmem:[%s0 + $0xe0] sm:$0xf]
  %v207 = vld [vmem:[%s0 + $0xe4] sm:$0xf]
  %v208 = vld [vmem:[%s0 + $0xe8] sm:$0xf]
  %v209 = vld [vmem:[%s0 + $0xec] sm:$0xf]
  %v210 = vld [vmem:[%s0 + $0xf0] sm:$0xf]
  %v211 = vld [vmem:[%s0 + $0xf4] sm:$0xf]
  %v212 = vld [vmem:[%s0 + $0xf8] sm:$0xf]
  %v213 = vld [vmem:[%s0 + $0xfc] sm:$0xf]
  %v214 = vld [vmem:[%s1] sm:$0xf]
  %v215 = vld [vmem:[%s1 + $0x4] sm:$0xf]
  %v216 = vld [vmem:[%s1 + $0x8] sm:$0xf]
  %v217 = vld [vmem:[%s1 + $0xc] sm:$0xf]
  %v218 = vld [vmem:[%s1 + $0x10] sm:$0xf]
  %v219 = vld [vmem:[%s1 + $0x14] sm:$0xf]
  %v220 = vld [vmem:[%s1 + $0x18] sm:$0xf]
  %v221 = vld [vmem:[%s1 + $0x1c] sm:$0xf]
  %v222 = vld [vmem:[%s1 + $0x20] sm:$0xf]
  %v287 = vunpack.c.l.b16 %v150
  %v288 = vunpack.c.l.b16 %v151
  %v289 = vunpack.c.l.b16 %v152
  %v290 = vunpack.c.l.b16 %v153
  %v291 = vunpack.c.l.b16 %v154
  %v292 = vunpack.c.l.b16 %v155
  %v293 = vunpack.c.l.b16 %v156
  %v294 = vunpack.c.l.b16 %v157
  %v295 = vunpack.c.l.b16 %v158
  %v296 = vunpack.c.l.b16 %v159
  %v297 = vunpack.c.l.b16 %v160
  %v298 = vunpack.c.l.b16 %v161
  %v299 = vunpack.c.l.b16 %v162
  %v300 = vunpack.c.l.b16 %v163
  %v301 = vunpack.c.l.b16 %v164
  %v302 = vunpack.c.l.b16 %v165
  %v303 = vunpack.c.l.b16 %v166
  %v304 = vunpack.c.l.b16 %v167
  %v305 = vunpack.c.l.b16 %v168
  %v306 = vunpack.c.l.b16 %v169
  %v307 = vunpack.c.l.b16 %v170
  %v308 = vunpack.c.l.b16 %v171
  %v309 = vunpack.c.l.b16 %v172
  %v310 = vunpack.c.l.b16 %v173
  %v311 = vunpack.c.l.b16 %v174
  %v312 = vunpack.c.l.b16 %v175
  %v313 = vunpack.c.l.b16 %v176
  %v314 = vunpack.c.l.b16 %v177
  %v315 = vunpack.c.l.b16 %v178
  %v316 = vunpack.c.l.b16 %v179
  %v317 = vunpack.c.l.b16 %v180
  %v318 = vunpack.c.l.b16 %v181
  %v319 = vunpack.c.l.b16 %v182
  %v320 = vunpack.c.l.b16 %v183
  %v321 = vunpack.c.l.b16 %v184
  %v322 = vunpack.c.l.b16 %v185
  %v323 = vunpack.c.l.b16 %v186
  %v324 = vunpack.c.l.b16 %v187
  %v325 = vunpack.c.l.b16 %v188
  %v326 = vunpack.c.l.b16 %v189
  %v327 = vunpack.c.l.b16 %v190
  %v328 = vunpack.c.l.b16 %v191
  %v329 = vunpack.c.l.b16 %v192
  %v330 = vunpack.c.l.b16 %v193
  %v331 = vunpack.c.l.b16 %v194
  %v332 = vunpack.c.l.b16 %v195
  %v333 = vunpack.c.l.b16 %v196
  %v334 = vunpack.c.l.b16 %v197
  %v335 = vunpack.c.l.b16 %v198
  %v336 = vunpack.c.l.b16 %v199
  %v337 = vunpack.c.l.b16 %v200
  %v338 = vunpack.c.l.b16 %v201
  %v339 = vunpack.c.l.b16 %v202
  %v340 = vunpack.c.l.b16 %v203
  %v341 = vunpack.c.l.b16 %v204
  %v342 = vunpack.c.l.b16 %v205
  %v343 = vunpack.c.l.b16 %v206
  %v344 = vunpack.c.l.b16 %v207
  %v345 = vunpack.c.l.b16 %v208
  %v346 = vunpack.c.l.b16 %v209
  %v347 = vunpack.c.l.b16 %v210
  %v348 = vunpack.c.l.b16 %v211
  %v349 = vunpack.c.l.b16 %v212
  %v350 = vunpack.c.l.b16 %v213
  %v351 = vpack.c.b16 %v288, %v287
  %v352 = vpack.c.b16 %v290, %v289
  %v353 = vpack.c.b16 %v292, %v291
  %v354 = vpack.c.b16 %v294, %v293
  %v355 = vpack.c.b16 %v296, %v295
  %v356 = vpack.c.b16 %v298, %v297
  %v357 = vpack.c.b16 %v300, %v299
  %v358 = vpack.c.b16 %v302, %v301
  %v359 = vpack.c.b16 %v304, %v303
  %v360 = vpack.c.b16 %v306, %v305
  %v361 = vpack.c.b16 %v308, %v307
  %v362 = vpack.c.b16 %v310, %v309
  %v363 = vpack.c.b16 %v312, %v311
  %v364 = vpack.c.b16 %v314, %v313
  %v365 = vpack.c.b16 %v316, %v315
  %v366 = vpack.c.b16 %v318, %v317
  %v367 = vpack.c.b16 %v320, %v319
  %v368 = vpack.c.b16 %v322, %v321
  %v369 = vpack.c.b16 %v324, %v323
  %v370 = vpack.c.b16 %v326, %v325
  %v371 = vpack.c.b16 %v328, %v327
  %v372 = vpack.c.b16 %v330, %v329
  %v373 = vpack.c.b16 %v332, %v331
  %v374 = vpack.c.b16 %v334, %v333
  %v375 = vpack.c.b16 %v336, %v335
  %v376 = vpack.c.b16 %v338, %v337
  %v377 = vpack.c.b16 %v340, %v339
  %v378 = vpack.c.b16 %v342, %v341
  %v379 = vpack.c.b16 %v344, %v343
  %v380 = vpack.c.b16 %v346, %v345
  %v381 = vpack.c.b16 %v348, %v347
  %v382 = vpack.c.b16 %v350, %v349
  %v392 = vunpack.c.l.b16 %v214
  %v393 = vunpack.c.l.b16 %v215
  %v394 = vunpack.c.l.b16 %v216
  %v395 = vunpack.c.l.b16 %v217
  %v396 = vunpack.c.l.b16 %v218
  %v397 = vunpack.c.l.b16 %v219
  %v398 = vunpack.c.l.b16 %v220
  %v399 = vunpack.c.l.b16 %v221
  %v400 = vunpack.c.l.b16 %v222
  %v401 = vpack.c.b16 %v393, %v392
  %v402 = vpack.c.b16 %v395, %v394
  %v403 = vpack.c.b16 %v397, %v396
  %v404 = vpack.c.b16 %v399, %v398
  %v405 = vpack.c.b16 %v400, %v400
  %vm410 = vcmask 588800
  %v412 = vsel %vm410, %v351, 0
  %v415 = vsel %vm410, %v352, 0
  %v418 = vsel %vm410, %v353, 0
  %v421 = vsel %vm410, %v354, 0
  %v424 = vsel %vm410, %v355, 0
  %v427 = vsel %vm410, %v356, 0
  %v430 = vsel %vm410, %v357, 0
  %v433 = vsel %vm410, %v358, 0
  %v436 = vsel %vm410, %v359, 0
  %v439 = vsel %vm410, %v360, 0
  %v442 = vsel %vm410, %v361, 0
  %v445 = vsel %vm410, %v362, 0
  %v448 = vsel %vm410, %v363, 0
  %v451 = vsel %vm410, %v364, 0
  %v454 = vsel %vm410, %v365, 0
  %v457 = vsel %vm410, %v366, 0
  %v460 = vsel %vm410, %v367, 0
  %v463 = vsel %vm410, %v368, 0
  %v466 = vsel %vm410, %v369, 0
  %v469 = vsel %vm410, %v370, 0
  %v472 = vsel %vm410, %v371, 0
  %v475 = vsel %vm410, %v372, 0
  %v478 = vsel %vm410, %v373, 0
  %v481 = vsel %vm410, %v374, 0
  %v484 = vsel %vm410, %v375, 0
  %v487 = vsel %vm410, %v376, 0
  %v490 = vsel %vm410, %v377, 0
  %v493 = vsel %vm410, %v378, 0
  %v496 = vsel %vm410, %v379, 0
  %v499 = vsel %vm410, %v380, 0
  %v502 = vsel %vm410, %v381, 0
  %v505 = vsel %vm410, %v382, 0
  %vm507 = vcmask 1043456
  %v509 = vsel %vm507, %v405, 0
  %511 = vmatpush.bf16.msra.mxu0 0
  %512 = vmatpush.bf16.msra.mxu0 0
  %513 = vmatpush.bf16.msra.mxu0 0
  %514 = vmatpush.bf16.msra.mxu0 %v509
  %515 = vmatpush.bf16.msra.mxu0 %v404
  %516 = vmatpush.bf16.msra.mxu0 %v403
  %517 = vmatpush.bf16.msra.mxu0 %v402
  %518 = vmatpush.bf16.msra.mxu0 %v401
  %519 = vmatmul.bf16.gmra.mxu0 %v412
  %v520 = vpop.f32.mrf.mxu0
  %v521 = vadd.f32 0.0, %v520
  %v522 = vpop.f32.mrf.mxu0
  %v523 = vadd.f32 0.0, %v522
  %524 = vmatmul.bf16.gmra.mxu0 %v415
  %v525 = vpop.f32.mrf.mxu0
  %v526 = vadd.f32 0.0, %v525
  %v527 = vpop.f32.mrf.mxu0
  %v528 = vadd.f32 0.0, %v527
  %529 = vmatmul.bf16.gmra.mxu0 %v418
  %v530 = vpop.f32.mrf.mxu0
  %v531 = vadd.f32 0.0, %v530
  %v532 = vpop.f32.mrf.mxu0
  %v533 = vadd.f32 0.0, %v532
  %534 = vmatmul.bf16.gmra.mxu0 %v421
  %v535 = vpop.f32.mrf.mxu0
  %v536 = vadd.f32 0.0, %v535
  %v537 = vpop.f32.mrf.mxu0
  %v538 = vadd.f32 0.0, %v537
  %539 = vmatmul.bf16.gmra.mxu0 %v424
  %v540 = vpop.f32.mrf.mxu0
  %v541 = vadd.f32 0.0, %v540
  %v542 = vpop.f32.mrf.mxu0
  %v543 = vadd.f32 0.0, %v542
  %544 = vmatmul.bf16.gmra.mxu0 %v427
  %v545 = vpop.f32.mrf.mxu0
  %v546 = vadd.f32 0.0, %v545
  %v547 = vpop.f32.mrf.mxu0
  %v548 = vadd.f32 0.0, %v547
  %549 = vmatmul.bf16.gmra.mxu0 %v430
  %v550 = vpop.f32.mrf.mxu0
  %v551 = vadd.f32 0.0, %v550
  %v552 = vpop.f32.mrf.mxu0
  %v553 = vadd.f32 0.0, %v552
  %554 = vmatmul.bf16.gmra.mxu0 %v433
  %v555 = vpop.f32.mrf.mxu0
  %v556 = vadd.f32 0.0, %v555
  %v557 = vpop.f32.mrf.mxu0
  %v558 = vadd.f32 0.0, %v557
  %559 = vmatmul.bf16.gmra.mxu0 %v436
  %v560 = vpop.f32.mrf.mxu0
  %v561 = vadd.f32 0.0, %v560
  %v562 = vpop.f32.mrf.mxu0
  %v563 = vadd.f32 0.0, %v562
  %564 = vmatmul.bf16.gmra.mxu0 %v439
  %v565 = vpop.f32.mrf.mxu0
  %v566 = vadd.f32 0.0, %v565
  %v567 = vpop.f32.mrf.mxu0
  %v568 = vadd.f32 0.0, %v567
  %569 = vmatmul.bf16.gmra.mxu0 %v442
  %v570 = vpop.f32.mrf.mxu0
  %v571 = vadd.f32 0.0, %v570
  %v572 = vpop.f32.mrf.mxu0
  %v573 = vadd.f32 0.0, %v572
  %574 = vmatmul.bf16.gmra.mxu0 %v445
  %v575 = vpop.f32.mrf.mxu0
  %v576 = vadd.f32 0.0, %v575
  %v577 = vpop.f32.mrf.mxu0
  %v578 = vadd.f32 0.0, %v577
  %579 = vmatmul.bf16.gmra.mxu0 %v448
  %v580 = vpop.f32.mrf.mxu0
  %v581 = vadd.f32 0.0, %v580
  %v582 = vpop.f32.mrf.mxu0
  %v583 = vadd.f32 0.0, %v582
  %584 = vmatmul.bf16.gmra.mxu0 %v451
  %v585 = vpop.f32.mrf.mxu0
  %v586 = vadd.f32 0.0, %v585
  %v587 = vpop.f32.mrf.mxu0
  %v588 = vadd.f32 0.0, %v587
  %589 = vmatmul.bf16.gmra.mxu0 %v454
  %v590 = vpop.f32.mrf.mxu0
  %v591 = vadd.f32 0.0, %v590
  %v592 = vpop.f32.mrf.mxu0
  %v593 = vadd.f32 0.0, %v592
  %594 = vmatmul.bf16.gmra.mxu0 %v457
  %v595 = vpop.f32.mrf.mxu0
  %v596 = vadd.f32 0.0, %v595
  %v597 = vpop.f32.mrf.mxu0
  %v598 = vadd.f32 0.0, %v597
  %599 = vmatmul.bf16.gmra.mxu0 %v460
  %v600 = vpop.f32.mrf.mxu0
  %v601 = vadd.f32 0.0, %v600
  %v602 = vpop.f32.mrf.mxu0
  %v603 = vadd.f32 0.0, %v602
  %604 = vmatmul.bf16.gmra.mxu0 %v463
  %v605 = vpop.f32.mrf.mxu0
  %v606 = vadd.f32 0.0, %v605
  %v607 = vpop.f32.mrf.mxu0
  %v608 = vadd.f32 0.0, %v607
  %609 = vmatmul.bf16.gmra.mxu0 %v466
  %v610 = vpop.f32.mrf.mxu0
  %v611 = vadd.f32 0.0, %v610
  %v612 = vpop.f32.mrf.mxu0
  %v613 = vadd.f32 0.0, %v612
  %614 = vmatmul.bf16.gmra.mxu0 %v469
  %v615 = vpop.f32.mrf.mxu0
  %v616 = vadd.f32 0.0, %v615
  %v617 = vpop.f32.mrf.mxu0
  %v618 = vadd.f32 0.0, %v617
  %619 = vmatmul.bf16.gmra.mxu0 %v472
  %v620 = vpop.f32.mrf.mxu0
  %v621 = vadd.f32 0.0, %v620
  %v622 = vpop.f32.mrf.mxu0
  %v623 = vadd.f32 0.0, %v622
  %624 = vmatmul.bf16.gmra.mxu0 %v475
  %v625 = vpop.f32.mrf.mxu0
  %v626 = vadd.f32 0.0, %v625
  %v627 = vpop.f32.mrf.mxu0
  %v628 = vadd.f32 0.0, %v627
  %629 = vmatmul.bf16.gmra.mxu0 %v478
  %v630 = vpop.f32.mrf.mxu0
  %v631 = vadd.f32 0.0, %v630
  %v632 = vpop.f32.mrf.mxu0
  %v633 = vadd.f32 0.0, %v632
  %634 = vmatmul.bf16.gmra.mxu0 %v481
  %v635 = vpop.f32.mrf.mxu0
  %v636 = vadd.f32 0.0, %v635
  %v637 = vpop.f32.mrf.mxu0
  %v638 = vadd.f32 0.0, %v637
  %639 = vmatmul.bf16.gmra.mxu0 %v484
  %v640 = vpop.f32.mrf.mxu0
  %v641 = vadd.f32 0.0, %v640
  %v642 = vpop.f32.mrf.mxu0
  %v643 = vadd.f32 0.0, %v642
  %644 = vmatmul.bf16.gmra.mxu0 %v487
  %v645 = vpop.f32.mrf.mxu0
  %v646 = vadd.f32 0.0, %v645
  %v647 = vpop.f32.mrf.mxu0
  %v648 = vadd.f32 0.0, %v647
  %649 = vmatmul.bf16.gmra.mxu0 %v490
  %v650 = vpop.f32.mrf.mxu0
  %v651 = vadd.f32 0.0, %v650
  %v652 = vpop.f32.mrf.mxu0
  %v653 = vadd.f32 0.0, %v652
  %654 = vmatmul.bf16.gmra.mxu0 %v493
  %v655 = vpop.f32.mrf.mxu0
  %v656 = vadd.f32 0.0, %v655
  %v657 = vpop.f32.mrf.mxu0
  %v658 = vadd.f32 0.0, %v657
  %659 = vmatmul.bf16.gmra.mxu0 %v496
  %v660 = vpop.f32.mrf.mxu0
  %v661 = vadd.f32 0.0, %v660
  %v662 = vpop.f32.mrf.mxu0
  %v663 = vadd.f32 0.0, %v662
  %664 = vmatmul.bf16.gmra.mxu0 %v499
  %v665 = vpop.f32.mrf.mxu0
  %v666 = vadd.f32 0.0, %v665
  %v667 = vpop.f32.mrf.mxu0
  %v668 = vadd.f32 0.0, %v667
  %669 = vmatmul.bf16.gmra.mxu0 %v502
  %v670 = vpop.f32.mrf.mxu0
  %v671 = vadd.f32 0.0, %v670
  %v672 = vpop.f32.mrf.mxu0
  %v673 = vadd.f32 0.0, %v672
  %674 = vmatmul.bf16.gmra.mxu0 %v505
  %v675 = vpop.f32.mrf.mxu0
  %v676 = vadd.f32 0.0, %v675
  %v677 = vpop.f32.mrf.mxu0
  %v678 = vadd.f32 0.0, %v677
  %679 = vdwg.mxu0
  %v680 = vadd.f32 %v86, %v521
  %v681 = vadd.f32 %v87, %v523
  %v682 = vadd.f32 %v88, %v526
  %v683 = vadd.f32 %v89, %v528
  %v684 = vadd.f32 %v90, %v531
  %v685 = vadd.f32 %v91, %v533
  %v686 = vadd.f32 %v92, %v536
  %v687 = vadd.f32 %v93, %v538
  %v688 = vadd.f32 %v94, %v541
  %v689 = vadd.f32 %v95, %v543
  %v690 = vadd.f32 %v96, %v546
  %v691 = vadd.f32 %v97, %v548
  %v692 = vadd.f32 %v98, %v551
  %v693 = vadd.f32 %v99, %v553
  %v694 = vadd.f32 %v100, %v556
  %v695 = vadd.f32 %v101, %v558
  %v696 = vadd.f32 %v102, %v561
  %v697 = vadd.f32 %v103, %v563
  %v698 = vadd.f32 %v104, %v566
  %v699 = vadd.f32 %v105, %v568
  %v700 = vadd.f32 %v106, %v571
  %v701 = vadd.f32 %v107, %v573
  %v702 = vadd.f32 %v108, %v576
  %v703 = vadd.f32 %v109, %v578
  %v704 = vadd.f32 %v110, %v581
  %v705 = vadd.f32 %v111, %v583
  %v706 = vadd.f32 %v112, %v586
  %v707 = vadd.f32 %v113, %v588
  %v708 = vadd.f32 %v114, %v591
  %v709 = vadd.f32 %v115, %v593
  %v710 = vadd.f32 %v116, %v596
  %v711 = vadd.f32 %v117, %v598
  %v712 = vadd.f32 %v118, %v601
  %v713 = vadd.f32 %v119, %v603
  %v714 = vadd.f32 %v120, %v606
  %v715 = vadd.f32 %v121, %v608
  %v716 = vadd.f32 %v122, %v611
  %v717 = vadd.f32 %v123, %v613
  %v718 = vadd.f32 %v124, %v616
  %v719 = vadd.f32 %v125, %v618
  %v720 = vadd.f32 %v126, %v621
  %v721 = vadd.f32 %v127, %v623
  %v722 = vadd.f32 %v128, %v626
  %v723 = vadd.f32 %v129, %v628
  %v724 = vadd.f32 %v130, %v631
  %v725 = vadd.f32 %v131, %v633
  %v726 = vadd.f32 %v132, %v636
  %v727 = vadd.f32 %v133, %v638
  %v728 = vadd.f32 %v134, %v641
  %v729 = vadd.f32 %v135, %v643
  %v730 = vadd.f32 %v136, %v646
  %v731 = vadd.f32 %v137, %v648
  %v732 = vadd.f32 %v138, %v651
  %v733 = vadd.f32 %v139, %v653
  %v734 = vadd.f32 %v140, %v656
  %v735 = vadd.f32 %v141, %v658
  %v736 = vadd.f32 %v142, %v661
  %v737 = vadd.f32 %v143, %v663
  %v738 = vadd.f32 %v144, %v666
  %v739 = vadd.f32 %v145, %v668
  %v740 = vadd.f32 %v146, %v671
  %v741 = vadd.f32 %v147, %v673
  %v742 = vadd.f32 %v148, %v676
  %v743 = vadd.f32 %v149, %v678
  %744 = vst [vmem:[#allocation2] sm:$0xff] %v680
  %745 = vst [vmem:[#allocation2 + $0x8] sm:$0xff] %v681
  %746 = vst [vmem:[#allocation2 + $0x10] sm:$0xff] %v682
  %747 = vst [vmem:[#allocation2 + $0x18] sm:$0xff] %v683
  %748 = vst [vmem:[#allocation2 + $0x20] sm:$0xff] %v684
  %749 = vst [vmem:[#allocation2 + $0x28] sm:$0xff] %v685
  %750 = vst [vmem:[#allocation2 + $0x30] sm:$0xff] %v686
  %751 = vst [vmem:[#allocation2 + $0x38] sm:$0xff] %v687
  %752 = vst [vmem:[#allocation2 + $0x40] sm:$0xff] %v688
  %753 = vst [vmem:[#allocation2 + $0x48] sm:$0xff] %v689
  %754 = vst [vmem:[#allocation2 + $0x50] sm:$0xff] %v690
  %755 = vst [vmem:[#allocation2 + $0x58] sm:$0xff] %v691
  %756 = vst [vmem:[#allocation2 + $0x60] sm:$0xff] %v692
  %757 = vst [vmem:[#allocation2 + $0x68] sm:$0xff] %v693
  %758 = vst [vmem:[#allocation2 + $0x70] sm:$0xff] %v694
  %759 = vst [vmem:[#allocation2 + $0x78] sm:$0xff] %v695
  %760 = vst [vmem:[#allocation2 + $0x80] sm:$0xff] %v696
  %761 = vst [vmem:[#allocation2 + $0x88] sm:$0xff] %v697
  %762 = vst [vmem:[#allocation2 + $0x90] sm:$0xff] %v698
  %763 = vst [vmem:[#allocation2 + $0x98] sm:$0xff] %v699
  %764 = vst [vmem:[#allocation2 + $0xa0] sm:$0xff] %v700
  %765 = vst [vmem:[#allocation2 + $0xa8] sm:$0xff] %v701
  %766 = vst [vmem:[#allocation2 + $0xb0] sm:$0xff] %v702
  %767 = vst [vmem:[#allocation2 + $0xb8] sm:$0xff] %v703
  %768 = vst [vmem:[#allocation2 + $0xc0] sm:$0xff] %v704
  %769 = vst [vmem:[#allocation2 + $0xc8] sm:$0xff] %v705
  %770 = vst [vmem:[#allocation2 + $0xd0] sm:$0xff] %v706
  %771 = vst [vmem:[#allocation2 + $0xd8] sm:$0xff] %v707
  %772 = vst [vmem:[#allocation2 + $0xe0] sm:$0xff] %v708
  %773 = vst [vmem:[#allocation2 + $0xe8] sm:$0xff] %v709
  %774 = vst [vmem:[#allocation2 + $0xf0] sm:$0xff] %v710
  %775 = vst [vmem:[#allocation2 + $0xf8] sm:$0xff] %v711
  %776 = vst [vmem:[#allocation2 + $0x100] sm:$0xff] %v712
  %777 = vst [vmem:[#allocation2 + $0x108] sm:$0xff] %v713
  %778 = vst [vmem:[#allocation2 + $0x110] sm:$0xff] %v714
  %779 = vst [vmem:[#allocation2 + $0x118] sm:$0xff] %v715
  %780 = vst [vmem:[#allocation2 + $0x120] sm:$0xff] %v716
  %781 = vst [vmem:[#allocation2 + $0x128] sm:$0xff] %v717
  %782 = vst [vmem:[#allocation2 + $0x130] sm:$0xff] %v718
  %783 = vst [vmem:[#allocation2 + $0x138] sm:$0xff] %v719
  %784 = vst [vmem:[#allocation2 + $0x140] sm:$0xff] %v720
  %785 = vst [vmem:[#allocation2 + $0x148] sm:$0xff] %v721
  %786 = vst [vmem:[#allocation2 + $0x150] sm:$0xff] %v722
  %787 = vst [vmem:[#allocation2 + $0x158] sm:$0xff] %v723
  %788 = vst [vmem:[#allocation2 + $0x160] sm:$0xff] %v724
  %789 = vst [vmem:[#allocation2 + $0x168] sm:$0xff] %v725
  %790 = vst [vmem:[#allocation2 + $0x170] sm:$0xff] %v726
  %791 = vst [vmem:[#allocation2 + $0x178] sm:$0xff] %v727
  %792 = vst [vmem:[#allocation2 + $0x180] sm:$0xff] %v728
  %793 = vst [vmem:[#allocation2 + $0x188] sm:$0xff] %v729
  %794 = vst [vmem:[#allocation2 + $0x190] sm:$0xff] %v730
  %795 = vst [vmem:[#allocation2 + $0x198] sm:$0xff] %v731
  %796 = vst [vmem:[#allocation2 + $0x1a0] sm:$0xff] %v732
  %797 = vst [vmem:[#allocation2 + $0x1a8] sm:$0xff] %v733
  %798 = vst [vmem:[#allocation2 + $0x1b0] sm:$0xff] %v734
  %799 = vst [vmem:[#allocation2 + $0x1b8] sm:$0xff] %v735
  %800 = vst [vmem:[#allocation2 + $0x1c0] sm:$0xff] %v736
  %801 = vst [vmem:[#allocation2 + $0x1c8] sm:$0xff] %v737
  %802 = vst [vmem:[#allocation2 + $0x1d0] sm:$0xff] %v738
  %803 = vst [vmem:[#allocation2 + $0x1d8] sm:$0xff] %v739
  %804 = vst [vmem:[#allocation2 + $0x1e0] sm:$0xff] %v740
  %805 = vst [vmem:[#allocation2 + $0x1e8] sm:$0xff] %v741
  %806 = vst [vmem:[#allocation2 + $0x1f0] sm:$0xff] %v742
  %807 = vst [vmem:[#allocation2 + $0x1f8] sm:$0xff] %v743
  // Predicated region
  $region22: #{_lambda_.11} parent=0 // pred_check
    %p808 = pneg %p18
  $region23: #{_lambda_.11} parent=0 // pred_check_branch
    %810 = sbr.rel (%p808) target = $region25
  $region24: #{_lambda_.11} parent=0 // pred_region
    %v811 = vld [vmem:[#allocation2] sm:$0xff]
    %v812 = vld [vmem:[#allocation2 + $0x8] sm:$0xff]
    %v813 = vld [vmem:[#allocation2 + $0x10] sm:$0xff]
    %v814 = vld [vmem:[#allocation2 + $0x18] sm:$0xff]
    %v815 = vld [vmem:[#allocation2 + $0x20] sm:$0xff]
    %v816 = vld [vmem:[#allocation2 + $0x28] sm:$0xff]
    %v817 = vld [vmem:[#allocation2 + $0x30] sm:$0xff]
    %v818 = vld [vmem:[#allocation2 + $0x38] sm:$0xff]
    %v819 = vld [vmem:[#allocation2 + $0x40] sm:$0xff]
    %v820 = vld [vmem:[#allocation2 + $0x48] sm:$0xff]
    %v821 = vld [vmem:[#allocation2 + $0x50] sm:$0xff]
    %v822 = vld [vmem:[#allocation2 + $0x58] sm:$0xff]
    %v823 = vld [vmem:[#allocation2 + $0x60] sm:$0xff]
    %v824 = vld [vmem:[#allocation2 + $0x68] sm:$0xff]
    %v825 = vld [vmem:[#allocation2 + $0x70] sm:$0xff]
    %v826 = vld [vmem:[#allocation2 + $0x78] sm:$0xff]
    %v827 = vld [vmem:[#allocation2 + $0x80] sm:$0xff]
    %v828 = vld [vmem:[#allocation2 + $0x88] sm:$0xff]
    %v829 = vld [vmem:[#allocation2 + $0x90] sm:$0xff]
    %v830 = vld [vmem:[#allocation2 + $0x98] sm:$0xff]
    %v831 = vld [vmem:[#allocation2 + $0xa0] sm:$0xff]
    %v832 = vld [vmem:[#allocation2 + $0xa8] sm:$0xff]
    %v833 = vld [vmem:[#allocation2 + $0xb0] sm:$0xff]
    %v834 = vld [vmem:[#allocation2 + $0xb8] sm:$0xff]
    %v835 = vld [vmem:[#allocation2 + $0xc0] sm:$0xff]
    %v836 = vld [vmem:[#allocation2 + $0xc8] sm:$0xff]
    %v837 = vld [vmem:[#allocation2 + $0xd0] sm:$0xff]
    %v838 = vld [vmem:[#allocation2 + $0xd8] sm:$0xff]
    %v839 = vld [vmem:[#allocation2 + $0xe0] sm:$0xff]
    %v840 = vld [vmem:[#allocation2 + $0xe8] sm:$0xff]
    %v841 = vld [vmem:[#allocation2 + $0xf0] sm:$0xff]
    %v842 = vld [vmem:[#allocation2 + $0xf8] sm:$0xff]
    %v843 = vld [vmem:[#allocation2 + $0x100] sm:$0xff]
    %v844 = vld [vmem:[#allocation2 + $0x108] sm:$0xff]
    %v845 = vld [vmem:[#allocation2 + $0x110] sm:$0xff]
    %v846 = vld [vmem:[#allocation2 + $0x118] sm:$0xff]
    %v847 = vld [vmem:[#allocation2 + $0x120] sm:$0xff]
    %v848 = vld [vmem:[#allocation2 + $0x128] sm:$0xff]
    %v849 = vld [vmem:[#allocation2 + $0x130] sm:$0xff]
    %v850 = vld [vmem:[#allocation2 + $0x138] sm:$0xff]
    %v851 = vld [vmem:[#allocation2 + $0x140] sm:$0xff]
    %v852 = vld [vmem:[#allocation2 + $0x148] sm:$0xff]
    %v853 = vld [vmem:[#allocation2 + $0x150] sm:$0xff]
    %v854 = vld [vmem:[#allocation2 + $0x158] sm:$0xff]
    %v855 = vld [vmem:[#allocation2 + $0x160] sm:$0xff]
    %v856 = vld [vmem:[#allocation2 + $0x168] sm:$0xff]
    %v857 = vld [vmem:[#allocation2 + $0x170] sm:$0xff]
    %v858 = vld [vmem:[#allocation2 + $0x178] sm:$0xff]
    %v859 = vld [vmem:[#allocation2 + $0x180] sm:$0xff]
    %v860 = vld [vmem:[#allocation2 + $0x188] sm:$0xff]
    %v861 = vld [vmem:[#allocation2 + $0x190] sm:$0xff]
    %v862 = vld [vmem:[#allocation2 + $0x198] sm:$0xff]
    %v863 = vld [vmem:[#allocation2 + $0x1a0] sm:$0xff]
    %v864 = vld [vmem:[#allocation2 + $0x1a8] sm:$0xff]
    %v865 = vld [vmem:[#allocation2 + $0x1b0] sm:$0xff]
    %v866 = vld [vmem:[#allocation2 + $0x1b8] sm:$0xff]
    %v867 = vld [vmem:[#allocation2 + $0x1c0] sm:$0xff]
    %v868 = vld [vmem:[#allocation2 + $0x1c8] sm:$0xff]
    %v869 = vld [vmem:[#allocation2 + $0x1d0] sm:$0xff]
    %v870 = vld [vmem:[#allocation2 + $0x1d8] sm:$0xff]
    %v871 = vld [vmem:[#allocation2 + $0x1e0] sm:$0xff]
    %v872 = vld [vmem:[#allocation2 + $0x1e8] sm:$0xff]
    %v873 = vld [vmem:[#allocation2 + $0x1f0] sm:$0xff]
    %v874 = vld [vmem:[#allocation2 + $0x1f8] sm:$0xff]
    %v875 = vld [vmem:[%s2] sm:$0x1]
    %v877 = vperm.slane %v875, 0
    %v879 = vmul.f32 %v811, %v877
    %v880 = vmul.f32 %v812, %v877
    %v881 = vmul.f32 %v813, %v877
    %v882 = vmul.f32 %v814, %v877
    %v883 = vmul.f32 %v815, %v877
    %v884 = vmul.f32 %v816, %v877
    %v885 = vmul.f32 %v817, %v877
    %v886 = vmul.f32 %v818, %v877
    %v887 = vmul.f32 %v819, %v877
    %v888 = vmul.f32 %v820, %v877
    %v889 = vmul.f32 %v821, %v877
    %v890 = vmul.f32 %v822, %v877
    %v891 = vmul.f32 %v823, %v877
    %v892 = vmul.f32 %v824, %v877
    %v893 = vmul.f32 %v825, %v877
    %v894 = vmul.f32 %v826, %v877
    %v895 = vmul.f32 %v827, %v877
    %v896 = vmul.f32 %v828, %v877
    %v897 = vmul.f32 %v829, %v877
    %v898 = vmul.f32 %v830, %v877
    %v899 = vmul.f32 %v831, %v877
    %v900 = vmul.f32 %v832, %v877
    %v901 = vmul.f32 %v833, %v877
    %v902 = vmul.f32 %v834, %v877
    %v903 = vmul.f32 %v835, %v877
    %v904 = vmul.f32 %v836, %v877
    %v905 = vmul.f32 %v837, %v877
    %v906 = vmul.f32 %v838, %v877
    %v907 = vmul.f32 %v839, %v877
    %v908 = vmul.f32 %v840, %v877
    %v909 = vmul.f32 %v841, %v877
    %v910 = vmul.f32 %v842, %v877
    %v911 = vmul.f32 %v843, %v877
    %v912 = vmul.f32 %v844, %v877
    %v913 = vmul.f32 %v845, %v877
    %v914 = vmul.f32 %v846, %v877
    %v915 = vmul.f32 %v847, %v877
    %v916 = vmul.f32 %v848, %v877
    %v917 = vmul.f32 %v849, %v877
    %v918 = vmul.f32 %v850, %v877
    %v919 = vmul.f32 %v851, %v877
    %v920 = vmul.f32 %v852, %v877
    %v921 = vmul.f32 %v853, %v877
    %v922 = vmul.f32 %v854, %v877
    %v923 = vmul.f32 %v855, %v877
    %v924 = vmul.f32 %v856, %v877
    %v925 = vmul.f32 %v857, %v877
    %v926 = vmul.f32 %v858, %v877
    %v927 = vmul.f32 %v859, %v877
    %v928 = vmul.f32 %v860, %v877
    %v929 = vmul.f32 %v861, %v877
    %v930 = vmul.f32 %v862, %v877
    %v931 = vmul.f32 %v863, %v877
    %v932 = vmul.f32 %v864, %v877
    %v933 = vmul.f32 %v865, %v877
    %v934 = vmul.f32 %v866, %v877
    %v935 = vmul.f32 %v867, %v877
    %v936 = vmul.f32 %v868, %v877
    %v937 = vmul.f32 %v869, %v877
    %v938 = vmul.f32 %v870, %v877
    %v939 = vmul.f32 %v871, %v877
    %v940 = vmul.f32 %v872, %v877
    %v941 = vmul.f32 %v873, %v877
    %v942 = vmul.f32 %v874, %v877
    %v943 = vld [vmem:[%s3] sm:$0x1]
    %v945 = vperm.slane %v943, 0
    %v947 = vadd.f32 %v879, %v945
    %v948 = vadd.f32 %v880, %v945
    %v949 = vadd.f32 %v881, %v945
    %v950 = vadd.f32 %v882, %v945
    %v951 = vadd.f32 %v883, %v945
    %v952 = vadd.f32 %v884, %v945
    %v953 = vadd.f32 %v885, %v945
    %v954 = vadd.f32 %v886, %v945
    %v955 = vadd.f32 %v887, %v945
    %v956 = vadd.f32 %v888, %v945
    %v957 = vadd.f32 %v889, %v945
    %v958 = vadd.f32 %v890, %v945
    %v959 = vadd.f32 %v891, %v945
    %v960 = vadd.f32 %v892, %v945
    %v961 = vadd.f32 %v893, %v945
    %v962 = vadd.f32 %v894, %v945
    %v963 = vadd.f32 %v895, %v945
    %v964 = vadd.f32 %v896, %v945
    %v965 = vadd.f32 %v897, %v945
    %v966 = vadd.f32 %v898, %v945
    %v967 = vadd.f32 %v899, %v945
    %v968 = vadd.f32 %v900, %v945
    %v969 = vadd.f32 %v901, %v945
    %v970 = vadd.f32 %v902, %v945
    %v971 = vadd.f32 %v903, %v945
    %v972 = vadd.f32 %v904, %v945
    %v973 = vadd.f32 %v905, %v945
    %v974 = vadd.f32 %v906, %v945
    %v975 = vadd.f32 %v907, %v945
    %v976 = vadd.f32 %v908, %v945
    %v977 = vadd.f32 %v909, %v945
    %v978 = vadd.f32 %v910, %v945
    %v979 = vadd.f32 %v911, %v945
    %v980 = vadd.f32 %v912, %v945
    %v981 = vadd.f32 %v913, %v945
    %v982 = vadd.f32 %v914, %v945
    %v983 = vadd.f32 %v915, %v945
    %v984 = vadd.f32 %v916, %v945
    %v985 = vadd.f32 %v917, %v945
    %v986 = vadd.f32 %v918, %v945
    %v987 = vadd.f32 %v919, %v945
    %v988 = vadd.f32 %v920, %v945
    %v989 = vadd.f32 %v921, %v945
    %v990 = vadd.f32 %v922, %v945
    %v991 = vadd.f32 %v923, %v945
    %v992 = vadd.f32 %v924, %v945
    %v993 = vadd.f32 %v925, %v945
    %v994 = vadd.f32 %v926, %v945
    %v995 = vadd.f32 %v927, %v945
    %v996 = vadd.f32 %v928, %v945
    %v997 = vadd.f32 %v929, %v945
    %v998 = vadd.f32 %v930, %v945
    %v999 = vadd.f32 %v931, %v945
    %v1000 = vadd.f32 %v932, %v945
    %v1001 = vadd.f32 %v933, %v945
    %v1002 = vadd.f32 %v934, %v945
    %v1003 = vadd.f32 %v935, %v945
    %v1004 = vadd.f32 %v936, %v945
    %v1005 = vadd.f32 %v937, %v945
    %v1006 = vadd.f32 %v938, %v945
    %v1007 = vadd.f32 %v939, %v945
    %v1008 = vadd.f32 %v940, %v945
    %v1009 = vadd.f32 %v941, %v945
    %v1010 = vadd.f32 %v942, %v945
    %v1011 = vmax.f32 %v947, 0.0
    %v1012 = vmax.f32 %v948, 0.0
    %v1013 = vmax.f32 %v949, 0.0
    %v1014 = vmax.f32 %v950, 0.0
    %v1015 = vmax.f32 %v951, 0.0
    %v1016 = vmax.f32 %v952, 0.0
    %v1017 = vmax.f32 %v953, 0.0
    %v1018 = vmax.f32 %v954, 0.0
    %v1019 = vmax.f32 %v955, 0.0
    %v1020 = vmax.f32 %v956, 0.0
    %v1021 = vmax.f32 %v957, 0.0
    %v1022 = vmax.f32 %v958, 0.0
    %v1023 = vmax.f32 %v959, 0.0
    %v1024 = vmax.f32 %v960, 0.0
    %v1025 = vmax.f32 %v961, 0.0
    %v1026 = vmax.f32 %v962, 0.0
    %v1027 = vmax.f32 %v963, 0.0
    %v1028 = vmax.f32 %v964, 0.0
    %v1029 = vmax.f32 %v965, 0.0
    %v1030 = vmax.f32 %v966, 0.0
    %v1031 = vmax.f32 %v967, 0.0
    %v1032 = vmax.f32 %v968, 0.0
    %v1033 = vmax.f32 %v969, 0.0
    %v1034 = vmax.f32 %v970, 0.0
    %v1035 = vmax.f32 %v971, 0.0
    %v1036 = vmax.f32 %v972, 0.0
    %v1037 = vmax.f32 %v973, 0.0
    %v1038 = vmax.f32 %v974, 0.0
    %v1039 = vmax.f32 %v975, 0.0
    %v1040 = vmax.f32 %v976, 0.0
    %v1041 = vmax.f32 %v977, 0.0
    %v1042 = vmax.f32 %v978, 0.0
    %v1043 = vmax.f32 %v979, 0.0
    %v1044 = vmax.f32 %v980, 0.0
    %v1045 = vmax.f32 %v981, 0.0
    %v1046 = vmax.f32 %v982, 0.0
    %v1047 = vmax.f32 %v983, 0.0
    %v1048 = vmax.f32 %v984, 0.0
    %v1049 = vmax.f32 %v985, 0.0
    %v1050 = vmax.f32 %v986, 0.0
    %v1051 = vmax.f32 %v987, 0.0
    %v1052 = vmax.f32 %v988, 0.0
    %v1053 = vmax.f32 %v989, 0.0
    %v1054 = vmax.f32 %v990, 0.0
    %v1055 = vmax.f32 %v991, 0.0
    %v1056 = vmax.f32 %v992, 0.0
    %v1057 = vmax.f32 %v993, 0.0
    %v1058 = vmax.f32 %v994, 0.0
    %v1059 = vmax.f32 %v995, 0.0
    %v1060 = vmax.f32 %v996, 0.0
    %v1061 = vmax.f32 %v997, 0.0
    %v1062 = vmax.f32 %v998, 0.0
    %v1063 = vmax.f32 %v999, 0.0
    %v1064 = vmax.f32 %v1000, 0.0
    %v1065 = vmax.f32 %v1001, 0.0
    %v1066 = vmax.f32 %v1002, 0.0
    %v1067 = vmax.f32 %v1003, 0.0
    %v1068 = vmax.f32 %v1004, 0.0
    %v1069 = vmax.f32 %v1005, 0.0
    %v1070 = vmax.f32 %v1006, 0.0
    %v1071 = vmax.f32 %v1007, 0.0
    %v1072 = vmax.f32 %v1008, 0.0
    %v1073 = vmax.f32 %v1009, 0.0
    %v1074 = vmax.f32 %v1010, 0.0
    %v1075 = vpack.c.bf16 %v1011, %v1011
    %v1076 = vpack.c.bf16 %v1012, %v1012
    %v1077 = vpack.c.bf16 %v1013, %v1013
    %v1078 = vpack.c.bf16 %v1014, %v1014
    %v1079 = vpack.c.bf16 %v1015, %v1015
    %v1080 = vpack.c.bf16 %v1016, %v1016
    %v1081 = vpack.c.bf16 %v1017, %v1017
    %v1082 = vpack.c.bf16 %v1018, %v1018
    %v1083 = vpack.c.bf16 %v1019, %v1019
    %v1084 = vpack.c.bf16 %v1020, %v1020
    %v1085 = vpack.c.bf16 %v1021, %v1021
    %v1086 = vpack.c.bf16 %v1022, %v1022
    %v1087 = vpack.c.bf16 %v1023, %v1023
    %v1088 = vpack.c.bf16 %v1024, %v1024
    %v1089 = vpack.c.bf16 %v1025, %v1025
    %v1090 = vpack.c.bf16 %v1026, %v1026
    %v1091 = vpack.c.bf16 %v1027, %v1027
    %v1092 = vpack.c.bf16 %v1028, %v1028
    %v1093 = vpack.c.bf16 %v1029, %v1029
    %v1094 = vpack.c.bf16 %v1030, %v1030
    %v1095 = vpack.c.bf16 %v1031, %v1031
    %v1096 = vpack.c.bf16 %v1032, %v1032
    %v1097 = vpack.c.bf16 %v1033, %v1033
    %v1098 = vpack.c.bf16 %v1034, %v1034
    %v1099 = vpack.c.bf16 %v1035, %v1035
    %v1100 = vpack.c.bf16 %v1036, %v1036
    %v1101 = vpack.c.bf16 %v1037, %v1037
    %v1102 = vpack.c.bf16 %v1038, %v1038
    %v1103 = vpack.c.bf16 %v1039, %v1039
    %v1104 = vpack.c.bf16 %v1040, %v1040
    %v1105 = vpack.c.bf16 %v1041, %v1041
    %v1106 = vpack.c.bf16 %v1042, %v1042
    %v1107 = vpack.c.bf16 %v1043, %v1043
    %v1108 = vpack.c.bf16 %v1044, %v1044
    %v1109 = vpack.c.bf16 %v1045, %v1045
    %v1110 = vpack.c.bf16 %v1046, %v1046
    %v1111 = vpack.c.bf16 %v1047, %v1047
    %v1112 = vpack.c.bf16 %v1048, %v1048
    %v1113 = vpack.c.bf16 %v1049, %v1049
    %v1114 = vpack.c.bf16 %v1050, %v1050
    %v1115 = vpack.c.bf16 %v1051, %v1051
    %v1116 = vpack.c.bf16 %v1052, %v1052
    %v1117 = vpack.c.bf16 %v1053, %v1053
    %v1118 = vpack.c.bf16 %v1054, %v1054
    %v1119 = vpack.c.bf16 %v1055, %v1055
    %v1120 = vpack.c.bf16 %v1056, %v1056
    %v1121 = vpack.c.bf16 %v1057, %v1057
    %v1122 = vpack.c.bf16 %v1058, %v1058
    %v1123 = vpack.c.bf16 %v1059, %v1059
    %v1124 = vpack.c.bf16 %v1060, %v1060
    %v1125 = vpack.c.bf16 %v1061, %v1061
    %v1126 = vpack.c.bf16 %v1062, %v1062
    %v1127 = vpack.c.bf16 %v1063, %v1063
    %v1128 = vpack.c.bf16 %v1064, %v1064
    %v1129 = vpack.c.bf16 %v1065, %v1065
    %v1130 = vpack.c.bf16 %v1066, %v1066
    %v1131 = vpack.c.bf16 %v1067, %v1067
    %v1132 = vpack.c.bf16 %v1068, %v1068
    %v1133 = vpack.c.bf16 %v1069, %v1069
    %v1134 = vpack.c.bf16 %v1070, %v1070
    %v1135 = vpack.c.bf16 %v1071, %v1071
    %v1136 = vpack.c.bf16 %v1072, %v1072
    %v1137 = vpack.c.bf16 %v1073, %v1073
    %v1138 = vpack.c.bf16 %v1074, %v1074
    %1139 = vst [vmem:[%s4] sm:$0xf] %v1075
    %1140 = vst [vmem:[%s4 + $0x4] sm:$0xf] %v1076
    %1141 = vst [vmem:[%s4 + $0x8] sm:$0xf] %v1077
    %1142 = vst [vmem:[%s4 + $0xc] sm:$0xf] %v1078
    %1143 = vst [vmem:[%s4 + $0x10] sm:$0xf] %v1079
    %1144 = vst [vmem:[%s4 + $0x14] sm:$0xf] %v1080
    %1145 = vst [vmem:[%s4 + $0x18] sm:$0xf] %v1081
    %1146 = vst [vmem:[%s4 + $0x1c] sm:$0xf] %v1082
    %1147 = vst [vmem:[%s4 + $0x20] sm:$0xf] %v1083
    %1148 = vst [vmem:[%s4 + $0x24] sm:$0xf] %v1084
    %1149 = vst [vmem:[%s4 + $0x28] sm:$0xf] %v1085
    %1150 = vst [vmem:[%s4 + $0x2c] sm:$0xf] %v1086
    %1151 = vst [vmem:[%s4 + $0x30] sm:$0xf] %v1087
    %1152 = vst [vmem:[%s4 + $0x34] sm:$0xf] %v1088
    %1153 = vst [vmem:[%s4 + $0x38] sm:$0xf] %v1089
    %1154 = vst [vmem:[%s4 + $0x3c] sm:$0xf] %v1090
    %1155 = vst [vmem:[%s4 + $0x40] sm:$0xf] %v1091
    %1156 = vst [vmem:[%s4 + $0x44] sm:$0xf] %v1092
    %1157 = vst [vmem:[%s4 + $0x48] sm:$0xf] %v1093
    %1158 = vst [vmem:[%s4 + $0x4c] sm:$0xf] %v1094
    %1159 = vst [vmem:[%s4 + $0x50] sm:$0xf] %v1095
    %1160 = vst [vmem:[%s4 + $0x54] sm:$0xf] %v1096
    %1161 = vst [vmem:[%s4 + $0x58] sm:$0xf] %v1097
    %1162 = vst [vmem:[%s4 + $0x5c] sm:$0xf] %v1098
    %1163 = vst [vmem:[%s4 + $0x60] sm:$0xf] %v1099
    %1164 = vst [vmem:[%s4 + $0x64] sm:$0xf] %v1100
    %1165 = vst [vmem:[%s4 + $0x68] sm:$0xf] %v1101
    %1166 = vst [vmem:[%s4 + $0x6c] sm:$0xf] %v1102
    %1167 = vst [vmem:[%s4 + $0x70] sm:$0xf] %v1103
    %1168 = vst [vmem:[%s4 + $0x74] sm:$0xf] %v1104
    %1169 = vst [vmem:[%s4 + $0x78] sm:$0xf] %v1105
    %1170 = vst [vmem:[%s4 + $0x7c] sm:$0xf] %v1106
    %1171 = vst [vmem:[%s4 + $0x80] sm:$0xf] %v1107
    %1172 = vst [vmem:[%s4 + $0x84] sm:$0xf] %v1108
    %1173 = vst [vmem:[%s4 + $0x88] sm:$0xf] %v1109
    %1174 = vst [vmem:[%s4 + $0x8c] sm:$0xf] %v1110
    %1175 = vst [vmem:[%s4 + $0x90] sm:$0xf] %v1111
    %1176 = vst [vmem:[%s4 + $0x94] sm:$0xf] %v1112
    %1177 = vst [vmem:[%s4 + $0x98] sm:$0xf] %v1113
    %1178 = vst [vmem:[%s4 + $0x9c] sm:$0xf] %v1114
    %1179 = vst [vmem:[%s4 + $0xa0] sm:$0xf] %v1115
    %1180 = vst [vmem:[%s4 + $0xa4] sm:$0xf] %v1116
    %1181 = vst [vmem:[%s4 + $0xa8] sm:$0xf] %v1117
    %1182 = vst [vmem:[%s4 + $0xac] sm:$0xf] %v1118
    %1183 = vst [vmem:[%s4 + $0xb0] sm:$0xf] %v1119
    %1184 = vst [vmem:[%s4 + $0xb4] sm:$0xf] %v1120
    %1185 = vst [vmem:[%s4 + $0xb8] sm:$0xf] %v1121
    %1186 = vst [vmem:[%s4 + $0xbc] sm:$0xf] %v1122
    %1187 = vst [vmem:[%s4 + $0xc0] sm:$0xf] %v1123
    %1188 = vst [vmem:[%s4 + $0xc4] sm:$0xf] %v1124
    %1189 = vst [vmem:[%s4 + $0xc8] sm:$0xf] %v1125
    %1190 = vst [vmem:[%s4 + $0xcc] sm:$0xf] %v1126
    %1191 = vst [vmem:[%s4 + $0xd0] sm:$0xf] %v1127
    %1192 = vst [vmem:[%s4 + $0xd4] sm:$0xf] %v1128
    %1193 = vst [vmem:[%s4 + $0xd8] sm:$0xf] %v1129
    %1194 = vst [vmem:[%s4 + $0xdc] sm:$0xf] %v1130
    %1195 = vst [vmem:[%s4 + $0xe0] sm:$0xf] %v1131
    %1196 = vst [vmem:[%s4 + $0xe4] sm:$0xf] %v1132
    %1197 = vst [vmem:[%s4 + $0xe8] sm:$0xf] %v1133
    %1198 = vst [vmem:[%s4 + $0xec] sm:$0xf] %v1134
    %1199 = vst [vmem:[%s4 + $0xf0] sm:$0xf] %v1135
    %1200 = vst [vmem:[%s4 + $0xf4] sm:$0xf] %v1136
    %1201 = vst [vmem:[%s4 + $0xf8] sm:$0xf] %v1137
    %1202 = vst [vmem:[%s4 + $0xfc] sm:$0xf] %v1138
  $region25: #{_lambda_.11} parent=0 // pred_fallthru
    _
  // Predicated region
  $region26: #{_lambda_.11} parent=0 // pred_check
    _
  $region27: #{_lambda_.11} parent=0 // pred_check_branch
    %1204 = sbr.rel (0) target = $region29
  $region28: #{_lambda_.11} parent=0 // pred_region
    _
  $region29: #{_lambda_.11} parent=0 // pred_fallthru
    _
  // Predicated region
  $region30: #{_lambda_.11} parent=0 // pred_check
    _
  $region31: #{_lambda_.11} parent=0 // pred_check_branch
    %1206 = sbr.rel (0) target = $region33
  $region32: #{_lambda_.11} parent=0 // pred_region
    _
  $region33: #{_lambda_.11} parent=0 // pred_fallthru
    _

// kernel: _lambda_.14
$region0: #{_lambda_.14}
  #allocation0 [shape = 'u32[]', space=smem, size = 0x4, offset = 0x4, fixed_abs, tag = 'smem constant byte address 0x4 - core index']
  #allocation1 [shape = 'u32[72,128]{1,0:T(1,128)}', space=vmem, size = 0x9000, scoped, tag = 'internal scratch']
  #allocation2 [shape = 'f32[128,128]{1,0:T(8,128)}', space=vmem, size = 0x10000, scoped, tag = 'scratch operand']
  %s0 = inlined_call_operand.vmem [shape: bf16[128,8], index: 0, kind: input, shape index: {}]
  %s1 = inlined_call_operand.vmem [shape: bf16[8,128], index: 1, kind: input, shape index: {}]
  %s2 = inlined_call_operand.vmem [shape: f32[1,128], index: 2, kind: input, shape index: {}]
  %s3 = inlined_call_operand.vmem [shape: f32[1,128], index: 3, kind: input, shape index: {}]
  %s4 = inlined_call_operand.vmem [shape: bf16[128,128], index: 4, kind: output, shape index: {}]
  %s5 = sld [smem:[#allocation0]]
  $region34: #{_lambda_.14} parent=0
    _
  %s7 = ssub.s32 1, %s5
  %s8 = scalar_select 0, %s7, %s5
  // Predicated region
  $region2: #{_lambda_.14} parent=0 // pred_check
    _
  $region3: #{_lambda_.14} parent=0 // pred_check_branch
    %10 = sbr.rel (0) target = $region5
  $region4: #{_lambda_.14} parent=0 // pred_region
    _
  $region5: #{_lambda_.14} parent=0 // pred_fallthru
    _
  // Predicated region
  $region6: #{_lambda_.14} parent=0 // pred_check
    _
  $region7: #{_lambda_.14} parent=0 // pred_check_branch
    %12 = sbr.rel (0) target = $region9
  $region8: #{_lambda_.14} parent=0 // pred_region
    _
  $region9: #{_lambda_.14} parent=0 // pred_fallthru
    _
  // Predicated region
  $region10: #{_lambda_.14} parent=0 // pred_check
    _
  $region11: #{_lambda_.14} parent=0 // pred_check_branch
    %14 = sbr.rel (0) target = $region13
  $region12: #{_lambda_.14} parent=0 // pred_region
    _
  $region13: #{_lambda_.14} parent=0 // pred_fallthru
    _
  // Predicated region
  $region14: #{_lambda_.14} parent=0 // pred_check
    _
  $region15: #{_lambda_.14} parent=0 // pred_check_branch
    %16 = sbr.rel (0) target = $region17
  $region16: #{_lambda_.14} parent=0 // pred_region
    _
  $region17: #{_lambda_.14} parent=0 // pred_fallthru
    _
  %p18 = scmp.eq.s32.totalorder 0, 0
  // Predicated region
  $region18: #{_lambda_.14} parent=0 // pred_check
    %p19 = pneg %p18
  $region19: #{_lambda_.14} parent=0 // pred_check_branch
    %21 = sbr.rel (%p19) target = $region21
  $region20: #{_lambda_.14} parent=0 // pred_region
    %22 = vst [vmem:[#allocation2] sm:$0xff] 0.0
    %23 = vst [vmem:[#allocation2 + $0x8] sm:$0xff] 0.0
    %24 = vst [vmem:[#allocation2 + $0x10] sm:$0xff] 0.0
    %25 = vst [vmem:[#allocation2 + $0x18] sm:$0xff] 0.0
    %26 = vst [vmem:[#allocation2 + $0x20] sm:$0xff] 0.0
    %27 = vst [vmem:[#allocation2 + $0x28] sm:$0xff] 0.0
    %28 = vst [vmem:[#allocation2 + $0x30] sm:$0xff] 0.0
    %29 = vst [vmem:[#allocation2 + $0x38] sm:$0xff] 0.0
    %30 = vst [vmem:[#allocation2 + $0x40] sm:$0xff] 0.0
    %31 = vst [vmem:[#allocation2 + $0x48] sm:$0xff] 0.0
    %32 = vst [vmem:[#allocation2 + $0x50] sm:$0xff] 0.0
    %33 = vst [vmem:[#allocation2 + $0x58] sm:$0xff] 0.0
    %34 = vst [vmem:[#allocation2 + $0x60] sm:$0xff] 0.0
    %35 = vst [vmem:[#allocation2 + $0x68] sm:$0xff] 0.0
    %36 = vst [vmem:[#allocation2 + $0x70] sm:$0xff] 0.0
    %37 = vst [vmem:[#allocation2 + $0x78] sm:$0xff] 0.0
  $region21: #{_lambda_.14} parent=0 // pred_fallthru
    _
  %v38 = vld [vmem:[#allocation2] sm:$0xff]
  %v39 = vld [vmem:[#allocation2 + $0x8] sm:$0xff]
  %v40 = vld [vmem:[#allocation2 + $0x10] sm:$0xff]
  %v41 = vld [vmem:[#allocation2 + $0x18] sm:$0xff]
  %v42 = vld [vmem:[#allocation2 + $0x20] sm:$0xff]
  %v43 = vld [vmem:[#allocation2 + $0x28] sm:$0xff]
  %v44 = vld [vmem:[#allocation2 + $0x30] sm:$0xff]
  %v45 = vld [vmem:[#allocation2 + $0x38] sm:$0xff]
  %v46 = vld [vmem:[#allocation2 + $0x40] sm:$0xff]
  %v47 = vld [vmem:[#allocation2 + $0x48] sm:$0xff]
  %v48 = vld [vmem:[#allocation2 + $0x50] sm:$0xff]
  %v49 = vld [vmem:[#allocation2 + $0x58] sm:$0xff]
  %v50 = vld [vmem:[#allocation2 + $0x60] sm:$0xff]
  %v51 = vld [vmem:[#allocation2 + $0x68] sm:$0xff]
  %v52 = vld [vmem:[#allocation2 + $0x70] sm:$0xff]
  %v53 = vld [vmem:[#allocation2 + $0x78] sm:$0xff]
  %v54 = vld [vmem:[%s0] sm:$0xf]
  %v55 = vld [vmem:[%s0 + $0x4] sm:$0xf]
  %v56 = vld [vmem:[%s0 + $0x8] sm:$0xf]
  %v57 = vld [vmem:[%s0 + $0xc] sm:$0xf]
  %v58 = vld [vmem:[%s0 + $0x10] sm:$0xf]
  %v59 = vld [vmem:[%s0 + $0x14] sm:$0xf]
  %v60 = vld [vmem:[%s0 + $0x18] sm:$0xf]
  %v61 = vld [vmem:[%s0 + $0x1c] sm:$0xf]
  %v62 = vld [vmem:[%s0 + $0x20] sm:$0xf]
  %v63 = vld [vmem:[%s0 + $0x24] sm:$0xf]
  %v64 = vld [vmem:[%s0 + $0x28] sm:$0xf]
  %v65 = vld [vmem:[%s0 + $0x2c] sm:$0xf]
  %v66 = vld [vmem:[%s0 + $0x30] sm:$0xf]
  %v67 = vld [vmem:[%s0 + $0x34] sm:$0xf]
  %v68 = vld [vmem:[%s0 + $0x38] sm:$0xf]
  %v69 = vld [vmem:[%s0 + $0x3c] sm:$0xf]
  %v70 = vld [vmem:[%s1] sm:$0xf]
  %v87 = vunpack.c.l.b16 %v54
  %v88 = vunpack.c.l.b16 %v55
  %v89 = vunpack.c.l.b16 %v56
  %v90 = vunpack.c.l.b16 %v57
  %v91 = vunpack.c.l.b16 %v58
  %v92 = vunpack.c.l.b16 %v59
  %v93 = vunpack.c.l.b16 %v60
  %v94 = vunpack.c.l.b16 %v61
  %v95 = vunpack.c.l.b16 %v62
  %v96 = vunpack.c.l.b16 %v63
  %v97 = vunpack.c.l.b16 %v64
  %v98 = vunpack.c.l.b16 %v65
  %v99 = vunpack.c.l.b16 %v66
  %v100 = vunpack.c.l.b16 %v67
  %v101 = vunpack.c.l.b16 %v68
  %v102 = vunpack.c.l.b16 %v69
  %v103 = vpack.c.b16 %v88, %v87
  %v104 = vpack.c.b16 %v90, %v89
  %v105 = vpack.c.b16 %v92, %v91
  %v106 = vpack.c.b16 %v94, %v93
  %v107 = vpack.c.b16 %v96, %v95
  %v108 = vpack.c.b16 %v98, %v97
  %v109 = vpack.c.b16 %v100, %v99
  %v110 = vpack.c.b16 %v102, %v101
  %vm111 = vcmask 64512
  %v113 = vsel %vm111, %v103, 0
  %v116 = vsel %vm111, %v104, 0
  %v119 = vsel %vm111, %v105, 0
  %v122 = vsel %vm111, %v106, 0
  %v125 = vsel %vm111, %v107, 0
  %v128 = vsel %vm111, %v108, 0
  %v131 = vsel %vm111, %v109, 0
  %v134 = vsel %vm111, %v110, 0
  %vm136 = vcmask 1043456
  %v138 = vsel %vm136, %v70, 0
  %140 = vmatpush.bf16.msra.mxu0 0
  %141 = vmatpush.bf16.msra.mxu0 0
  %142 = vmatpush.bf16.msra.mxu0 0
  %143 = vmatpush.bf16.msra.mxu0 0
  %144 = vmatpush.bf16.msra.mxu0 0
  %145 = vmatpush.bf16.msra.mxu0 0
  %146 = vmatpush.bf16.msra.mxu0 0
  %147 = vmatpush.bf16.msra.mxu0 %v138
  %148 = vmatmul.bf16.gmra.mxu0 %v113
  %v149 = vpop.f32.mrf.mxu0
  %v150 = vadd.f32 0.0, %v149
  %v151 = vpop.f32.mrf.mxu0
  %v152 = vadd.f32 0.0, %v151
  %153 = vmatmul.bf16.gmra.mxu0 %v116
  %v154 = vpop.f32.mrf.mxu0
  %v155 = vadd.f32 0.0, %v154
  %v156 = vpop.f32.mrf.mxu0
  %v157 = vadd.f32 0.0, %v156
  %158 = vmatmul.bf16.gmra.mxu0 %v119
  %v159 = vpop.f32.mrf.mxu0
  %v160 = vadd.f32 0.0, %v159
  %v161 = vpop.f32.mrf.mxu0
  %v162 = vadd.f32 0.0, %v161
  %163 = vmatmul.bf16.gmra.mxu0 %v122
  %v164 = vpop.f32.mrf.mxu0
  %v165 = vadd.f32 0.0, %v164
  %v166 = vpop.f32.mrf.mxu0
  %v167 = vadd.f32 0.0, %v166
  %168 = vmatmul.bf16.gmra.mxu0 %v125
  %v169 = vpop.f32.mrf.mxu0
  %v170 = vadd.f32 0.0, %v169
  %v171 = vpop.f32.mrf.mxu0
  %v172 = vadd.f32 0.0, %v171
  %173 = vmatmul.bf16.gmra.mxu0 %v128
  %v174 = vpop.f32.mrf.mxu0
  %v175 = vadd.f32 0.0, %v174
  %v176 = vpop.f32.mrf.mxu0
  %v177 = vadd.f32 0.0, %v176
  %178 = vmatmul.bf16.gmra.mxu0 %v131
  %v179 = vpop.f32.mrf.mxu0
  %v180 = vadd.f32 0.0, %v179
  %v181 = vpop.f32.mrf.mxu0
  %v182 = vadd.f32 0.0, %v181
  %183 = vmatmul.bf16.gmra.mxu0 %v134
  %v184 = vpop.f32.mrf.mxu0
  %v185 = vadd.f32 0.0, %v184
  %v186 = vpop.f32.mrf.mxu0
  %v187 = vadd.f32 0.0, %v186
  %188 = vdwg.mxu0
  %v189 = vadd.f32 %v38, %v150
  %v190 = vadd.f32 %v39, %v152
  %v191 = vadd.f32 %v40, %v155
  %v192 = vadd.f32 %v41, %v157
  %v193 = vadd.f32 %v42, %v160
  %v194 = vadd.f32 %v43, %v162
  %v195 = vadd.f32 %v44, %v165
  %v196 = vadd.f32 %v45, %v167
  %v197 = vadd.f32 %v46, %v170
  %v198 = vadd.f32 %v47, %v172
  %v199 = vadd.f32 %v48, %v175
  %v200 = vadd.f32 %v49, %v177
  %v201 = vadd.f32 %v50, %v180
  %v202 = vadd.f32 %v51, %v182
  %v203 = vadd.f32 %v52, %v185
  %v204 = vadd.f32 %v53, %v187
  %205 = vst [vmem:[#allocation2] sm:$0xff] %v189
  %206 = vst [vmem:[#allocation2 + $0x8] sm:$0xff] %v190
  %207 = vst [vmem:[#allocation2 + $0x10] sm:$0xff] %v191
  %208 = vst [vmem:[#allocation2 + $0x18] sm:$0xff] %v192
  %209 = vst [vmem:[#allocation2 + $0x20] sm:$0xff] %v193
  %210 = vst [vmem:[#allocation2 + $0x28] sm:$0xff] %v194
  %211 = vst [vmem:[#allocation2 + $0x30] sm:$0xff] %v195
  %212 = vst [vmem:[#allocation2 + $0x38] sm:$0xff] %v196
  %213 = vst [vmem:[#allocation2 + $0x40] sm:$0xff] %v197
  %214 = vst [vmem:[#allocation2 + $0x48] sm:$0xff] %v198
  %215 = vst [vmem:[#allocation2 + $0x50] sm:$0xff] %v199
  %216 = vst [vmem:[#allocation2 + $0x58] sm:$0xff] %v200
  %217 = vst [vmem:[#allocation2 + $0x60] sm:$0xff] %v201
  %218 = vst [vmem:[#allocation2 + $0x68] sm:$0xff] %v202
  %219 = vst [vmem:[#allocation2 + $0x70] sm:$0xff] %v203
  %220 = vst [vmem:[#allocation2 + $0x78] sm:$0xff] %v204
  // Predicated region
  $region22: #{_lambda_.14} parent=0 // pred_check
    %p221 = pneg %p18
  $region23: #{_lambda_.14} parent=0 // pred_check_branch
    %223 = sbr.rel (%p221) target = $region25
  $region24: #{_lambda_.14} parent=0 // pred_region
    %v224 = vld [vmem:[#allocation2] sm:$0xff]
    %v225 = vld [vmem:[#allocation2 + $0x8] sm:$0xff]
    %v226 = vld [vmem:[#allocation2 + $0x10] sm:$0xff]
    %v227 = vld [vmem:[#allocation2 + $0x18] sm:$0xff]
    %v228 = vld [vmem:[#allocation2 + $0x20] sm:$0xff]
    %v229 = vld [vmem:[#allocation2 + $0x28] sm:$0xff]
    %v230 = vld [vmem:[#allocation2 + $0x30] sm:$0xff]
    %v231 = vld [vmem:[#allocation2 + $0x38] sm:$0xff]
    %v232 = vld [vmem:[#allocation2 + $0x40] sm:$0xff]
    %v233 = vld [vmem:[#allocation2 + $0x48] sm:$0xff]
    %v234 = vld [vmem:[#allocation2 + $0x50] sm:$0xff]
    %v235 = vld [vmem:[#allocation2 + $0x58] sm:$0xff]
    %v236 = vld [vmem:[#allocation2 + $0x60] sm:$0xff]
    %v237 = vld [vmem:[#allocation2 + $0x68] sm:$0xff]
    %v238 = vld [vmem:[#allocation2 + $0x70] sm:$0xff]
    %v239 = vld [vmem:[#allocation2 + $0x78] sm:$0xff]
    %v240 = vld [vmem:[%s2] sm:$0x1]
    %v242 = vperm.slane %v240, 0
    %v244 = vmul.f32 %v224, %v242
    %v245 = vmul.f32 %v225, %v242
    %v246 = vmul.f32 %v226, %v242
    %v247 = vmul.f32 %v227, %v242
    %v248 = vmul.f32 %v228, %v242
    %v249 = vmul.f32 %v229, %v242
    %v250 = vmul.f32 %v230, %v242
    %v251 = vmul.f32 %v231, %v242
    %v252 = vmul.f32 %v232, %v242
    %v253 = vmul.f32 %v233, %v242
    %v254 = vmul.f32 %v234, %v242
    %v255 = vmul.f32 %v235, %v242
    %v256 = vmul.f32 %v236, %v242
    %v257 = vmul.f32 %v237, %v242
    %v258 = vmul.f32 %v238, %v242
    %v259 = vmul.f32 %v239, %v242
    %v260 = vld [vmem:[%s3] sm:$0x1]
    %v262 = vperm.slane %v260, 0
    %v264 = vadd.f32 %v244, %v262
    %v265 = vadd.f32 %v245, %v262
    %v266 = vadd.f32 %v246, %v262
    %v267 = vadd.f32 %v247, %v262
    %v268 = vadd.f32 %v248, %v262
    %v269 = vadd.f32 %v249, %v262
    %v270 = vadd.f32 %v250, %v262
    %v271 = vadd.f32 %v251, %v262
    %v272 = vadd.f32 %v252, %v262
    %v273 = vadd.f32 %v253, %v262
    %v274 = vadd.f32 %v254, %v262
    %v275 = vadd.f32 %v255, %v262
    %v276 = vadd.f32 %v256, %v262
    %v277 = vadd.f32 %v257, %v262
    %v278 = vadd.f32 %v258, %v262
    %v279 = vadd.f32 %v259, %v262
    %v280 = vpack.c.bf16 %v264, %v264
    %v281 = vpack.c.bf16 %v265, %v265
    %v282 = vpack.c.bf16 %v266, %v266
    %v283 = vpack.c.bf16 %v267, %v267
    %v284 = vpack.c.bf16 %v268, %v268
    %v285 = vpack.c.bf16 %v269, %v269
    %v286 = vpack.c.bf16 %v270, %v270
    %v287 = vpack.c.bf16 %v271, %v271
    %v288 = vpack.c.bf16 %v272, %v272
    %v289 = vpack.c.bf16 %v273, %v273
    %v290 = vpack.c.bf16 %v274, %v274
    %v291 = vpack.c.bf16 %v275, %v275
    %v292 = vpack.c.bf16 %v276, %v276
    %v293 = vpack.c.bf16 %v277, %v277
    %v294 = vpack.c.bf16 %v278, %v278
    %v295 = vpack.c.bf16 %v279, %v279
    %296 = vst [vmem:[%s4] sm:$0xf] %v280
    %297 = vst [vmem:[%s4 + $0x4] sm:$0xf] %v281
    %298 = vst [vmem:[%s4 + $0x8] sm:$0xf] %v282
    %299 = vst [vmem:[%s4 + $0xc] sm:$0xf] %v283
    %300 = vst [vmem:[%s4 + $0x10] sm:$0xf] %v284
    %301 = vst [vmem:[%s4 + $0x14] sm:$0xf] %v285
    %302 = vst [vmem:[%s4 + $0x18] sm:$0xf] %v286
    %303 = vst [vmem:[%s4 + $0x1c] sm:$0xf] %v287
    %304 = vst [vmem:[%s4 + $0x20] sm:$0xf] %v288
    %305 = vst [vmem:[%s4 + $0x24] sm:$0xf] %v289
    %306 = vst [vmem:[%s4 + $0x28] sm:$0xf] %v290
    %307 = vst [vmem:[%s4 + $0x2c] sm:$0xf] %v291
    %308 = vst [vmem:[%s4 + $0x30] sm:$0xf] %v292
    %309 = vst [vmem:[%s4 + $0x34] sm:$0xf] %v293
    %310 = vst [vmem:[%s4 + $0x38] sm:$0xf] %v294
    %311 = vst [vmem:[%s4 + $0x3c] sm:$0xf] %v295
  $region25: #{_lambda_.14} parent=0 // pred_fallthru
    _
  // Predicated region
  $region26: #{_lambda_.14} parent=0 // pred_check
    _
  $region27: #{_lambda_.14} parent=0 // pred_check_branch
    %313 = sbr.rel (0) target = $region29
  $region28: #{_lambda_.14} parent=0 // pred_region
    _
  $region29: #{_lambda_.14} parent=0 // pred_fallthru
    _
  // Predicated region
  $region30: #{_lambda_.14} parent=0 // pred_check
    _
  $region31: #{_lambda_.14} parent=0 // pred_check_branch
    %315 = sbr.rel (0) target = $region33
  $region32: #{_lambda_.14} parent=0 // pred_region
    _
  $region33: #{_lambda_.14} parent=0 // pred_fallthru
    _

// kernel: _lambda_.12
$region0: #{_lambda_.12}
  #allocation0 [shape = 'u32[]', space=smem, size = 0x4, offset = 0x4, fixed_abs, tag = 'smem constant byte address 0x4 - core index']
  #allocation1 [shape = 'u32[72,128]{1,0:T(1,128)}', space=vmem, size = 0x9000, scoped, tag = 'internal scratch']
  #allocation2 [shape = 'f32[512,128]{1,0:T(8,128)}', space=vmem, size = 0x40000, scoped, tag = 'scratch operand']
  %s0 = inlined_call_operand.vmem [shape: bf16[512,72], index: 0, kind: input, shape index: {}]
  %s1 = inlined_call_operand.vmem [shape: bf16[72,128], index: 1, kind: input, shape index: {}]
  %s2 = inlined_call_operand.vmem [shape: f32[1,128], index: 2, kind: input, shape index: {}]
  %s3 = inlined_call_operand.vmem [shape: f32[1,128], index: 3, kind: input, shape index: {}]
  %s4 = inlined_call_operand.vmem [shape: bf16[512,128], index: 4, kind: input, shape index: {}]
  %s5 = inlined_call_operand.vmem [shape: bf16[512,128], index: 5, kind: output, shape index: {}]
  %s6 = sld [smem:[#allocation0]]
  $region38: #{_lambda_.12} parent=0
    _
  %s8 = ssub.s32 1, %s6
  %s9 = scalar_select 0, %s8, %s6
  // Predicated region
  $region2: #{_lambda_.12} parent=0 // pred_check
    _
  $region3: #{_lambda_.12} parent=0 // pred_check_branch
    %11 = sbr.rel (0) target = $region5
  $region4: #{_lambda_.12} parent=0 // pred_region
    _
  $region5: #{_lambda_.12} parent=0 // pred_fallthru
    _
  // Predicated region
  $region6: #{_lambda_.12} parent=0 // pred_check
    _
  $region7: #{_lambda_.12} parent=0 // pred_check_branch
    %13 = sbr.rel (0) target = $region9
  $region8: #{_lambda_.12} parent=0 // pred_region
    _
  $region9: #{_lambda_.12} parent=0 // pred_fallthru
    _
  // Predicated region
  $region10: #{_lambda_.12} parent=0 // pred_check
    _
  $region11: #{_lambda_.12} parent=0 // pred_check_branch
    %15 = sbr.rel (0) target = $region13
  $region12: #{_lambda_.12} parent=0 // pred_region
    _
  $region13: #{_lambda_.12} parent=0 // pred_fallthru
    _
  // Predicated region
  $region14: #{_lambda_.12} parent=0 // pred_check
    _
  $region15: #{_lambda_.12} parent=0 // pred_check_branch
    %17 = sbr.rel (0) target = $region17
  $region16: #{_lambda_.12} parent=0 // pred_region
    _
  $region17: #{_lambda_.12} parent=0 // pred_fallthru
    _
  // Predicated region
  $region18: #{_lambda_.12} parent=0 // pred_check
    _
  $region19: #{_lambda_.12} parent=0 // pred_check_branch
    %19 = sbr.rel (0) target = $region21
  $region20: #{_lambda_.12} parent=0 // pred_region
    _
  $region21: #{_lambda_.12} parent=0 // pred_fallthru
    _
  %p21 = scmp.eq.s32.totalorder 0, 0
  // Predicated region
  $region22: #{_lambda_.12} parent=0 // pred_check
    %p22 = pneg %p21
  $region23: #{_lambda_.12} parent=0 // pred_check_branch
    %24 = sbr.rel (%p22) target = $region25
  $region24: #{_lambda_.12} parent=0 // pred_region
    %25 = vst [vmem:[#allocation2] sm:$0xff] 0.0
    %26 = vst [vmem:[#allocation2 + $0x8] sm:$0xff] 0.0
    %27 = vst [vmem:[#allocation2 + $0x10] sm:$0xff] 0.0
    %28 = vst [vmem:[#allocation2 + $0x18] sm:$0xff] 0.0
    %29 = vst [vmem:[#allocation2 + $0x20] sm:$0xff] 0.0
    %30 = vst [vmem:[#allocation2 + $0x28] sm:$0xff] 0.0
    %31 = vst [vmem:[#allocation2 + $0x30] sm:$0xff] 0.0
    %32 = vst [vmem:[#allocation2 + $0x38] sm:$0xff] 0.0
    %33 = vst [vmem:[#allocation2 + $0x40] sm:$0xff] 0.0
    %34 = vst [vmem:[#allocation2 + $0x48] sm:$0xff] 0.0
    %35 = vst [vmem:[#allocation2 + $0x50] sm:$0xff] 0.0
    %36 = vst [vmem:[#allocation2 + $0x58] sm:$0xff] 0.0
    %37 = vst [vmem:[#allocation2 + $0x60] sm:$0xff] 0.0
    %38 = vst [vmem:[#allocation2 + $0x68] sm:$0xff] 0.0
    %39 = vst [vmem:[#allocation2 + $0x70] sm:$0xff] 0.0
    %40 = vst [vmem:[#allocation2 + $0x78] sm:$0xff] 0.0
    %41 = vst [vmem:[#allocation2 + $0x80] sm:$0xff] 0.0
    %42 = vst [vmem:[#allocation2 + $0x88] sm:$0xff] 0.0
    %43 = vst [vmem:[#allocation2 + $0x90] sm:$0xff] 0.0
    %44 = vst [vmem:[#allocation2 + $0x98] sm:$0xff] 0.0
    %45 = vst [vmem:[#allocation2 + $0xa0] sm:$0xff] 0.0
    %46 = vst [vmem:[#allocation2 + $0xa8] sm:$0xff] 0.0
    %47 = vst [vmem:[#allocation2 + $0xb0] sm:$0xff] 0.0
    %48 = vst [vmem:[#allocation2 + $0xb8] sm:$0xff] 0.0
    %49 = vst [vmem:[#allocation2 + $0xc0] sm:$0xff] 0.0
    %50 = vst [vmem:[#allocation2 + $0xc8] sm:$0xff] 0.0
    %51 = vst [vmem:[#allocation2 + $0xd0] sm:$0xff] 0.0
    %52 = vst [vmem:[#allocation2 + $0xd8] sm:$0xff] 0.0
    %53 = vst [vmem:[#allocation2 + $0xe0] sm:$0xff] 0.0
    %54 = vst [vmem:[#allocation2 + $0xe8] sm:$0xff] 0.0
    %55 = vst [vmem:[#allocation2 + $0xf0] sm:$0xff] 0.0
    %56 = vst [vmem:[#allocation2 + $0xf8] sm:$0xff] 0.0
    %57 = vst [vmem:[#allocation2 + $0x100] sm:$0xff] 0.0
    %58 = vst [vmem:[#allocation2 + $0x108] sm:$0xff] 0.0
    %59 = vst [vmem:[#allocation2 + $0x110] sm:$0xff] 0.0
    %60 = vst [vmem:[#allocation2 + $0x118] sm:$0xff] 0.0
    %61 = vst [vmem:[#allocation2 + $0x120] sm:$0xff] 0.0
    %62 = vst [vmem:[#allocation2 + $0x128] sm:$0xff] 0.0
    %63 = vst [vmem:[#allocation2 + $0x130] sm:$0xff] 0.0
    %64 = vst [vmem:[#allocation2 + $0x138] sm:$0xff] 0.0
    %65 = vst [vmem:[#allocation2 + $0x140] sm:$0xff] 0.0
    %66 = vst [vmem:[#allocation2 + $0x148] sm:$0xff] 0.0
    %67 = vst [vmem:[#allocation2 + $0x150] sm:$0xff] 0.0
    %68 = vst [vmem:[#allocation2 + $0x158] sm:$0xff] 0.0
    %69 = vst [vmem:[#allocation2 + $0x160] sm:$0xff] 0.0
    %70 = vst [vmem:[#allocation2 + $0x168] sm:$0xff] 0.0
    %71 = vst [vmem:[#allocation2 + $0x170] sm:$0xff] 0.0
    %72 = vst [vmem:[#allocation2 + $0x178] sm:$0xff] 0.0
    %73 = vst [vmem:[#allocation2 + $0x180] sm:$0xff] 0.0
    %74 = vst [vmem:[#allocation2 + $0x188] sm:$0xff] 0.0
    %75 = vst [vmem:[#allocation2 + $0x190] sm:$0xff] 0.0
    %76 = vst [vmem:[#allocation2 + $0x198] sm:$0xff] 0.0
    %77 = vst [vmem:[#allocation2 + $0x1a0] sm:$0xff] 0.0
    %78 = vst [vmem:[#allocation2 + $0x1a8] sm:$0xff] 0.0
    %79 = vst [vmem:[#allocation2 + $0x1b0] sm:$0xff] 0.0
    %80 = vst [vmem:[#allocation2 + $0x1b8] sm:$0xff] 0.0
    %81 = vst [vmem:[#allocation2 + $0x1c0] sm:$0xff] 0.0
    %82 = vst [vmem:[#allocation2 + $0x1c8] sm:$0xff] 0.0
    %83 = vst [vmem:[#allocation2 + $0x1d0] sm:$0xff] 0.0
    %84 = vst [vmem:[#allocation2 + $0x1d8] sm:$0xff] 0.0
    %85 = vst [vmem:[#allocation2 + $0x1e0] sm:$0xff] 0.0
    %86 = vst [vmem:[#allocation2 + $0x1e8] sm:$0xff] 0.0
    %87 = vst [vmem:[#allocation2 + $0x1f0] sm:$0xff] 0.0
    %88 = vst [vmem:[#allocation2 + $0x1f8] sm:$0xff] 0.0
  $region25: #{_lambda_.12} parent=0 // pred_fallthru
    _
  %v89 = vld [vmem:[#allocation2] sm:$0xff]
  %v90 = vld [vmem:[#allocation2 + $0x8] sm:$0xff]
  %v91 = vld [vmem:[#allocation2 + $0x10] sm:$0xff]
  %v92 = vld [vmem:[#allocation2 + $0x18] sm:$0xff]
  %v93 = vld [vmem:[#allocation2 + $0x20] sm:$0xff]
  %v94 = vld [vmem:[#allocation2 + $0x28] sm:$0xff]
  %v95 = vld [vmem:[#allocation2 + $0x30] sm:$0xff]
  %v96 = vld [vmem:[#allocation2 + $0x38] sm:$0xff]
  %v97 = vld [vmem:[#allocation2 + $0x40] sm:$0xff]
  %v98 = vld [vmem:[#allocation2 + $0x48] sm:$0xff]
  %v99 = vld [vmem:[#allocation2 + $0x50] sm:$0xff]
  %v100 = vld [vmem:[#allocation2 + $0x58] sm:$0xff]
  %v101 = vld [vmem:[#allocation2 + $0x60] sm:$0xff]
  %v102 = vld [vmem:[#allocation2 + $0x68] sm:$0xff]
  %v103 = vld [vmem:[#allocation2 + $0x70] sm:$0xff]
  %v104 = vld [vmem:[#allocation2 + $0x78] sm:$0xff]
  %v105 = vld [vmem:[#allocation2 + $0x80] sm:$0xff]
  %v106 = vld [vmem:[#allocation2 + $0x88] sm:$0xff]
  %v107 = vld [vmem:[#allocation2 + $0x90] sm:$0xff]
  %v108 = vld [vmem:[#allocation2 + $0x98] sm:$0xff]
  %v109 = vld [vmem:[#allocation2 + $0xa0] sm:$0xff]
  %v110 = vld [vmem:[#allocation2 + $0xa8] sm:$0xff]
  %v111 = vld [vmem:[#allocation2 + $0xb0] sm:$0xff]
  %v112 = vld [vmem:[#allocation2 + $0xb8] sm:$0xff]
  %v113 = vld [vmem:[#allocation2 + $0xc0] sm:$0xff]
  %v114 = vld [vmem:[#allocation2 + $0xc8] sm:$0xff]
  %v115 = vld [vmem:[#allocation2 + $0xd0] sm:$0xff]
  %v116 = vld [vmem:[#allocation2 + $0xd8] sm:$0xff]
  %v117 = vld [vmem:[#allocation2 + $0xe0] sm:$0xff]
  %v118 = vld [vmem:[#allocation2 + $0xe8] sm:$0xff]
  %v119 = vld [vmem:[#allocation2 + $0xf0] sm:$0xff]
  %v120 = vld [vmem:[#allocation2 + $0xf8] sm:$0xff]
  %v121 = vld [vmem:[#allocation2 + $0x100] sm:$0xff]
  %v122 = vld [vmem:[#allocation2 + $0x108] sm:$0xff]
  %v123 = vld [vmem:[#allocation2 + $0x110] sm:$0xff]
  %v124 = vld [vmem:[#allocation2 + $0x118] sm:$0xff]
  %v125 = vld [vmem:[#allocation2 + $0x120] sm:$0xff]
  %v126 = vld [vmem:[#allocation2 + $0x128] sm:$0xff]
  %v127 = vld [vmem:[#allocation2 + $0x130] sm:$0xff]
  %v128 = vld [vmem:[#allocation2 + $0x138] sm:$0xff]
  %v129 = vld [vmem:[#allocation2 + $0x140] sm:$0xff]
  %v130 = vld [vmem:[#allocation2 + $0x148] sm:$0xff]
  %v131 = vld [vmem:[#allocation2 + $0x150] sm:$0xff]
  %v132 = vld [vmem:[#allocation2 + $0x158] sm:$0xff]
  %v133 = vld [vmem:[#allocation2 + $0x160] sm:$0xff]
  %v134 = vld [vmem:[#allocation2 + $0x168] sm:$0xff]
  %v135 = vld [vmem:[#allocation2 + $0x170] sm:$0xff]
  %v136 = vld [vmem:[#allocation2 + $0x178] sm:$0xff]
  %v137 = vld [vmem:[#allocation2 + $0x180] sm:$0xff]
  %v138 = vld [vmem:[#allocation2 + $0x188] sm:$0xff]
  %v139 = vld [vmem:[#allocation2 + $0x190] sm:$0xff]
  %v140 = vld [vmem:[#allocation2 + $0x198] sm:$0xff]
  %v141 = vld [vmem:[#allocation2 + $0x1a0] sm:$0xff]
  %v142 = vld [vmem:[#allocation2 + $0x1a8] sm:$0xff]
  %v143 = vld [vmem:[#allocation2 + $0x1b0] sm:$0xff]
  %v144 = vld [vmem:[#allocation2 + $0x1b8] sm:$0xff]
  %v145 = vld [vmem:[#allocation2 + $0x1c0] sm:$0xff]
  %v146 = vld [vmem:[#allocation2 + $0x1c8] sm:$0xff]
  %v147 = vld [vmem:[#allocation2 + $0x1d0] sm:$0xff]
  %v148 = vld [vmem:[#allocation2 + $0x1d8] sm:$0xff]
  %v149 = vld [vmem:[#allocation2 + $0x1e0] sm:$0xff]
  %v150 = vld [vmem:[#allocation2 + $0x1e8] sm:$0xff]
  %v151 = vld [vmem:[#allocation2 + $0x1f0] sm:$0xff]
  %v152 = vld [vmem:[#allocation2 + $0x1f8] sm:$0xff]
  %v153 = vld [vmem:[%s0] sm:$0xf]
  %v154 = vld [vmem:[%s0 + $0x4] sm:$0xf]
  %v155 = vld [vmem:[%s0 + $0x8] sm:$0xf]
  %v156 = vld [vmem:[%s0 + $0xc] sm:$0xf]
  %v157 = vld [vmem:[%s0 + $0x10] sm:$0xf]
  %v158 = vld [vmem:[%s0 + $0x14] sm:$0xf]
  %v159 = vld [vmem:[%s0 + $0x18] sm:$0xf]
  %v160 = vld [vmem:[%s0 + $0x1c] sm:$0xf]
  %v161 = vld [vmem:[%s0 + $0x20] sm:$0xf]
  %v162 = vld [vmem:[%s0 + $0x24] sm:$0xf]
  %v163 = vld [vmem:[%s0 + $0x28] sm:$0xf]
  %v164 = vld [vmem:[%s0 + $0x2c] sm:$0xf]
  %v165 = vld [vmem:[%s0 + $0x30] sm:$0xf]
  %v166 = vld [vmem:[%s0 + $0x34] sm:$0xf]
  %v167 = vld [vmem:[%s0 + $0x38] sm:$0xf]
  %v168 = vld [vmem:[%s0 + $0x3c] sm:$0xf]
  %v169 = vld [vmem:[%s0 + $0x40] sm:$0xf]
  %v170 = vld [vmem:[%s0 + $0x44] sm:$0xf]
  %v171 = vld [vmem:[%s0 + $0x48] sm:$0xf]
  %v172 = vld [vmem:[%s0 + $0x4c] sm:$0xf]
  %v173 = vld [vmem:[%s0 + $0x50] sm:$0xf]
  %v174 = vld [vmem:[%s0 + $0x54] sm:$0xf]
  %v175 = vld [vmem:[%s0 + $0x58] sm:$0xf]
  %v176 = vld [vmem:[%s0 + $0x5c] sm:$0xf]
  %v177 = vld [vmem:[%s0 + $0x60] sm:$0xf]
  %v178 = vld [vmem:[%s0 + $0x64] sm:$0xf]
  %v179 = vld [vmem:[%s0 + $0x68] sm:$0xf]
  %v180 = vld [vmem:[%s0 + $0x6c] sm:$0xf]
  %v181 = vld [vmem:[%s0 + $0x70] sm:$0xf]
  %v182 = vld [vmem:[%s0 + $0x74] sm:$0xf]
  %v183 = vld [vmem:[%s0 + $0x78] sm:$0xf]
  %v184 = vld [vmem:[%s0 + $0x7c] sm:$0xf]
  %v185 = vld [vmem:[%s0 + $0x80] sm:$0xf]
  %v186 = vld [vmem:[%s0 + $0x84] sm:$0xf]
  %v187 = vld [vmem:[%s0 + $0x88] sm:$0xf]
  %v188 = vld [vmem:[%s0 + $0x8c] sm:$0xf]
  %v189 = vld [vmem:[%s0 + $0x90] sm:$0xf]
  %v190 = vld [vmem:[%s0 + $0x94] sm:$0xf]
  %v191 = vld [vmem:[%s0 + $0x98] sm:$0xf]
  %v192 = vld [vmem:[%s0 + $0x9c] sm:$0xf]
  %v193 = vld [vmem:[%s0 + $0xa0] sm:$0xf]
  %v194 = vld [vmem:[%s0 + $0xa4] sm:$0xf]
  %v195 = vld [vmem:[%s0 + $0xa8] sm:$0xf]
  %v196 = vld [vmem:[%s0 + $0xac] sm:$0xf]
  %v197 = vld [vmem:[%s0 + $0xb0] sm:$0xf]
  %v198 = vld [vmem:[%s0 + $0xb4] sm:$0xf]
  %v199 = vld [vmem:[%s0 + $0xb8] sm:$0xf]
  %v200 = vld [vmem:[%s0 + $0xbc] sm:$0xf]
  %v201 = vld [vmem:[%s0 + $0xc0] sm:$0xf]
  %v202 = vld [vmem:[%s0 + $0xc4] sm:$0xf]
  %v203 = vld [vmem:[%s0 + $0xc8] sm:$0xf]
  %v204 = vld [vmem:[%s0 + $0xcc] sm:$0xf]
  %v205 = vld [vmem:[%s0 + $0xd0] sm:$0xf]
  %v206 = vld [vmem:[%s0 + $0xd4] sm:$0xf]
  %v207 = vld [vmem:[%s0 + $0xd8] sm:$0xf]
  %v208 = vld [vmem:[%s0 + $0xdc] sm:$0xf]
  %v209 = vld [vmem:[%s0 + $0xe0] sm:$0xf]
  %v210 = vld [vmem:[%s0 + $0xe4] sm:$0xf]
  %v211 = vld [vmem:[%s0 + $0xe8] sm:$0xf]
  %v212 = vld [vmem:[%s0 + $0xec] sm:$0xf]
  %v213 = vld [vmem:[%s0 + $0xf0] sm:$0xf]
  %v214 = vld [vmem:[%s0 + $0xf4] sm:$0xf]
  %v215 = vld [vmem:[%s0 + $0xf8] sm:$0xf]
  %v216 = vld [vmem:[%s0 + $0xfc] sm:$0xf]
  %v217 = vld [vmem:[%s1] sm:$0xf]
  %v218 = vld [vmem:[%s1 + $0x4] sm:$0xf]
  %v219 = vld [vmem:[%s1 + $0x8] sm:$0xf]
  %v220 = vld [vmem:[%s1 + $0xc] sm:$0xf]
  %v221 = vld [vmem:[%s1 + $0x10] sm:$0xf]
  %v222 = vld [vmem:[%s1 + $0x14] sm:$0xf]
  %v223 = vld [vmem:[%s1 + $0x18] sm:$0xf]
  %v224 = vld [vmem:[%s1 + $0x1c] sm:$0xf]
  %v225 = vld [vmem:[%s1 + $0x20] sm:$0xf]
  %v290 = vunpack.c.l.b16 %v153
  %v291 = vunpack.c.l.b16 %v154
  %v292 = vunpack.c.l.b16 %v155
  %v293 = vunpack.c.l.b16 %v156
  %v294 = vunpack.c.l.b16 %v157
  %v295 = vunpack.c.l.b16 %v158
  %v296 = vunpack.c.l.b16 %v159
  %v297 = vunpack.c.l.b16 %v160
  %v298 = vunpack.c.l.b16 %v161
  %v299 = vunpack.c.l.b16 %v162
  %v300 = vunpack.c.l.b16 %v163
  %v301 = vunpack.c.l.b16 %v164
  %v302 = vunpack.c.l.b16 %v165
  %v303 = vunpack.c.l.b16 %v166
  %v304 = vunpack.c.l.b16 %v167
  %v305 = vunpack.c.l.b16 %v168
  %v306 = vunpack.c.l.b16 %v169
  %v307 = vunpack.c.l.b16 %v170
  %v308 = vunpack.c.l.b16 %v171
  %v309 = vunpack.c.l.b16 %v172
  %v310 = vunpack.c.l.b16 %v173
  %v311 = vunpack.c.l.b16 %v174
  %v312 = vunpack.c.l.b16 %v175
  %v313 = vunpack.c.l.b16 %v176
  %v314 = vunpack.c.l.b16 %v177
  %v315 = vunpack.c.l.b16 %v178
  %v316 = vunpack.c.l.b16 %v179
  %v317 = vunpack.c.l.b16 %v180
  %v318 = vunpack.c.l.b16 %v181
  %v319 = vunpack.c.l.b16 %v182
  %v320 = vunpack.c.l.b16 %v183
  %v321 = vunpack.c.l.b16 %v184
  %v322 = vunpack.c.l.b16 %v185
  %v323 = vunpack.c.l.b16 %v186
  %v324 = vunpack.c.l.b16 %v187
  %v325 = vunpack.c.l.b16 %v188
  %v326 = vunpack.c.l.b16 %v189
  %v327 = vunpack.c.l.b16 %v190
  %v328 = vunpack.c.l.b16 %v191
  %v329 = vunpack.c.l.b16 %v192
  %v330 = vunpack.c.l.b16 %v193
  %v331 = vunpack.c.l.b16 %v194
  %v332 = vunpack.c.l.b16 %v195
  %v333 = vunpack.c.l.b16 %v196
  %v334 = vunpack.c.l.b16 %v197
  %v335 = vunpack.c.l.b16 %v198
  %v336 = vunpack.c.l.b16 %v199
  %v337 = vunpack.c.l.b16 %v200
  %v338 = vunpack.c.l.b16 %v201
  %v339 = vunpack.c.l.b16 %v202
  %v340 = vunpack.c.l.b16 %v203
  %v341 = vunpack.c.l.b16 %v204
  %v342 = vunpack.c.l.b16 %v205
  %v343 = vunpack.c.l.b16 %v206
  %v344 = vunpack.c.l.b16 %v207
  %v345 = vunpack.c.l.b16 %v208
  %v346 = vunpack.c.l.b16 %v209
  %v347 = vunpack.c.l.b16 %v210
  %v348 = vunpack.c.l.b16 %v211
  %v349 = vunpack.c.l.b16 %v212
  %v350 = vunpack.c.l.b16 %v213
  %v351 = vunpack.c.l.b16 %v214
  %v352 = vunpack.c.l.b16 %v215
  %v353 = vunpack.c.l.b16 %v216
  %v354 = vpack.c.b16 %v291, %v290
  %v355 = vpack.c.b16 %v293, %v292
  %v356 = vpack.c.b16 %v295, %v294
  %v357 = vpack.c.b16 %v297, %v296
  %v358 = vpack.c.b16 %v299, %v298
  %v359 = vpack.c.b16 %v301, %v300
  %v360 = vpack.c.b16 %v303, %v302
  %v361 = vpack.c.b16 %v305, %v304
  %v362 = vpack.c.b16 %v307, %v306
  %v363 = vpack.c.b16 %v309, %v308
  %v364 = vpack.c.b16 %v311, %v310
  %v365 = vpack.c.b16 %v313, %v312
  %v366 = vpack.c.b16 %v315, %v314
  %v367 = vpack.c.b16 %v317, %v316
  %v368 = vpack.c.b16 %v319, %v318
  %v369 = vpack.c.b16 %v321, %v320
  %v370 = vpack.c.b16 %v323, %v322
  %v371 = vpack.c.b16 %v325, %v324
  %v372 = vpack.c.b16 %v327, %v326
  %v373 = vpack.c.b16 %v329, %v328
  %v374 = vpack.c.b16 %v331, %v330
  %v375 = vpack.c.b16 %v333, %v332
  %v376 = vpack.c.b16 %v335, %v334
  %v377 = vpack.c.b16 %v337, %v336
  %v378 = vpack.c.b16 %v339, %v338
  %v379 = vpack.c.b16 %v341, %v340
  %v380 = vpack.c.b16 %v343, %v342
  %v381 = vpack.c.b16 %v345, %v344
  %v382 = vpack.c.b16 %v347, %v346
  %v383 = vpack.c.b16 %v349, %v348
  %v384 = vpack.c.b16 %v351, %v350
  %v385 = vpack.c.b16 %v353, %v352
  %v395 = vunpack.c.l.b16 %v217
  %v396 = vunpack.c.l.b16 %v218
  %v397 = vunpack.c.l.b16 %v219
  %v398 = vunpack.c.l.b16 %v220
  %v399 = vunpack.c.l.b16 %v221
  %v400 = vunpack.c.l.b16 %v222
  %v401 = vunpack.c.l.b16 %v223
  %v402 = vunpack.c.l.b16 %v224
  %v403 = vunpack.c.l.b16 %v225
  %v404 = vpack.c.b16 %v396, %v395
  %v405 = vpack.c.b16 %v398, %v397
  %v406 = vpack.c.b16 %v400, %v399
  %v407 = vpack.c.b16 %v402, %v401
  %v408 = vpack.c.b16 %v403, %v403
  %vm413 = vcmask 588800
  %v415 = vsel %vm413, %v354, 0
  %v418 = vsel %vm413, %v355, 0
  %v421 = vsel %vm413, %v356, 0
  %v424 = vsel %vm413, %v357, 0
  %v427 = vsel %vm413, %v358, 0
  %v430 = vsel %vm413, %v359, 0
  %v433 = vsel %vm413, %v360, 0
  %v436 = vsel %vm413, %v361, 0
  %v439 = vsel %vm413, %v362, 0
  %v442 = vsel %vm413, %v363, 0
  %v445 = vsel %vm413, %v364, 0
  %v448 = vsel %vm413, %v365, 0
  %v451 = vsel %vm413, %v366, 0
  %v454 = vsel %vm413, %v367, 0
  %v457 = vsel %vm413, %v368, 0
  %v460 = vsel %vm413, %v369, 0
  %v463 = vsel %vm413, %v370, 0
  %v466 = vsel %vm413, %v371, 0
  %v469 = vsel %vm413, %v372, 0
  %v472 = vsel %vm413, %v373, 0
  %v475 = vsel %vm413, %v374, 0
  %v478 = vsel %vm413, %v375, 0
  %v481 = vsel %vm413, %v376, 0
  %v484 = vsel %vm413, %v377, 0
  %v487 = vsel %vm413, %v378, 0
  %v490 = vsel %vm413, %v379, 0
  %v493 = vsel %vm413, %v380, 0
  %v496 = vsel %vm413, %v381, 0
  %v499 = vsel %vm413, %v382, 0
  %v502 = vsel %vm413, %v383, 0
  %v505 = vsel %vm413, %v384, 0
  %v508 = vsel %vm413, %v385, 0
  %vm510 = vcmask 1043456
  %v512 = vsel %vm510, %v408, 0
  %514 = vmatpush.bf16.msra.mxu0 0
  %515 = vmatpush.bf16.msra.mxu0 0
  %516 = vmatpush.bf16.msra.mxu0 0
  %517 = vmatpush.bf16.msra.mxu0 %v512
  %518 = vmatpush.bf16.msra.mxu0 %v407
  %519 = vmatpush.bf16.msra.mxu0 %v406
  %520 = vmatpush.bf16.msra.mxu0 %v405
  %521 = vmatpush.bf16.msra.mxu0 %v404
  %522 = vmatmul.bf16.gmra.mxu0 %v415
  %v523 = vpop.f32.mrf.mxu0
  %v524 = vadd.f32 0.0, %v523
  %v525 = vpop.f32.mrf.mxu0
  %v526 = vadd.f32 0.0, %v525
  %527 = vmatmul.bf16.gmra.mxu0 %v418
  %v528 = vpop.f32.mrf.mxu0
  %v529 = vadd.f32 0.0, %v528
  %v530 = vpop.f32.mrf.mxu0
  %v531 = vadd.f32 0.0, %v530
  %532 = vmatmul.bf16.gmra.mxu0 %v421
  %v533 = vpop.f32.mrf.mxu0
  %v534 = vadd.f32 0.0, %v533
  %v535 = vpop.f32.mrf.mxu0
  %v536 = vadd.f32 0.0, %v535
  %537 = vmatmul.bf16.gmra.mxu0 %v424
  %v538 = vpop.f32.mrf.mxu0
  %v539 = vadd.f32 0.0, %v538
  %v540 = vpop.f32.mrf.mxu0
  %v541 = vadd.f32 0.0, %v540
  %542 = vmatmul.bf16.gmra.mxu0 %v427
  %v543 = vpop.f32.mrf.mxu0
  %v544 = vadd.f32 0.0, %v543
  %v545 = vpop.f32.mrf.mxu0
  %v546 = vadd.f32 0.0, %v545
  %547 = vmatmul.bf16.gmra.mxu0 %v430
  %v548 = vpop.f32.mrf.mxu0
  %v549 = vadd.f32 0.0, %v548
  %v550 = vpop.f32.mrf.mxu0
  %v551 = vadd.f32 0.0, %v550
  %552 = vmatmul.bf16.gmra.mxu0 %v433
  %v553 = vpop.f32.mrf.mxu0
  %v554 = vadd.f32 0.0, %v553
  %v555 = vpop.f32.mrf.mxu0
  %v556 = vadd.f32 0.0, %v555
  %557 = vmatmul.bf16.gmra.mxu0 %v436
  %v558 = vpop.f32.mrf.mxu0
  %v559 = vadd.f32 0.0, %v558
  %v560 = vpop.f32.mrf.mxu0
  %v561 = vadd.f32 0.0, %v560
  %562 = vmatmul.bf16.gmra.mxu0 %v439
  %v563 = vpop.f32.mrf.mxu0
  %v564 = vadd.f32 0.0, %v563
  %v565 = vpop.f32.mrf.mxu0
  %v566 = vadd.f32 0.0, %v565
  %567 = vmatmul.bf16.gmra.mxu0 %v442
  %v568 = vpop.f32.mrf.mxu0
  %v569 = vadd.f32 0.0, %v568
  %v570 = vpop.f32.mrf.mxu0
  %v571 = vadd.f32 0.0, %v570
  %572 = vmatmul.bf16.gmra.mxu0 %v445
  %v573 = vpop.f32.mrf.mxu0
  %v574 = vadd.f32 0.0, %v573
  %v575 = vpop.f32.mrf.mxu0
  %v576 = vadd.f32 0.0, %v575
  %577 = vmatmul.bf16.gmra.mxu0 %v448
  %v578 = vpop.f32.mrf.mxu0
  %v579 = vadd.f32 0.0, %v578
  %v580 = vpop.f32.mrf.mxu0
  %v581 = vadd.f32 0.0, %v580
  %582 = vmatmul.bf16.gmra.mxu0 %v451
  %v583 = vpop.f32.mrf.mxu0
  %v584 = vadd.f32 0.0, %v583
  %v585 = vpop.f32.mrf.mxu0
  %v586 = vadd.f32 0.0, %v585
  %587 = vmatmul.bf16.gmra.mxu0 %v454
  %v588 = vpop.f32.mrf.mxu0
  %v589 = vadd.f32 0.0, %v588
  %v590 = vpop.f32.mrf.mxu0
  %v591 = vadd.f32 0.0, %v590
  %592 = vmatmul.bf16.gmra.mxu0 %v457
  %v593 = vpop.f32.mrf.mxu0
  %v594 = vadd.f32 0.0, %v593
  %v595 = vpop.f32.mrf.mxu0
  %v596 = vadd.f32 0.0, %v595
  %597 = vmatmul.bf16.gmra.mxu0 %v460
  %v598 = vpop.f32.mrf.mxu0
  %v599 = vadd.f32 0.0, %v598
  %v600 = vpop.f32.mrf.mxu0
  %v601 = vadd.f32 0.0, %v600
  %602 = vmatmul.bf16.gmra.mxu0 %v463
  %v603 = vpop.f32.mrf.mxu0
  %v604 = vadd.f32 0.0, %v603
  %v605 = vpop.f32.mrf.mxu0
  %v606 = vadd.f32 0.0, %v605
  %607 = vmatmul.bf16.gmra.mxu0 %v466
  %v608 = vpop.f32.mrf.mxu0
  %v609 = vadd.f32 0.0, %v608
  %v610 = vpop.f32.mrf.mxu0
  %v611 = vadd.f32 0.0, %v610
  %612 = vmatmul.bf16.gmra.mxu0 %v469
  %v613 = vpop.f32.mrf.mxu0
  %v614 = vadd.f32 0.0, %v613
  %v615 = vpop.f32.mrf.mxu0
  %v616 = vadd.f32 0.0, %v615
  %617 = vmatmul.bf16.gmra.mxu0 %v472
  %v618 = vpop.f32.mrf.mxu0
  %v619 = vadd.f32 0.0, %v618
  %v620 = vpop.f32.mrf.mxu0
  %v621 = vadd.f32 0.0, %v620
  %622 = vmatmul.bf16.gmra.mxu0 %v475
  %v623 = vpop.f32.mrf.mxu0
  %v624 = vadd.f32 0.0, %v623
  %v625 = vpop.f32.mrf.mxu0
  %v626 = vadd.f32 0.0, %v625
  %627 = vmatmul.bf16.gmra.mxu0 %v478
  %v628 = vpop.f32.mrf.mxu0
  %v629 = vadd.f32 0.0, %v628
  %v630 = vpop.f32.mrf.mxu0
  %v631 = vadd.f32 0.0, %v630
  %632 = vmatmul.bf16.gmra.mxu0 %v481
  %v633 = vpop.f32.mrf.mxu0
  %v634 = vadd.f32 0.0, %v633
  %v635 = vpop.f32.mrf.mxu0
  %v636 = vadd.f32 0.0, %v635
  %637 = vmatmul.bf16.gmra.mxu0 %v484
  %v638 = vpop.f32.mrf.mxu0
  %v639 = vadd.f32 0.0, %v638
  %v640 = vpop.f32.mrf.mxu0
  %v641 = vadd.f32 0.0, %v640
  %642 = vmatmul.bf16.gmra.mxu0 %v487
  %v643 = vpop.f32.mrf.mxu0
  %v644 = vadd.f32 0.0, %v643
  %v645 = vpop.f32.mrf.mxu0
  %v646 = vadd.f32 0.0, %v645
  %647 = vmatmul.bf16.gmra.mxu0 %v490
  %v648 = vpop.f32.mrf.mxu0
  %v649 = vadd.f32 0.0, %v648
  %v650 = vpop.f32.mrf.mxu0
  %v651 = vadd.f32 0.0, %v650
  %652 = vmatmul.bf16.gmra.mxu0 %v493
  %v653 = vpop.f32.mrf.mxu0
  %v654 = vadd.f32 0.0, %v653
  %v655 = vpop.f32.mrf.mxu0
  %v656 = vadd.f32 0.0, %v655
  %657 = vmatmul.bf16.gmra.mxu0 %v496
  %v658 = vpop.f32.mrf.mxu0
  %v659 = vadd.f32 0.0, %v658
  %v660 = vpop.f32.mrf.mxu0
  %v661 = vadd.f32 0.0, %v660
  %662 = vmatmul.bf16.gmra.mxu0 %v499
  %v663 = vpop.f32.mrf.mxu0
  %v664 = vadd.f32 0.0, %v663
  %v665 = vpop.f32.mrf.mxu0
  %v666 = vadd.f32 0.0, %v665
  %667 = vmatmul.bf16.gmra.mxu0 %v502
  %v668 = vpop.f32.mrf.mxu0
  %v669 = vadd.f32 0.0, %v668
  %v670 = vpop.f32.mrf.mxu0
  %v671 = vadd.f32 0.0, %v670
  %672 = vmatmul.bf16.gmra.mxu0 %v505
  %v673 = vpop.f32.mrf.mxu0
  %v674 = vadd.f32 0.0, %v673
  %v675 = vpop.f32.mrf.mxu0
  %v676 = vadd.f32 0.0, %v675
  %677 = vmatmul.bf16.gmra.mxu0 %v508
  %v678 = vpop.f32.mrf.mxu0
  %v679 = vadd.f32 0.0, %v678
  %v680 = vpop.f32.mrf.mxu0
  %v681 = vadd.f32 0.0, %v680
  %682 = vdwg.mxu0
  %v683 = vadd.f32 %v89, %v524
  %v684 = vadd.f32 %v90, %v526
  %v685 = vadd.f32 %v91, %v529
  %v686 = vadd.f32 %v92, %v531
  %v687 = vadd.f32 %v93, %v534
  %v688 = vadd.f32 %v94, %v536
  %v689 = vadd.f32 %v95, %v539
  %v690 = vadd.f32 %v96, %v541
  %v691 = vadd.f32 %v97, %v544
  %v692 = vadd.f32 %v98, %v546
  %v693 = vadd.f32 %v99, %v549
  %v694 = vadd.f32 %v100, %v551
  %v695 = vadd.f32 %v101, %v554
  %v696 = vadd.f32 %v102, %v556
  %v697 = vadd.f32 %v103, %v559
  %v698 = vadd.f32 %v104, %v561
  %v699 = vadd.f32 %v105, %v564
  %v700 = vadd.f32 %v106, %v566
  %v701 = vadd.f32 %v107, %v569
  %v702 = vadd.f32 %v108, %v571
  %v703 = vadd.f32 %v109, %v574
  %v704 = vadd.f32 %v110, %v576
  %v705 = vadd.f32 %v111, %v579
  %v706 = vadd.f32 %v112, %v581
  %v707 = vadd.f32 %v113, %v584
  %v708 = vadd.f32 %v114, %v586
  %v709 = vadd.f32 %v115, %v589
  %v710 = vadd.f32 %v116, %v591
  %v711 = vadd.f32 %v117, %v594
  %v712 = vadd.f32 %v118, %v596
  %v713 = vadd.f32 %v119, %v599
  %v714 = vadd.f32 %v120, %v601
  %v715 = vadd.f32 %v121, %v604
  %v716 = vadd.f32 %v122, %v606
  %v717 = vadd.f32 %v123, %v609
  %v718 = vadd.f32 %v124, %v611
  %v719 = vadd.f32 %v125, %v614
  %v720 = vadd.f32 %v126, %v616
  %v721 = vadd.f32 %v127, %v619
  %v722 = vadd.f32 %v128, %v621
  %v723 = vadd.f32 %v129, %v624
  %v724 = vadd.f32 %v130, %v626
  %v725 = vadd.f32 %v131, %v629
  %v726 = vadd.f32 %v132, %v631
  %v727 = vadd.f32 %v133, %v634
  %v728 = vadd.f32 %v134, %v636
  %v729 = vadd.f32 %v135, %v639
  %v730 = vadd.f32 %v136, %v641
  %v731 = vadd.f32 %v137, %v644
  %v732 = vadd.f32 %v138, %v646
  %v733 = vadd.f32 %v139, %v649
  %v734 = vadd.f32 %v140, %v651
  %v735 = vadd.f32 %v141, %v654
  %v736 = vadd.f32 %v142, %v656
  %v737 = vadd.f32 %v143, %v659
  %v738 = vadd.f32 %v144, %v661
  %v739 = vadd.f32 %v145, %v664
  %v740 = vadd.f32 %v146, %v666
  %v741 = vadd.f32 %v147, %v669
  %v742 = vadd.f32 %v148, %v671
  %v743 = vadd.f32 %v149, %v674
  %v744 = vadd.f32 %v150, %v676
  %v745 = vadd.f32 %v151, %v679
  %v746 = vadd.f32 %v152, %v681
  %747 = vst [vmem:[#allocation2] sm:$0xff] %v683
  %748 = vst [vmem:[#allocation2 + $0x8] sm:$0xff] %v684
  %749 = vst [vmem:[#allocation2 + $0x10] sm:$0xff] %v685
  %750 = vst [vmem:[#allocation2 + $0x18] sm:$0xff] %v686
  %751 = vst [vmem:[#allocation2 + $0x20] sm:$0xff] %v687
  %752 = vst [vmem:[#allocation2 + $0x28] sm:$0xff] %v688
  %753 = vst [vmem:[#allocation2 + $0x30] sm:$0xff] %v689
  %754 = vst [vmem:[#allocation2 + $0x38] sm:$0xff] %v690
  %755 = vst [vmem:[#allocation2 + $0x40] sm:$0xff] %v691
  %756 = vst [vmem:[#allocation2 + $0x48] sm:$0xff] %v692
  %757 = vst [vmem:[#allocation2 + $0x50] sm:$0xff] %v693
  %758 = vst [vmem:[#allocation2 + $0x58] sm:$0xff] %v694
  %759 = vst [vmem:[#allocation2 + $0x60] sm:$0xff] %v695
  %760 = vst [vmem:[#allocation2 + $0x68] sm:$0xff] %v696
  %761 = vst [vmem:[#allocation2 + $0x70] sm:$0xff] %v697
  %762 = vst [vmem:[#allocation2 + $0x78] sm:$0xff] %v698
  %763 = vst [vmem:[#allocation2 + $0x80] sm:$0xff] %v699
  %764 = vst [vmem:[#allocation2 + $0x88] sm:$0xff] %v700
  %765 = vst [vmem:[#allocation2 + $0x90] sm:$0xff] %v701
  %766 = vst [vmem:[#allocation2 + $0x98] sm:$0xff] %v702
  %767 = vst [vmem:[#allocation2 + $0xa0] sm:$0xff] %v703
  %768 = vst [vmem:[#allocation2 + $0xa8] sm:$0xff] %v704
  %769 = vst [vmem:[#allocation2 + $0xb0] sm:$0xff] %v705
  %770 = vst [vmem:[#allocation2 + $0xb8] sm:$0xff] %v706
  %771 = vst [vmem:[#allocation2 + $0xc0] sm:$0xff] %v707
  %772 = vst [vmem:[#allocation2 + $0xc8] sm:$0xff] %v708
  %773 = vst [vmem:[#allocation2 + $0xd0] sm:$0xff] %v709
  %774 = vst [vmem:[#allocation2 + $0xd8] sm:$0xff] %v710
  %775 = vst [vmem:[#allocation2 + $0xe0] sm:$0xff] %v711
  %776 = vst [vmem:[#allocation2 + $0xe8] sm:$0xff] %v712
  %777 = vst [vmem:[#allocation2 + $0xf0] sm:$0xff] %v713
  %778 = vst [vmem:[#allocation2 + $0xf8] sm:$0xff] %v714
  %779 = vst [vmem:[#allocation2 + $0x100] sm:$0xff] %v715
  %780 = vst [vmem:[#allocation2 + $0x108] sm:$0xff] %v716
  %781 = vst [vmem:[#allocation2 + $0x110] sm:$0xff] %v717
  %782 = vst [vmem:[#allocation2 + $0x118] sm:$0xff] %v718
  %783 = vst [vmem:[#allocation2 + $0x120] sm:$0xff] %v719
  %784 = vst [vmem:[#allocation2 + $0x128] sm:$0xff] %v720
  %785 = vst [vmem:[#allocation2 + $0x130] sm:$0xff] %v721
  %786 = vst [vmem:[#allocation2 + $0x138] sm:$0xff] %v722
  %787 = vst [vmem:[#allocation2 + $0x140] sm:$0xff] %v723
  %788 = vst [vmem:[#allocation2 + $0x148] sm:$0xff] %v724
  %789 = vst [vmem:[#allocation2 + $0x150] sm:$0xff] %v725
  %790 = vst [vmem:[#allocation2 + $0x158] sm:$0xff] %v726
  %791 = vst [vmem:[#allocation2 + $0x160] sm:$0xff] %v727
  %792 = vst [vmem:[#allocation2 + $0x168] sm:$0xff] %v728
  %793 = vst [vmem:[#allocation2 + $0x170] sm:$0xff] %v729
  %794 = vst [vmem:[#allocation2 + $0x178] sm:$0xff] %v730
  %795 = vst [vmem:[#allocation2 + $0x180] sm:$0xff] %v731
  %796 = vst [vmem:[#allocation2 + $0x188] sm:$0xff] %v732
  %797 = vst [vmem:[#allocation2 + $0x190] sm:$0xff] %v733
  %798 = vst [vmem:[#allocation2 + $0x198] sm:$0xff] %v734
  %799 = vst [vmem:[#allocation2 + $0x1a0] sm:$0xff] %v735
  %800 = vst [vmem:[#allocation2 + $0x1a8] sm:$0xff] %v736
  %801 = vst [vmem:[#allocation2 + $0x1b0] sm:$0xff] %v737
  %802 = vst [vmem:[#allocation2 + $0x1b8] sm:$0xff] %v738
  %803 = vst [vmem:[#allocation2 + $0x1c0] sm:$0xff] %v739
  %804 = vst [vmem:[#allocation2 + $0x1c8] sm:$0xff] %v740
  %805 = vst [vmem:[#allocation2 + $0x1d0] sm:$0xff] %v741
  %806 = vst [vmem:[#allocation2 + $0x1d8] sm:$0xff] %v742
  %807 = vst [vmem:[#allocation2 + $0x1e0] sm:$0xff] %v743
  %808 = vst [vmem:[#allocation2 + $0x1e8] sm:$0xff] %v744
  %809 = vst [vmem:[#allocation2 + $0x1f0] sm:$0xff] %v745
  %810 = vst [vmem:[#allocation2 + $0x1f8] sm:$0xff] %v746
  // Predicated region
  $region26: #{_lambda_.12} parent=0 // pred_check
    %p811 = pneg %p21
  $region27: #{_lambda_.12} parent=0 // pred_check_branch
    %813 = sbr.rel (%p811) target = $region29
  $region28: #{_lambda_.12} parent=0 // pred_region
    %v814 = vld [vmem:[#allocation2] sm:$0xff]
    %v815 = vld [vmem:[#allocation2 + $0x8] sm:$0xff]
    %v816 = vld [vmem:[#allocation2 + $0x10] sm:$0xff]
    %v817 = vld [vmem:[#allocation2 + $0x18] sm:$0xff]
    %v818 = vld [vmem:[#allocation2 + $0x20] sm:$0xff]
    %v819 = vld [vmem:[#allocation2 + $0x28] sm:$0xff]
    %v820 = vld [vmem:[#allocation2 + $0x30] sm:$0xff]
    %v821 = vld [vmem:[#allocation2 + $0x38] sm:$0xff]
    %v822 = vld [vmem:[#allocation2 + $0x40] sm:$0xff]
    %v823 = vld [vmem:[#allocation2 + $0x48] sm:$0xff]
    %v824 = vld [vmem:[#allocation2 + $0x50] sm:$0xff]
    %v825 = vld [vmem:[#allocation2 + $0x58] sm:$0xff]
    %v826 = vld [vmem:[#allocation2 + $0x60] sm:$0xff]
    %v827 = vld [vmem:[#allocation2 + $0x68] sm:$0xff]
    %v828 = vld [vmem:[#allocation2 + $0x70] sm:$0xff]
    %v829 = vld [vmem:[#allocation2 + $0x78] sm:$0xff]
    %v830 = vld [vmem:[#allocation2 + $0x80] sm:$0xff]
    %v831 = vld [vmem:[#allocation2 + $0x88] sm:$0xff]
    %v832 = vld [vmem:[#allocation2 + $0x90] sm:$0xff]
    %v833 = vld [vmem:[#allocation2 + $0x98] sm:$0xff]
    %v834 = vld [vmem:[#allocation2 + $0xa0] sm:$0xff]
    %v835 = vld [vmem:[#allocation2 + $0xa8] sm:$0xff]
    %v836 = vld [vmem:[#allocation2 + $0xb0] sm:$0xff]
    %v837 = vld [vmem:[#allocation2 + $0xb8] sm:$0xff]
    %v838 = vld [vmem:[#allocation2 + $0xc0] sm:$0xff]
    %v839 = vld [vmem:[#allocation2 + $0xc8] sm:$0xff]
    %v840 = vld [vmem:[#allocation2 + $0xd0] sm:$0xff]
    %v841 = vld [vmem:[#allocation2 + $0xd8] sm:$0xff]
    %v842 = vld [vmem:[#allocation2 + $0xe0] sm:$0xff]
    %v843 = vld [vmem:[#allocation2 + $0xe8] sm:$0xff]
    %v844 = vld [vmem:[#allocation2 + $0xf0] sm:$0xff]
    %v845 = vld [vmem:[#allocation2 + $0xf8] sm:$0xff]
    %v846 = vld [vmem:[#allocation2 + $0x100] sm:$0xff]
    %v847 = vld [vmem:[#allocation2 + $0x108] sm:$0xff]
    %v848 = vld [vmem:[#allocation2 + $0x110] sm:$0xff]
    %v849 = vld [vmem:[#allocation2 + $0x118] sm:$0xff]
    %v850 = vld [vmem:[#allocation2 + $0x120] sm:$0xff]
    %v851 = vld [vmem:[#allocation2 + $0x128] sm:$0xff]
    %v852 = vld [vmem:[#allocation2 + $0x130] sm:$0xff]
    %v853 = vld [vmem:[#allocation2 + $0x138] sm:$0xff]
    %v854 = vld [vmem:[#allocation2 + $0x140] sm:$0xff]
    %v855 = vld [vmem:[#allocation2 + $0x148] sm:$0xff]
    %v856 = vld [vmem:[#allocation2 + $0x150] sm:$0xff]
    %v857 = vld [vmem:[#allocation2 + $0x158] sm:$0xff]
    %v858 = vld [vmem:[#allocation2 + $0x160] sm:$0xff]
    %v859 = vld [vmem:[#allocation2 + $0x168] sm:$0xff]
    %v860 = vld [vmem:[#allocation2 + $0x170] sm:$0xff]
    %v861 = vld [vmem:[#allocation2 + $0x178] sm:$0xff]
    %v862 = vld [vmem:[#allocation2 + $0x180] sm:$0xff]
    %v863 = vld [vmem:[#allocation2 + $0x188] sm:$0xff]
    %v864 = vld [vmem:[#allocation2 + $0x190] sm:$0xff]
    %v865 = vld [vmem:[#allocation2 + $0x198] sm:$0xff]
    %v866 = vld [vmem:[#allocation2 + $0x1a0] sm:$0xff]
    %v867 = vld [vmem:[#allocation2 + $0x1a8] sm:$0xff]
    %v868 = vld [vmem:[#allocation2 + $0x1b0] sm:$0xff]
    %v869 = vld [vmem:[#allocation2 + $0x1b8] sm:$0xff]
    %v870 = vld [vmem:[#allocation2 + $0x1c0] sm:$0xff]
    %v871 = vld [vmem:[#allocation2 + $0x1c8] sm:$0xff]
    %v872 = vld [vmem:[#allocation2 + $0x1d0] sm:$0xff]
    %v873 = vld [vmem:[#allocation2 + $0x1d8] sm:$0xff]
    %v874 = vld [vmem:[#allocation2 + $0x1e0] sm:$0xff]
    %v875 = vld [vmem:[#allocation2 + $0x1e8] sm:$0xff]
    %v876 = vld [vmem:[#allocation2 + $0x1f0] sm:$0xff]
    %v877 = vld [vmem:[#allocation2 + $0x1f8] sm:$0xff]
    %v878 = vld [vmem:[%s2] sm:$0x1]
    %v880 = vperm.slane %v878, 0
    %v882 = vmul.f32 %v814, %v880
    %v883 = vmul.f32 %v815, %v880
    %v884 = vmul.f32 %v816, %v880
    %v885 = vmul.f32 %v817, %v880
    %v886 = vmul.f32 %v818, %v880
    %v887 = vmul.f32 %v819, %v880
    %v888 = vmul.f32 %v820, %v880
    %v889 = vmul.f32 %v821, %v880
    %v890 = vmul.f32 %v822, %v880
    %v891 = vmul.f32 %v823, %v880
    %v892 = vmul.f32 %v824, %v880
    %v893 = vmul.f32 %v825, %v880
    %v894 = vmul.f32 %v826, %v880
    %v895 = vmul.f32 %v827, %v880
    %v896 = vmul.f32 %v828, %v880
    %v897 = vmul.f32 %v829, %v880
    %v898 = vmul.f32 %v830, %v880
    %v899 = vmul.f32 %v831, %v880
    %v900 = vmul.f32 %v832, %v880
    %v901 = vmul.f32 %v833, %v880
    %v902 = vmul.f32 %v834, %v880
    %v903 = vmul.f32 %v835, %v880
    %v904 = vmul.f32 %v836, %v880
    %v905 = vmul.f32 %v837, %v880
    %v906 = vmul.f32 %v838, %v880
    %v907 = vmul.f32 %v839, %v880
    %v908 = vmul.f32 %v840, %v880
    %v909 = vmul.f32 %v841, %v880
    %v910 = vmul.f32 %v842, %v880
    %v911 = vmul.f32 %v843, %v880
    %v912 = vmul.f32 %v844, %v880
    %v913 = vmul.f32 %v845, %v880
    %v914 = vmul.f32 %v846, %v880
    %v915 = vmul.f32 %v847, %v880
    %v916 = vmul.f32 %v848, %v880
    %v917 = vmul.f32 %v849, %v880
    %v918 = vmul.f32 %v850, %v880
    %v919 = vmul.f32 %v851, %v880
    %v920 = vmul.f32 %v852, %v880
    %v921 = vmul.f32 %v853, %v880
    %v922 = vmul.f32 %v854, %v880
    %v923 = vmul.f32 %v855, %v880
    %v924 = vmul.f32 %v856, %v880
    %v925 = vmul.f32 %v857, %v880
    %v926 = vmul.f32 %v858, %v880
    %v927 = vmul.f32 %v859, %v880
    %v928 = vmul.f32 %v860, %v880
    %v929 = vmul.f32 %v861, %v880
    %v930 = vmul.f32 %v862, %v880
    %v931 = vmul.f32 %v863, %v880
    %v932 = vmul.f32 %v864, %v880
    %v933 = vmul.f32 %v865, %v880
    %v934 = vmul.f32 %v866, %v880
    %v935 = vmul.f32 %v867, %v880
    %v936 = vmul.f32 %v868, %v880
    %v937 = vmul.f32 %v869, %v880
    %v938 = vmul.f32 %v870, %v880
    %v939 = vmul.f32 %v871, %v880
    %v940 = vmul.f32 %v872, %v880
    %v941 = vmul.f32 %v873, %v880
    %v942 = vmul.f32 %v874, %v880
    %v943 = vmul.f32 %v875, %v880
    %v944 = vmul.f32 %v876, %v880
    %v945 = vmul.f32 %v877, %v880
    %v946 = vld [vmem:[%s3] sm:$0x1]
    %v948 = vperm.slane %v946, 0
    %v950 = vadd.f32 %v882, %v948
    %v951 = vadd.f32 %v883, %v948
    %v952 = vadd.f32 %v884, %v948
    %v953 = vadd.f32 %v885, %v948
    %v954 = vadd.f32 %v886, %v948
    %v955 = vadd.f32 %v887, %v948
    %v956 = vadd.f32 %v888, %v948
    %v957 = vadd.f32 %v889, %v948
    %v958 = vadd.f32 %v890, %v948
    %v959 = vadd.f32 %v891, %v948
    %v960 = vadd.f32 %v892, %v948
    %v961 = vadd.f32 %v893, %v948
    %v962 = vadd.f32 %v894, %v948
    %v963 = vadd.f32 %v895, %v948
    %v964 = vadd.f32 %v896, %v948
    %v965 = vadd.f32 %v897, %v948
    %v966 = vadd.f32 %v898, %v948
    %v967 = vadd.f32 %v899, %v948
    %v968 = vadd.f32 %v900, %v948
    %v969 = vadd.f32 %v901, %v948
    %v970 = vadd.f32 %v902, %v948
    %v971 = vadd.f32 %v903, %v948
    %v972 = vadd.f32 %v904, %v948
    %v973 = vadd.f32 %v905, %v948
    %v974 = vadd.f32 %v906, %v948
    %v975 = vadd.f32 %v907, %v948
    %v976 = vadd.f32 %v908, %v948
    %v977 = vadd.f32 %v909, %v948
    %v978 = vadd.f32 %v910, %v948
    %v979 = vadd.f32 %v911, %v948
    %v980 = vadd.f32 %v912, %v948
    %v981 = vadd.f32 %v913, %v948
    %v982 = vadd.f32 %v914, %v948
    %v983 = vadd.f32 %v915, %v948
    %v984 = vadd.f32 %v916, %v948
    %v985 = vadd.f32 %v917, %v948
    %v986 = vadd.f32 %v918, %v948
    %v987 = vadd.f32 %v919, %v948
    %v988 = vadd.f32 %v920, %v948
    %v989 = vadd.f32 %v921, %v948
    %v990 = vadd.f32 %v922, %v948
    %v991 = vadd.f32 %v923, %v948
    %v992 = vadd.f32 %v924, %v948
    %v993 = vadd.f32 %v925, %v948
    %v994 = vadd.f32 %v926, %v948
    %v995 = vadd.f32 %v927, %v948
    %v996 = vadd.f32 %v928, %v948
    %v997 = vadd.f32 %v929, %v948
    %v998 = vadd.f32 %v930, %v948
    %v999 = vadd.f32 %v931, %v948
    %v1000 = vadd.f32 %v932, %v948
    %v1001 = vadd.f32 %v933, %v948
    %v1002 = vadd.f32 %v934, %v948
    %v1003 = vadd.f32 %v935, %v948
    %v1004 = vadd.f32 %v936, %v948
    %v1005 = vadd.f32 %v937, %v948
    %v1006 = vadd.f32 %v938, %v948
    %v1007 = vadd.f32 %v939, %v948
    %v1008 = vadd.f32 %v940, %v948
    %v1009 = vadd.f32 %v941, %v948
    %v1010 = vadd.f32 %v942, %v948
    %v1011 = vadd.f32 %v943, %v948
    %v1012 = vadd.f32 %v944, %v948
    %v1013 = vadd.f32 %v945, %v948
    %v1014 = vld [vmem:[%s4] sm:$0xf]
    %v1015 = vld [vmem:[%s4 + $0x4] sm:$0xf]
    %v1016 = vld [vmem:[%s4 + $0x8] sm:$0xf]
    %v1017 = vld [vmem:[%s4 + $0xc] sm:$0xf]
    %v1018 = vld [vmem:[%s4 + $0x10] sm:$0xf]
    %v1019 = vld [vmem:[%s4 + $0x14] sm:$0xf]
    %v1020 = vld [vmem:[%s4 + $0x18] sm:$0xf]
    %v1021 = vld [vmem:[%s4 + $0x1c] sm:$0xf]
    %v1022 = vld [vmem:[%s4 + $0x20] sm:$0xf]
    %v1023 = vld [vmem:[%s4 + $0x24] sm:$0xf]
    %v1024 = vld [vmem:[%s4 + $0x28] sm:$0xf]
    %v1025 = vld [vmem:[%s4 + $0x2c] sm:$0xf]
    %v1026 = vld [vmem:[%s4 + $0x30] sm:$0xf]
    %v1027 = vld [vmem:[%s4 + $0x34] sm:$0xf]
    %v1028 = vld [vmem:[%s4 + $0x38] sm:$0xf]
    %v1029 = vld [vmem:[%s4 + $0x3c] sm:$0xf]
    %v1030 = vld [vmem:[%s4 + $0x40] sm:$0xf]
    %v1031 = vld [vmem:[%s4 + $0x44] sm:$0xf]
    %v1032 = vld [vmem:[%s4 + $0x48] sm:$0xf]
    %v1033 = vld [vmem:[%s4 + $0x4c] sm:$0xf]
    %v1034 = vld [vmem:[%s4 + $0x50] sm:$0xf]
    %v1035 = vld [vmem:[%s4 + $0x54] sm:$0xf]
    %v1036 = vld [vmem:[%s4 + $0x58] sm:$0xf]
    %v1037 = vld [vmem:[%s4 + $0x5c] sm:$0xf]
    %v1038 = vld [vmem:[%s4 + $0x60] sm:$0xf]
    %v1039 = vld [vmem:[%s4 + $0x64] sm:$0xf]
    %v1040 = vld [vmem:[%s4 + $0x68] sm:$0xf]
    %v1041 = vld [vmem:[%s4 + $0x6c] sm:$0xf]
    %v1042 = vld [vmem:[%s4 + $0x70] sm:$0xf]
    %v1043 = vld [vmem:[%s4 + $0x74] sm:$0xf]
    %v1044 = vld [vmem:[%s4 + $0x78] sm:$0xf]
    %v1045 = vld [vmem:[%s4 + $0x7c] sm:$0xf]
    %v1046 = vld [vmem:[%s4 + $0x80] sm:$0xf]
    %v1047 = vld [vmem:[%s4 + $0x84] sm:$0xf]
    %v1048 = vld [vmem:[%s4 + $0x88] sm:$0xf]
    %v1049 = vld [vmem:[%s4 + $0x8c] sm:$0xf]
    %v1050 = vld [vmem:[%s4 + $0x90] sm:$0xf]
    %v1051 = vld [vmem:[%s4 + $0x94] sm:$0xf]
    %v1052 = vld [vmem:[%s4 + $0x98] sm:$0xf]
    %v1053 = vld [vmem:[%s4 + $0x9c] sm:$0xf]
    %v1054 = vld [vmem:[%s4 + $0xa0] sm:$0xf]
    %v1055 = vld [vmem:[%s4 + $0xa4] sm:$0xf]
    %v1056 = vld [vmem:[%s4 + $0xa8] sm:$0xf]
    %v1057 = vld [vmem:[%s4 + $0xac] sm:$0xf]
    %v1058 = vld [vmem:[%s4 + $0xb0] sm:$0xf]
    %v1059 = vld [vmem:[%s4 + $0xb4] sm:$0xf]
    %v1060 = vld [vmem:[%s4 + $0xb8] sm:$0xf]
    %v1061 = vld [vmem:[%s4 + $0xbc] sm:$0xf]
    %v1062 = vld [vmem:[%s4 + $0xc0] sm:$0xf]
    %v1063 = vld [vmem:[%s4 + $0xc4] sm:$0xf]
    %v1064 = vld [vmem:[%s4 + $0xc8] sm:$0xf]
    %v1065 = vld [vmem:[%s4 + $0xcc] sm:$0xf]
    %v1066 = vld [vmem:[%s4 + $0xd0] sm:$0xf]
    %v1067 = vld [vmem:[%s4 + $0xd4] sm:$0xf]
    %v1068 = vld [vmem:[%s4 + $0xd8] sm:$0xf]
    %v1069 = vld [vmem:[%s4 + $0xdc] sm:$0xf]
    %v1070 = vld [vmem:[%s4 + $0xe0] sm:$0xf]
    %v1071 = vld [vmem:[%s4 + $0xe4] sm:$0xf]
    %v1072 = vld [vmem:[%s4 + $0xe8] sm:$0xf]
    %v1073 = vld [vmem:[%s4 + $0xec] sm:$0xf]
    %v1074 = vld [vmem:[%s4 + $0xf0] sm:$0xf]
    %v1075 = vld [vmem:[%s4 + $0xf4] sm:$0xf]
    %v1076 = vld [vmem:[%s4 + $0xf8] sm:$0xf]
    %v1077 = vld [vmem:[%s4 + $0xfc] sm:$0xf]
    %v1078 = vunpack.c.l.bf16 %v1014
    %v1079 = vunpack.c.l.bf16 %v1015
    %v1080 = vunpack.c.l.bf16 %v1016
    %v1081 = vunpack.c.l.bf16 %v1017
    %v1082 = vunpack.c.l.bf16 %v1018
    %v1083 = vunpack.c.l.bf16 %v1019
    %v1084 = vunpack.c.l.bf16 %v1020
    %v1085 = vunpack.c.l.bf16 %v1021
    %v1086 = vunpack.c.l.bf16 %v1022
    %v1087 = vunpack.c.l.bf16 %v1023
    %v1088 = vunpack.c.l.bf16 %v1024
    %v1089 = vunpack.c.l.bf16 %v1025
    %v1090 = vunpack.c.l.bf16 %v1026
    %v1091 = vunpack.c.l.bf16 %v1027
    %v1092 = vunpack.c.l.bf16 %v1028
    %v1093 = vunpack.c.l.bf16 %v1029
    %v1094 = vunpack.c.l.bf16 %v1030
    %v1095 = vunpack.c.l.bf16 %v1031
    %v1096 = vunpack.c.l.bf16 %v1032
    %v1097 = vunpack.c.l.bf16 %v1033
    %v1098 = vunpack.c.l.bf16 %v1034
    %v1099 = vunpack.c.l.bf16 %v1035
    %v1100 = vunpack.c.l.bf16 %v1036
    %v1101 = vunpack.c.l.bf16 %v1037
    %v1102 = vunpack.c.l.bf16 %v1038
    %v1103 = vunpack.c.l.bf16 %v1039
    %v1104 = vunpack.c.l.bf16 %v1040
    %v1105 = vunpack.c.l.bf16 %v1041
    %v1106 = vunpack.c.l.bf16 %v1042
    %v1107 = vunpack.c.l.bf16 %v1043
    %v1108 = vunpack.c.l.bf16 %v1044
    %v1109 = vunpack.c.l.bf16 %v1045
    %v1110 = vunpack.c.l.bf16 %v1046
    %v1111 = vunpack.c.l.bf16 %v1047
    %v1112 = vunpack.c.l.bf16 %v1048
    %v1113 = vunpack.c.l.bf16 %v1049
    %v1114 = vunpack.c.l.bf16 %v1050
    %v1115 = vunpack.c.l.bf16 %v1051
    %v1116 = vunpack.c.l.bf16 %v1052
    %v1117 = vunpack.c.l.bf16 %v1053
    %v1118 = vunpack.c.l.bf16 %v1054
    %v1119 = vunpack.c.l.bf16 %v1055
    %v1120 = vunpack.c.l.bf16 %v1056
    %v1121 = vunpack.c.l.bf16 %v1057
    %v1122 = vunpack.c.l.bf16 %v1058
    %v1123 = vunpack.c.l.bf16 %v1059
    %v1124 = vunpack.c.l.bf16 %v1060
    %v1125 = vunpack.c.l.bf16 %v1061
    %v1126 = vunpack.c.l.bf16 %v1062
    %v1127 = vunpack.c.l.bf16 %v1063
    %v1128 = vunpack.c.l.bf16 %v1064
    %v1129 = vunpack.c.l.bf16 %v1065
    %v1130 = vunpack.c.l.bf16 %v1066
    %v1131 = vunpack.c.l.bf16 %v1067
    %v1132 = vunpack.c.l.bf16 %v1068
    %v1133 = vunpack.c.l.bf16 %v1069
    %v1134 = vunpack.c.l.bf16 %v1070
    %v1135 = vunpack.c.l.bf16 %v1071
    %v1136 = vunpack.c.l.bf16 %v1072
    %v1137 = vunpack.c.l.bf16 %v1073
    %v1138 = vunpack.c.l.bf16 %v1074
    %v1139 = vunpack.c.l.bf16 %v1075
    %v1140 = vunpack.c.l.bf16 %v1076
    %v1141 = vunpack.c.l.bf16 %v1077
    %v1142 = vadd.f32 %v950, %v1078
    %v1143 = vadd.f32 %v951, %v1079
    %v1144 = vadd.f32 %v952, %v1080
    %v1145 = vadd.f32 %v953, %v1081
    %v1146 = vadd.f32 %v954, %v1082
    %v1147 = vadd.f32 %v955, %v1083
    %v1148 = vadd.f32 %v956, %v1084
    %v1149 = vadd.f32 %v957, %v1085
    %v1150 = vadd.f32 %v958, %v1086
    %v1151 = vadd.f32 %v959, %v1087
    %v1152 = vadd.f32 %v960, %v1088
    %v1153 = vadd.f32 %v961, %v1089
    %v1154 = vadd.f32 %v962, %v1090
    %v1155 = vadd.f32 %v963, %v1091
    %v1156 = vadd.f32 %v964, %v1092
    %v1157 = vadd.f32 %v965, %v1093
    %v1158 = vadd.f32 %v966, %v1094
    %v1159 = vadd.f32 %v967, %v1095
    %v1160 = vadd.f32 %v968, %v1096
    %v1161 = vadd.f32 %v969, %v1097
    %v1162 = vadd.f32 %v970, %v1098
    %v1163 = vadd.f32 %v971, %v1099
    %v1164 = vadd.f32 %v972, %v1100
    %v1165 = vadd.f32 %v973, %v1101
    %v1166 = vadd.f32 %v974, %v1102
    %v1167 = vadd.f32 %v975, %v1103
    %v1168 = vadd.f32 %v976, %v1104
    %v1169 = vadd.f32 %v977, %v1105
    %v1170 = vadd.f32 %v978, %v1106
    %v1171 = vadd.f32 %v979, %v1107
    %v1172 = vadd.f32 %v980, %v1108
    %v1173 = vadd.f32 %v981, %v1109
    %v1174 = vadd.f32 %v982, %v1110
    %v1175 = vadd.f32 %v983, %v1111
    %v1176 = vadd.f32 %v984, %v1112
    %v1177 = vadd.f32 %v985, %v1113
    %v1178 = vadd.f32 %v986, %v1114
    %v1179 = vadd.f32 %v987, %v1115
    %v1180 = vadd.f32 %v988, %v1116
    %v1181 = vadd.f32 %v989, %v1117
    %v1182 = vadd.f32 %v990, %v1118
    %v1183 = vadd.f32 %v991, %v1119
    %v1184 = vadd.f32 %v992, %v1120
    %v1185 = vadd.f32 %v993, %v1121
    %v1186 = vadd.f32 %v994, %v1122
    %v1187 = vadd.f32 %v995, %v1123
    %v1188 = vadd.f32 %v996, %v1124
    %v1189 = vadd.f32 %v997, %v1125
    %v1190 = vadd.f32 %v998, %v1126
    %v1191 = vadd.f32 %v999, %v1127
    %v1192 = vadd.f32 %v1000, %v1128
    %v1193 = vadd.f32 %v1001, %v1129
    %v1194 = vadd.f32 %v1002, %v1130
    %v1195 = vadd.f32 %v1003, %v1131
    %v1196 = vadd.f32 %v1004, %v1132
    %v1197 = vadd.f32 %v1005, %v1133
    %v1198 = vadd.f32 %v1006, %v1134
    %v1199 = vadd.f32 %v1007, %v1135
    %v1200 = vadd.f32 %v1008, %v1136
    %v1201 = vadd.f32 %v1009, %v1137
    %v1202 = vadd.f32 %v1010, %v1138
    %v1203 = vadd.f32 %v1011, %v1139
    %v1204 = vadd.f32 %v1012, %v1140
    %v1205 = vadd.f32 %v1013, %v1141
    %v1206 = vmax.f32 %v1142, 0.0
    %v1207 = vmax.f32 %v1143, 0.0
    %v1208 = vmax.f32 %v1144, 0.0
    %v1209 = vmax.f32 %v1145, 0.0
    %v1210 = vmax.f32 %v1146, 0.0
    %v1211 = vmax.f32 %v1147, 0.0
    %v1212 = vmax.f32 %v1148, 0.0
    %v1213 = vmax.f32 %v1149, 0.0
    %v1214 = vmax.f32 %v1150, 0.0
    %v1215 = vmax.f32 %v1151, 0.0
    %v1216 = vmax.f32 %v1152, 0.0
    %v1217 = vmax.f32 %v1153, 0.0
    %v1218 = vmax.f32 %v1154, 0.0
    %v1219 = vmax.f32 %v1155, 0.0
    %v1220 = vmax.f32 %v1156, 0.0
    %v1221 = vmax.f32 %v1157, 0.0
    %v1222 = vmax.f32 %v1158, 0.0
    %v1223 = vmax.f32 %v1159, 0.0
    %v1224 = vmax.f32 %v1160, 0.0
    %v1225 = vmax.f32 %v1161, 0.0
    %v1226 = vmax.f32 %v1162, 0.0
    %v1227 = vmax.f32 %v1163, 0.0
    %v1228 = vmax.f32 %v1164, 0.0
    %v1229 = vmax.f32 %v1165, 0.0
    %v1230 = vmax.f32 %v1166, 0.0
    %v1231 = vmax.f32 %v1167, 0.0
    %v1232 = vmax.f32 %v1168, 0.0
    %v1233 = vmax.f32 %v1169, 0.0
    %v1234 = vmax.f32 %v1170, 0.0
    %v1235 = vmax.f32 %v1171, 0.0
    %v1236 = vmax.f32 %v1172, 0.0
    %v1237 = vmax.f32 %v1173, 0.0
    %v1238 = vmax.f32 %v1174, 0.0
    %v1239 = vmax.f32 %v1175, 0.0
    %v1240 = vmax.f32 %v1176, 0.0
    %v1241 = vmax.f32 %v1177, 0.0
    %v1242 = vmax.f32 %v1178, 0.0
    %v1243 = vmax.f32 %v1179, 0.0
    %v1244 = vmax.f32 %v1180, 0.0
    %v1245 = vmax.f32 %v1181, 0.0
    %v1246 = vmax.f32 %v1182, 0.0
    %v1247 = vmax.f32 %v1183, 0.0
    %v1248 = vmax.f32 %v1184, 0.0
    %v1249 = vmax.f32 %v1185, 0.0
    %v1250 = vmax.f32 %v1186, 0.0
    %v1251 = vmax.f32 %v1187, 0.0
    %v1252 = vmax.f32 %v1188, 0.0
    %v1253 = vmax.f32 %v1189, 0.0
    %v1254 = vmax.f32 %v1190, 0.0
    %v1255 = vmax.f32 %v1191, 0.0
    %v1256 = vmax.f32 %v1192, 0.0
    %v1257 = vmax.f32 %v1193, 0.0
    %v1258 = vmax.f32 %v1194, 0.0
    %v1259 = vmax.f32 %v1195, 0.0
    %v1260 = vmax.f32 %v1196, 0.0
    %v1261 = vmax.f32 %v1197, 0.0
    %v1262 = vmax.f32 %v1198, 0.0
    %v1263 = vmax.f32 %v1199, 0.0
    %v1264 = vmax.f32 %v1200, 0.0
    %v1265 = vmax.f32 %v1201, 0.0
    %v1266 = vmax.f32 %v1202, 0.0
    %v1267 = vmax.f32 %v1203, 0.0
    %v1268 = vmax.f32 %v1204, 0.0
    %v1269 = vmax.f32 %v1205, 0.0
    %v1270 = vpack.c.bf16 %v1206, %v1206
    %v1271 = vpack.c.bf16 %v1207, %v1207
    %v1272 = vpack.c.bf16 %v1208, %v1208
    %v1273 = vpack.c.bf16 %v1209, %v1209
    %v1274 = vpack.c.bf16 %v1210, %v1210
    %v1275 = vpack.c.bf16 %v1211, %v1211
    %v1276 = vpack.c.bf16 %v1212, %v1212
    %v1277 = vpack.c.bf16 %v1213, %v1213
    %v1278 = vpack.c.bf16 %v1214, %v1214
    %v1279 = vpack.c.bf16 %v1215, %v1215
    %v1280 = vpack.c.bf16 %v1216, %v1216
    %v1281 = vpack.c.bf16 %v1217, %v1217
    %v1282 = vpack.c.bf16 %v1218, %v1218
    %v1283 = vpack.c.bf16 %v1219, %v1219
    %v1284 = vpack.c.bf16 %v1220, %v1220
    %v1285 = vpack.c.bf16 %v1221, %v1221
    %v1286 = vpack.c.bf16 %v1222, %v1222
    %v1287 = vpack.c.bf16 %v1223, %v1223
    %v1288 = vpack.c.bf16 %v1224, %v1224
    %v1289 = vpack.c.bf16 %v1225, %v1225
    %v1290 = vpack.c.bf16 %v1226, %v1226
    %v1291 = vpack.c.bf16 %v1227, %v1227
    %v1292 = vpack.c.bf16 %v1228, %v1228
    %v1293 = vpack.c.bf16 %v1229, %v1229
    %v1294 = vpack.c.bf16 %v1230, %v1230
    %v1295 = vpack.c.bf16 %v1231, %v1231
    %v1296 = vpack.c.bf16 %v1232, %v1232
    %v1297 = vpack.c.bf16 %v1233, %v1233
    %v1298 = vpack.c.bf16 %v1234, %v1234
    %v1299 = vpack.c.bf16 %v1235, %v1235
    %v1300 = vpack.c.bf16 %v1236, %v1236
    %v1301 = vpack.c.bf16 %v1237, %v1237
    %v1302 = vpack.c.bf16 %v1238, %v1238
    %v1303 = vpack.c.bf16 %v1239, %v1239
    %v1304 = vpack.c.bf16 %v1240, %v1240
    %v1305 = vpack.c.bf16 %v1241, %v1241
    %v1306 = vpack.c.bf16 %v1242, %v1242
    %v1307 = vpack.c.bf16 %v1243, %v1243
    %v1308 = vpack.c.bf16 %v1244, %v1244
    %v1309 = vpack.c.bf16 %v1245, %v1245
    %v1310 = vpack.c.bf16 %v1246, %v1246
    %v1311 = vpack.c.bf16 %v1247, %v1247
    %v1312 = vpack.c.bf16 %v1248, %v1248
    %v1313 = vpack.c.bf16 %v1249, %v1249
    %v1314 = vpack.c.bf16 %v1250, %v1250
    %v1315 = vpack.c.bf16 %v1251, %v1251
    %v1316 = vpack.c.bf16 %v1252, %v1252
    %v1317 = vpack.c.bf16 %v1253, %v1253
    %v1318 = vpack.c.bf16 %v1254, %v1254
    %v1319 = vpack.c.bf16 %v1255, %v1255
    %v1320 = vpack.c.bf16 %v1256, %v1256
    %v1321 = vpack.c.bf16 %v1257, %v1257
    %v1322 = vpack.c.bf16 %v1258, %v1258
    %v1323 = vpack.c.bf16 %v1259, %v1259
    %v1324 = vpack.c.bf16 %v1260, %v1260
    %v1325 = vpack.c.bf16 %v1261, %v1261
    %v1326 = vpack.c.bf16 %v1262, %v1262
    %v1327 = vpack.c.bf16 %v1263, %v1263
    %v1328 = vpack.c.bf16 %v1264, %v1264
    %v1329 = vpack.c.bf16 %v1265, %v1265
    %v1330 = vpack.c.bf16 %v1266, %v1266
    %v1331 = vpack.c.bf16 %v1267, %v1267
    %v1332 = vpack.c.bf16 %v1268, %v1268
    %v1333 = vpack.c.bf16 %v1269, %v1269
    %1334 = vst [vmem:[%s5] sm:$0xf] %v1270
    %1335 = vst [vmem:[%s5 + $0x4] sm:$0xf] %v1271
    %1336 = vst [vmem:[%s5 + $0x8] sm:$0xf] %v1272
    %1337 = vst [vmem:[%s5 + $0xc] sm:$0xf] %v1273
    %1338 = vst [vmem:[%s5 + $0x10] sm:$0xf] %v1274
    %1339 = vst [vmem:[%s5 + $0x14] sm:$0xf] %v1275
    %1340 = vst [vmem:[%s5 + $0x18] sm:$0xf] %v1276
    %1341 = vst [vmem:[%s5 + $0x1c] sm:$0xf] %v1277
    %1342 = vst [vmem:[%s5 + $0x20] sm:$0xf] %v1278
    %1343 = vst [vmem:[%s5 + $0x24] sm:$0xf] %v1279
    %1344 = vst [vmem:[%s5 + $0x28] sm:$0xf] %v1280
    %1345 = vst [vmem:[%s5 + $0x2c] sm:$0xf] %v1281
    %1346 = vst [vmem:[%s5 + $0x30] sm:$0xf] %v1282
    %1347 = vst [vmem:[%s5 + $0x34] sm:$0xf] %v1283
    %1348 = vst [vmem:[%s5 + $0x38] sm:$0xf] %v1284
    %1349 = vst [vmem:[%s5 + $0x3c] sm:$0xf] %v1285
    %1350 = vst [vmem:[%s5 + $0x40] sm:$0xf] %v1286
    %1351 = vst [vmem:[%s5 + $0x44] sm:$0xf] %v1287
    %1352 = vst [vmem:[%s5 + $0x48] sm:$0xf] %v1288
    %1353 = vst [vmem:[%s5 + $0x4c] sm:$0xf] %v1289
    %1354 = vst [vmem:[%s5 + $0x50] sm:$0xf] %v1290
    %1355 = vst [vmem:[%s5 + $0x54] sm:$0xf] %v1291
    %1356 = vst [vmem:[%s5 + $0x58] sm:$0xf] %v1292
    %1357 = vst [vmem:[%s5 + $0x5c] sm:$0xf] %v1293
    %1358 = vst [vmem:[%s5 + $0x60] sm:$0xf] %v1294
    %1359 = vst [vmem:[%s5 + $0x64] sm:$0xf] %v1295
    %1360 = vst [vmem:[%s5 + $0x68] sm:$0xf] %v1296
    %1361 = vst [vmem:[%s5 + $0x6c] sm:$0xf] %v1297
    %1362 = vst [vmem:[%s5 + $0x70] sm:$0xf] %v1298
    %1363 = vst [vmem:[%s5 + $0x74] sm:$0xf] %v1299
    %1364 = vst [vmem:[%s5 + $0x78] sm:$0xf] %v1300
    %1365 = vst [vmem:[%s5 + $0x7c] sm:$0xf] %v1301
    %1366 = vst [vmem:[%s5 + $0x80] sm:$0xf] %v1302
    %1367 = vst [vmem:[%s5 + $0x84] sm:$0xf] %v1303
    %1368 = vst [vmem:[%s5 + $0x88] sm:$0xf] %v1304
    %1369 = vst [vmem:[%s5 + $0x8c] sm:$0xf] %v1305
    %1370 = vst [vmem:[%s5 + $0x90] sm:$0xf] %v1306
    %1371 = vst [vmem:[%s5 + $0x94] sm:$0xf] %v1307
    %1372 = vst [vmem:[%s5 + $0x98] sm:$0xf] %v1308
    %1373 = vst [vmem:[%s5 + $0x9c] sm:$0xf] %v1309
    %1374 = vst [vmem:[%s5 + $0xa0] sm:$0xf] %v1310
    %1375 = vst [vmem:[%s5 + $0xa4] sm:$0xf] %v1311
    %1376 = vst [vmem:[%s5 + $0xa8] sm:$0xf] %v1312
    %1377 = vst [vmem:[%s5 + $0xac] sm:$0xf] %v1313
    %1378 = vst [vmem:[%s5 + $0xb0] sm:$0xf] %v1314
    %1379 = vst [vmem:[%s5 + $0xb4] sm:$0xf] %v1315
    %1380 = vst [vmem:[%s5 + $0xb8] sm:$0xf] %v1316
    %1381 = vst [vmem:[%s5 + $0xbc] sm:$0xf] %v1317
    %1382 = vst [vmem:[%s5 + $0xc0] sm:$0xf] %v1318
    %1383 = vst [vmem:[%s5 + $0xc4] sm:$0xf] %v1319
    %1384 = vst [vmem:[%s5 + $0xc8] sm:$0xf] %v1320
    %1385 = vst [vmem:[%s5 + $0xcc] sm:$0xf] %v1321
    %1386 = vst [vmem:[%s5 + $0xd0] sm:$0xf] %v1322
    %1387 = vst [vmem:[%s5 + $0xd4] sm:$0xf] %v1323
    %1388 = vst [vmem:[%s5 + $0xd8] sm:$0xf] %v1324
    %1389 = vst [vmem:[%s5 + $0xdc] sm:$0xf] %v1325
    %1390 = vst [vmem:[%s5 + $0xe0] sm:$0xf] %v1326
    %1391 = vst [vmem:[%s5 + $0xe4] sm:$0xf] %v1327
    %1392 = vst [vmem:[%s5 + $0xe8] sm:$0xf] %v1328
    %1393 = vst [vmem:[%s5 + $0xec] sm:$0xf] %v1329
    %1394 = vst [vmem:[%s5 + $0xf0] sm:$0xf] %v1330
    %1395 = vst [vmem:[%s5 + $0xf4] sm:$0xf] %v1331
    %1396 = vst [vmem:[%s5 + $0xf8] sm:$0xf] %v1332
    %1397 = vst [vmem:[%s5 + $0xfc] sm:$0xf] %v1333
  $region29: #{_lambda_.12} parent=0 // pred_fallthru
    _
  // Predicated region
  $region30: #{_lambda_.12} parent=0 // pred_check
    _
  $region31: #{_lambda_.12} parent=0 // pred_check_branch
    %1399 = sbr.rel (0) target = $region33
  $region32: #{_lambda_.12} parent=0 // pred_region
    _
  $region33: #{_lambda_.12} parent=0 // pred_fallthru
    _
  // Predicated region
  $region34: #{_lambda_.12} parent=0 // pred_check
    _
  $region35: #{_lambda_.12} parent=0 // pred_check_branch
    %1401 = sbr.rel (0) target = $region37
  $region36: #{_lambda_.12} parent=0 // pred_region
    _
  $region37: #{_lambda_.12} parent=0 // pred_fallthru
    _

// kernel: _lambda_.13
$region0: #{_lambda_.13}
  #allocation0 [shape = 'u32[]', space=smem, size = 0x4, offset = 0x4, fixed_abs, tag = 'smem constant byte address 0x4 - core index']
  #allocation1 [shape = 'u32[72,128]{1,0:T(1,128)}', space=vmem, size = 0x9000, scoped, tag = 'internal scratch']
  #allocation2 [shape = 'f32[128,128]{1,0:T(8,128)}', space=vmem, size = 0x10000, scoped, tag = 'scratch operand']
  %s0 = inlined_call_operand.vmem [shape: bf16[128,72], index: 0, kind: input, shape index: {}]
  %s1 = inlined_call_operand.vmem [shape: bf16[72,128], index: 1, kind: input, shape index: {}]
  %s2 = inlined_call_operand.vmem [shape: f32[1,128], index: 2, kind: input, shape index: {}]
  %s3 = inlined_call_operand.vmem [shape: f32[1,128], index: 3, kind: input, shape index: {}]
  %s4 = inlined_call_operand.vmem [shape: bf16[128,128], index: 4, kind: output, shape index: {}]
  %s5 = sld [smem:[#allocation0]]
  $region34: #{_lambda_.13} parent=0
    _
  %s7 = ssub.s32 1, %s5
  %s8 = scalar_select 0, %s7, %s5
  // Predicated region
  $region2: #{_lambda_.13} parent=0 // pred_check
    _
  $region3: #{_lambda_.13} parent=0 // pred_check_branch
    %10 = sbr.rel (0) target = $region5
  $region4: #{_lambda_.13} parent=0 // pred_region
    _
  $region5: #{_lambda_.13} parent=0 // pred_fallthru
    _
  // Predicated region
  $region6: #{_lambda_.13} parent=0 // pred_check
    _
  $region7: #{_lambda_.13} parent=0 // pred_check_branch
    %12 = sbr.rel (0) target = $region9
  $region8: #{_lambda_.13} parent=0 // pred_region
    _
  $region9: #{_lambda_.13} parent=0 // pred_fallthru
    _
  // Predicated region
  $region10: #{_lambda_.13} parent=0 // pred_check
    _
  $region11: #{_lambda_.13} parent=0 // pred_check_branch
    %14 = sbr.rel (0) target = $region13
  $region12: #{_lambda_.13} parent=0 // pred_region
    _
  $region13: #{_lambda_.13} parent=0 // pred_fallthru
    _
  // Predicated region
  $region14: #{_lambda_.13} parent=0 // pred_check
    _
  $region15: #{_lambda_.13} parent=0 // pred_check_branch
    %16 = sbr.rel (0) target = $region17
  $region16: #{_lambda_.13} parent=0 // pred_region
    _
  $region17: #{_lambda_.13} parent=0 // pred_fallthru
    _
  %p18 = scmp.eq.s32.totalorder 0, 0
  // Predicated region
  $region18: #{_lambda_.13} parent=0 // pred_check
    %p19 = pneg %p18
  $region19: #{_lambda_.13} parent=0 // pred_check_branch
    %21 = sbr.rel (%p19) target = $region21
  $region20: #{_lambda_.13} parent=0 // pred_region
    %22 = vst [vmem:[#allocation2] sm:$0xff] 0.0
    %23 = vst [vmem:[#allocation2 + $0x8] sm:$0xff] 0.0
    %24 = vst [vmem:[#allocation2 + $0x10] sm:$0xff] 0.0
    %25 = vst [vmem:[#allocation2 + $0x18] sm:$0xff] 0.0
    %26 = vst [vmem:[#allocation2 + $0x20] sm:$0xff] 0.0
    %27 = vst [vmem:[#allocation2 + $0x28] sm:$0xff] 0.0
    %28 = vst [vmem:[#allocation2 + $0x30] sm:$0xff] 0.0
    %29 = vst [vmem:[#allocation2 + $0x38] sm:$0xff] 0.0
    %30 = vst [vmem:[#allocation2 + $0x40] sm:$0xff] 0.0
    %31 = vst [vmem:[#allocation2 + $0x48] sm:$0xff] 0.0
    %32 = vst [vmem:[#allocation2 + $0x50] sm:$0xff] 0.0
    %33 = vst [vmem:[#allocation2 + $0x58] sm:$0xff] 0.0
    %34 = vst [vmem:[#allocation2 + $0x60] sm:$0xff] 0.0
    %35 = vst [vmem:[#allocation2 + $0x68] sm:$0xff] 0.0
    %36 = vst [vmem:[#allocation2 + $0x70] sm:$0xff] 0.0
    %37 = vst [vmem:[#allocation2 + $0x78] sm:$0xff] 0.0
  $region21: #{_lambda_.13} parent=0 // pred_fallthru
    _
  %v38 = vld [vmem:[#allocation2] sm:$0xff]
  %v39 = vld [vmem:[#allocation2 + $0x8] sm:$0xff]
  %v40 = vld [vmem:[#allocation2 + $0x10] sm:$0xff]
  %v41 = vld [vmem:[#allocation2 + $0x18] sm:$0xff]
  %v42 = vld [vmem:[#allocation2 + $0x20] sm:$0xff]
  %v43 = vld [vmem:[#allocation2 + $0x28] sm:$0xff]
  %v44 = vld [vmem:[#allocation2 + $0x30] sm:$0xff]
  %v45 = vld [vmem:[#allocation2 + $0x38] sm:$0xff]
  %v46 = vld [vmem:[#allocation2 + $0x40] sm:$0xff]
  %v47 = vld [vmem:[#allocation2 + $0x48] sm:$0xff]
  %v48 = vld [vmem:[#allocation2 + $0x50] sm:$0xff]
  %v49 = vld [vmem:[#allocation2 + $0x58] sm:$0xff]
  %v50 = vld [vmem:[#allocation2 + $0x60] sm:$0xff]
  %v51 = vld [vmem:[#allocation2 + $0x68] sm:$0xff]
  %v52 = vld [vmem:[#allocation2 + $0x70] sm:$0xff]
  %v53 = vld [vmem:[#allocation2 + $0x78] sm:$0xff]
  %v54 = vld [vmem:[%s0] sm:$0xf]
  %v55 = vld [vmem:[%s0 + $0x4] sm:$0xf]
  %v56 = vld [vmem:[%s0 + $0x8] sm:$0xf]
  %v57 = vld [vmem:[%s0 + $0xc] sm:$0xf]
  %v58 = vld [vmem:[%s0 + $0x10] sm:$0xf]
  %v59 = vld [vmem:[%s0 + $0x14] sm:$0xf]
  %v60 = vld [vmem:[%s0 + $0x18] sm:$0xf]
  %v61 = vld [vmem:[%s0 + $0x1c] sm:$0xf]
  %v62 = vld [vmem:[%s0 + $0x20] sm:$0xf]
  %v63 = vld [vmem:[%s0 + $0x24] sm:$0xf]
  %v64 = vld [vmem:[%s0 + $0x28] sm:$0xf]
  %v65 = vld [vmem:[%s0 + $0x2c] sm:$0xf]
  %v66 = vld [vmem:[%s0 + $0x30] sm:$0xf]
  %v67 = vld [vmem:[%s0 + $0x34] sm:$0xf]
  %v68 = vld [vmem:[%s0 + $0x38] sm:$0xf]
  %v69 = vld [vmem:[%s0 + $0x3c] sm:$0xf]
  %v70 = vld [vmem:[%s1] sm:$0xf]
  %v71 = vld [vmem:[%s1 + $0x4] sm:$0xf]
  %v72 = vld [vmem:[%s1 + $0x8] sm:$0xf]
  %v73 = vld [vmem:[%s1 + $0xc] sm:$0xf]
  %v74 = vld [vmem:[%s1 + $0x10] sm:$0xf]
  %v75 = vld [vmem:[%s1 + $0x14] sm:$0xf]
  %v76 = vld [vmem:[%s1 + $0x18] sm:$0xf]
  %v77 = vld [vmem:[%s1 + $0x1c] sm:$0xf]
  %v78 = vld [vmem:[%s1 + $0x20] sm:$0xf]
  %v95 = vunpack.c.l.b16 %v54
  %v96 = vunpack.c.l.b16 %v55
  %v97 = vunpack.c.l.b16 %v56
  %v98 = vunpack.c.l.b16 %v57
  %v99 = vunpack.c.l.b16 %v58
  %v100 = vunpack.c.l.b16 %v59
  %v101 = vunpack.c.l.b16 %v60
  %v102 = vunpack.c.l.b16 %v61
  %v103 = vunpack.c.l.b16 %v62
  %v104 = vunpack.c.l.b16 %v63
  %v105 = vunpack.c.l.b16 %v64
  %v106 = vunpack.c.l.b16 %v65
  %v107 = vunpack.c.l.b16 %v66
  %v108 = vunpack.c.l.b16 %v67
  %v109 = vunpack.c.l.b16 %v68
  %v110 = vunpack.c.l.b16 %v69
  %v111 = vpack.c.b16 %v96, %v95
  %v112 = vpack.c.b16 %v98, %v97
  %v113 = vpack.c.b16 %v100, %v99
  %v114 = vpack.c.b16 %v102, %v101
  %v115 = vpack.c.b16 %v104, %v103
  %v116 = vpack.c.b16 %v106, %v105
  %v117 = vpack.c.b16 %v108, %v107
  %v118 = vpack.c.b16 %v110, %v109
  %v128 = vunpack.c.l.b16 %v70
  %v129 = vunpack.c.l.b16 %v71
  %v130 = vunpack.c.l.b16 %v72
  %v131 = vunpack.c.l.b16 %v73
  %v132 = vunpack.c.l.b16 %v74
  %v133 = vunpack.c.l.b16 %v75
  %v134 = vunpack.c.l.b16 %v76
  %v135 = vunpack.c.l.b16 %v77
  %v136 = vunpack.c.l.b16 %v78
  %v137 = vpack.c.b16 %v129, %v128
  %v138 = vpack.c.b16 %v131, %v130
  %v139 = vpack.c.b16 %v133, %v132
  %v140 = vpack.c.b16 %v135, %v134
  %v141 = vpack.c.b16 %v136, %v136
  %vm146 = vcmask 588800
  %v148 = vsel %vm146, %v111, 0
  %v151 = vsel %vm146, %v112, 0
  %v154 = vsel %vm146, %v113, 0
  %v157 = vsel %vm146, %v114, 0
  %v160 = vsel %vm146, %v115, 0
  %v163 = vsel %vm146, %v116, 0
  %v166 = vsel %vm146, %v117, 0
  %v169 = vsel %vm146, %v118, 0
  %vm171 = vcmask 1043456
  %v173 = vsel %vm171, %v141, 0
  %175 = vmatpush.bf16.msra.mxu0 0
  %176 = vmatpush.bf16.msra.mxu0 0
  %177 = vmatpush.bf16.msra.mxu0 0
  %178 = vmatpush.bf16.msra.mxu0 %v173
  %179 = vmatpush.bf16.msra.mxu0 %v140
  %180 = vmatpush.bf16.msra.mxu0 %v139
  %181 = vmatpush.bf16.msra.mxu0 %v138
  %182 = vmatpush.bf16.msra.mxu0 %v137
  %183 = vmatmul.bf16.gmra.mxu0 %v148
  %v184 = vpop.f32.mrf.mxu0
  %v185 = vadd.f32 0.0, %v184
  %v186 = vpop.f32.mrf.mxu0
  %v187 = vadd.f32 0.0, %v186
  %188 = vmatmul.bf16.gmra.mxu0 %v151
  %v189 = vpop.f32.mrf.mxu0
  %v190 = vadd.f32 0.0, %v189
  %v191 = vpop.f32.mrf.mxu0
  %v192 = vadd.f32 0.0, %v191
  %193 = vmatmul.bf16.gmra.mxu0 %v154
  %v194 = vpop.f32.mrf.mxu0
  %v195 = vadd.f32 0.0, %v194
  %v196 = vpop.f32.mrf.mxu0
  %v197 = vadd.f32 0.0, %v196
  %198 = vmatmul.bf16.gmra.mxu0 %v157
  %v199 = vpop.f32.mrf.mxu0
  %v200 = vadd.f32 0.0, %v199
  %v201 = vpop.f32.mrf.mxu0
  %v202 = vadd.f32 0.0, %v201
  %203 = vmatmul.bf16.gmra.mxu0 %v160
  %v204 = vpop.f32.mrf.mxu0
  %v205 = vadd.f32 0.0, %v204
  %v206 = vpop.f32.mrf.mxu0
  %v207 = vadd.f32 0.0, %v206
  %208 = vmatmul.bf16.gmra.mxu0 %v163
  %v209 = vpop.f32.mrf.mxu0
  %v210 = vadd.f32 0.0, %v209
  %v211 = vpop.f32.mrf.mxu0
  %v212 = vadd.f32 0.0, %v211
  %213 = vmatmul.bf16.gmra.mxu0 %v166
  %v214 = vpop.f32.mrf.mxu0
  %v215 = vadd.f32 0.0, %v214
  %v216 = vpop.f32.mrf.mxu0
  %v217 = vadd.f32 0.0, %v216
  %218 = vmatmul.bf16.gmra.mxu0 %v169
  %v219 = vpop.f32.mrf.mxu0
  %v220 = vadd.f32 0.0, %v219
  %v221 = vpop.f32.mrf.mxu0
  %v222 = vadd.f32 0.0, %v221
  %223 = vdwg.mxu0
  %v224 = vadd.f32 %v38, %v185
  %v225 = vadd.f32 %v39, %v187
  %v226 = vadd.f32 %v40, %v190
  %v227 = vadd.f32 %v41, %v192
  %v228 = vadd.f32 %v42, %v195
  %v229 = vadd.f32 %v43, %v197
  %v230 = vadd.f32 %v44, %v200
  %v231 = vadd.f32 %v45, %v202
  %v232 = vadd.f32 %v46, %v205
  %v233 = vadd.f32 %v47, %v207
  %v234 = vadd.f32 %v48, %v210
  %v235 = vadd.f32 %v49, %v212
  %v236 = vadd.f32 %v50, %v215
  %v237 = vadd.f32 %v51, %v217
  %v238 = vadd.f32 %v52, %v220
  %v239 = vadd.f32 %v53, %v222
  %240 = vst [vmem:[#allocation2] sm:$0xff] %v224
  %241 = vst [vmem:[#allocation2 + $0x8] sm:$0xff] %v225
  %242 = vst [vmem:[#allocation2 + $0x10] sm:$0xff] %v226
  %243 = vst [vmem:[#allocation2 + $0x18] sm:$0xff] %v227
  %244 = vst [vmem:[#allocation2 + $0x20] sm:$0xff] %v228
  %245 = vst [vmem:[#allocation2 + $0x28] sm:$0xff] %v229
  %246 = vst [vmem:[#allocation2 + $0x30] sm:$0xff] %v230
  %247 = vst [vmem:[#allocation2 + $0x38] sm:$0xff] %v231
  %248 = vst [vmem:[#allocation2 + $0x40] sm:$0xff] %v232
  %249 = vst [vmem:[#allocation2 + $0x48] sm:$0xff] %v233
  %250 = vst [vmem:[#allocation2 + $0x50] sm:$0xff] %v234
  %251 = vst [vmem:[#allocation2 + $0x58] sm:$0xff] %v235
  %252 = vst [vmem:[#allocation2 + $0x60] sm:$0xff] %v236
  %253 = vst [vmem:[#allocation2 + $0x68] sm:$0xff] %v237
  %254 = vst [vmem:[#allocation2 + $0x70] sm:$0xff] %v238
  %255 = vst [vmem:[#allocation2 + $0x78] sm:$0xff] %v239
  // Predicated region
  $region22: #{_lambda_.13} parent=0 // pred_check
    %p256 = pneg %p18
  $region23: #{_lambda_.13} parent=0 // pred_check_branch
    %258 = sbr.rel (%p256) target = $region25
  $region24: #{_lambda_.13} parent=0 // pred_region
    %v259 = vld [vmem:[#allocation2] sm:$0xff]
    %v260 = vld [vmem:[#allocation2 + $0x8] sm:$0xff]
    %v261 = vld [vmem:[#allocation2 + $0x10] sm:$0xff]
    %v262 = vld [vmem:[#allocation2 + $0x18] sm:$0xff]
    %v263 = vld [vmem:[#allocation2 + $0x20] sm:$0xff]
    %v264 = vld [vmem:[#allocation2 + $0x28] sm:$0xff]
    %v265 = vld [vmem:[#allocation2 + $0x30] sm:$0xff]
    %v266 = vld [vmem:[#allocation2 + $0x38] sm:$0xff]
    %v267 = vld [vmem:[#allocation2 + $0x40] sm:$0xff]
    %v268 = vld [vmem:[#allocation2 + $0x48] sm:$0xff]
    %v269 = vld [vmem:[#allocation2 + $0x50] sm:$0xff]
    %v270 = vld [vmem:[#allocation2 + $0x58] sm:$0xff]
    %v271 = vld [vmem:[#allocation2 + $0x60] sm:$0xff]
    %v272 = vld [vmem:[#allocation2 + $0x68] sm:$0xff]
    %v273 = vld [vmem:[#allocation2 + $0x70] sm:$0xff]
    %v274 = vld [vmem:[#allocation2 + $0x78] sm:$0xff]
    %v275 = vld [vmem:[%s2] sm:$0x1]
    %v277 = vperm.slane %v275, 0
    %v279 = vmul.f32 %v259, %v277
    %v280 = vmul.f32 %v260, %v277
    %v281 = vmul.f32 %v261, %v277
    %v282 = vmul.f32 %v262, %v277
    %v283 = vmul.f32 %v263, %v277
    %v284 = vmul.f32 %v264, %v277
    %v285 = vmul.f32 %v265, %v277
    %v286 = vmul.f32 %v266, %v277
    %v287 = vmul.f32 %v267, %v277
    %v288 = vmul.f32 %v268, %v277
    %v289 = vmul.f32 %v269, %v277
    %v290 = vmul.f32 %v270, %v277
    %v291 = vmul.f32 %v271, %v277
    %v292 = vmul.f32 %v272, %v277
    %v293 = vmul.f32 %v273, %v277
    %v294 = vmul.f32 %v274, %v277
    %v295 = vld [vmem:[%s3] sm:$0x1]
    %v297 = vperm.slane %v295, 0
    %v299 = vadd.f32 %v279, %v297
    %v300 = vadd.f32 %v280, %v297
    %v301 = vadd.f32 %v281, %v297
    %v302 = vadd.f32 %v282, %v297
    %v303 = vadd.f32 %v283, %v297
    %v304 = vadd.f32 %v284, %v297
    %v305 = vadd.f32 %v285, %v297
    %v306 = vadd.f32 %v286, %v297
    %v307 = vadd.f32 %v287, %v297
    %v308 = vadd.f32 %v288, %v297
    %v309 = vadd.f32 %v289, %v297
    %v310 = vadd.f32 %v290, %v297
    %v311 = vadd.f32 %v291, %v297
    %v312 = vadd.f32 %v292, %v297
    %v313 = vadd.f32 %v293, %v297
    %v314 = vadd.f32 %v294, %v297
    %v315 = vmax.f32 %v299, 0.0
    %v316 = vmax.f32 %v300, 0.0
    %v317 = vmax.f32 %v301, 0.0
    %v318 = vmax.f32 %v302, 0.0
    %v319 = vmax.f32 %v303, 0.0
    %v320 = vmax.f32 %v304, 0.0
    %v321 = vmax.f32 %v305, 0.0
    %v322 = vmax.f32 %v306, 0.0
    %v323 = vmax.f32 %v307, 0.0
    %v324 = vmax.f32 %v308, 0.0
    %v325 = vmax.f32 %v309, 0.0
    %v326 = vmax.f32 %v310, 0.0
    %v327 = vmax.f32 %v311, 0.0
    %v328 = vmax.f32 %v312, 0.0
    %v329 = vmax.f32 %v313, 0.0
    %v330 = vmax.f32 %v314, 0.0
    %v331 = vpack.c.bf16 %v315, %v315
    %v332 = vpack.c.bf16 %v316, %v316
    %v333 = vpack.c.bf16 %v317, %v317
    %v334 = vpack.c.bf16 %v318, %v318
    %v335 = vpack.c.bf16 %v319, %v319
    %v336 = vpack.c.bf16 %v320, %v320
    %v337 = vpack.c.bf16 %v321, %v321
    %v338 = vpack.c.bf16 %v322, %v322
    %v339 = vpack.c.bf16 %v323, %v323
    %v340 = vpack.c.bf16 %v324, %v324
    %v341 = vpack.c.bf16 %v325, %v325
    %v342 = vpack.c.bf16 %v326, %v326
    %v343 = vpack.c.bf16 %v327, %v327
    %v344 = vpack.c.bf16 %v328, %v328
    %v345 = vpack.c.bf16 %v329, %v329
    %v346 = vpack.c.bf16 %v330, %v330
    %347 = vst [vmem:[%s4] sm:$0xf] %v331
    %348 = vst [vmem:[%s4 + $0x4] sm:$0xf] %v332
    %349 = vst [vmem:[%s4 + $0x8] sm:$0xf] %v333
    %350 = vst [vmem:[%s4 + $0xc] sm:$0xf] %v334
    %351 = vst [vmem:[%s4 + $0x10] sm:$0xf] %v335
    %352 = vst [vmem:[%s4 + $0x14] sm:$0xf] %v336
    %353 = vst [vmem:[%s4 + $0x18] sm:$0xf] %v337
    %354 = vst [vmem:[%s4 + $0x1c] sm:$0xf] %v338
    %355 = vst [vmem:[%s4 + $0x20] sm:$0xf] %v339
    %356 = vst [vmem:[%s4 + $0x24] sm:$0xf] %v340
    %357 = vst [vmem:[%s4 + $0x28] sm:$0xf] %v341
    %358 = vst [vmem:[%s4 + $0x2c] sm:$0xf] %v342
    %359 = vst [vmem:[%s4 + $0x30] sm:$0xf] %v343
    %360 = vst [vmem:[%s4 + $0x34] sm:$0xf] %v344
    %361 = vst [vmem:[%s4 + $0x38] sm:$0xf] %v345
    %362 = vst [vmem:[%s4 + $0x3c] sm:$0xf] %v346
  $region25: #{_lambda_.13} parent=0 // pred_fallthru
    _
  // Predicated region
  $region26: #{_lambda_.13} parent=0 // pred_check
    _
  $region27: #{_lambda_.13} parent=0 // pred_check_branch
    %364 = sbr.rel (0) target = $region29
  $region28: #{_lambda_.13} parent=0 // pred_region
    _
  $region29: #{_lambda_.13} parent=0 // pred_fallthru
    _
  // Predicated region
  $region30: #{_lambda_.13} parent=0 // pred_check
    _
  $region31: #{_lambda_.13} parent=0 // pred_check_branch
    %366 = sbr.rel (0) target = $region33
  $region32: #{_lambda_.13} parent=0 // pred_region
    _
  $region33: #{_lambda_.13} parent=0 // pred_fallthru
    _

// kernel: _lambda_.17
$region0: #{_lambda_.17}
  #allocation0 [shape = 'u32[]', space=smem, size = 0x4, offset = 0x4, fixed_abs, tag = 'smem constant byte address 0x4 - core index']
  #allocation1 [shape = 'u32[72,128]{1,0:T(1,128)}', space=vmem, size = 0x9000, scoped, tag = 'internal scratch']
  #allocation2 [shape = 'f32[32,128]{1,0:T(8,128)}', space=vmem, size = 0x4000, scoped, tag = 'scratch operand']
  %s0 = inlined_call_operand.vmem [shape: bf16[32,16], index: 0, kind: input, shape index: {}]
  %s1 = inlined_call_operand.vmem [shape: bf16[16,128], index: 1, kind: input, shape index: {}]
  %s2 = inlined_call_operand.vmem [shape: f32[1,128], index: 2, kind: input, shape index: {}]
  %s3 = inlined_call_operand.vmem [shape: f32[1,128], index: 3, kind: input, shape index: {}]
  %s4 = inlined_call_operand.vmem [shape: bf16[32,128], index: 4, kind: output, shape index: {}]
  %s5 = sld [smem:[#allocation0]]
  $region34: #{_lambda_.17} parent=0
    _
  %s7 = ssub.s32 1, %s5
  %s8 = scalar_select 0, %s7, %s5
  // Predicated region
  $region2: #{_lambda_.17} parent=0 // pred_check
    _
  $region3: #{_lambda_.17} parent=0 // pred_check_branch
    %10 = sbr.rel (0) target = $region5
  $region4: #{_lambda_.17} parent=0 // pred_region
    _
  $region5: #{_lambda_.17} parent=0 // pred_fallthru
    _
  // Predicated region
  $region6: #{_lambda_.17} parent=0 // pred_check
    _
  $region7: #{_lambda_.17} parent=0 // pred_check_branch
    %12 = sbr.rel (0) target = $region9
  $region8: #{_lambda_.17} parent=0 // pred_region
    _
  $region9: #{_lambda_.17} parent=0 // pred_fallthru
    _
  // Predicated region
  $region10: #{_lambda_.17} parent=0 // pred_check
    _
  $region11: #{_lambda_.17} parent=0 // pred_check_branch
    %14 = sbr.rel (0) target = $region13
  $region12: #{_lambda_.17} parent=0 // pred_region
    _
  $region13: #{_lambda_.17} parent=0 // pred_fallthru
    _
  // Predicated region
  $region14: #{_lambda_.17} parent=0 // pred_check
    _
  $region15: #{_lambda_.17} parent=0 // pred_check_branch
    %16 = sbr.rel (0) target = $region17
  $region16: #{_lambda_.17} parent=0 // pred_region
    _
  $region17: #{_lambda_.17} parent=0 // pred_fallthru
    _
  %p18 = scmp.eq.s32.totalorder 0, 0
  // Predicated region
  $region18: #{_lambda_.17} parent=0 // pred_check
    %p19 = pneg %p18
  $region19: #{_lambda_.17} parent=0 // pred_check_branch
    %21 = sbr.rel (%p19) target = $region21
  $region20: #{_lambda_.17} parent=0 // pred_region
    %22 = vst [vmem:[#allocation2] sm:$0xff] 0.0
    %23 = vst [vmem:[#allocation2 + $0x8] sm:$0xff] 0.0
    %24 = vst [vmem:[#allocation2 + $0x10] sm:$0xff] 0.0
    %25 = vst [vmem:[#allocation2 + $0x18] sm:$0xff] 0.0
  $region21: #{_lambda_.17} parent=0 // pred_fallthru
    _
  %v26 = vld [vmem:[#allocation2] sm:$0xff]
  %v27 = vld [vmem:[#allocation2 + $0x8] sm:$0xff]
  %v28 = vld [vmem:[#allocation2 + $0x10] sm:$0xff]
  %v29 = vld [vmem:[#allocation2 + $0x18] sm:$0xff]
  %v30 = vld [vmem:[%s0] sm:$0xf]
  %v31 = vld [vmem:[%s0 + $0x4] sm:$0xf]
  %v32 = vld [vmem:[%s0 + $0x8] sm:$0xf]
  %v33 = vld [vmem:[%s0 + $0xc] sm:$0xf]
  %v34 = vld [vmem:[%s1] sm:$0xf]
  %v35 = vld [vmem:[%s1 + $0x4] sm:$0xf]
  %v40 = vunpack.c.l.b16 %v30
  %v41 = vunpack.c.l.b16 %v31
  %v42 = vunpack.c.l.b16 %v32
  %v43 = vunpack.c.l.b16 %v33
  %v44 = vpack.c.b16 %v41, %v40
  %v45 = vpack.c.b16 %v43, %v42
  %v48 = vunpack.c.l.b16 %v34
  %v49 = vunpack.c.l.b16 %v35
  %v50 = vpack.c.b16 %v49, %v48
  %vm52 = vcmask 130048
  %v54 = vsel %vm52, %v44, 0
  %v57 = vsel %vm52, %v45, 0
  %59 = vmatpush.bf16.msra.mxu0 0
  %60 = vmatpush.bf16.msra.mxu0 0
  %61 = vmatpush.bf16.msra.mxu0 0
  %62 = vmatpush.bf16.msra.mxu0 0
  %63 = vmatpush.bf16.msra.mxu0 0
  %64 = vmatpush.bf16.msra.mxu0 0
  %65 = vmatpush.bf16.msra.mxu0 0
  %66 = vmatpush.bf16.msra.mxu0 %v50
  %67 = vmatmul.bf16.gmra.mxu0 %v54
  %v68 = vpop.f32.mrf.mxu0
  %v69 = vadd.f32 0.0, %v68
  %v70 = vpop.f32.mrf.mxu0
  %v71 = vadd.f32 0.0, %v70
  %72 = vmatmul.bf16.gmra.mxu0 %v57
  %v73 = vpop.f32.mrf.mxu0
  %v74 = vadd.f32 0.0, %v73
  %v75 = vpop.f32.mrf.mxu0
  %v76 = vadd.f32 0.0, %v75
  %77 = vdwg.mxu0
  %v78 = vadd.f32 %v26, %v69
  %v79 = vadd.f32 %v27, %v71
  %v80 = vadd.f32 %v28, %v74
  %v81 = vadd.f32 %v29, %v76
  %82 = vst [vmem:[#allocation2] sm:$0xff] %v78
  %83 = vst [vmem:[#allocation2 + $0x8] sm:$0xff] %v79
  %84 = vst [vmem:[#allocation2 + $0x10] sm:$0xff] %v80
  %85 = vst [vmem:[#allocation2 + $0x18] sm:$0xff] %v81
  // Predicated region
  $region22: #{_lambda_.17} parent=0 // pred_check
    %p86 = pneg %p18
  $region23: #{_lambda_.17} parent=0 // pred_check_branch
    %88 = sbr.rel (%p86) target = $region25
  $region24: #{_lambda_.17} parent=0 // pred_region
    %v89 = vld [vmem:[#allocation2] sm:$0xff]
    %v90 = vld [vmem:[#allocation2 + $0x8] sm:$0xff]
    %v91 = vld [vmem:[#allocation2 + $0x10] sm:$0xff]
    %v92 = vld [vmem:[#allocation2 + $0x18] sm:$0xff]
    %v93 = vld [vmem:[%s2] sm:$0x1]
    %v95 = vperm.slane %v93, 0
    %v97 = vmul.f32 %v89, %v95
    %v98 = vmul.f32 %v90, %v95
    %v99 = vmul.f32 %v91, %v95
    %v100 = vmul.f32 %v92, %v95
    %v101 = vld [vmem:[%s3] sm:$0x1]
    %v103 = vperm.slane %v101, 0
    %v105 = vadd.f32 %v97, %v103
    %v106 = vadd.f32 %v98, %v103
    %v107 = vadd.f32 %v99, %v103
    %v108 = vadd.f32 %v100, %v103
    %v109 = vpack.c.bf16 %v105, %v105
    %v110 = vpack.c.bf16 %v106, %v106
    %v111 = vpack.c.bf16 %v107, %v107
    %v112 = vpack.c.bf16 %v108, %v108
    %113 = vst [vmem:[%s4] sm:$0xf] %v109
    %114 = vst [vmem:[%s4 + $0x4] sm:$0xf] %v110
    %115 = vst [vmem:[%s4 + $0x8] sm:$0xf] %v111
    %116 = vst [vmem:[%s4 + $0xc] sm:$0xf] %v112
  $region25: #{_lambda_.17} parent=0 // pred_fallthru
    _
  // Predicated region
  $region26: #{_lambda_.17} parent=0 // pred_check
    _
  $region27: #{_lambda_.17} parent=0 // pred_check_branch
    %118 = sbr.rel (0) target = $region29
  $region28: #{_lambda_.17} parent=0 // pred_region
    _
  $region29: #{_lambda_.17} parent=0 // pred_fallthru
    _
  // Predicated region
  $region30: #{_lambda_.17} parent=0 // pred_check
    _
  $region31: #{_lambda_.17} parent=0 // pred_check_branch
    %120 = sbr.rel (0) target = $region33
  $region32: #{_lambda_.17} parent=0 // pred_region
    _
  $region33: #{_lambda_.17} parent=0 // pred_fallthru
    _

// kernel: _lambda_.15
$region0: #{_lambda_.15}
  #allocation0 [shape = 'u32[]', space=smem, size = 0x4, offset = 0x4, fixed_abs, tag = 'smem constant byte address 0x4 - core index']
  #allocation1 [shape = 'u32[72,128]{1,0:T(1,128)}', space=vmem, size = 0x9000, scoped, tag = 'internal scratch']
  #allocation2 [shape = 'f32[128,128]{1,0:T(8,128)}', space=vmem, size = 0x10000, scoped, tag = 'scratch operand']
  %s0 = inlined_call_operand.vmem [shape: bf16[128,144], index: 0, kind: input, shape index: {}]
  %s1 = inlined_call_operand.vmem [shape: bf16[144,128], index: 1, kind: input, shape index: {}]
  %s2 = inlined_call_operand.vmem [shape: f32[1,128], index: 2, kind: input, shape index: {}]
  %s3 = inlined_call_operand.vmem [shape: f32[1,128], index: 3, kind: input, shape index: {}]
  %s4 = inlined_call_operand.vmem [shape: bf16[128,128], index: 4, kind: input, shape index: {}]
  %s5 = inlined_call_operand.vmem [shape: bf16[128,128], index: 5, kind: output, shape index: {}]
  %s6 = sld [smem:[#allocation0]]
  $region38: #{_lambda_.15} parent=0
    _
  %s8 = ssub.s32 1, %s6
  %s9 = scalar_select 0, %s8, %s6
  // Predicated region
  $region2: #{_lambda_.15} parent=0 // pred_check
    _
  $region3: #{_lambda_.15} parent=0 // pred_check_branch
    %11 = sbr.rel (0) target = $region5
  $region4: #{_lambda_.15} parent=0 // pred_region
    _
  $region5: #{_lambda_.15} parent=0 // pred_fallthru
    _
  // Predicated region
  $region6: #{_lambda_.15} parent=0 // pred_check
    _
  $region7: #{_lambda_.15} parent=0 // pred_check_branch
    %13 = sbr.rel (0) target = $region9
  $region8: #{_lambda_.15} parent=0 // pred_region
    _
  $region9: #{_lambda_.15} parent=0 // pred_fallthru
    _
  // Predicated region
  $region10: #{_lambda_.15} parent=0 // pred_check
    _
  $region11: #{_lambda_.15} parent=0 // pred_check_branch
    %15 = sbr.rel (0) target = $region13
  $region12: #{_lambda_.15} parent=0 // pred_region
    _
  $region13: #{_lambda_.15} parent=0 // pred_fallthru
    _
  // Predicated region
  $region14: #{_lambda_.15} parent=0 // pred_check
    _
  $region15: #{_lambda_.15} parent=0 // pred_check_branch
    %17 = sbr.rel (0) target = $region17
  $region16: #{_lambda_.15} parent=0 // pred_region
    _
  $region17: #{_lambda_.15} parent=0 // pred_fallthru
    _
  // Predicated region
  $region18: #{_lambda_.15} parent=0 // pred_check
    _
  $region19: #{_lambda_.15} parent=0 // pred_check_branch
    %19 = sbr.rel (0) target = $region21
  $region20: #{_lambda_.15} parent=0 // pred_region
    _
  $region21: #{_lambda_.15} parent=0 // pred_fallthru
    _
  %p21 = scmp.eq.s32.totalorder 0, 0
  // Predicated region
  $region22: #{_lambda_.15} parent=0 // pred_check
    %p22 = pneg %p21
  $region23: #{_lambda_.15} parent=0 // pred_check_branch
    %24 = sbr.rel (%p22) target = $region25
  $region24: #{_lambda_.15} parent=0 // pred_region
    %25 = vst [vmem:[#allocation2] sm:$0xff] 0.0
    %26 = vst [vmem:[#allocation2 + $0x8] sm:$0xff] 0.0
    %27 = vst [vmem:[#allocation2 + $0x10] sm:$0xff] 0.0
    %28 = vst [vmem:[#allocation2 + $0x18] sm:$0xff] 0.0
    %29 = vst [vmem:[#allocation2 + $0x20] sm:$0xff] 0.0
    %30 = vst [vmem:[#allocation2 + $0x28] sm:$0xff] 0.0
    %31 = vst [vmem:[#allocation2 + $0x30] sm:$0xff] 0.0
    %32 = vst [vmem:[#allocation2 + $0x38] sm:$0xff] 0.0
    %33 = vst [vmem:[#allocation2 + $0x40] sm:$0xff] 0.0
    %34 = vst [vmem:[#allocation2 + $0x48] sm:$0xff] 0.0
    %35 = vst [vmem:[#allocation2 + $0x50] sm:$0xff] 0.0
    %36 = vst [vmem:[#allocation2 + $0x58] sm:$0xff] 0.0
    %37 = vst [vmem:[#allocation2 + $0x60] sm:$0xff] 0.0
    %38 = vst [vmem:[#allocation2 + $0x68] sm:$0xff] 0.0
    %39 = vst [vmem:[#allocation2 + $0x70] sm:$0xff] 0.0
    %40 = vst [vmem:[#allocation2 + $0x78] sm:$0xff] 0.0
  $region25: #{_lambda_.15} parent=0 // pred_fallthru
    _
  %v41 = vld [vmem:[#allocation2] sm:$0xff]
  %v42 = vld [vmem:[#allocation2 + $0x8] sm:$0xff]
  %v43 = vld [vmem:[#allocation2 + $0x10] sm:$0xff]
  %v44 = vld [vmem:[#allocation2 + $0x18] sm:$0xff]
  %v45 = vld [vmem:[#allocation2 + $0x20] sm:$0xff]
  %v46 = vld [vmem:[#allocation2 + $0x28] sm:$0xff]
  %v47 = vld [vmem:[#allocation2 + $0x30] sm:$0xff]
  %v48 = vld [vmem:[#allocation2 + $0x38] sm:$0xff]
  %v49 = vld [vmem:[#allocation2 + $0x40] sm:$0xff]
  %v50 = vld [vmem:[#allocation2 + $0x48] sm:$0xff]
  %v51 = vld [vmem:[#allocation2 + $0x50] sm:$0xff]
  %v52 = vld [vmem:[#allocation2 + $0x58] sm:$0xff]
  %v53 = vld [vmem:[#allocation2 + $0x60] sm:$0xff]
  %v54 = vld [vmem:[#allocation2 + $0x68] sm:$0xff]
  %v55 = vld [vmem:[#allocation2 + $0x70] sm:$0xff]
  %v56 = vld [vmem:[#allocation2 + $0x78] sm:$0xff]
  %v57 = vld [vmem:[%s0] sm:$0xff]
  %v58 = vld [vmem:[%s0 + $0x8] sm:$0xff]
  %v59 = vld [vmem:[%s0 + $0x10] sm:$0xff]
  %v60 = vld [vmem:[%s0 + $0x18] sm:$0xff]
  %v61 = vld [vmem:[%s0 + $0x20] sm:$0xff]
  %v62 = vld [vmem:[%s0 + $0x28] sm:$0xff]
  %v63 = vld [vmem:[%s0 + $0x30] sm:$0xff]
  %v64 = vld [vmem:[%s0 + $0x38] sm:$0xff]
  %v65 = vld [vmem:[%s0 + $0x40] sm:$0xff]
  %v66 = vld [vmem:[%s0 + $0x48] sm:$0xff]
  %v67 = vld [vmem:[%s0 + $0x50] sm:$0xff]
  %v68 = vld [vmem:[%s0 + $0x58] sm:$0xff]
  %v69 = vld [vmem:[%s0 + $0x60] sm:$0xff]
  %v70 = vld [vmem:[%s0 + $0x68] sm:$0xff]
  %v71 = vld [vmem:[%s0 + $0x70] sm:$0xff]
  %v72 = vld [vmem:[%s0 + $0x78] sm:$0xff]
  %v73 = vld [vmem:[%s1] sm:$0xf]
  %v74 = vld [vmem:[%s1 + $0x4] sm:$0xf]
  %v75 = vld [vmem:[%s1 + $0x8] sm:$0xf]
  %v76 = vld [vmem:[%s1 + $0xc] sm:$0xf]
  %v77 = vld [vmem:[%s1 + $0x10] sm:$0xf]
  %v78 = vld [vmem:[%s1 + $0x14] sm:$0xf]
  %v79 = vld [vmem:[%s1 + $0x18] sm:$0xf]
  %v80 = vld [vmem:[%s1 + $0x1c] sm:$0xf]
  %v81 = vld [vmem:[%s1 + $0x20] sm:$0xf]
  %v82 = vld [vmem:[%s1 + $0x24] sm:$0xf]
  %v83 = vld [vmem:[%s1 + $0x28] sm:$0xf]
  %v84 = vld [vmem:[%s1 + $0x2c] sm:$0xf]
  %v85 = vld [vmem:[%s1 + $0x30] sm:$0xf]
  %v86 = vld [vmem:[%s1 + $0x34] sm:$0xf]
  %v87 = vld [vmem:[%s1 + $0x38] sm:$0xf]
  %v88 = vld [vmem:[%s1 + $0x3c] sm:$0xf]
  %v89 = vld [vmem:[%s1 + $0x40] sm:$0xf]
  %v90 = vld [vmem:[%s1 + $0x44] sm:$0xf]
  %v107 = vunpack.c.l.b16 %v57
  %v108 = vunpack.c.h.b16 %v57
  %v109 = vunpack.c.l.b16 %v58
  %v110 = vunpack.c.h.b16 %v58
  %v111 = vunpack.c.l.b16 %v59
  %v112 = vunpack.c.h.b16 %v59
  %v113 = vunpack.c.l.b16 %v60
  %v114 = vunpack.c.h.b16 %v60
  %v115 = vunpack.c.l.b16 %v61
  %v116 = vunpack.c.h.b16 %v61
  %v117 = vunpack.c.l.b16 %v62
  %v118 = vunpack.c.h.b16 %v62
  %v119 = vunpack.c.l.b16 %v63
  %v120 = vunpack.c.h.b16 %v63
  %v121 = vunpack.c.l.b16 %v64
  %v122 = vunpack.c.h.b16 %v64
  %v123 = vunpack.c.l.b16 %v65
  %v124 = vunpack.c.h.b16 %v65
  %v125 = vunpack.c.l.b16 %v66
  %v126 = vunpack.c.h.b16 %v66
  %v127 = vunpack.c.l.b16 %v67
  %v128 = vunpack.c.h.b16 %v67
  %v129 = vunpack.c.l.b16 %v68
  %v130 = vunpack.c.h.b16 %v68
  %v131 = vunpack.c.l.b16 %v69
  %v132 = vunpack.c.h.b16 %v69
  %v133 = vunpack.c.l.b16 %v70
  %v134 = vunpack.c.h.b16 %v70
  %v135 = vunpack.c.l.b16 %v71
  %v136 = vunpack.c.h.b16 %v71
  %v137 = vunpack.c.l.b16 %v72
  %v138 = vunpack.c.h.b16 %v72
  %v139 = vpack.c.b16 %v109, %v107
  %v140 = vpack.c.b16 %v110, %v108
  %v141 = vpack.c.b16 %v113, %v111
  %v142 = vpack.c.b16 %v114, %v112
  %v143 = vpack.c.b16 %v117, %v115
  %v144 = vpack.c.b16 %v118, %v116
  %v145 = vpack.c.b16 %v121, %v119
  %v146 = vpack.c.b16 %v122, %v120
  %v147 = vpack.c.b16 %v125, %v123
  %v148 = vpack.c.b16 %v126, %v124
  %v149 = vpack.c.b16 %v129, %v127
  %v150 = vpack.c.b16 %v130, %v128
  %v151 = vpack.c.b16 %v133, %v131
  %v152 = vpack.c.b16 %v134, %v132
  %v153 = vpack.c.b16 %v137, %v135
  %v154 = vpack.c.b16 %v138, %v136
  %v181 = vunpack.c.l.b16 %v73
  %v182 = vunpack.c.l.b16 %v74
  %v183 = vunpack.c.l.b16 %v75
  %v184 = vunpack.c.l.b16 %v76
  %v185 = vunpack.c.l.b16 %v77
  %v186 = vunpack.c.l.b16 %v78
  %v187 = vunpack.c.l.b16 %v79
  %v188 = vunpack.c.l.b16 %v80
  %v189 = vunpack.c.l.b16 %v81
  %v190 = vunpack.c.l.b16 %v82
  %v191 = vunpack.c.l.b16 %v83
  %v192 = vunpack.c.l.b16 %v84
  %v193 = vunpack.c.l.b16 %v85
  %v194 = vunpack.c.l.b16 %v86
  %v195 = vunpack.c.l.b16 %v87
  %v196 = vunpack.c.l.b16 %v88
  %v197 = vunpack.c.l.b16 %v89
  %v198 = vunpack.c.l.b16 %v90
  %v199 = vpack.c.b16 %v182, %v181
  %v200 = vpack.c.b16 %v184, %v183
  %v201 = vpack.c.b16 %v186, %v185
  %v202 = vpack.c.b16 %v188, %v187
  %v203 = vpack.c.b16 %v190, %v189
  %v204 = vpack.c.b16 %v192, %v191
  %v205 = vpack.c.b16 %v194, %v193
  %v206 = vpack.c.b16 %v196, %v195
  %v207 = vpack.c.b16 %v198, %v197
  %vm217 = vcmask 130048
  %v219 = vsel %vm217, %v140, 0
  %v222 = vsel %vm217, %v142, 0
  %v225 = vsel %vm217, %v144, 0
  %v228 = vsel %vm217, %v146, 0
  %v231 = vsel %vm217, %v148, 0
  %v234 = vsel %vm217, %v150, 0
  %v237 = vsel %vm217, %v152, 0
  %v240 = vsel %vm217, %v154, 0
  %242 = vmatpush.bf16.msra.mxu0 %v206
  %243 = vmatpush.bf16.msra.mxu0 %v205
  %244 = vmatpush.bf16.msra.mxu0 %v204
  %245 = vmatpush.bf16.msra.mxu0 %v203
  %246 = vmatpush.bf16.msra.mxu0 %v202
  %247 = vmatpush.bf16.msra.mxu0 %v201
  %248 = vmatpush.bf16.msra.mxu0 %v200
  %249 = vmatpush.bf16.msra.mxu0 %v199
  %250 = vmatmul.bf16.gmra.mxu0 %v139
  %v251 = vpop.f32.mrf.mxu0
  %v252 = vadd.f32 0.0, %v251
  %v253 = vpop.f32.mrf.mxu0
  %v254 = vadd.f32 0.0, %v253
  %255 = vmatmul.bf16.gmra.mxu0 %v141
  %v256 = vpop.f32.mrf.mxu0
  %v257 = vadd.f32 0.0, %v256
  %v258 = vpop.f32.mrf.mxu0
  %v259 = vadd.f32 0.0, %v258
  %260 = vmatmul.bf16.gmra.mxu0 %v143
  %v261 = vpop.f32.mrf.mxu0
  %v262 = vadd.f32 0.0, %v261
  %v263 = vpop.f32.mrf.mxu0
  %v264 = vadd.f32 0.0, %v263
  %265 = vmatmul.bf16.gmra.mxu0 %v145
  %v266 = vpop.f32.mrf.mxu0
  %v267 = vadd.f32 0.0, %v266
  %v268 = vpop.f32.mrf.mxu0
  %v269 = vadd.f32 0.0, %v268
  %270 = vmatmul.bf16.gmra.mxu0 %v147
  %v271 = vpop.f32.mrf.mxu0
  %v272 = vadd.f32 0.0, %v271
  %v273 = vpop.f32.mrf.mxu0
  %v274 = vadd.f32 0.0, %v273
  %275 = vmatmul.bf16.gmra.mxu0 %v149
  %v276 = vpop.f32.mrf.mxu0
  %v277 = vadd.f32 0.0, %v276
  %v278 = vpop.f32.mrf.mxu0
  %v279 = vadd.f32 0.0, %v278
  %280 = vmatmul.bf16.gmra.mxu0 %v151
  %v281 = vpop.f32.mrf.mxu0
  %v282 = vadd.f32 0.0, %v281
  %v283 = vpop.f32.mrf.mxu0
  %v284 = vadd.f32 0.0, %v283
  %285 = vmatmul.bf16.gmra.mxu0 %v153
  %v286 = vpop.f32.mrf.mxu0
  %v287 = vadd.f32 0.0, %v286
  %v288 = vpop.f32.mrf.mxu0
  %v289 = vadd.f32 0.0, %v288
  %290 = vdwg.mxu0
  %291 = vmatpush.bf16.msra.mxu0 0
  %292 = vmatpush.bf16.msra.mxu0 0
  %293 = vmatpush.bf16.msra.mxu0 0
  %294 = vmatpush.bf16.msra.mxu0 0
  %295 = vmatpush.bf16.msra.mxu0 0
  %296 = vmatpush.bf16.msra.mxu0 0
  %297 = vmatpush.bf16.msra.mxu0 0
  %298 = vmatpush.bf16.msra.mxu0 %v207
  %299 = vmatmul.bf16.gmra.mxu0 %v219
  %v300 = vpop.f32.mrf.mxu0
  %v301 = vadd.f32 %v252, %v300
  %v302 = vpop.f32.mrf.mxu0
  %v303 = vadd.f32 %v254, %v302
  %304 = vmatmul.bf16.gmra.mxu0 %v222
  %v305 = vpop.f32.mrf.mxu0
  %v306 = vadd.f32 %v257, %v305
  %v307 = vpop.f32.mrf.mxu0
  %v308 = vadd.f32 %v259, %v307
  %309 = vmatmul.bf16.gmra.mxu0 %v225
  %v310 = vpop.f32.mrf.mxu0
  %v311 = vadd.f32 %v262, %v310
  %v312 = vpop.f32.mrf.mxu0
  %v313 = vadd.f32 %v264, %v312
  %314 = vmatmul.bf16.gmra.mxu0 %v228
  %v315 = vpop.f32.mrf.mxu0
  %v316 = vadd.f32 %v267, %v315
  %v317 = vpop.f32.mrf.mxu0
  %v318 = vadd.f32 %v269, %v317
  %319 = vmatmul.bf16.gmra.mxu0 %v231
  %v320 = vpop.f32.mrf.mxu0
  %v321 = vadd.f32 %v272, %v320
  %v322 = vpop.f32.mrf.mxu0
  %v323 = vadd.f32 %v274, %v322
  %324 = vmatmul.bf16.gmra.mxu0 %v234
  %v325 = vpop.f32.mrf.mxu0
  %v326 = vadd.f32 %v277, %v325
  %v327 = vpop.f32.mrf.mxu0
  %v328 = vadd.f32 %v279, %v327
  %329 = vmatmul.bf16.gmra.mxu0 %v237
  %v330 = vpop.f32.mrf.mxu0
  %v331 = vadd.f32 %v282, %v330
  %v332 = vpop.f32.mrf.mxu0
  %v333 = vadd.f32 %v284, %v332
  %334 = vmatmul.bf16.gmra.mxu0 %v240
  %v335 = vpop.f32.mrf.mxu0
  %v336 = vadd.f32 %v287, %v335
  %v337 = vpop.f32.mrf.mxu0
  %v338 = vadd.f32 %v289, %v337
  %339 = vdwg.mxu0
  %v340 = vadd.f32 %v41, %v301
  %v341 = vadd.f32 %v42, %v303
  %v342 = vadd.f32 %v43, %v306
  %v343 = vadd.f32 %v44, %v308
  %v344 = vadd.f32 %v45, %v311
  %v345 = vadd.f32 %v46, %v313
  %v346 = vadd.f32 %v47, %v316
  %v347 = vadd.f32 %v48, %v318
  %v348 = vadd.f32 %v49, %v321
  %v349 = vadd.f32 %v50, %v323
  %v350 = vadd.f32 %v51, %v326
  %v351 = vadd.f32 %v52, %v328
  %v352 = vadd.f32 %v53, %v331
  %v353 = vadd.f32 %v54, %v333
  %v354 = vadd.f32 %v55, %v336
  %v355 = vadd.f32 %v56, %v338
  %356 = vst [vmem:[#allocation2] sm:$0xff] %v340
  %357 = vst [vmem:[#allocation2 + $0x8] sm:$0xff] %v341
  %358 = vst [vmem:[#allocation2 + $0x10] sm:$0xff] %v342
  %359 = vst [vmem:[#allocation2 + $0x18] sm:$0xff] %v343
  %360 = vst [vmem:[#allocation2 + $0x20] sm:$0xff] %v344
  %361 = vst [vmem:[#allocation2 + $0x28] sm:$0xff] %v345
  %362 = vst [vmem:[#allocation2 + $0x30] sm:$0xff] %v346
  %363 = vst [vmem:[#allocation2 + $0x38] sm:$0xff] %v347
  %364 = vst [vmem:[#allocation2 + $0x40] sm:$0xff] %v348
  %365 = vst [vmem:[#allocation2 + $0x48] sm:$0xff] %v349
  %366 = vst [vmem:[#allocation2 + $0x50] sm:$0xff] %v350
  %367 = vst [vmem:[#allocation2 + $0x58] sm:$0xff] %v351
  %368 = vst [vmem:[#allocation2 + $0x60] sm:$0xff] %v352
  %369 = vst [vmem:[#allocation2 + $0x68] sm:$0xff] %v353
  %370 = vst [vmem:[#allocation2 + $0x70] sm:$0xff] %v354
  %371 = vst [vmem:[#allocation2 + $0x78] sm:$0xff] %v355
  // Predicated region
  $region26: #{_lambda_.15} parent=0 // pred_check
    %p372 = pneg %p21
  $region27: #{_lambda_.15} parent=0 // pred_check_branch
    %374 = sbr.rel (%p372) target = $region29
  $region28: #{_lambda_.15} parent=0 // pred_region
    %v375 = vld [vmem:[#allocation2] sm:$0xff]
    %v376 = vld [vmem:[#allocation2 + $0x8] sm:$0xff]
    %v377 = vld [vmem:[#allocation2 + $0x10] sm:$0xff]
    %v378 = vld [vmem:[#allocation2 + $0x18] sm:$0xff]
    %v379 = vld [vmem:[#allocation2 + $0x20] sm:$0xff]
    %v380 = vld [vmem:[#allocation2 + $0x28] sm:$0xff]
    %v381 = vld [vmem:[#allocation2 + $0x30] sm:$0xff]
    %v382 = vld [vmem:[#allocation2 + $0x38] sm:$0xff]
    %v383 = vld [vmem:[#allocation2 + $0x40] sm:$0xff]
    %v384 = vld [vmem:[#allocation2 + $0x48] sm:$0xff]
    %v385 = vld [vmem:[#allocation2 + $0x50] sm:$0xff]
    %v386 = vld [vmem:[#allocation2 + $0x58] sm:$0xff]
    %v387 = vld [vmem:[#allocation2 + $0x60] sm:$0xff]
    %v388 = vld [vmem:[#allocation2 + $0x68] sm:$0xff]
    %v389 = vld [vmem:[#allocation2 + $0x70] sm:$0xff]
    %v390 = vld [vmem:[#allocation2 + $0x78] sm:$0xff]
    %v391 = vld [vmem:[%s2] sm:$0x1]
    %v393 = vperm.slane %v391, 0
    %v395 = vmul.f32 %v375, %v393
    %v396 = vmul.f32 %v376, %v393
    %v397 = vmul.f32 %v377, %v393
    %v398 = vmul.f32 %v378, %v393
    %v399 = vmul.f32 %v379, %v393
    %v400 = vmul.f32 %v380, %v393
    %v401 = vmul.f32 %v381, %v393
    %v402 = vmul.f32 %v382, %v393
    %v403 = vmul.f32 %v383, %v393
    %v404 = vmul.f32 %v384, %v393
    %v405 = vmul.f32 %v385, %v393
    %v406 = vmul.f32 %v386, %v393
    %v407 = vmul.f32 %v387, %v393
    %v408 = vmul.f32 %v388, %v393
    %v409 = vmul.f32 %v389, %v393
    %v410 = vmul.f32 %v390, %v393
    %v411 = vld [vmem:[%s3] sm:$0x1]
    %v413 = vperm.slane %v411, 0
    %v415 = vadd.f32 %v395, %v413
    %v416 = vadd.f32 %v396, %v413
    %v417 = vadd.f32 %v397, %v413
    %v418 = vadd.f32 %v398, %v413
    %v419 = vadd.f32 %v399, %v413
    %v420 = vadd.f32 %v400, %v413
    %v421 = vadd.f32 %v401, %v413
    %v422 = vadd.f32 %v402, %v413
    %v423 = vadd.f32 %v403, %v413
    %v424 = vadd.f32 %v404, %v413
    %v425 = vadd.f32 %v405, %v413
    %v426 = vadd.f32 %v406, %v413
    %v427 = vadd.f32 %v407, %v413
    %v428 = vadd.f32 %v408, %v413
    %v429 = vadd.f32 %v409, %v413
    %v430 = vadd.f32 %v410, %v413
    %v431 = vld [vmem:[%s4] sm:$0xf]
    %v432 = vld [vmem:[%s4 + $0x4] sm:$0xf]
    %v433 = vld [vmem:[%s4 + $0x8] sm:$0xf]
    %v434 = vld [vmem:[%s4 + $0xc] sm:$0xf]
    %v435 = vld [vmem:[%s4 + $0x10] sm:$0xf]
    %v436 = vld [vmem:[%s4 + $0x14] sm:$0xf]
    %v437 = vld [vmem:[%s4 + $0x18] sm:$0xf]
    %v438 = vld [vmem:[%s4 + $0x1c] sm:$0xf]
    %v439 = vld [vmem:[%s4 + $0x20] sm:$0xf]
    %v440 = vld [vmem:[%s4 + $0x24] sm:$0xf]
    %v441 = vld [vmem:[%s4 + $0x28] sm:$0xf]
    %v442 = vld [vmem:[%s4 + $0x2c] sm:$0xf]
    %v443 = vld [vmem:[%s4 + $0x30] sm:$0xf]
    %v444 = vld [vmem:[%s4 + $0x34] sm:$0xf]
    %v445 = vld [vmem:[%s4 + $0x38] sm:$0xf]
    %v446 = vld [vmem:[%s4 + $0x3c] sm:$0xf]
    %v447 = vunpack.c.l.bf16 %v431
    %v448 = vunpack.c.l.bf16 %v432
    %v449 = vunpack.c.l.bf16 %v433
    %v450 = vunpack.c.l.bf16 %v434
    %v451 = vunpack.c.l.bf16 %v435
    %v452 = vunpack.c.l.bf16 %v436
    %v453 = vunpack.c.l.bf16 %v437
    %v454 = vunpack.c.l.bf16 %v438
    %v455 = vunpack.c.l.bf16 %v439
    %v456 = vunpack.c.l.bf16 %v440
    %v457 = vunpack.c.l.bf16 %v441
    %v458 = vunpack.c.l.bf16 %v442
    %v459 = vunpack.c.l.bf16 %v443
    %v460 = vunpack.c.l.bf16 %v444
    %v461 = vunpack.c.l.bf16 %v445
    %v462 = vunpack.c.l.bf16 %v446
    %v463 = vadd.f32 %v415, %v447
    %v464 = vadd.f32 %v416, %v448
    %v465 = vadd.f32 %v417, %v449
    %v466 = vadd.f32 %v418, %v450
    %v467 = vadd.f32 %v419, %v451
    %v468 = vadd.f32 %v420, %v452
    %v469 = vadd.f32 %v421, %v453
    %v470 = vadd.f32 %v422, %v454
    %v471 = vadd.f32 %v423, %v455
    %v472 = vadd.f32 %v424, %v456
    %v473 = vadd.f32 %v425, %v457
    %v474 = vadd.f32 %v426, %v458
    %v475 = vadd.f32 %v427, %v459
    %v476 = vadd.f32 %v428, %v460
    %v477 = vadd.f32 %v429, %v461
    %v478 = vadd.f32 %v430, %v462
    %v479 = vmax.f32 %v463, 0.0
    %v480 = vmax.f32 %v464, 0.0
    %v481 = vmax.f32 %v465, 0.0
    %v482 = vmax.f32 %v466, 0.0
    %v483 = vmax.f32 %v467, 0.0
    %v484 = vmax.f32 %v468, 0.0
    %v485 = vmax.f32 %v469, 0.0
    %v486 = vmax.f32 %v470, 0.0
    %v487 = vmax.f32 %v471, 0.0
    %v488 = vmax.f32 %v472, 0.0
    %v489 = vmax.f32 %v473, 0.0
    %v490 = vmax.f32 %v474, 0.0
    %v491 = vmax.f32 %v475, 0.0
    %v492 = vmax.f32 %v476, 0.0
    %v493 = vmax.f32 %v477, 0.0
    %v494 = vmax.f32 %v478, 0.0
    %v495 = vpack.c.bf16 %v479, %v479
    %v496 = vpack.c.bf16 %v480, %v480
    %v497 = vpack.c.bf16 %v481, %v481
    %v498 = vpack.c.bf16 %v482, %v482
    %v499 = vpack.c.bf16 %v483, %v483
    %v500 = vpack.c.bf16 %v484, %v484
    %v501 = vpack.c.bf16 %v485, %v485
    %v502 = vpack.c.bf16 %v486, %v486
    %v503 = vpack.c.bf16 %v487, %v487
    %v504 = vpack.c.bf16 %v488, %v488
    %v505 = vpack.c.bf16 %v489, %v489
    %v506 = vpack.c.bf16 %v490, %v490
    %v507 = vpack.c.bf16 %v491, %v491
    %v508 = vpack.c.bf16 %v492, %v492
    %v509 = vpack.c.bf16 %v493, %v493
    %v510 = vpack.c.bf16 %v494, %v494
    %511 = vst [vmem:[%s5] sm:$0xf] %v495
    %512 = vst [vmem:[%s5 + $0x4] sm:$0xf] %v496
    %513 = vst [vmem:[%s5 + $0x8] sm:$0xf] %v497
    %514 = vst [vmem:[%s5 + $0xc] sm:$0xf] %v498
    %515 = vst [vmem:[%s5 + $0x10] sm:$0xf] %v499
    %516 = vst [vmem:[%s5 + $0x14] sm:$0xf] %v500
    %517 = vst [vmem:[%s5 + $0x18] sm:$0xf] %v501
    %518 = vst [vmem:[%s5 + $0x1c] sm:$0xf] %v502
    %519 = vst [vmem:[%s5 + $0x20] sm:$0xf] %v503
    %520 = vst [vmem:[%s5 + $0x24] sm:$0xf] %v504
    %521 = vst [vmem:[%s5 + $0x28] sm:$0xf] %v505
    %522 = vst [vmem:[%s5 + $0x2c] sm:$0xf] %v506
    %523 = vst [vmem:[%s5 + $0x30] sm:$0xf] %v507
    %524 = vst [vmem:[%s5 + $0x34] sm:$0xf] %v508
    %525 = vst [vmem:[%s5 + $0x38] sm:$0xf] %v509
    %526 = vst [vmem:[%s5 + $0x3c] sm:$0xf] %v510
  $region29: #{_lambda_.15} parent=0 // pred_fallthru
    _
  // Predicated region
  $region30: #{_lambda_.15} parent=0 // pred_check
    _
  $region31: #{_lambda_.15} parent=0 // pred_check_branch
    %528 = sbr.rel (0) target = $region33
  $region32: #{_lambda_.15} parent=0 // pred_region
    _
  $region33: #{_lambda_.15} parent=0 // pred_fallthru
    _
  // Predicated region
  $region34: #{_lambda_.15} parent=0 // pred_check
    _
  $region35: #{_lambda_.15} parent=0 // pred_check_branch
    %530 = sbr.rel (0) target = $region37
  $region36: #{_lambda_.15} parent=0 // pred_region
    _
  $region37: #{_lambda_.15} parent=0 // pred_fallthru
    _

// kernel: _lambda_.16
$region0: #{_lambda_.16}
  #allocation0 [shape = 'u32[]', space=smem, size = 0x4, offset = 0x4, fixed_abs, tag = 'smem constant byte address 0x4 - core index']
  #allocation1 [shape = 'u32[72,128]{1,0:T(1,128)}', space=vmem, size = 0x9000, scoped, tag = 'internal scratch']
  #allocation2 [shape = 'f32[32,128]{1,0:T(8,128)}', space=vmem, size = 0x4000, scoped, tag = 'scratch operand']
  %s0 = inlined_call_operand.vmem [shape: bf16[32,144], index: 0, kind: input, shape index: {}]
  %s1 = inlined_call_operand.vmem [shape: bf16[144,128], index: 1, kind: input, shape index: {}]
  %s2 = inlined_call_operand.vmem [shape: f32[1,128], index: 2, kind: input, shape index: {}]
  %s3 = inlined_call_operand.vmem [shape: f32[1,128], index: 3, kind: input, shape index: {}]
  %s4 = inlined_call_operand.vmem [shape: bf16[32,128], index: 4, kind: output, shape index: {}]
  %s5 = sld [smem:[#allocation0]]
  $region34: #{_lambda_.16} parent=0
    _
  %s7 = ssub.s32 1, %s5
  %s8 = scalar_select 0, %s7, %s5
  // Predicated region
  $region2: #{_lambda_.16} parent=0 // pred_check
    _
  $region3: #{_lambda_.16} parent=0 // pred_check_branch
    %10 = sbr.rel (0) target = $region5
  $region4: #{_lambda_.16} parent=0 // pred_region
    _
  $region5: #{_lambda_.16} parent=0 // pred_fallthru
    _
  // Predicated region
  $region6: #{_lambda_.16} parent=0 // pred_check
    _
  $region7: #{_lambda_.16} parent=0 // pred_check_branch
    %12 = sbr.rel (0) target = $region9
  $region8: #{_lambda_.16} parent=0 // pred_region
    _
  $region9: #{_lambda_.16} parent=0 // pred_fallthru
    _
  // Predicated region
  $region10: #{_lambda_.16} parent=0 // pred_check
    _
  $region11: #{_lambda_.16} parent=0 // pred_check_branch
    %14 = sbr.rel (0) target = $region13
  $region12: #{_lambda_.16} parent=0 // pred_region
    _
  $region13: #{_lambda_.16} parent=0 // pred_fallthru
    _
  // Predicated region
  $region14: #{_lambda_.16} parent=0 // pred_check
    _
  $region15: #{_lambda_.16} parent=0 // pred_check_branch
    %16 = sbr.rel (0) target = $region17
  $region16: #{_lambda_.16} parent=0 // pred_region
    _
  $region17: #{_lambda_.16} parent=0 // pred_fallthru
    _
  %p18 = scmp.eq.s32.totalorder 0, 0
  // Predicated region
  $region18: #{_lambda_.16} parent=0 // pred_check
    %p19 = pneg %p18
  $region19: #{_lambda_.16} parent=0 // pred_check_branch
    %21 = sbr.rel (%p19) target = $region21
  $region20: #{_lambda_.16} parent=0 // pred_region
    %22 = vst [vmem:[#allocation2] sm:$0xff] 0.0
    %23 = vst [vmem:[#allocation2 + $0x8] sm:$0xff] 0.0
    %24 = vst [vmem:[#allocation2 + $0x10] sm:$0xff] 0.0
    %25 = vst [vmem:[#allocation2 + $0x18] sm:$0xff] 0.0
  $region21: #{_lambda_.16} parent=0 // pred_fallthru
    _
  %v26 = vld [vmem:[#allocation2] sm:$0xff]
  %v27 = vld [vmem:[#allocation2 + $0x8] sm:$0xff]
  %v28 = vld [vmem:[#allocation2 + $0x10] sm:$0xff]
  %v29 = vld [vmem:[#allocation2 + $0x18] sm:$0xff]
  %v30 = vld [vmem:[%s0] sm:$0xff]
  %v31 = vld [vmem:[%s0 + $0x8] sm:$0xff]
  %v32 = vld [vmem:[%s0 + $0x10] sm:$0xff]
  %v33 = vld [vmem:[%s0 + $0x18] sm:$0xff]
  %v34 = vld [vmem:[%s1] sm:$0xf]
  %v35 = vld [vmem:[%s1 + $0x4] sm:$0xf]
  %v36 = vld [vmem:[%s1 + $0x8] sm:$0xf]
  %v37 = vld [vmem:[%s1 + $0xc] sm:$0xf]
  %v38 = vld [vmem:[%s1 + $0x10] sm:$0xf]
  %v39 = vld [vmem:[%s1 + $0x14] sm:$0xf]
  %v40 = vld [vmem:[%s1 + $0x18] sm:$0xf]
  %v41 = vld [vmem:[%s1 + $0x1c] sm:$0xf]
  %v42 = vld [vmem:[%s1 + $0x20] sm:$0xf]
  %v43 = vld [vmem:[%s1 + $0x24] sm:$0xf]
  %v44 = vld [vmem:[%s1 + $0x28] sm:$0xf]
  %v45 = vld [vmem:[%s1 + $0x2c] sm:$0xf]
  %v46 = vld [vmem:[%s1 + $0x30] sm:$0xf]
  %v47 = vld [vmem:[%s1 + $0x34] sm:$0xf]
  %v48 = vld [vmem:[%s1 + $0x38] sm:$0xf]
  %v49 = vld [vmem:[%s1 + $0x3c] sm:$0xf]
  %v50 = vld [vmem:[%s1 + $0x40] sm:$0xf]
  %v51 = vld [vmem:[%s1 + $0x44] sm:$0xf]
  %v56 = vunpack.c.l.b16 %v30
  %v57 = vunpack.c.h.b16 %v30
  %v58 = vunpack.c.l.b16 %v31
  %v59 = vunpack.c.h.b16 %v31
  %v60 = vunpack.c.l.b16 %v32
  %v61 = vunpack.c.h.b16 %v32
  %v62 = vunpack.c.l.b16 %v33
  %v63 = vunpack.c.h.b16 %v33
  %v64 = vpack.c.b16 %v58, %v56
  %v65 = vpack.c.b16 %v59, %v57
  %v66 = vpack.c.b16 %v62, %v60
  %v67 = vpack.c.b16 %v63, %v61
  %v88 = vunpack.c.l.b16 %v34
  %v89 = vunpack.c.l.b16 %v35
  %v90 = vunpack.c.l.b16 %v36
  %v91 = vunpack.c.l.b16 %v37
  %v92 = vunpack.c.l.b16 %v38
  %v93 = vunpack.c.l.b16 %v39
  %v94 = vunpack.c.l.b16 %v40
  %v95 = vunpack.c.l.b16 %v41
  %v96 = vunpack.c.l.b16 %v42
  %v97 = vunpack.c.l.b16 %v43
  %v98 = vunpack.c.l.b16 %v44
  %v99 = vunpack.c.l.b16 %v45
  %v100 = vunpack.c.l.b16 %v46
  %v101 = vunpack.c.l.b16 %v47
  %v102 = vunpack.c.l.b16 %v48
  %v103 = vunpack.c.l.b16 %v49
  %v104 = vunpack.c.l.b16 %v50
  %v105 = vunpack.c.l.b16 %v51
  %v106 = vpack.c.b16 %v89, %v88
  %v107 = vpack.c.b16 %v91, %v90
  %v108 = vpack.c.b16 %v93, %v92
  %v109 = vpack.c.b16 %v95, %v94
  %v110 = vpack.c.b16 %v97, %v96
  %v111 = vpack.c.b16 %v99, %v98
  %v112 = vpack.c.b16 %v101, %v100
  %v113 = vpack.c.b16 %v103, %v102
  %v114 = vpack.c.b16 %v105, %v104
  %vm124 = vcmask 130048
  %v126 = vsel %vm124, %v65, 0
  %v129 = vsel %vm124, %v67, 0
  %131 = vmatpush.bf16.msra.mxu0 %v113
  %132 = vmatpush.bf16.msra.mxu0 %v112
  %133 = vmatpush.bf16.msra.mxu0 %v111
  %134 = vmatpush.bf16.msra.mxu0 %v110
  %135 = vmatpush.bf16.msra.mxu0 %v109
  %136 = vmatpush.bf16.msra.mxu0 %v108
  %137 = vmatpush.bf16.msra.mxu0 %v107
  %138 = vmatpush.bf16.msra.mxu0 %v106
  %139 = vmatmul.bf16.gmra.mxu0 %v64
  %v140 = vpop.f32.mrf.mxu0
  %v141 = vadd.f32 0.0, %v140
  %v142 = vpop.f32.mrf.mxu0
  %v143 = vadd.f32 0.0, %v142
  %144 = vmatmul.bf16.gmra.mxu0 %v66
  %v145 = vpop.f32.mrf.mxu0
  %v146 = vadd.f32 0.0, %v145
  %v147 = vpop.f32.mrf.mxu0
  %v148 = vadd.f32 0.0, %v147
  %149 = vdwg.mxu0
  %150 = vmatpush.bf16.msra.mxu0 0
  %151 = vmatpush.bf16.msra.mxu0 0
  %152 = vmatpush.bf16.msra.mxu0 0
  %153 = vmatpush.bf16.msra.mxu0 0
  %154 = vmatpush.bf16.msra.mxu0 0
  %155 = vmatpush.bf16.msra.mxu0 0
  %156 = vmatpush.bf16.msra.mxu0 0
  %157 = vmatpush.bf16.msra.mxu0 %v114
  %158 = vmatmul.bf16.gmra.mxu0 %v126
  %v159 = vpop.f32.mrf.mxu0
  %v160 = vadd.f32 %v141, %v159
  %v161 = vpop.f32.mrf.mxu0
  %v162 = vadd.f32 %v143, %v161
  %163 = vmatmul.bf16.gmra.mxu0 %v129
  %v164 = vpop.f32.mrf.mxu0
  %v165 = vadd.f32 %v146, %v164
  %v166 = vpop.f32.mrf.mxu0
  %v167 = vadd.f32 %v148, %v166
  %168 = vdwg.mxu0
  %v169 = vadd.f32 %v26, %v160
  %v170 = vadd.f32 %v27, %v162
  %v171 = vadd.f32 %v28, %v165
  %v172 = vadd.f32 %v29, %v167
  %173 = vst [vmem:[#allocation2] sm:$0xff] %v169
  %174 = vst [vmem:[#allocation2 + $0x8] sm:$0xff] %v170
  %175 = vst [vmem:[#allocation2 + $0x10] sm:$0xff] %v171
  %176 = vst [vmem:[#allocation2 + $0x18] sm:$0xff] %v172
  // Predicated region
  $region22: #{_lambda_.16} parent=0 // pred_check
    %p177 = pneg %p18
  $region23: #{_lambda_.16} parent=0 // pred_check_branch
    %179 = sbr.rel (%p177) target = $region25
  $region24: #{_lambda_.16} parent=0 // pred_region
    %v180 = vld [vmem:[#allocation2] sm:$0xff]
    %v181 = vld [vmem:[#allocation2 + $0x8] sm:$0xff]
    %v182 = vld [vmem:[#allocation2 + $0x10] sm:$0xff]
    %v183 = vld [vmem:[#allocation2 + $0x18] sm:$0xff]
    %v184 = vld [vmem:[%s2] sm:$0x1]
    %v186 = vperm.slane %v184, 0
    %v188 = vmul.f32 %v180, %v186
    %v189 = vmul.f32 %v181, %v186
    %v190 = vmul.f32 %v182, %v186
    %v191 = vmul.f32 %v183, %v186
    %v192 = vld [vmem:[%s3] sm:$0x1]
    %v194 = vperm.slane %v192, 0
    %v196 = vadd.f32 %v188, %v194
    %v197 = vadd.f32 %v189, %v194
    %v198 = vadd.f32 %v190, %v194
    %v199 = vadd.f32 %v191, %v194
    %v200 = vmax.f32 %v196, 0.0
    %v201 = vmax.f32 %v197, 0.0
    %v202 = vmax.f32 %v198, 0.0
    %v203 = vmax.f32 %v199, 0.0
    %v204 = vpack.c.bf16 %v200, %v200
    %v205 = vpack.c.bf16 %v201, %v201
    %v206 = vpack.c.bf16 %v202, %v202
    %v207 = vpack.c.bf16 %v203, %v203
    %208 = vst [vmem:[%s4] sm:$0xf] %v204
    %209 = vst [vmem:[%s4 + $0x4] sm:$0xf] %v205
    %210 = vst [vmem:[%s4 + $0x8] sm:$0xf] %v206
    %211 = vst [vmem:[%s4 + $0xc] sm:$0xf] %v207
  $region25: #{_lambda_.16} parent=0 // pred_fallthru
    _
  // Predicated region
  $region26: #{_lambda_.16} parent=0 // pred_check
    _
  $region27: #{_lambda_.16} parent=0 // pred_check_branch
    %213 = sbr.rel (0) target = $region29
  $region28: #{_lambda_.16} parent=0 // pred_region
    _
  $region29: #{_lambda_.16} parent=0 // pred_fallthru
    _
  // Predicated region
  $region30: #{_lambda_.16} parent=0 // pred_check
    _
  $region31: #{_lambda_.16} parent=0 // pred_check_branch
    %215 = sbr.rel (0) target = $region33
  $region32: #{_lambda_.16} parent=0 // pred_region
    _
  $region33: #{_lambda_.16} parent=0 // pred_fallthru
    _

// kernel: _lambda_.19
$region0: #{_lambda_.19}
  #allocation0 [shape = 'u32[]', space=smem, size = 0x4, offset = 0x4, fixed_abs, tag = 'smem constant byte address 0x4 - core index']
  #allocation1 [shape = 'u32[72,128]{1,0:T(1,128)}', space=vmem, size = 0x9000, scoped, tag = 'internal scratch']
  %s0 = inlined_call_operand.vmem [shape: bf16[2,16,128], index: 0, kind: input, shape index: {}]
  %s1 = inlined_call_operand.vmem [shape: bf16[128,128], index: 1, kind: input, shape index: {}]
  %s2 = inlined_call_operand.vmem [shape: f32[1,128], index: 2, kind: input, shape index: {}]
  %s3 = inlined_call_operand.hbm [shape: f32[2,128], index: 3, kind: output, shape index: {}]
  %s4 = sld [smem:[#allocation0]]
  $region22: #{_lambda_.19} parent=0
    _
  %s6 = ssub.s32 1, %s4
  %s7 = scalar_select 0, %s6, %s4
  $region1: #{_lambda_.19} parent=0
    #allocation2 [shape = 'u8[1024]{0}', space=vmem, size = 0x400, scoped, tag = 'output window, operand 0, single buffered']
    #allocation3 [shape = 's32[1]{0}', space=sflag, size = 0x4, scoped, tag = 'scoped memory for _lambda_.19']
    %8 = vsyncpa [#allocation3], 0
    // Predicated region
    $region2: #{_lambda_.19} parent=1 // pred_check
      _
    $region3: #{_lambda_.19} parent=1 // pred_check_branch
      %10 = sbr.rel (0) target = $region5
    $region4: #{_lambda_.19} parent=1 // pred_region
      _
    $region5: #{_lambda_.19} parent=1 // pred_fallthru
      _
    // Predicated region
    $region6: #{_lambda_.19} parent=1 // pred_check
      _
    $region7: #{_lambda_.19} parent=1 // pred_check_branch
      %12 = sbr.rel (0) target = $region9
    $region8: #{_lambda_.19} parent=1 // pred_region
      _
    $region9: #{_lambda_.19} parent=1 // pred_fallthru
      _
    // Predicated region
    $region10: #{_lambda_.19} parent=1 // pred_check
      _
    $region11: #{_lambda_.19} parent=1 // pred_check_branch
      %14 = sbr.rel (0) target = $region13
    $region12: #{_lambda_.19} parent=1 // pred_region
      _
    $region13: #{_lambda_.19} parent=1 // pred_fallthru
      _
    %v15 = vld [vmem:[%s0] sm:$0xf]
    %v16 = vld [vmem:[%s0 + $0x4] sm:$0xf]
    %v17 = vld [vmem:[%s0 + $0x8] sm:$0xf]
    %v18 = vld [vmem:[%s0 + $0xc] sm:$0xf]
    %v19 = vunpack.c.l.bf16 %v15
    %v20 = vunpack.c.l.bf16 %v16
    %v21 = vunpack.c.l.bf16 %v17
    %v22 = vunpack.c.l.bf16 %v18
    %v23 = vadd.f32 %v19, %v20
    %v24 = vrot.slane %v23, 4
    %v25 = vadd.f32 %v23, %v24
    %v26 = vrot.slane %v25, 2
    %v27 = vadd.f32 %v25, %v26
    %v28 = vrot.slane %v27, 1
    %v29 = vadd.f32 %v27, %v28
    %v30 = vadd.f32 %v21, %v22
    %v31 = vrot.slane %v30, 4
    %v32 = vadd.f32 %v30, %v31
    %v33 = vrot.slane %v32, 2
    %v34 = vadd.f32 %v32, %v33
    %v35 = vrot.slane %v34, 1
    %v36 = vadd.f32 %v34, %v35
    %v37 = vrcp.pop 16.0
    %v38 = vmul.f32 16.0, %v37
    %v39 = vsub.f32 1.0, %v38
    %v40 = vmul.f32 %v37, %v39
    %v41 = vadd.f32 %v37, %v40
    %vm42 = vweird.f32 %v37
    %v43 = vsel %vm42, %v37, %v41
    %v44 = vmul.f32 %v29, %v43
    %v45 = vmul.f32 %v36, %v43
    %v46 = vpack.c.bf16 %v44, %v44
    %v47 = vpack.c.bf16 %v45, %v45
    %v48 = vld [vmem:[%s1] sm:$0xf]
    %v49 = vld [vmem:[%s1 + $0x4] sm:$0xf]
    %v50 = vld [vmem:[%s1 + $0x8] sm:$0xf]
    %v51 = vld [vmem:[%s1 + $0xc] sm:$0xf]
    %v52 = vld [vmem:[%s1 + $0x10] sm:$0xf]
    %v53 = vld [vmem:[%s1 + $0x14] sm:$0xf]
    %v54 = vld [vmem:[%s1 + $0x18] sm:$0xf]
    %v55 = vld [vmem:[%s1 + $0x1c] sm:$0xf]
    %v56 = vld [vmem:[%s1 + $0x20] sm:$0xf]
    %v57 = vld [vmem:[%s1 + $0x24] sm:$0xf]
    %v58 = vld [vmem:[%s1 + $0x28] sm:$0xf]
    %v59 = vld [vmem:[%s1 + $0x2c] sm:$0xf]
    %v60 = vld [vmem:[%s1 + $0x30] sm:$0xf]
    %v61 = vld [vmem:[%s1 + $0x34] sm:$0xf]
    %v62 = vld [vmem:[%s1 + $0x38] sm:$0xf]
    %v63 = vld [vmem:[%s1 + $0x3c] sm:$0xf]
    %v64 = vld [vmem:[%s2] sm:$0x1]
    %v66 = vperm.slane %v64, 0
    %v70 = vunpack.c.l.b16 %v46
    %v71 = vunpack.c.l.b16 %v47
    %vm72 = vcmask 1041409
    %v73 = vsel %vm72, %v71, %v70
    %v74 = vpack.c.b16 %v73, %v73
    %v92 = vunpack.c.l.b16 %v48
    %v93 = vunpack.c.l.b16 %v49
    %v94 = vunpack.c.l.b16 %v50
    %v95 = vunpack.c.l.b16 %v51
    %v96 = vunpack.c.l.b16 %v52
    %v97 = vunpack.c.l.b16 %v53
    %v98 = vunpack.c.l.b16 %v54
    %v99 = vunpack.c.l.b16 %v55
    %v100 = vunpack.c.l.b16 %v56
    %v101 = vunpack.c.l.b16 %v57
    %v102 = vunpack.c.l.b16 %v58
    %v103 = vunpack.c.l.b16 %v59
    %v104 = vunpack.c.l.b16 %v60
    %v105 = vunpack.c.l.b16 %v61
    %v106 = vunpack.c.l.b16 %v62
    %v107 = vunpack.c.l.b16 %v63
    %v108 = vpack.c.b16 %v93, %v92
    %v109 = vpack.c.b16 %v95, %v94
    %v110 = vpack.c.b16 %v97, %v96
    %v111 = vpack.c.b16 %v99, %v98
    %v112 = vpack.c.b16 %v101, %v100
    %v113 = vpack.c.b16 %v103, %v102
    %v114 = vpack.c.b16 %v105, %v104
    %v115 = vpack.c.b16 %v107, %v106
    %124 = vmatpush.bf16.msra.mxu0 %v115
    %125 = vmatpush.bf16.msra.mxu0 %v114
    %126 = vmatpush.bf16.msra.mxu0 %v113
    %127 = vmatpush.bf16.msra.mxu0 %v112
    %128 = vmatpush.bf16.msra.mxu0 %v111
    %129 = vmatpush.bf16.msra.mxu0 %v110
    %130 = vmatpush.bf16.msra.mxu0 %v109
    %131 = vmatpush.bf16.msra.mxu0 %v108
    %132 = vmatmul.bf16.gmra.mxu0 %v74
    %v133 = vpop.f32.mrf.mxu0
    %v134 = vadd.f32 %v66, %v133
    %v135 = vpop.f32.mrf.mxu0
    %136 = vdwg.mxu0
    %137 = vst [vmem:[#allocation2] sm:$0x3] %v134
    // Predicated region
    $region14: #{_lambda_.19} parent=1 // pred_check
      _
    $region15: #{_lambda_.19} parent=1 // pred_check_branch
      %139 = sbr.rel (0) target = $region17
    $region16: #{_lambda_.19} parent=1 // pred_region
      %141 = vsyncadd [#allocation3], 0
      %s143 = sshll.u32 [#allocation2], 4
      %s144 = int_to_ptr.vmem [resolvable:$true] %s143
      %s145 = sshll.u32 %s3, 4
      %s146 = int_to_ptr.hbm [resolvable:$true] %s145
      %148 = dma.vmem_to_hbm [thread:$0]  %s144, 32, %s146, [#allocation3]
    $region17: #{_lambda_.19} parent=1 // pred_fallthru
      _
    // Predicated region
    $region18: #{_lambda_.19} parent=1 // pred_check
      _
    $region19: #{_lambda_.19} parent=1 // pred_check_branch
      %150 = sbr.rel (0) target = $region21
    $region20: #{_lambda_.19} parent=1 // pred_region
      %152 = dma.done [#allocation3], 32
    $region21: #{_lambda_.19} parent=1 // pred_fallthru
      _
    %153 = vsyncpa [#allocation3], 1

// kernel: _lambda_.18
$region0: #{_lambda_.18}
  #allocation0 [shape = 'u32[]', space=smem, size = 0x4, offset = 0x4, fixed_abs, tag = 'smem constant byte address 0x4 - core index']
  #allocation1 [shape = 'u32[72,128]{1,0:T(1,128)}', space=vmem, size = 0x9000, scoped, tag = 'internal scratch']
  #allocation2 [shape = 'f32[32,128]{1,0:T(8,128)}', space=vmem, size = 0x4000, scoped, tag = 'scratch operand']
  %s0 = inlined_call_operand.vmem [shape: bf16[32,288], index: 0, kind: input, shape index: {}]
  %s1 = inlined_call_operand.vmem [shape: bf16[288,128], index: 1, kind: input, shape index: {}]
  %s2 = inlined_call_operand.vmem [shape: f32[1,128], index: 2, kind: input, shape index: {}]
  %s3 = inlined_call_operand.vmem [shape: f32[1,128], index: 3, kind: input, shape index: {}]
  %s4 = inlined_call_operand.vmem [shape: bf16[32,128], index: 4, kind: input, shape index: {}]
  %s5 = inlined_call_operand.vmem [shape: bf16[32,128], index: 5, kind: output, shape index: {}]
  %s6 = sld [smem:[#allocation0]]
  $region38: #{_lambda_.18} parent=0
    _
  %s8 = ssub.s32 1, %s6
  %s9 = scalar_select 0, %s8, %s6
  // Predicated region
  $region2: #{_lambda_.18} parent=0 // pred_check
    _
  $region3: #{_lambda_.18} parent=0 // pred_check_branch
    %11 = sbr.rel (0) target = $region5
  $region4: #{_lambda_.18} parent=0 // pred_region
    _
  $region5: #{_lambda_.18} parent=0 // pred_fallthru
    _
  // Predicated region
  $region6: #{_lambda_.18} parent=0 // pred_check
    _
  $region7: #{_lambda_.18} parent=0 // pred_check_branch
    %13 = sbr.rel (0) target = $region9
  $region8: #{_lambda_.18} parent=0 // pred_region
    _
  $region9: #{_lambda_.18} parent=0 // pred_fallthru
    _
  // Predicated region
  $region10: #{_lambda_.18} parent=0 // pred_check
    _
  $region11: #{_lambda_.18} parent=0 // pred_check_branch
    %15 = sbr.rel (0) target = $region13
  $region12: #{_lambda_.18} parent=0 // pred_region
    _
  $region13: #{_lambda_.18} parent=0 // pred_fallthru
    _
  // Predicated region
  $region14: #{_lambda_.18} parent=0 // pred_check
    _
  $region15: #{_lambda_.18} parent=0 // pred_check_branch
    %17 = sbr.rel (0) target = $region17
  $region16: #{_lambda_.18} parent=0 // pred_region
    _
  $region17: #{_lambda_.18} parent=0 // pred_fallthru
    _
  // Predicated region
  $region18: #{_lambda_.18} parent=0 // pred_check
    _
  $region19: #{_lambda_.18} parent=0 // pred_check_branch
    %19 = sbr.rel (0) target = $region21
  $region20: #{_lambda_.18} parent=0 // pred_region
    _
  $region21: #{_lambda_.18} parent=0 // pred_fallthru
    _
  %p21 = scmp.eq.s32.totalorder 0, 0
  // Predicated region
  $region22: #{_lambda_.18} parent=0 // pred_check
    %p22 = pneg %p21
  $region23: #{_lambda_.18} parent=0 // pred_check_branch
    %24 = sbr.rel (%p22) target = $region25
  $region24: #{_lambda_.18} parent=0 // pred_region
    %25 = vst [vmem:[#allocation2] sm:$0xff] 0.0
    %26 = vst [vmem:[#allocation2 + $0x8] sm:$0xff] 0.0
    %27 = vst [vmem:[#allocation2 + $0x10] sm:$0xff] 0.0
    %28 = vst [vmem:[#allocation2 + $0x18] sm:$0xff] 0.0
  $region25: #{_lambda_.18} parent=0 // pred_fallthru
    _
  %v29 = vld [vmem:[#allocation2] sm:$0xff]
  %v30 = vld [vmem:[#allocation2 + $0x8] sm:$0xff]
  %v31 = vld [vmem:[#allocation2 + $0x10] sm:$0xff]
  %v32 = vld [vmem:[#allocation2 + $0x18] sm:$0xff]
  %v33 = vld [vmem:[%s0] sm:$0xff]
  %v34 = vld [vmem:[%s0 + $0x8] sm:$0xf]
  %v35 = vld [vmem:[%s0 + $0xc] sm:$0xff]
  %v36 = vld [vmem:[%s0 + $0x14] sm:$0xf]
  %v37 = vld [vmem:[%s0 + $0x18] sm:$0xff]
  %v38 = vld [vmem:[%s0 + $0x20] sm:$0xf]
  %v39 = vld [vmem:[%s0 + $0x24] sm:$0xff]
  %v40 = vld [vmem:[%s0 + $0x2c] sm:$0xf]
  %v41 = vld [vmem:[%s1] sm:$0xf]
  %v42 = vld [vmem:[%s1 + $0x4] sm:$0xf]
  %v43 = vld [vmem:[%s1 + $0x8] sm:$0xf]
  %v44 = vld [vmem:[%s1 + $0xc] sm:$0xf]
  %v45 = vld [vmem:[%s1 + $0x10] sm:$0xf]
  %v46 = vld [vmem:[%s1 + $0x14] sm:$0xf]
  %v47 = vld [vmem:[%s1 + $0x18] sm:$0xf]
  %v48 = vld [vmem:[%s1 + $0x1c] sm:$0xf]
  %v49 = vld [vmem:[%s1 + $0x20] sm:$0xf]
  %v50 = vld [vmem:[%s1 + $0x24] sm:$0xf]
  %v51 = vld [vmem:[%s1 + $0x28] sm:$0xf]
  %v52 = vld [vmem:[%s1 + $0x2c] sm:$0xf]
  %v53 = vld [vmem:[%s1 + $0x30] sm:$0xf]
  %v54 = vld [vmem:[%s1 + $0x34] sm:$0xf]
  %v55 = vld [vmem:[%s1 + $0x38] sm:$0xf]
  %v56 = vld [vmem:[%s1 + $0x3c] sm:$0xf]
  %v57 = vld [vmem:[%s1 + $0x40] sm:$0xf]
  %v58 = vld [vmem:[%s1 + $0x44] sm:$0xf]
  %v59 = vld [vmem:[%s1 + $0x48] sm:$0xf]
  %v60 = vld [vmem:[%s1 + $0x4c] sm:$0xf]
  %v61 = vld [vmem:[%s1 + $0x50] sm:$0xf]
  %v62 = vld [vmem:[%s1 + $0x54] sm:$0xf]
  %v63 = vld [vmem:[%s1 + $0x58] sm:$0xf]
  %v64 = vld [vmem:[%s1 + $0x5c] sm:$0xf]
  %v65 = vld [vmem:[%s1 + $0x60] sm:$0xf]
  %v66 = vld [vmem:[%s1 + $0x64] sm:$0xf]
  %v67 = vld [vmem:[%s1 + $0x68] sm:$0xf]
  %v68 = vld [vmem:[%s1 + $0x6c] sm:$0xf]
  %v69 = vld [vmem:[%s1 + $0x70] sm:$0xf]
  %v70 = vld [vmem:[%s1 + $0x74] sm:$0xf]
  %v71 = vld [vmem:[%s1 + $0x78] sm:$0xf]
  %v72 = vld [vmem:[%s1 + $0x7c] sm:$0xf]
  %v73 = vld [vmem:[%s1 + $0x80] sm:$0xf]
  %v74 = vld [vmem:[%s1 + $0x84] sm:$0xf]
  %v75 = vld [vmem:[%s1 + $0x88] sm:$0xf]
  %v76 = vld [vmem:[%s1 + $0x8c] sm:$0xf]
  %v85 = vunpack.c.l.b16 %v33
  %v86 = vunpack.c.h.b16 %v33
  %v87 = vunpack.c.l.b16 %v34
  %v88 = vunpack.c.l.b16 %v35
  %v89 = vunpack.c.h.b16 %v35
  %v90 = vunpack.c.l.b16 %v36
  %v91 = vunpack.c.l.b16 %v37
  %v92 = vunpack.c.h.b16 %v37
  %v93 = vunpack.c.l.b16 %v38
  %v94 = vunpack.c.l.b16 %v39
  %v95 = vunpack.c.h.b16 %v39
  %v96 = vunpack.c.l.b16 %v40
  %v97 = vpack.c.b16 %v88, %v85
  %v98 = vpack.c.b16 %v89, %v86
  %v99 = vpack.c.b16 %v90, %v87
  %v100 = vpack.c.b16 %v94, %v91
  %v101 = vpack.c.b16 %v95, %v92
  %v102 = vpack.c.b16 %v96, %v93
  %v143 = vunpack.c.l.b16 %v41
  %v144 = vunpack.c.l.b16 %v42
  %v145 = vunpack.c.l.b16 %v43
  %v146 = vunpack.c.l.b16 %v44
  %v147 = vunpack.c.l.b16 %v45
  %v148 = vunpack.c.l.b16 %v46
  %v149 = vunpack.c.l.b16 %v47
  %v150 = vunpack.c.l.b16 %v48
  %v151 = vunpack.c.l.b16 %v49
  %v152 = vunpack.c.l.b16 %v50
  %v153 = vunpack.c.l.b16 %v51
  %v154 = vunpack.c.l.b16 %v52
  %v155 = vunpack.c.l.b16 %v53
  %v156 = vunpack.c.l.b16 %v54
  %v157 = vunpack.c.l.b16 %v55
  %v158 = vunpack.c.l.b16 %v56
  %v159 = vunpack.c.l.b16 %v57
  %v160 = vunpack.c.l.b16 %v58
  %v161 = vunpack.c.l.b16 %v59
  %v162 = vunpack.c.l.b16 %v60
  %v163 = vunpack.c.l.b16 %v61
  %v164 = vunpack.c.l.b16 %v62
  %v165 = vunpack.c.l.b16 %v63
  %v166 = vunpack.c.l.b16 %v64
  %v167 = vunpack.c.l.b16 %v65
  %v168 = vunpack.c.l.b16 %v66
  %v169 = vunpack.c.l.b16 %v67
  %v170 = vunpack.c.l.b16 %v68
  %v171 = vunpack.c.l.b16 %v69
  %v172 = vunpack.c.l.b16 %v70
  %v173 = vunpack.c.l.b16 %v71
  %v174 = vunpack.c.l.b16 %v72
  %v175 = vunpack.c.l.b16 %v73
  %v176 = vunpack.c.l.b16 %v74
  %v177 = vunpack.c.l.b16 %v75
  %v178 = vunpack.c.l.b16 %v76
  %v179 = vpack.c.b16 %v144, %v143
  %v180 = vpack.c.b16 %v146, %v145
  %v181 = vpack.c.b16 %v148, %v147
  %v182 = vpack.c.b16 %v150, %v149
  %v183 = vpack.c.b16 %v152, %v151
  %v184 = vpack.c.b16 %v154, %v153
  %v185 = vpack.c.b16 %v156, %v155
  %v186 = vpack.c.b16 %v158, %v157
  %v187 = vpack.c.b16 %v160, %v159
  %v188 = vpack.c.b16 %v162, %v161
  %v189 = vpack.c.b16 %v164, %v163
  %v190 = vpack.c.b16 %v166, %v165
  %v191 = vpack.c.b16 %v168, %v167
  %v192 = vpack.c.b16 %v170, %v169
  %v193 = vpack.c.b16 %v172, %v171
  %v194 = vpack.c.b16 %v174, %v173
  %v195 = vpack.c.b16 %v176, %v175
  %v196 = vpack.c.b16 %v178, %v177
  %vm215 = vcmask 261120
  %v217 = vsel %vm215, %v99, 0
  %v220 = vsel %vm215, %v102, 0
  %222 = vmatpush.bf16.msra.mxu0 %v186
  %223 = vmatpush.bf16.msra.mxu0 %v185
  %224 = vmatpush.bf16.msra.mxu0 %v184
  %225 = vmatpush.bf16.msra.mxu0 %v183
  %226 = vmatpush.bf16.msra.mxu0 %v182
  %227 = vmatpush.bf16.msra.mxu0 %v181
  %228 = vmatpush.bf16.msra.mxu0 %v180
  %229 = vmatpush.bf16.msra.mxu0 %v179
  %230 = vmatmul.bf16.gmra.mxu0 %v97
  %v231 = vpop.f32.mrf.mxu0
  %v232 = vadd.f32 0.0, %v231
  %v233 = vpop.f32.mrf.mxu0
  %v234 = vadd.f32 0.0, %v233
  %235 = vmatmul.bf16.gmra.mxu0 %v100
  %v236 = vpop.f32.mrf.mxu0
  %v237 = vadd.f32 0.0, %v236
  %v238 = vpop.f32.mrf.mxu0
  %v239 = vadd.f32 0.0, %v238
  %240 = vdwg.mxu0
  %241 = vmatpush.bf16.msra.mxu0 %v194
  %242 = vmatpush.bf16.msra.mxu0 %v193
  %243 = vmatpush.bf16.msra.mxu0 %v192
  %244 = vmatpush.bf16.msra.mxu0 %v191
  %245 = vmatpush.bf16.msra.mxu0 %v190
  %246 = vmatpush.bf16.msra.mxu0 %v189
  %247 = vmatpush.bf16.msra.mxu0 %v188
  %248 = vmatpush.bf16.msra.mxu0 %v187
  %249 = vmatmul.bf16.gmra.mxu0 %v98
  %v250 = vpop.f32.mrf.mxu0
  %v251 = vadd.f32 %v232, %v250
  %v252 = vpop.f32.mrf.mxu0
  %v253 = vadd.f32 %v234, %v252
  %254 = vmatmul.bf16.gmra.mxu0 %v101
  %v255 = vpop.f32.mrf.mxu0
  %v256 = vadd.f32 %v237, %v255
  %v257 = vpop.f32.mrf.mxu0
  %v258 = vadd.f32 %v239, %v257
  %259 = vdwg.mxu0
  %260 = vmatpush.bf16.msra.mxu0 0
  %261 = vmatpush.bf16.msra.mxu0 0
  %262 = vmatpush.bf16.msra.mxu0 0
  %263 = vmatpush.bf16.msra.mxu0 0
  %264 = vmatpush.bf16.msra.mxu0 0
  %265 = vmatpush.bf16.msra.mxu0 0
  %266 = vmatpush.bf16.msra.mxu0 %v196
  %267 = vmatpush.bf16.msra.mxu0 %v195
  %268 = vmatmul.bf16.gmra.mxu0 %v217
  %v269 = vpop.f32.mrf.mxu0
  %v270 = vadd.f32 %v251, %v269
  %v271 = vpop.f32.mrf.mxu0
  %v272 = vadd.f32 %v253, %v271
  %273 = vmatmul.bf16.gmra.mxu0 %v220
  %v274 = vpop.f32.mrf.mxu0
  %v275 = vadd.f32 %v256, %v274
  %v276 = vpop.f32.mrf.mxu0
  %v277 = vadd.f32 %v258, %v276
  %278 = vdwg.mxu0
  %v279 = vadd.f32 %v29, %v270
  %v280 = vadd.f32 %v30, %v272
  %v281 = vadd.f32 %v31, %v275
  %v282 = vadd.f32 %v32, %v277
  %283 = vst [vmem:[#allocation2] sm:$0xff] %v279
  %284 = vst [vmem:[#allocation2 + $0x8] sm:$0xff] %v280
  %285 = vst [vmem:[#allocation2 + $0x10] sm:$0xff] %v281
  %286 = vst [vmem:[#allocation2 + $0x18] sm:$0xff] %v282
  // Predicated region
  $region26: #{_lambda_.18} parent=0 // pred_check
    %p287 = pneg %p21
  $region27: #{_lambda_.18} parent=0 // pred_check_branch
    %289 = sbr.rel (%p287) target = $region29
  $region28: #{_lambda_.18} parent=0 // pred_region
    %v290 = vld [vmem:[#allocation2] sm:$0xff]
    %v291 = vld [vmem:[#allocation2 + $0x8] sm:$0xff]
    %v292 = vld [vmem:[#allocation2 + $0x10] sm:$0xff]
    %v293 = vld [vmem:[#allocation2 + $0x18] sm:$0xff]
    %v294 = vld [vmem:[%s2] sm:$0x1]
    %v296 = vperm.slane %v294, 0
    %v298 = vmul.f32 %v290, %v296
    %v299 = vmul.f32 %v291, %v296
    %v300 = vmul.f32 %v292, %v296
    %v301 = vmul.f32 %v293, %v296
    %v302 = vld [vmem:[%s3] sm:$0x1]
    %v304 = vperm.slane %v302, 0
    %v306 = vadd.f32 %v298, %v304
    %v307 = vadd.f32 %v299, %v304
    %v308 = vadd.f32 %v300, %v304
    %v309 = vadd.f32 %v301, %v304
    %v310 = vld [vmem:[%s4] sm:$0xf]
    %v311 = vld [vmem:[%s4 + $0x4] sm:$0xf]
    %v312 = vld [vmem:[%s4 + $0x8] sm:$0xf]
    %v313 = vld [vmem:[%s4 + $0xc] sm:$0xf]
    %v314 = vunpack.c.l.bf16 %v310
    %v315 = vunpack.c.l.bf16 %v311
    %v316 = vunpack.c.l.bf16 %v312
    %v317 = vunpack.c.l.bf16 %v313
    %v318 = vadd.f32 %v306, %v314
    %v319 = vadd.f32 %v307, %v315
    %v320 = vadd.f32 %v308, %v316
    %v321 = vadd.f32 %v309, %v317
    %v322 = vmax.f32 %v318, 0.0
    %v323 = vmax.f32 %v319, 0.0
    %v324 = vmax.f32 %v320, 0.0
    %v325 = vmax.f32 %v321, 0.0
    %v326 = vpack.c.bf16 %v322, %v322
    %v327 = vpack.c.bf16 %v323, %v323
    %v328 = vpack.c.bf16 %v324, %v324
    %v329 = vpack.c.bf16 %v325, %v325
    %330 = vst [vmem:[%s5] sm:$0xf] %v326
    %331 = vst [vmem:[%s5 + $0x4] sm:$0xf] %v327
    %332 = vst [vmem:[%s5 + $0x8] sm:$0xf] %v328
    %333 = vst [vmem:[%s5 + $0xc] sm:$0xf] %v329
  $region29: #{_lambda_.18} parent=0 // pred_fallthru
    _
  // Predicated region
  $region30: #{_lambda_.18} parent=0 // pred_check
    _
  $region31: #{_lambda_.18} parent=0 // pred_check_branch
    %335 = sbr.rel (0) target = $region33
  $region32: #{_lambda_.18} parent=0 // pred_region
    _
  $region33: #{_lambda_.18} parent=0 // pred_fallthru
    _
  // Predicated region
  $region34: #{_lambda_.18} parent=0 // pred_check
    _
  $region35: #{_lambda_.18} parent=0 // pred_check_branch
    %337 = sbr.rel (0) target = $region37
  $region36: #{_lambda_.18} parent=0 // pred_region
    _
  $region37: #{_lambda_.18} parent=0 // pred_fallthru
    _

</llo_original>
